<compile_context>
chip_gen: v5e
topology: v5e:2x2
jax: 0.10.0
libtpu: 0.0.40
codegen_flags: <defaults>
</compile_context>

<pallas_src>
import math
import functools

import jax
import jax.numpy as jnp
from jax.experimental import pallas as pl
from jax.experimental.pallas import tpu as pltpu


# ----------------------------------------------------------------------------- helpers

def _erf_approx(x):
    # Abramowitz & Stegun 7.1.26 (max abs err ~1.5e-7), used for PyTorch's default
    # exact (erf-based) GELU inside the reweight MLP.
    # TODO(synk): switch to lax.erf if/when a native Mosaic lowering is guaranteed.
    p = 0.3275911
    a1, a2, a3, a4, a5 = 0.254829592, -0.284496736, 1.421413741, -1.453152027, 1.061405429
    ax = jnp.abs(x)
    t = 1.0 / (1.0 + p * ax)
    poly = ((((a5 * t + a4) * t + a3) * t + a2) * t + a1) * t
    y = 1.0 - poly * jnp.exp(-ax * ax)
    return jnp.where(x < 0, -y, y)


def _gelu_exact(x):
    return 0.5 * x * (1.0 + _erf_approx(x * (1.0 / math.sqrt(2.0))))


# ----------------------------------------------------------------------------- kernel

def patm_kernel(H, W, C, K,
                x_ref, wbig_ref, scale_ref, shift_ref, phase_ref,
                tapsw_ref, tapsh_ref,
                wr1_ref, br1_ref, wr2_ref, br2_ref,
                wp4_ref, wpc_ref, bp_ref,
                out_ref):
    HW = H * W
    pad = K // 2
    G = 4 * C

    # ---- single fused 1x1 projection: (HW, C) @ (C, 9C), bf16 in / f32 accumulate.
    # Column groups: [th_h|p0, th_h|p1, th_w|p0, th_w|p1,
    #                 fc_h|p0, fc_h|p1, fc_w|p0, fc_w|p1, fc_c]
    x = x_ref[0].astype(jnp.bfloat16)                                    # (HW, C)
    z = jnp.dot(x, wbig_ref[...], preferred_element_type=jnp.float32)    # (HW, 9C)

    # theta block: folded BN (eval) + conv bias, ReLU, then cos(. - phase) realizes
    # cos(theta) / sin(theta) per (permuted) channel group in one EUP pass.
    th = jnp.maximum(z[:, 0:G] * scale_ref[...] + shift_ref[...], 0.0)
    trig = jnp.cos(th - phase_ref[...])                                  # (HW, 4C)

    # phase-modulated projections, packed lane-dense as [u0_h | u1_h | u0_w | u1_w]
    u = z[:, G:2 * G] * trig                                             # (HW, 4C)
    x_c = z[:, 2 * G:2 * G + C]                                          # (HW, C)

    # ---- grouped (1,7)/(7,1) convs as 7 shifted per-channel multiply-adds (VPU),
    #      on the full 4C-wide block (h-taps and w-taps live in disjoint channel groups).
    w_pos = jax.lax.broadcasted_iota(jnp.int32, (HW, 1), 0) % W

    acc = jnp.zeros((HW, G), jnp.float32)
    for j in range(K):
        d = j - pad
        # (1,7): shift along W inside each image row -> XLU roll + boundary mask.
        if d == 0:
            sw = u
        else:
            sw = pltpu.roll(u, shift=(-d) % HW, axis=0)
            sw = jnp.where((w_pos + d >= 0) & (w_pos + d < W), sw, 0.0)
        acc = acc + sw * tapsw_ref[j:j + 1, :]
        # (7,1): shift along H == whole-row shift in the flat layout (tile aligned).
        if d == 0:
            sh = u
        elif d > 0:
            sh = jnp.concatenate(
                [u[d * W:, :], jnp.zeros((d * W, G), jnp.float32)], axis=0)
        else:
            sh = jnp.concatenate(
                [jnp.zeros((-d * W, G), jnp.float32), u[:HW + d * W, :]], axis=0)
        acc = acc + sh * tapsh_ref[j:j + 1, :]

    # ---- adaptive_avg_pool2d(h + w + c, 1): pool first, reduce the 4 groups after.
    p4 = jnp.sum(acc, axis=0, keepdims=True)                             # (1, 4C)
    pc = jnp.sum(x_c, axis=0, keepdims=True)                             # (1, C)
    pooled = (p4[:, 0:C] + p4[:, C:2 * C] + p4[:, 2 * C:3 * C] + p4[:, 3 * C:4 * C]
              + pc) * (1.0 / HW)                                         # (1, C)

    # ---- reweight MLP (1x1 convs on the pooled vector) + softmax over 3 paths.
    z1 = jnp.dot(pooled.astype(jnp.bfloat16), wr1_ref[...],
                 preferred_element_type=jnp.float32) + br1_ref[...]
    z1 = _gelu_exact(z1)
    z2 = jnp.dot(z1.astype(jnp.bfloat16), wr2_ref[...],
                 preferred_element_type=jnp.float32) + br2_ref[...]
    a0 = z2[:, 0:C]
    a1 = z2[:, C:2 * C]
    a2 = z2[:, 2 * C:3 * C]
    m = jnp.maximum(jnp.maximum(a0, a1), a2)
    e0 = jnp.exp(a0 - m)
    e1 = jnp.exp(a1 - m)
    e2 = jnp.exp(a2 - m)
    inv = 1.0 / (e0 + e1 + e2)
    att0, att1, att2 = e0 * inv, e1 * inv, e2 * inv                      # (1, C) each

    # ---- weighted combine folded into the final 1x1 projection:
    #      (h*a0 + w*a1) @ Wp == (acc * [a0|a0|a1|a1]) @ [Wp;Wp;Wp;Wp]
    a_ext = jnp.concatenate([att0, att0, att1, att1], axis=1)            # (1, 4C)
    m1 = (acc * a_ext).astype(jnp.bfloat16)
    m2 = (x_c * att2).astype(jnp.bfloat16)
    y = (jnp.dot(m1, wp4_ref[...], preferred_element_type=jnp.float32)
         + jnp.dot(m2, wpc_ref[...], preferred_element_type=jnp.float32)
         + bp_ref[...])
    out_ref[0] = y.astype(out_ref.dtype)


# ----------------------------------------------------------------------------- glue

PACKED_ORDER = ("w_big", "scale_th", "shift_th", "phase", "taps_w", "taps_h",
                "wr1", "br1", "wr2", "br2", "wp4", "wpc", "bp")


def _full_spec(shape):
    nd = len(shape)
    return pl.BlockSpec(shape, lambda b, _nd=nd: (0,) * _nd)


@jax.jit
def patm_forward(x_nchw, packed):
    """x_nchw: (B, C, H, W) float32 -> (B, C, H, W) float32 (PyTorch NCHW interface)."""
    B, C, H, W = x_nchw.shape
    K = packed["taps_w"].shape[0]
    # TODO(synk): keep the surrounding model NHWC to avoid this HBM transpose round trip.
    x = jnp.transpose(x_nchw, (0, 2, 3, 1)).reshape(B, H * W, C)

    kernel = functools.partial(patm_kernel, H, W, C, K)
    in_specs = [pl.BlockSpec((1, H * W, C), lambda b: (b, 0, 0))]
    args = [x]
    for name in PACKED_ORDER:
        p = packed[name]
        in_specs.append(_full_spec(p.shape))
        args.append(p)

    out = pl.pallas_call(
        kernel,
        out_shape=jax.ShapeDtypeStruct((B, H * W, C), jnp.float32),
        grid=(B,),
        in_specs=in_specs,
        out_specs=pl.BlockSpec((1, H * W, C), lambda b: (b, 0, 0)),
        compiler_params=pltpu.CompilerParams(
            # B >= 2 parallel steps keeps both v7x TensorCores busy (megacore sharding).
            dimension_semantics=("parallel",),
            vmem_limit_bytes=32 * 1024 * 1024),
    )(*args)

    return jnp.transpose(out.reshape(B, H, W, C), (0, 3, 1, 2))


def init_params(key, dim, kernel=7):
    """Random parameters, stored close to the torch module's own layout."""
    C, C4, K = dim, max(dim // 4, 1), kernel
    ks = list(jax.random.split(key, 24))

    def nrm(k, shape, scale):
        return scale * jax.random.normal(k, shape, dtype=jnp.float32)

    p = {}
    # theta_{h,w}_conv: Conv1x1(bias=True) + BatchNorm2d(eval) + ReLU
    p["w_th"] = nrm(ks[0], (C, C), 0.15)           # stored (Cin, Cout)
    p["b_th"] = nrm(ks[1], (C,), 0.05)
    p["bn_h_gamma"] = 1.0 + nrm(ks[2], (C,), 0.1)
    p["bn_h_beta"] = nrm(ks[3], (C,), 0.05)
    p["bn_h_mean"] = nrm(ks[4], (C,), 0.05)
    p["bn_h_var"] = jnp.abs(nrm(ks[5], (C,), 0.1)) + 1.0
    p["w_tw"] = nrm(ks[6], (C, C), 0.15)
    p["b_tw"] = nrm(ks[7], (C,), 0.05)
    p["bn_w_gamma"] = 1.0 + nrm(ks[8], (C,), 0.1)
    p["bn_w_beta"] = nrm(ks[9], (C,), 0.05)
    p["bn_w_mean"] = nrm(ks[10], (C,), 0.05)
    p["bn_w_var"] = jnp.abs(nrm(ks[11], (C,), 0.1)) + 1.0
    # fc_h / fc_w / fc_c (bias=False)
    p["w_fch"] = nrm(ks[12], (C, C), 0.15)
    p["w_fcw"] = nrm(ks[13], (C, C), 0.15)
    p["w_fcc"] = nrm(ks[14], (C, C), 0.15)
    # tfc_h (C, 2, 1, K) / tfc_w (C, 2, K, 1), squeezed to (C, 2, K)
    p["wt_h"] = nrm(ks[15], (C, 2, K), 0.25)
    p["wt_w"] = nrm(ks[16], (C, 2, K), 0.25)
    # reweight MLP
    p["wr1"] = nrm(ks[17], (C, C4), 0.2)
    p["br1"] = nrm(ks[18], (C4,), 0.05)
    p["wr2"] = nrm(ks[19], (C4, 3 * C), 0.2)       # torch channel order: c*3 + t
    p["br2"] = nrm(ks[20], (3 * C,), 0.05)
    # proj (bias=True)
    p["wp"] = nrm(ks[21], (C, C), 0.15)
    p["bp"] = nrm(ks[22], (C,), 0.05)
    return p


def pack_params(p, dim, kernel=7, eps=1e-5):
    """Preprocess module params into the fused / permuted kernel operands."""
    C, K = dim, kernel
    idx = jnp.arange(C)
    # Grouped conv group c reads concat channels (2c, 2c+1); concat is blocked
    # [x*cos | x*sin], so source channel = (2c+k) mod C and trig = cos if 2c+k < C else sin.
    perm0 = (2 * idx) % C
    perm1 = (2 * idx + 1) % C
    half_pi = jnp.float32(math.pi / 2.0)
    phase0 = jnp.where(2 * idx < C, 0.0, half_pi).astype(jnp.float32)       # cos(t - pi/2) = sin(t)
    phase1 = jnp.where(2 * idx + 1 < C, 0.0, half_pi).astype(jnp.float32)

    def fold_bn(gamma, beta, mean, var, conv_bias):
        scale = gamma / jnp.sqrt(var + eps)
        shift = beta - mean * scale + scale * conv_bias   # BN(conv + b) = scale*conv + shift
        return scale, shift

    sc_h, sh_h = fold_bn(p["bn_h_gamma"], p["bn_h_beta"], p["bn_h_mean"], p["bn_h_var"], p["b_th"])
    sc_w, sh_w = fold_bn(p["bn_w_gamma"], p["bn_w_beta"], p["bn_w_mean"], p["bn_w_var"], p["b_tw"])

    # Fused (C, 9C) projection weight.
    w_big = jnp.concatenate(
        [p["w_th"][:, perm0], p["w_th"][:, perm1],
         p["w_tw"][:, perm0], p["w_tw"][:, perm1],
         p["w_fch"][:, perm0], p["w_fch"][:, perm1],
         p["w_fcw"][:, perm0], p["w_fcw"][:, perm1],
         p["w_fcc"]], axis=1)

    scale_th = jnp.concatenate([sc_h[perm0], sc_h[perm1], sc_w[perm0], sc_w[perm1]])[None, :]
    shift_th = jnp.concatenate([sh_h[perm0], sh_h[perm1], sh_w[perm0], sh_w[perm1]])[None, :]
    phase = jnp.concatenate([phase0, phase1, phase0, phase1])[None, :]

    # Per-channel tap weights, padded to the 4C lane-packed block layout.
    zc = jnp.zeros((K, C), jnp.float32)
    taps_w = jnp.concatenate([p["wt_h"][:, 0, :].T, p["wt_h"][:, 1, :].T, zc, zc], axis=1)
    taps_h = jnp.concatenate([zc, zc, p["wt_w"][:, 0, :].T, p["wt_w"][:, 1, :].T], axis=1)

    # reweight fc2: reorder torch-interleaved (c*3 + t) -> blocked [path0 | path1 | path2]
    i3 = jnp.arange(3 * C)
    perm2 = (i3 % C) * 3 + i3 // C
    wr2 = p["wr2"][:, perm2]
    br2 = p["br2"][perm2][None, :]

    return {
        "w_big": w_big.astype(jnp.bfloat16),
        "scale_th": scale_th,
        "shift_th": shift_th,
        "phase": phase,
        "taps_w": taps_w,
        "taps_h": taps_h,
        "wr1": p["wr1"].astype(jnp.bfloat16),
        "br1": p["br1"][None, :],
        "wr2": wr2.astype(jnp.bfloat16),
        "br2": br2,
        "wp4": jnp.tile(p["wp"], (4, 1)).astype(jnp.bfloat16),   # [Wp;Wp;Wp;Wp]
        "wpc": p["wp"].astype(jnp.bfloat16),
        "bp": p["bp"][None, :],
    }


if __name__ == "__main__":
    B, C, H, W = 2, 32, 16, 16
    key = jax.random.PRNGKey(0)
    kx, kp = jax.random.split(key)
    x = jax.random.normal(kx, (B, C, H, W), dtype=jnp.float32)
    raw = init_params(kp, C)
    packed = pack_params(raw, C)

    y = patm_forward(x, packed)
    jax.block_until_ready(y)

    assert y.shape == (B, C, H, W), y.shape
    assert y.dtype == jnp.float32
    assert bool(jnp.all(jnp.isfinite(y)))
    print("KERNEL_OK")
</pallas_src>

<mosaic_0001>
module attributes {stable_mosaic.version = 11 : i64} {
  func.func @patm_kernel(%arg0: i32, %arg1: memref<1x256x32xf32, #tpu.memory_space<vmem>>, %arg2: memref<32x288xbf16, #tpu.memory_space<vmem>>, %arg3: memref<1x128xf32, #tpu.memory_space<vmem>>, %arg4: memref<1x128xf32, #tpu.memory_space<vmem>>, %arg5: memref<1x128xf32, #tpu.memory_space<vmem>>, %arg6: memref<7x128xf32, #tpu.memory_space<vmem>>, %arg7: memref<7x128xf32, #tpu.memory_space<vmem>>, %arg8: memref<32x8xbf16, #tpu.memory_space<vmem>>, %arg9: memref<1x8xf32, #tpu.memory_space<vmem>>, %arg10: memref<8x96xbf16, #tpu.memory_space<vmem>>, %arg11: memref<1x96xf32, #tpu.memory_space<vmem>>, %arg12: memref<128x32xbf16, #tpu.memory_space<vmem>>, %arg13: memref<32x32xbf16, #tpu.memory_space<vmem>>, %arg14: memref<1x32xf32, #tpu.memory_space<vmem>>, %arg15: memref<1x256x32xf32, #tpu.memory_space<vmem>>) attributes {dimension_semantics = [#tpu.dimension_semantics<parallel>], iteration_bounds = array<i64: 2>, scalar_prefetch = 0 : i64, scratch_operands = 0 : i64, tpu.core_type = #tpu.core_type<tc>, window_params = [{transform_indices = @transform_0, window_bounds = array<i64: 1, 256, 32>}, {pipeline_mode = #tpu.pipeline_mode<synchronous>, transform_indices = @transform_1, window_bounds = array<i64: 32, 288>}, {pipeline_mode = #tpu.pipeline_mode<synchronous>, transform_indices = @transform_2, window_bounds = array<i64: 1, 128>}, {pipeline_mode = #tpu.pipeline_mode<synchronous>, transform_indices = @transform_3, window_bounds = array<i64: 1, 128>}, {pipeline_mode = #tpu.pipeline_mode<synchronous>, transform_indices = @transform_4, window_bounds = array<i64: 1, 128>}, {pipeline_mode = #tpu.pipeline_mode<synchronous>, transform_indices = @transform_5, window_bounds = array<i64: 7, 128>}, {pipeline_mode = #tpu.pipeline_mode<synchronous>, transform_indices = @transform_6, window_bounds = array<i64: 7, 128>}, {pipeline_mode = #tpu.pipeline_mode<synchronous>, transform_indices = @transform_7, window_bounds = array<i64: 32, 8>}, {pipeline_mode = #tpu.pipeline_mode<synchronous>, transform_indices = @transform_8, window_bounds = array<i64: 1, 8>}, {pipeline_mode = #tpu.pipeline_mode<synchronous>, transform_indices = @transform_9, window_bounds = array<i64: 8, 96>}, {pipeline_mode = #tpu.pipeline_mode<synchronous>, transform_indices = @transform_10, window_bounds = array<i64: 1, 96>}, {pipeline_mode = #tpu.pipeline_mode<synchronous>, transform_indices = @transform_11, window_bounds = array<i64: 128, 32>}, {pipeline_mode = #tpu.pipeline_mode<synchronous>, transform_indices = @transform_12, window_bounds = array<i64: 32, 32>}, {pipeline_mode = #tpu.pipeline_mode<synchronous>, transform_indices = @transform_13, window_bounds = array<i64: 1, 32>}, {transform_indices = @transform_14, window_bounds = array<i64: 1, 256, 32>}]} {
    %c0 = arith.constant 0 : index
    %c0_0 = arith.constant 0 : index
    %c0_1 = arith.constant 0 : index
    %0 = vector.load %arg1[%c0, %c0_0, %c0_1] : memref<1x256x32xf32, #tpu.memory_space<vmem>>, vector<1x256x32xf32>
    %1 = vector.shape_cast %0 : vector<1x256x32xf32> to vector<256x32xf32>
    %2 = arith.truncf %1 : vector<256x32xf32> to vector<256x32xbf16>
    %c0_2 = arith.constant 0 : index
    %c0_3 = arith.constant 0 : index
    %3 = vector.load %arg2[%c0_2, %c0_3] : memref<32x288xbf16, #tpu.memory_space<vmem>>, vector<32x288xbf16>
    %cst = arith.constant dense<0.000000e+00> : vector<256x288xf32>
    %4 = tpu.matmul %2, %3, %cst {dimension_numbers = #tpu.dot_dimension_numbers<[1], [0], [0], [1], [0, 0, 1, 1], [], []>} : vector<256x32xbf16>, vector<32x288xbf16>, vector<256x288xf32> -> vector<256x288xf32>
    %5 = vector.extract_strided_slice %4 {offsets = [0, 0], sizes = [256, 128], strides = [1, 1]} : vector<256x288xf32> to vector<256x128xf32>
    %c0_4 = arith.constant 0 : index
    %c0_5 = arith.constant 0 : index
    %6 = vector.load %arg3[%c0_4, %c0_5] : memref<1x128xf32, #tpu.memory_space<vmem>>, vector<1x128xf32>
    %7 = vector.broadcast %6 : vector<1x128xf32> to vector<256x128xf32>
    %8 = arith.mulf %5, %7 : vector<256x128xf32>
    %c0_6 = arith.constant 0 : index
    %c0_7 = arith.constant 0 : index
    %9 = vector.load %arg4[%c0_6, %c0_7] : memref<1x128xf32, #tpu.memory_space<vmem>>, vector<1x128xf32>
    %10 = vector.broadcast %9 : vector<1x128xf32> to vector<256x128xf32>
    %11 = arith.addf %8, %10 : vector<256x128xf32>
    %cst_8 = arith.constant 0.000000e+00 : f32
    %12 = vector.broadcast %cst_8 : f32 to vector<256x128xf32>
    %13 = arith.maximumf %11, %12 : vector<256x128xf32>
    %c0_9 = arith.constant 0 : index
    %c0_10 = arith.constant 0 : index
    %14 = vector.load %arg5[%c0_9, %c0_10] : memref<1x128xf32, #tpu.memory_space<vmem>>, vector<1x128xf32>
    %15 = vector.broadcast %14 : vector<1x128xf32> to vector<256x128xf32>
    %16 = arith.subf %13, %15 : vector<256x128xf32>
    %17 = math.cos %16 : vector<256x128xf32>
    %18 = vector.extract_strided_slice %4 {offsets = [0, 128], sizes = [256, 128], strides = [1, 1]} : vector<256x288xf32> to vector<256x128xf32>
    %19 = arith.mulf %18, %17 : vector<256x128xf32>
    %20 = vector.extract_strided_slice %4 {offsets = [0, 256], sizes = [256, 32], strides = [1, 1]} : vector<256x288xf32> to vector<256x32xf32>
    %21 = tpu.iota {dimensions = array<i32: 0>} : vector<256x1xi32>
    %c16_i32 = arith.constant 16 : i32
    %c0_i32 = arith.constant 0 : i32
    %22 = arith.cmpi eq, %c16_i32, %c0_i32 : i32
    %c1_i32 = arith.constant 1 : i32
    %23 = arith.select %22, %c1_i32, %c16_i32 : i32
    %24 = vector.broadcast %23 : i32 to vector<256x1xi32>
    %25 = arith.remsi %21, %24 : vector<256x1xi32>
    %c0_i32_11 = arith.constant 0 : i32
    %26 = vector.broadcast %c0_i32_11 : i32 to vector<256x1xi32>
    %27 = arith.cmpi ne, %25, %26 : vector<256x1xi32>
    %c0_i32_12 = arith.constant 0 : i32
    %28 = vector.broadcast %c0_i32_12 : i32 to vector<256x1xi32>
    %29 = arith.cmpi slt, %25, %28 : vector<256x1xi32>
    %c0_i32_13 = arith.constant 0 : i32
    %30 = arith.cmpi slt, %23, %c0_i32_13 : i32
    %31 = vector.broadcast %30 : i1 to vector<256x1xi1>
    %32 = vector.broadcast %31 : vector<256x1xi1> to vector<256x1xi1>
    %33 = arith.xori %29, %32 : vector<256x1xi1>
    %34 = arith.andi %33, %27 : vector<256x1xi1>
    %35 = vector.broadcast %23 : i32 to vector<256x1xi32>
    %36 = arith.addi %25, %35 : vector<256x1xi32>
    %37 = arith.select %34, %36, %25 : vector<256x1xi1>, vector<256x1xi32>
    %cst_14 = arith.constant 0.000000e+00 : f32
    %38 = vector.broadcast %cst_14 : f32 to vector<256x128xf32>
    %c3_i32 = arith.constant 3 : i32
    %39 = tpu.dynamic_rotate %19 by %c3_i32 dim 0 : vector<256x128xf32>, i32 -> vector<256x128xf32>
    %c-3_i32 = arith.constant -3 : i32
    %40 = vector.broadcast %c-3_i32 : i32 to vector<256x1xi32>
    %41 = arith.addi %37, %40 : vector<256x1xi32>
    %c0_i32_15 = arith.constant 0 : i32
    %42 = vector.broadcast %c0_i32_15 : i32 to vector<256x1xi32>
    %43 = arith.cmpi sge, %41, %42 : vector<256x1xi32>
    %c-3_i32_16 = arith.constant -3 : i32
    %44 = vector.broadcast %c-3_i32_16 : i32 to vector<256x1xi32>
    %45 = arith.addi %37, %44 : vector<256x1xi32>
    %c16_i32_17 = arith.constant 16 : i32
    %46 = vector.broadcast %c16_i32_17 : i32 to vector<256x1xi32>
    %47 = arith.cmpi slt, %45, %46 : vector<256x1xi32>
    %48 = arith.andi %43, %47 : vector<256x1xi1>
    %cst_18 = arith.constant 0.000000e+00 : f32
    %49 = vector.shape_cast %48 : vector<256x1xi1> to vector<256x1xi1>
    %50 = vector.broadcast %49 : vector<256x1xi1> to vector<256x128xi1>
    %51 = vector.broadcast %cst_18 : f32 to vector<256x128xf32>
    %52 = arith.select %50, %39, %51 : vector<256x128xi1>, vector<256x128xf32>
    %c0_19 = arith.constant 0 : index
    %c0_20 = arith.constant 0 : index
    %53 = vector.load %arg6[%c0_19, %c0_20] : memref<7x128xf32, #tpu.memory_space<vmem>>, vector<1x128xf32>
    %54 = vector.broadcast %53 : vector<1x128xf32> to vector<256x128xf32>
    %55 = arith.mulf %52, %54 : vector<256x128xf32>
    %56 = arith.addf %38, %55 : vector<256x128xf32>
    %cst_21 = arith.constant 0.000000e+00 : f32
    %57 = vector.broadcast %cst_21 : f32 to vector<48x128xf32>
    %58 = vector.extract_strided_slice %19 {offsets = [0, 0], sizes = [208, 128], strides = [1, 1]} : vector<256x128xf32> to vector<208x128xf32>
    %59 = tpu.concatenate %57, %58 in 0 : vector<48x128xf32>, vector<208x128xf32> -> vector<256x128xf32>
    %c0_22 = arith.constant 0 : index
    %c0_23 = arith.constant 0 : index
    %60 = vector.load %arg7[%c0_22, %c0_23] : memref<7x128xf32, #tpu.memory_space<vmem>>, vector<1x128xf32>
    %61 = vector.broadcast %60 : vector<1x128xf32> to vector<256x128xf32>
    %62 = arith.mulf %59, %61 : vector<256x128xf32>
    %63 = arith.addf %56, %62 : vector<256x128xf32>
    %c2_i32 = arith.constant 2 : i32
    %64 = tpu.dynamic_rotate %19 by %c2_i32 dim 0 : vector<256x128xf32>, i32 -> vector<256x128xf32>
    %c-2_i32 = arith.constant -2 : i32
    %65 = vector.broadcast %c-2_i32 : i32 to vector<256x1xi32>
    %66 = arith.addi %37, %65 : vector<256x1xi32>
    %c0_i32_24 = arith.constant 0 : i32
    %67 = vector.broadcast %c0_i32_24 : i32 to vector<256x1xi32>
    %68 = arith.cmpi sge, %66, %67 : vector<256x1xi32>
    %c-2_i32_25 = arith.constant -2 : i32
    %69 = vector.broadcast %c-2_i32_25 : i32 to vector<256x1xi32>
    %70 = arith.addi %37, %69 : vector<256x1xi32>
    %c16_i32_26 = arith.constant 16 : i32
    %71 = vector.broadcast %c16_i32_26 : i32 to vector<256x1xi32>
    %72 = arith.cmpi slt, %70, %71 : vector<256x1xi32>
    %73 = arith.andi %68, %72 : vector<256x1xi1>
    %cst_27 = arith.constant 0.000000e+00 : f32
    %74 = vector.shape_cast %73 : vector<256x1xi1> to vector<256x1xi1>
    %75 = vector.broadcast %74 : vector<256x1xi1> to vector<256x128xi1>
    %76 = vector.broadcast %cst_27 : f32 to vector<256x128xf32>
    %77 = arith.select %75, %64, %76 : vector<256x128xi1>, vector<256x128xf32>
    %c1 = arith.constant 1 : index
    %c0_28 = arith.constant 0 : index
    %78 = vector.load %arg6[%c1, %c0_28] : memref<7x128xf32, #tpu.memory_space<vmem>>, vector<1x128xf32>
    %79 = vector.broadcast %78 : vector<1x128xf32> to vector<256x128xf32>
    %80 = arith.mulf %77, %79 : vector<256x128xf32>
    %81 = arith.addf %63, %80 : vector<256x128xf32>
    %cst_29 = arith.constant 0.000000e+00 : f32
    %82 = vector.broadcast %cst_29 : f32 to vector<32x128xf32>
    %83 = vector.extract_strided_slice %19 {offsets = [0, 0], sizes = [224, 128], strides = [1, 1]} : vector<256x128xf32> to vector<224x128xf32>
    %84 = tpu.concatenate %82, %83 in 0 : vector<32x128xf32>, vector<224x128xf32> -> vector<256x128xf32>
    %c1_30 = arith.constant 1 : index
    %c0_31 = arith.constant 0 : index
    %85 = vector.load %arg7[%c1_30, %c0_31] : memref<7x128xf32, #tpu.memory_space<vmem>>, vector<1x128xf32>
    %86 = vector.broadcast %85 : vector<1x128xf32> to vector<256x128xf32>
    %87 = arith.mulf %84, %86 : vector<256x128xf32>
    %88 = arith.addf %81, %87 : vector<256x128xf32>
    %c1_i32_32 = arith.constant 1 : i32
    %89 = tpu.dynamic_rotate %19 by %c1_i32_32 dim 0 : vector<256x128xf32>, i32 -> vector<256x128xf32>
    %c-1_i32 = arith.constant -1 : i32
    %90 = vector.broadcast %c-1_i32 : i32 to vector<256x1xi32>
    %91 = arith.addi %37, %90 : vector<256x1xi32>
    %c0_i32_33 = arith.constant 0 : i32
    %92 = vector.broadcast %c0_i32_33 : i32 to vector<256x1xi32>
    %93 = arith.cmpi sge, %91, %92 : vector<256x1xi32>
    %c-1_i32_34 = arith.constant -1 : i32
    %94 = vector.broadcast %c-1_i32_34 : i32 to vector<256x1xi32>
    %95 = arith.addi %37, %94 : vector<256x1xi32>
    %c16_i32_35 = arith.constant 16 : i32
    %96 = vector.broadcast %c16_i32_35 : i32 to vector<256x1xi32>
    %97 = arith.cmpi slt, %95, %96 : vector<256x1xi32>
    %98 = arith.andi %93, %97 : vector<256x1xi1>
    %cst_36 = arith.constant 0.000000e+00 : f32
    %99 = vector.shape_cast %98 : vector<256x1xi1> to vector<256x1xi1>
    %100 = vector.broadcast %99 : vector<256x1xi1> to vector<256x128xi1>
    %101 = vector.broadcast %cst_36 : f32 to vector<256x128xf32>
    %102 = arith.select %100, %89, %101 : vector<256x128xi1>, vector<256x128xf32>
    %c2 = arith.constant 2 : index
    %c0_37 = arith.constant 0 : index
    %103 = vector.load %arg6[%c2, %c0_37] : memref<7x128xf32, #tpu.memory_space<vmem>>, vector<1x128xf32>
    %104 = vector.broadcast %103 : vector<1x128xf32> to vector<256x128xf32>
    %105 = arith.mulf %102, %104 : vector<256x128xf32>
    %106 = arith.addf %88, %105 : vector<256x128xf32>
    %cst_38 = arith.constant 0.000000e+00 : f32
    %107 = vector.broadcast %cst_38 : f32 to vector<16x128xf32>
    %108 = vector.extract_strided_slice %19 {offsets = [0, 0], sizes = [240, 128], strides = [1, 1]} : vector<256x128xf32> to vector<240x128xf32>
    %109 = tpu.concatenate %107, %108 in 0 : vector<16x128xf32>, vector<240x128xf32> -> vector<256x128xf32>
    %c2_39 = arith.constant 2 : index
    %c0_40 = arith.constant 0 : index
    %110 = vector.load %arg7[%c2_39, %c0_40] : memref<7x128xf32, #tpu.memory_space<vmem>>, vector<1x128xf32>
    %111 = vector.broadcast %110 : vector<1x128xf32> to vector<256x128xf32>
    %112 = arith.mulf %109, %111 : vector<256x128xf32>
    %113 = arith.addf %106, %112 : vector<256x128xf32>
    %c3 = arith.constant 3 : index
    %c0_41 = arith.constant 0 : index
    %114 = vector.load %arg6[%c3, %c0_41] : memref<7x128xf32, #tpu.memory_space<vmem>>, vector<1x128xf32>
    %115 = vector.broadcast %114 : vector<1x128xf32> to vector<256x128xf32>
    %116 = arith.mulf %19, %115 : vector<256x128xf32>
    %117 = arith.addf %113, %116 : vector<256x128xf32>
    %c3_42 = arith.constant 3 : index
    %c0_43 = arith.constant 0 : index
    %118 = vector.load %arg7[%c3_42, %c0_43] : memref<7x128xf32, #tpu.memory_space<vmem>>, vector<1x128xf32>
    %119 = vector.broadcast %118 : vector<1x128xf32> to vector<256x128xf32>
    %120 = arith.mulf %19, %119 : vector<256x128xf32>
    %121 = arith.addf %117, %120 : vector<256x128xf32>
    %c255_i32 = arith.constant 255 : i32
    %122 = tpu.dynamic_rotate %19 by %c255_i32 dim 0 : vector<256x128xf32>, i32 -> vector<256x128xf32>
    %c1_i32_44 = arith.constant 1 : i32
    %123 = vector.broadcast %c1_i32_44 : i32 to vector<256x1xi32>
    %124 = arith.addi %37, %123 : vector<256x1xi32>
    %c0_i32_45 = arith.constant 0 : i32
    %125 = vector.broadcast %c0_i32_45 : i32 to vector<256x1xi32>
    %126 = arith.cmpi sge, %124, %125 : vector<256x1xi32>
    %c1_i32_46 = arith.constant 1 : i32
    %127 = vector.broadcast %c1_i32_46 : i32 to vector<256x1xi32>
    %128 = arith.addi %37, %127 : vector<256x1xi32>
    %c16_i32_47 = arith.constant 16 : i32
    %129 = vector.broadcast %c16_i32_47 : i32 to vector<256x1xi32>
    %130 = arith.cmpi slt, %128, %129 : vector<256x1xi32>
    %131 = arith.andi %126, %130 : vector<256x1xi1>
    %cst_48 = arith.constant 0.000000e+00 : f32
    %132 = vector.shape_cast %131 : vector<256x1xi1> to vector<256x1xi1>
    %133 = vector.broadcast %132 : vector<256x1xi1> to vector<256x128xi1>
    %134 = vector.broadcast %cst_48 : f32 to vector<256x128xf32>
    %135 = arith.select %133, %122, %134 : vector<256x128xi1>, vector<256x128xf32>
    %c4 = arith.constant 4 : index
    %c0_49 = arith.constant 0 : index
    %136 = vector.load %arg6[%c4, %c0_49] : memref<7x128xf32, #tpu.memory_space<vmem>>, vector<1x128xf32>
    %137 = vector.broadcast %136 : vector<1x128xf32> to vector<256x128xf32>
    %138 = arith.mulf %135, %137 : vector<256x128xf32>
    %139 = arith.addf %121, %138 : vector<256x128xf32>
    %140 = vector.extract_strided_slice %19 {offsets = [16, 0], sizes = [240, 128], strides = [1, 1]} : vector<256x128xf32> to vector<240x128xf32>
    %cst_50 = arith.constant 0.000000e+00 : f32
    %141 = vector.broadcast %cst_50 : f32 to vector<16x128xf32>
    %142 = tpu.concatenate %140, %141 in 0 : vector<240x128xf32>, vector<16x128xf32> -> vector<256x128xf32>
    %c4_51 = arith.constant 4 : index
    %c0_52 = arith.constant 0 : index
    %143 = vector.load %arg7[%c4_51, %c0_52] : memref<7x128xf32, #tpu.memory_space<vmem>>, vector<1x128xf32>
    %144 = vector.broadcast %143 : vector<1x128xf32> to vector<256x128xf32>
    %145 = arith.mulf %142, %144 : vector<256x128xf32>
    %146 = arith.addf %139, %145 : vector<256x128xf32>
    %c254_i32 = arith.constant 254 : i32
    %147 = tpu.dynamic_rotate %19 by %c254_i32 dim 0 : vector<256x128xf32>, i32 -> vector<256x128xf32>
    %c2_i32_53 = arith.constant 2 : i32
    %148 = vector.broadcast %c2_i32_53 : i32 to vector<256x1xi32>
    %149 = arith.addi %37, %148 : vector<256x1xi32>
    %c0_i32_54 = arith.constant 0 : i32
    %150 = vector.broadcast %c0_i32_54 : i32 to vector<256x1xi32>
    %151 = arith.cmpi sge, %149, %150 : vector<256x1xi32>
    %c2_i32_55 = arith.constant 2 : i32
    %152 = vector.broadcast %c2_i32_55 : i32 to vector<256x1xi32>
    %153 = arith.addi %37, %152 : vector<256x1xi32>
    %c16_i32_56 = arith.constant 16 : i32
    %154 = vector.broadcast %c16_i32_56 : i32 to vector<256x1xi32>
    %155 = arith.cmpi slt, %153, %154 : vector<256x1xi32>
    %156 = arith.andi %151, %155 : vector<256x1xi1>
    %cst_57 = arith.constant 0.000000e+00 : f32
    %157 = vector.shape_cast %156 : vector<256x1xi1> to vector<256x1xi1>
    %158 = vector.broadcast %157 : vector<256x1xi1> to vector<256x128xi1>
    %159 = vector.broadcast %cst_57 : f32 to vector<256x128xf32>
    %160 = arith.select %158, %147, %159 : vector<256x128xi1>, vector<256x128xf32>
    %c5 = arith.constant 5 : index
    %c0_58 = arith.constant 0 : index
    %161 = vector.load %arg6[%c5, %c0_58] : memref<7x128xf32, #tpu.memory_space<vmem>>, vector<1x128xf32>
    %162 = vector.broadcast %161 : vector<1x128xf32> to vector<256x128xf32>
    %163 = arith.mulf %160, %162 : vector<256x128xf32>
    %164 = arith.addf %146, %163 : vector<256x128xf32>
    %165 = vector.extract_strided_slice %19 {offsets = [32, 0], sizes = [224, 128], strides = [1, 1]} : vector<256x128xf32> to vector<224x128xf32>
    %cst_59 = arith.constant 0.000000e+00 : f32
    %166 = vector.broadcast %cst_59 : f32 to vector<32x128xf32>
    %167 = tpu.concatenate %165, %166 in 0 : vector<224x128xf32>, vector<32x128xf32> -> vector<256x128xf32>
    %c5_60 = arith.constant 5 : index
    %c0_61 = arith.constant 0 : index
    %168 = vector.load %arg7[%c5_60, %c0_61] : memref<7x128xf32, #tpu.memory_space<vmem>>, vector<1x128xf32>
    %169 = vector.broadcast %168 : vector<1x128xf32> to vector<256x128xf32>
    %170 = arith.mulf %167, %169 : vector<256x128xf32>
    %171 = arith.addf %164, %170 : vector<256x128xf32>
    %c253_i32 = arith.constant 253 : i32
    %172 = tpu.dynamic_rotate %19 by %c253_i32 dim 0 : vector<256x128xf32>, i32 -> vector<256x128xf32>
    %c3_i32_62 = arith.constant 3 : i32
    %173 = vector.broadcast %c3_i32_62 : i32 to vector<256x1xi32>
    %174 = arith.addi %37, %173 : vector<256x1xi32>
    %c0_i32_63 = arith.constant 0 : i32
    %175 = vector.broadcast %c0_i32_63 : i32 to vector<256x1xi32>
    %176 = arith.cmpi sge, %174, %175 : vector<256x1xi32>
    %c3_i32_64 = arith.constant 3 : i32
    %177 = vector.broadcast %c3_i32_64 : i32 to vector<256x1xi32>
    %178 = arith.addi %37, %177 : vector<256x1xi32>
    %c16_i32_65 = arith.constant 16 : i32
    %179 = vector.broadcast %c16_i32_65 : i32 to vector<256x1xi32>
    %180 = arith.cmpi slt, %178, %179 : vector<256x1xi32>
    %181 = arith.andi %176, %180 : vector<256x1xi1>
    %cst_66 = arith.constant 0.000000e+00 : f32
    %182 = vector.shape_cast %181 : vector<256x1xi1> to vector<256x1xi1>
    %183 = vector.broadcast %182 : vector<256x1xi1> to vector<256x128xi1>
    %184 = vector.broadcast %cst_66 : f32 to vector<256x128xf32>
    %185 = arith.select %183, %172, %184 : vector<256x128xi1>, vector<256x128xf32>
    %c6 = arith.constant 6 : index
    %c0_67 = arith.constant 0 : index
    %186 = vector.load %arg6[%c6, %c0_67] : memref<7x128xf32, #tpu.memory_space<vmem>>, vector<1x128xf32>
    %187 = vector.broadcast %186 : vector<1x128xf32> to vector<256x128xf32>
    %188 = arith.mulf %185, %187 : vector<256x128xf32>
    %189 = arith.addf %171, %188 : vector<256x128xf32>
    %190 = vector.extract_strided_slice %19 {offsets = [48, 0], sizes = [208, 128], strides = [1, 1]} : vector<256x128xf32> to vector<208x128xf32>
    %cst_68 = arith.constant 0.000000e+00 : f32
    %191 = vector.broadcast %cst_68 : f32 to vector<48x128xf32>
    %192 = tpu.concatenate %190, %191 in 0 : vector<208x128xf32>, vector<48x128xf32> -> vector<256x128xf32>
    %c6_69 = arith.constant 6 : index
    %c0_70 = arith.constant 0 : index
    %193 = vector.load %arg7[%c6_69, %c0_70] : memref<7x128xf32, #tpu.memory_space<vmem>>, vector<1x128xf32>
    %194 = vector.broadcast %193 : vector<1x128xf32> to vector<256x128xf32>
    %195 = arith.mulf %192, %194 : vector<256x128xf32>
    %196 = arith.addf %189, %195 : vector<256x128xf32>
    %cst_71 = arith.constant dense<0.000000e+00> : vector<128xf32>
    %197 = vector.multi_reduction <add>, %196, %cst_71 [0] : vector<256x128xf32> to vector<128xf32>
    %198 = vector.shape_cast %197 : vector<128xf32> to vector<1x128xf32>
    %cst_72 = arith.constant dense<0.000000e+00> : vector<32xf32>
    %199 = vector.multi_reduction <add>, %20, %cst_72 [0] : vector<256x32xf32> to vector<32xf32>
    %200 = vector.shape_cast %199 : vector<32xf32> to vector<1x32xf32>
    %201 = vector.extract_strided_slice %198 {offsets = [0, 0], sizes = [1, 32], strides = [1, 1]} : vector<1x128xf32> to vector<1x32xf32>
    %202 = vector.extract_strided_slice %198 {offsets = [0, 32], sizes = [1, 32], strides = [1, 1]} : vector<1x128xf32> to vector<1x32xf32>
    %203 = arith.addf %201, %202 : vector<1x32xf32>
    %204 = vector.extract_strided_slice %198 {offsets = [0, 64], sizes = [1, 32], strides = [1, 1]} : vector<1x128xf32> to vector<1x32xf32>
    %205 = arith.addf %203, %204 : vector<1x32xf32>
    %206 = vector.extract_strided_slice %198 {offsets = [0, 96], sizes = [1, 32], strides = [1, 1]} : vector<1x128xf32> to vector<1x32xf32>
    %207 = arith.addf %205, %206 : vector<1x32xf32>
    %208 = arith.addf %207, %200 : vector<1x32xf32>
    %cst_73 = arith.constant 3.906250e-03 : f32
    %209 = vector.broadcast %cst_73 : f32 to vector<1x32xf32>
    %210 = arith.mulf %208, %209 : vector<1x32xf32>
    %211 = arith.truncf %210 : vector<1x32xf32> to vector<1x32xbf16>
    %c0_74 = arith.constant 0 : index
    %c0_75 = arith.constant 0 : index
    %212 = vector.load %arg8[%c0_74, %c0_75] : memref<32x8xbf16, #tpu.memory_space<vmem>>, vector<32x8xbf16>
    %cst_76 = arith.constant dense<0.000000e+00> : vector<1x8xf32>
    %213 = tpu.matmul %211, %212, %cst_76 {dimension_numbers = #tpu.dot_dimension_numbers<[1], [0], [0], [1], [0, 0, 1, 1], [], []>} : vector<1x32xbf16>, vector<32x8xbf16>, vector<1x8xf32> -> vector<1x8xf32>
    %c0_77 = arith.constant 0 : index
    %c0_78 = arith.constant 0 : index
    %214 = vector.load %arg9[%c0_77, %c0_78] : memref<1x8xf32, #tpu.memory_space<vmem>>, vector<1x8xf32>
    %215 = arith.addf %213, %214 : vector<1x8xf32>
    %cst_79 = arith.constant 5.000000e-01 : f32
    %216 = vector.broadcast %cst_79 : f32 to vector<1x8xf32>
    %217 = arith.mulf %216, %215 : vector<1x8xf32>
    %cst_80 = arith.constant 0.707106769 : f32
    %218 = vector.broadcast %cst_80 : f32 to vector<1x8xf32>
    %219 = arith.mulf %215, %218 : vector<1x8xf32>
    %220 = math.absf %219 : vector<1x8xf32>
    %cst_81 = arith.constant 0.327591091 : f32
    %221 = vector.broadcast %cst_81 : f32 to vector<1x8xf32>
    %222 = arith.mulf %221, %220 : vector<1x8xf32>
    %cst_82 = arith.constant 1.000000e+00 : f32
    %223 = vector.broadcast %cst_82 : f32 to vector<1x8xf32>
    %224 = arith.addf %223, %222 : vector<1x8xf32>
    %cst_83 = arith.constant 1.000000e+00 : f32
    %225 = vector.broadcast %cst_83 : f32 to vector<1x8xf32>
    %226 = arith.divf %225, %224 : vector<1x8xf32>
    %cst_84 = arith.constant 1.06140542 : f32
    %227 = vector.broadcast %cst_84 : f32 to vector<1x8xf32>
    %228 = arith.mulf %227, %226 : vector<1x8xf32>
    %cst_85 = arith.constant -1.45315206 : f32
    %229 = vector.broadcast %cst_85 : f32 to vector<1x8xf32>
    %230 = arith.addf %228, %229 : vector<1x8xf32>
    %231 = arith.mulf %230, %226 : vector<1x8xf32>
    %cst_86 = arith.constant 1.42141378 : f32
    %232 = vector.broadcast %cst_86 : f32 to vector<1x8xf32>
    %233 = arith.addf %231, %232 : vector<1x8xf32>
    %234 = arith.mulf %233, %226 : vector<1x8xf32>
    %cst_87 = arith.constant -0.284496725 : f32
    %235 = vector.broadcast %cst_87 : f32 to vector<1x8xf32>
    %236 = arith.addf %234, %235 : vector<1x8xf32>
    %237 = arith.mulf %236, %226 : vector<1x8xf32>
    %cst_88 = arith.constant 0.254829586 : f32
    %238 = vector.broadcast %cst_88 : f32 to vector<1x8xf32>
    %239 = arith.addf %237, %238 : vector<1x8xf32>
    %240 = arith.mulf %239, %226 : vector<1x8xf32>
    %cst_89 = arith.constant 0.000000e+00 : f32
    %241 = vector.broadcast %cst_89 : f32 to vector<1x8xf32>
    %242 = arith.subf %241, %220 : vector<1x8xf32>
    %243 = arith.mulf %242, %220 : vector<1x8xf32>
    %244 = math.exp %243 : vector<1x8xf32>
    %245 = arith.mulf %240, %244 : vector<1x8xf32>
    %cst_90 = arith.constant 1.000000e+00 : f32
    %246 = vector.broadcast %cst_90 : f32 to vector<1x8xf32>
    %247 = arith.subf %246, %245 : vector<1x8xf32>
    %cst_91 = arith.constant 0.000000e+00 : f32
    %248 = vector.broadcast %cst_91 : f32 to vector<1x8xf32>
    %249 = arith.cmpf olt, %219, %248 : vector<1x8xf32>
    %cst_92 = arith.constant 0.000000e+00 : f32
    %250 = vector.broadcast %cst_92 : f32 to vector<1x8xf32>
    %251 = arith.subf %250, %247 : vector<1x8xf32>
    %252 = arith.select %249, %251, %247 : vector<1x8xi1>, vector<1x8xf32>
    %cst_93 = arith.constant 1.000000e+00 : f32
    %253 = vector.broadcast %cst_93 : f32 to vector<1x8xf32>
    %254 = arith.addf %253, %252 : vector<1x8xf32>
    %255 = arith.mulf %217, %254 : vector<1x8xf32>
    %256 = arith.truncf %255 : vector<1x8xf32> to vector<1x8xbf16>
    %c0_94 = arith.constant 0 : index
    %c0_95 = arith.constant 0 : index
    %257 = vector.load %arg10[%c0_94, %c0_95] : memref<8x96xbf16, #tpu.memory_space<vmem>>, vector<8x96xbf16>
    %cst_96 = arith.constant dense<0.000000e+00> : vector<1x96xf32>
    %258 = tpu.matmul %256, %257, %cst_96 {dimension_numbers = #tpu.dot_dimension_numbers<[1], [0], [0], [1], [0, 0, 1, 1], [], []>} : vector<1x8xbf16>, vector<8x96xbf16>, vector<1x96xf32> -> vector<1x96xf32>
    %c0_97 = arith.constant 0 : index
    %c0_98 = arith.constant 0 : index
    %259 = vector.load %arg11[%c0_97, %c0_98] : memref<1x96xf32, #tpu.memory_space<vmem>>, vector<1x96xf32>
    %260 = arith.addf %258, %259 : vector<1x96xf32>
    %261 = vector.extract_strided_slice %260 {offsets = [0, 0], sizes = [1, 32], strides = [1, 1]} : vector<1x96xf32> to vector<1x32xf32>
    %262 = vector.extract_strided_slice %260 {offsets = [0, 32], sizes = [1, 32], strides = [1, 1]} : vector<1x96xf32> to vector<1x32xf32>
    %263 = vector.extract_strided_slice %260 {offsets = [0, 64], sizes = [1, 32], strides = [1, 1]} : vector<1x96xf32> to vector<1x32xf32>
    %264 = arith.maximumf %261, %262 : vector<1x32xf32>
    %265 = arith.maximumf %264, %263 : vector<1x32xf32>
    %266 = arith.subf %261, %265 : vector<1x32xf32>
    %267 = math.exp %266 : vector<1x32xf32>
    %268 = arith.subf %262, %265 : vector<1x32xf32>
    %269 = math.exp %268 : vector<1x32xf32>
    %270 = arith.subf %263, %265 : vector<1x32xf32>
    %271 = math.exp %270 : vector<1x32xf32>
    %272 = arith.addf %267, %269 : vector<1x32xf32>
    %273 = arith.addf %272, %271 : vector<1x32xf32>
    %cst_99 = arith.constant 1.000000e+00 : f32
    %274 = vector.broadcast %cst_99 : f32 to vector<1x32xf32>
    %275 = arith.divf %274, %273 : vector<1x32xf32>
    %276 = arith.mulf %267, %275 : vector<1x32xf32>
    %277 = arith.mulf %269, %275 : vector<1x32xf32>
    %278 = arith.mulf %271, %275 : vector<1x32xf32>
    %279 = tpu.concatenate %276, %276, %277, %277 in 1 : vector<1x32xf32>, vector<1x32xf32>, vector<1x32xf32>, vector<1x32xf32> -> vector<1x128xf32>
    %280 = vector.broadcast %279 : vector<1x128xf32> to vector<256x128xf32>
    %281 = arith.mulf %196, %280 : vector<256x128xf32>
    %282 = arith.truncf %281 : vector<256x128xf32> to vector<256x128xbf16>
    %283 = vector.broadcast %278 : vector<1x32xf32> to vector<256x32xf32>
    %284 = arith.mulf %20, %283 : vector<256x32xf32>
    %285 = arith.truncf %284 : vector<256x32xf32> to vector<256x32xbf16>
    %c0_100 = arith.constant 0 : index
    %c0_101 = arith.constant 0 : index
    %286 = vector.load %arg12[%c0_100, %c0_101] : memref<128x32xbf16, #tpu.memory_space<vmem>>, vector<128x32xbf16>
    %cst_102 = arith.constant dense<0.000000e+00> : vector<256x32xf32>
    %287 = tpu.matmul %282, %286, %cst_102 {dimension_numbers = #tpu.dot_dimension_numbers<[1], [0], [0], [1], [0, 0, 1, 1], [], []>} : vector<256x128xbf16>, vector<128x32xbf16>, vector<256x32xf32> -> vector<256x32xf32>
    %c0_103 = arith.constant 0 : index
    %c0_104 = arith.constant 0 : index
    %288 = vector.load %arg13[%c0_103, %c0_104] : memref<32x32xbf16, #tpu.memory_space<vmem>>, vector<32x32xbf16>
    %cst_105 = arith.constant dense<0.000000e+00> : vector<256x32xf32>
    %289 = tpu.matmul %285, %288, %cst_105 {dimension_numbers = #tpu.dot_dimension_numbers<[1], [0], [0], [1], [0, 0, 1, 1], [], []>} : vector<256x32xbf16>, vector<32x32xbf16>, vector<256x32xf32> -> vector<256x32xf32>
    %290 = arith.addf %287, %289 : vector<256x32xf32>
    %c0_106 = arith.constant 0 : index
    %c0_107 = arith.constant 0 : index
    %291 = vector.load %arg14[%c0_106, %c0_107] : memref<1x32xf32, #tpu.memory_space<vmem>>, vector<1x32xf32>
    %292 = vector.broadcast %291 : vector<1x32xf32> to vector<256x32xf32>
    %293 = arith.addf %290, %292 : vector<256x32xf32>
    %c0_108 = arith.constant 0 : index
    %c0_109 = arith.constant 0 : index
    %c0_110 = arith.constant 0 : index
    %294 = vector.load %arg15[%c0_108, %c0_109, %c0_110] : memref<1x256x32xf32, #tpu.memory_space<vmem>>, vector<1x256x32xf32>
    %295 = vector.shape_cast %294 : vector<1x256x32xf32> to vector<256x32xf32>
    %296 = vector.shape_cast %293 : vector<256x32xf32> to vector<1x256x32xf32>
    tpu.vector_store %arg15[%c0_108, %c0_109, %c0_110], %296 {strides = array<i32>} : memref<1x256x32xf32, #tpu.memory_space<vmem>>, vector<1x256x32xf32>,
    return
  }
  func.func @transform_0(%arg0: i32) -> (i32, i32, i32) {
    %c0_i32 = arith.constant 0 : i32
    %c0_i32_0 = arith.constant 0 : i32
    %c0_i32_1 = arith.constant 0 : i32
    return %arg0, %c0_i32, %c0_i32_0 : i32, i32, i32
  }
  func.func @transform_1(%arg0: i32) -> (i32, i32) {
    %c0_i32 = arith.constant 0 : i32
    %c0_i32_0 = arith.constant 0 : i32
    %c0_i32_1 = arith.constant 0 : i32
    return %c0_i32, %c0_i32_0 : i32, i32
  }
  func.func @transform_2(%arg0: i32) -> (i32, i32) {
    %c0_i32 = arith.constant 0 : i32
    %c0_i32_0 = arith.constant 0 : i32
    %c0_i32_1 = arith.constant 0 : i32
    return %c0_i32, %c0_i32_0 : i32, i32
  }
  func.func @transform_3(%arg0: i32) -> (i32, i32) {
    %c0_i32 = arith.constant 0 : i32
    %c0_i32_0 = arith.constant 0 : i32
    %c0_i32_1 = arith.constant 0 : i32
    return %c0_i32, %c0_i32_0 : i32, i32
  }
  func.func @transform_4(%arg0: i32) -> (i32, i32) {
    %c0_i32 = arith.constant 0 : i32
    %c0_i32_0 = arith.constant 0 : i32
    %c0_i32_1 = arith.constant 0 : i32
    return %c0_i32, %c0_i32_0 : i32, i32
  }
  func.func @transform_5(%arg0: i32) -> (i32, i32) {
    %c0_i32 = arith.constant 0 : i32
    %c0_i32_0 = arith.constant 0 : i32
    %c0_i32_1 = arith.constant 0 : i32
    return %c0_i32, %c0_i32_0 : i32, i32
  }
  func.func @transform_6(%arg0: i32) -> (i32, i32) {
    %c0_i32 = arith.constant 0 : i32
    %c0_i32_0 = arith.constant 0 : i32
    %c0_i32_1 = arith.constant 0 : i32
    return %c0_i32, %c0_i32_0 : i32, i32
  }
  func.func @transform_7(%arg0: i32) -> (i32, i32) {
    %c0_i32 = arith.constant 0 : i32
    %c0_i32_0 = arith.constant 0 : i32
    %c0_i32_1 = arith.constant 0 : i32
    return %c0_i32, %c0_i32_0 : i32, i32
  }
  func.func @transform_8(%arg0: i32) -> (i32, i32) {
    %c0_i32 = arith.constant 0 : i32
    %c0_i32_0 = arith.constant 0 : i32
    %c0_i32_1 = arith.constant 0 : i32
    return %c0_i32, %c0_i32_0 : i32, i32
  }
  func.func @transform_9(%arg0: i32) -> (i32, i32) {
    %c0_i32 = arith.constant 0 : i32
    %c0_i32_0 = arith.constant 0 : i32
    %c0_i32_1 = arith.constant 0 : i32
    return %c0_i32, %c0_i32_0 : i32, i32
  }
  func.func @transform_10(%arg0: i32) -> (i32, i32) {
    %c0_i32 = arith.constant 0 : i32
    %c0_i32_0 = arith.constant 0 : i32
    %c0_i32_1 = arith.constant 0 : i32
    return %c0_i32, %c0_i32_0 : i32, i32
  }
  func.func @transform_11(%arg0: i32) -> (i32, i32) {
    %c0_i32 = arith.constant 0 : i32
    %c0_i32_0 = arith.constant 0 : i32
    %c0_i32_1 = arith.constant 0 : i32
    return %c0_i32, %c0_i32_0 : i32, i32
  }
  func.func @transform_12(%arg0: i32) -> (i32, i32) {
    %c0_i32 = arith.constant 0 : i32
    %c0_i32_0 = arith.constant 0 : i32
    %c0_i32_1 = arith.constant 0 : i32
    return %c0_i32, %c0_i32_0 : i32, i32
  }
  func.func @transform_13(%arg0: i32) -> (i32, i32) {
    %c0_i32 = arith.constant 0 : i32
    %c0_i32_0 = arith.constant 0 : i32
    %c0_i32_1 = arith.constant 0 : i32
    return %c0_i32, %c0_i32_0 : i32, i32
  }
  func.func @transform_14(%arg0: i32) -> (i32, i32, i32) {
    %c0_i32 = arith.constant 0 : i32
    %c0_i32_0 = arith.constant 0 : i32
    %c0_i32_1 = arith.constant 0 : i32
    return %arg0, %c0_i32, %c0_i32_0 : i32, i32, i32
  }
}

</mosaic_0001>

<llo_original>
// kernel: patm_forward.1
$region0: #{patm_forward.1}
  #allocation0 [shape = 'u32[]', space=smem, size = 0x4, offset = 0x4, fixed_abs, tag = 'smem constant byte address 0x4 - core index']
  #allocation1 [shape = 'u32[72,128]{1,0:T(1,128)}', space=vmem, size = 0x9000, scoped, tag = 'internal scratch']
  %s0 = inlined_call_operand.hbm [shape: f32[2,256,32], index: 0, kind: input, shape index: {}]
  %s1 = inlined_call_operand.vmem [shape: bf16[32,288], index: 1, kind: input, shape index: {}]
  %s2 = inlined_call_operand.vmem [shape: f32[1,128], index: 2, kind: input, shape index: {}]
  %s3 = inlined_call_operand.vmem [shape: f32[1,128], index: 3, kind: input, shape index: {}]
  %s4 = inlined_call_operand.vmem [shape: f32[1,128], index: 4, kind: input, shape index: {}]
  %s5 = inlined_call_operand.vmem [shape: f32[7,128], index: 5, kind: input, shape index: {}]
  %s6 = inlined_call_operand.vmem [shape: f32[7,128], index: 6, kind: input, shape index: {}]
  %s7 = inlined_call_operand.vmem [shape: bf16[32,8], index: 7, kind: input, shape index: {}]
  %s8 = inlined_call_operand.vmem [shape: f32[1,8], index: 8, kind: input, shape index: {}]
  %s9 = inlined_call_operand.vmem [shape: bf16[8,96], index: 9, kind: input, shape index: {}]
  %s10 = inlined_call_operand.vmem [shape: f32[1,96], index: 10, kind: input, shape index: {}]
  %s11 = inlined_call_operand.vmem [shape: bf16[128,32], index: 11, kind: input, shape index: {}]
  %s12 = inlined_call_operand.vmem [shape: bf16[32,32], index: 12, kind: input, shape index: {}]
  %s13 = inlined_call_operand.vmem [shape: f32[1,32], index: 13, kind: input, shape index: {}]
  %s14 = inlined_call_operand.hbm [shape: f32[2,256,32], index: 14, kind: output, shape index: {}]
  %s15 = sld [smem:[#allocation0]]
  $region93: #{patm_forward.1} parent=0
    _
  %s17 = ssub.s32 1, %s15
  %s18 = scalar_select 0, %s17, %s15
  $region1: #{patm_forward.1} parent=0
    #allocation2 [shape = 'u8[262144]{0}', space=vmem, size = 0x40000, scoped, tag = 'input window, operand 0']
    #allocation3 [shape = 's32[2]{0}', space=sflag, size = 0x8, scoped, tag = 'scoped memory for patm_forward.1']
    #allocation4 [shape = 's32[2]{0}', space=sflag, size = 0x8, scoped, tag = 'scoped memory for patm_forward.1']
    #allocation5 [shape = 'u8[262144]{0}', space=vmem, size = 0x40000, scoped, tag = 'output window, operand 0']
    %19 = vsyncpa [#allocation3], 0
    %s20 = scalar_lea.sflag [#allocation3], 1
    %21 = vsyncpa %s20, 0
    %22 = vsyncpa [#allocation4], 0
    %s23 = scalar_lea.sflag [#allocation4], 1
    %24 = vsyncpa %s23, 0
    loop: start=0, step=1, limit=4
    $region2: #{patm_forward.1} parent=1 // loop_pre_header
      _
    $region3: #{patm_forward.1} parent=1 // loop_header
      %s26 = sphi 0, %s30
      %p27 = scmp.ge.s32.totalorder %s26, 4
      %s36 = sphi 0, %s38
      %s39 = sphi 0, %s36
      %s40 = sphi 0, %s39
      %s56 = sphi 0, %s40
      %s60 = sphi 0, %s60
      %s62 = sphi 0, %s60
      %s63 = sphi 0, %s62
      %s77 = sphi 0, %s63
      %s81 = sphi 0, %s81
      %s83 = sphi 0, %s81
      %s84 = sphi 0, %s83
      %s98 = sphi 0, %s84
      %s102 = sphi 0, %s102
      %s104 = sphi 0, %s102
      %s105 = sphi 0, %s104
      %s119 = sphi 0, %s105
      %s123 = sphi 0, %s123
      %s125 = sphi 0, %s123
      %s126 = sphi 0, %s125
      %s140 = sphi 0, %s126
      %s144 = sphi 0, %s144
      %s146 = sphi 0, %s144
      %s147 = sphi 0, %s146
      %s161 = sphi 0, %s147
      %s165 = sphi 0, %s165
      %s167 = sphi 0, %s165
      %s168 = sphi 0, %s167
      %s182 = sphi 0, %s168
      %s186 = sphi 0, %s186
      %s188 = sphi 0, %s186
      %s189 = sphi 0, %s188
      %s203 = sphi 0, %s189
      %s207 = sphi 0, %s207
      %s209 = sphi 0, %s207
      %s210 = sphi 0, %s209
      %s224 = sphi 0, %s210
      %s228 = sphi 0, %s228
      %s230 = sphi 0, %s228
      %s231 = sphi 0, %s230
      %s245 = sphi 0, %s231
      %s249 = sphi 0, %s249
      %s251 = sphi 0, %s249
      %s252 = sphi 0, %s251
      %s266 = sphi 0, %s252
      %s270 = sphi 0, %s270
      %s272 = sphi 0, %s270
      %s273 = sphi 0, %s272
      %s287 = sphi 0, %s273
      %s291 = sphi 0, %s291
      %s293 = sphi 0, %s291
      %s294 = sphi 0, %s293
      %s308 = sphi 0, %s294
      %s312 = sphi 0, %s312
      %s314 = sphi 0, %s312
      %s315 = sphi 0, %s314
      %s329 = sphi 0, %s315
      %s335 = sphi 0, %s337
      %s338 = sphi 0, %s335
      %s339 = sphi 0, %s338
      %s355 = sphi 0, %s339
    $region4: #{patm_forward.1} parent=1 // loop_header_branch
      %29 = sbr.rel (%p27) target = $region8
    $region5: #{patm_forward.1} parent=1 // loop_body
      %s31 = ssub.s32 %s26, 1
      %s32 = ssub.s32 %s26, 2
      %s33 = sadd.s32 %s26, 1
      %s34 = ssub.s32 %s26, %s33
      %p35 = scmp.eq.s32.totalorder %s34, 0
      %s37 = sadd.s32 %s36, 1
      %s38 = scalar_select %p35, %s36, %s37
      %p41 = pneg %p35
      %p42 = scmp.eq.s32.totalorder %s26, 1
      %p43 = por %p41, %p42
      %p44 = scmp.ne.s32.totalorder %s36, %s39
      %p45 = scmp.eq.s32.totalorder %s26, 0
      %p46 = por %p44, %p45
      %p47 = scmp.ne.s32.totalorder %s36, %s39
      %p48 = scmp.eq.s32.totalorder %s31, 1
      %p49 = por %p47, %p48
      %p50 = scmp.ne.s32.totalorder %s39, %s40
      %p51 = scmp.eq.s32.totalorder %s31, 0
      %p52 = por %p50, %p51
      %p53 = scmp.ne.s32.totalorder %s39, %s40
      %p54 = scmp.eq.s32.totalorder %s32, 1
      %p55 = por %p53, %p54
      %p57 = scmp.ne.s32.totalorder %s40, %s56
      %p58 = scmp.eq.s32.totalorder %s32, 0
      %p59 = por %p57, %p58
      %s61 = sadd.s32 %s60, 1
      %p64 = scmp.eq.s32.totalorder %s26, 1
      %p65 = scmp.ne.s32.totalorder %s60, %s62
      %p66 = scmp.eq.s32.totalorder %s26, 0
      %p67 = por %p65, %p66
      %p68 = scmp.ne.s32.totalorder %s60, %s62
      %p69 = scmp.eq.s32.totalorder %s31, 1
      %p70 = por %p68, %p69
      %p71 = scmp.ne.s32.totalorder %s62, %s63
      %p72 = scmp.eq.s32.totalorder %s31, 0
      %p73 = por %p71, %p72
      %p74 = scmp.ne.s32.totalorder %s62, %s63
      %p75 = scmp.eq.s32.totalorder %s32, 1
      %p76 = por %p74, %p75
      %p78 = scmp.ne.s32.totalorder %s63, %s77
      %p79 = scmp.eq.s32.totalorder %s32, 0
      %p80 = por %p78, %p79
      %s82 = sadd.s32 %s81, 1
      %p85 = scmp.eq.s32.totalorder %s26, 1
      %p86 = scmp.ne.s32.totalorder %s81, %s83
      %p87 = scmp.eq.s32.totalorder %s26, 0
      %p88 = por %p86, %p87
      %p89 = scmp.ne.s32.totalorder %s81, %s83
      %p90 = scmp.eq.s32.totalorder %s31, 1
      %p91 = por %p89, %p90
      %p92 = scmp.ne.s32.totalorder %s83, %s84
      %p93 = scmp.eq.s32.totalorder %s31, 0
      %p94 = por %p92, %p93
      %p95 = scmp.ne.s32.totalorder %s83, %s84
      %p96 = scmp.eq.s32.totalorder %s32, 1
      %p97 = por %p95, %p96
      %p99 = scmp.ne.s32.totalorder %s84, %s98
      %p100 = scmp.eq.s32.totalorder %s32, 0
      %p101 = por %p99, %p100
      %s103 = sadd.s32 %s102, 1
      %p106 = scmp.eq.s32.totalorder %s26, 1
      %p107 = scmp.ne.s32.totalorder %s102, %s104
      %p108 = scmp.eq.s32.totalorder %s26, 0
      %p109 = por %p107, %p108
      %p110 = scmp.ne.s32.totalorder %s102, %s104
      %p111 = scmp.eq.s32.totalorder %s31, 1
      %p112 = por %p110, %p111
      %p113 = scmp.ne.s32.totalorder %s104, %s105
      %p114 = scmp.eq.s32.totalorder %s31, 0
      %p115 = por %p113, %p114
      %p116 = scmp.ne.s32.totalorder %s104, %s105
      %p117 = scmp.eq.s32.totalorder %s32, 1
      %p118 = por %p116, %p117
      %p120 = scmp.ne.s32.totalorder %s105, %s119
      %p121 = scmp.eq.s32.totalorder %s32, 0
      %p122 = por %p120, %p121
      %s124 = sadd.s32 %s123, 1
      %p127 = scmp.eq.s32.totalorder %s26, 1
      %p128 = scmp.ne.s32.totalorder %s123, %s125
      %p129 = scmp.eq.s32.totalorder %s26, 0
      %p130 = por %p128, %p129
      %p131 = scmp.ne.s32.totalorder %s123, %s125
      %p132 = scmp.eq.s32.totalorder %s31, 1
      %p133 = por %p131, %p132
      %p134 = scmp.ne.s32.totalorder %s125, %s126
      %p135 = scmp.eq.s32.totalorder %s31, 0
      %p136 = por %p134, %p135
      %p137 = scmp.ne.s32.totalorder %s125, %s126
      %p138 = scmp.eq.s32.totalorder %s32, 1
      %p139 = por %p137, %p138
      %p141 = scmp.ne.s32.totalorder %s126, %s140
      %p142 = scmp.eq.s32.totalorder %s32, 0
      %p143 = por %p141, %p142
      %s145 = sadd.s32 %s144, 1
      %p148 = scmp.eq.s32.totalorder %s26, 1
      %p149 = scmp.ne.s32.totalorder %s144, %s146
      %p150 = scmp.eq.s32.totalorder %s26, 0
      %p151 = por %p149, %p150
      %p152 = scmp.ne.s32.totalorder %s144, %s146
      %p153 = scmp.eq.s32.totalorder %s31, 1
      %p154 = por %p152, %p153
      %p155 = scmp.ne.s32.totalorder %s146, %s147
      %p156 = scmp.eq.s32.totalorder %s31, 0
      %p157 = por %p155, %p156
      %p158 = scmp.ne.s32.totalorder %s146, %s147
      %p159 = scmp.eq.s32.totalorder %s32, 1
      %p160 = por %p158, %p159
      %p162 = scmp.ne.s32.totalorder %s147, %s161
      %p163 = scmp.eq.s32.totalorder %s32, 0
      %p164 = por %p162, %p163
      %s166 = sadd.s32 %s165, 1
      %p169 = scmp.eq.s32.totalorder %s26, 1
      %p170 = scmp.ne.s32.totalorder %s165, %s167
      %p171 = scmp.eq.s32.totalorder %s26, 0
      %p172 = por %p170, %p171
      %p173 = scmp.ne.s32.totalorder %s165, %s167
      %p174 = scmp.eq.s32.totalorder %s31, 1
      %p175 = por %p173, %p174
      %p176 = scmp.ne.s32.totalorder %s167, %s168
      %p177 = scmp.eq.s32.totalorder %s31, 0
      %p178 = por %p176, %p177
      %p179 = scmp.ne.s32.totalorder %s167, %s168
      %p180 = scmp.eq.s32.totalorder %s32, 1
      %p181 = por %p179, %p180
      %p183 = scmp.ne.s32.totalorder %s168, %s182
      %p184 = scmp.eq.s32.totalorder %s32, 0
      %p185 = por %p183, %p184
      %s187 = sadd.s32 %s186, 1
      %p190 = scmp.eq.s32.totalorder %s26, 1
      %p191 = scmp.ne.s32.totalorder %s186, %s188
      %p192 = scmp.eq.s32.totalorder %s26, 0
      %p193 = por %p191, %p192
      %p194 = scmp.ne.s32.totalorder %s186, %s188
      %p195 = scmp.eq.s32.totalorder %s31, 1
      %p196 = por %p194, %p195
      %p197 = scmp.ne.s32.totalorder %s188, %s189
      %p198 = scmp.eq.s32.totalorder %s31, 0
      %p199 = por %p197, %p198
      %p200 = scmp.ne.s32.totalorder %s188, %s189
      %p201 = scmp.eq.s32.totalorder %s32, 1
      %p202 = por %p200, %p201
      %p204 = scmp.ne.s32.totalorder %s189, %s203
      %p205 = scmp.eq.s32.totalorder %s32, 0
      %p206 = por %p204, %p205
      %s208 = sadd.s32 %s207, 1
      %p211 = scmp.eq.s32.totalorder %s26, 1
      %p212 = scmp.ne.s32.totalorder %s207, %s209
      %p213 = scmp.eq.s32.totalorder %s26, 0
      %p214 = por %p212, %p213
      %p215 = scmp.ne.s32.totalorder %s207, %s209
      %p216 = scmp.eq.s32.totalorder %s31, 1
      %p217 = por %p215, %p216
      %p218 = scmp.ne.s32.totalorder %s209, %s210
      %p219 = scmp.eq.s32.totalorder %s31, 0
      %p220 = por %p218, %p219
      %p221 = scmp.ne.s32.totalorder %s209, %s210
      %p222 = scmp.eq.s32.totalorder %s32, 1
      %p223 = por %p221, %p222
      %p225 = scmp.ne.s32.totalorder %s210, %s224
      %p226 = scmp.eq.s32.totalorder %s32, 0
      %p227 = por %p225, %p226
      %s229 = sadd.s32 %s228, 1
      %p232 = scmp.eq.s32.totalorder %s26, 1
      %p233 = scmp.ne.s32.totalorder %s228, %s230
      %p234 = scmp.eq.s32.totalorder %s26, 0
      %p235 = por %p233, %p234
      %p236 = scmp.ne.s32.totalorder %s228, %s230
      %p237 = scmp.eq.s32.totalorder %s31, 1
      %p238 = por %p236, %p237
      %p239 = scmp.ne.s32.totalorder %s230, %s231
      %p240 = scmp.eq.s32.totalorder %s31, 0
      %p241 = por %p239, %p240
      %p242 = scmp.ne.s32.totalorder %s230, %s231
      %p243 = scmp.eq.s32.totalorder %s32, 1
      %p244 = por %p242, %p243
      %p246 = scmp.ne.s32.totalorder %s231, %s245
      %p247 = scmp.eq.s32.totalorder %s32, 0
      %p248 = por %p246, %p247
      %s250 = sadd.s32 %s249, 1
      %p253 = scmp.eq.s32.totalorder %s26, 1
      %p254 = scmp.ne.s32.totalorder %s249, %s251
      %p255 = scmp.eq.s32.totalorder %s26, 0
      %p256 = por %p254, %p255
      %p257 = scmp.ne.s32.totalorder %s249, %s251
      %p258 = scmp.eq.s32.totalorder %s31, 1
      %p259 = por %p257, %p258
      %p260 = scmp.ne.s32.totalorder %s251, %s252
      %p261 = scmp.eq.s32.totalorder %s31, 0
      %p262 = por %p260, %p261
      %p263 = scmp.ne.s32.totalorder %s251, %s252
      %p264 = scmp.eq.s32.totalorder %s32, 1
      %p265 = por %p263, %p264
      %p267 = scmp.ne.s32.totalorder %s252, %s266
      %p268 = scmp.eq.s32.totalorder %s32, 0
      %p269 = por %p267, %p268
      %s271 = sadd.s32 %s270, 1
      %p274 = scmp.eq.s32.totalorder %s26, 1
      %p275 = scmp.ne.s32.totalorder %s270, %s272
      %p276 = scmp.eq.s32.totalorder %s26, 0
      %p277 = por %p275, %p276
      %p278 = scmp.ne.s32.totalorder %s270, %s272
      %p279 = scmp.eq.s32.totalorder %s31, 1
      %p280 = por %p278, %p279
      %p281 = scmp.ne.s32.totalorder %s272, %s273
      %p282 = scmp.eq.s32.totalorder %s31, 0
      %p283 = por %p281, %p282
      %p284 = scmp.ne.s32.totalorder %s272, %s273
      %p285 = scmp.eq.s32.totalorder %s32, 1
      %p286 = por %p284, %p285
      %p288 = scmp.ne.s32.totalorder %s273, %s287
      %p289 = scmp.eq.s32.totalorder %s32, 0
      %p290 = por %p288, %p289
      %s292 = sadd.s32 %s291, 1
      %p295 = scmp.eq.s32.totalorder %s26, 1
      %p296 = scmp.ne.s32.totalorder %s291, %s293
      %p297 = scmp.eq.s32.totalorder %s26, 0
      %p298 = por %p296, %p297
      %p299 = scmp.ne.s32.totalorder %s291, %s293
      %p300 = scmp.eq.s32.totalorder %s31, 1
      %p301 = por %p299, %p300
      %p302 = scmp.ne.s32.totalorder %s293, %s294
      %p303 = scmp.eq.s32.totalorder %s31, 0
      %p304 = por %p302, %p303
      %p305 = scmp.ne.s32.totalorder %s293, %s294
      %p306 = scmp.eq.s32.totalorder %s32, 1
      %p307 = por %p305, %p306
      %p309 = scmp.ne.s32.totalorder %s294, %s308
      %p310 = scmp.eq.s32.totalorder %s32, 0
      %p311 = por %p309, %p310
      %s313 = sadd.s32 %s312, 1
      %p316 = scmp.eq.s32.totalorder %s26, 1
      %p317 = scmp.ne.s32.totalorder %s312, %s314
      %p318 = scmp.eq.s32.totalorder %s26, 0
      %p319 = por %p317, %p318
      %p320 = scmp.ne.s32.totalorder %s312, %s314
      %p321 = scmp.eq.s32.totalorder %s31, 1
      %p322 = por %p320, %p321
      %p323 = scmp.ne.s32.totalorder %s314, %s315
      %p324 = scmp.eq.s32.totalorder %s31, 0
      %p325 = por %p323, %p324
      %p326 = scmp.ne.s32.totalorder %s314, %s315
      %p327 = scmp.eq.s32.totalorder %s32, 1
      %p328 = por %p326, %p327
      %p330 = scmp.ne.s32.totalorder %s315, %s329
      %p331 = scmp.eq.s32.totalorder %s32, 0
      %p332 = por %p330, %p331
      %s333 = ssub.s32 %s26, %s33
      %p334 = scmp.eq.s32.totalorder %s333, 0
      %s336 = sadd.s32 %s335, 1
      %s337 = scalar_select %p334, %s335, %s336
      %p340 = pneg %p334
      %p341 = scmp.eq.s32.totalorder %s26, 1
      %p342 = por %p340, %p341
      %p343 = scmp.ne.s32.totalorder %s335, %s338
      %p344 = scmp.eq.s32.totalorder %s26, 0
      %p345 = por %p343, %p344
      %p346 = scmp.ne.s32.totalorder %s335, %s338
      %p347 = scmp.eq.s32.totalorder %s31, 1
      %p348 = por %p346, %p347
      %p349 = scmp.ne.s32.totalorder %s338, %s339
      %p350 = scmp.eq.s32.totalorder %s31, 0
      %p351 = por %p349, %p350
      %p352 = scmp.ne.s32.totalorder %s338, %s339
      %p353 = scmp.eq.s32.totalorder %s32, 1
      %p354 = por %p352, %p353
      %p356 = scmp.ne.s32.totalorder %s339, %s355
      %p357 = scmp.eq.s32.totalorder %s32, 0
      %p358 = por %p356, %p357
      %p359 = scmp.le.s32.totalorder 1, %s26
      %p360 = scmp.lt.s32.totalorder %s26, 3
      %p361 = pnand %p359, %p360
      %p362 = pneg %p361
      // Predicated region
      $region9: #{patm_forward.1} parent=5 // pred_check
        _
      $region10: #{patm_forward.1} parent=5 // pred_check_branch
        %364 = sbr.rel (%p361) target = $region12
      $region11: #{patm_forward.1} parent=5 // pred_region
        %s365 = ssub.s32 %s26, 1
        // Predicated region
        $region13: #{patm_forward.1} parent=11 // pred_check
          %p366 = pneg %p73
        $region14: #{patm_forward.1} parent=11 // pred_check_branch
          %368 = sbr.rel (%p366) target = $region16
        $region15: #{patm_forward.1} parent=11 // pred_region
          _
        $region16: #{patm_forward.1} parent=11 // pred_fallthru
          _
        // Predicated region
        $region17: #{patm_forward.1} parent=11 // pred_check
          %p369 = pneg %p94
        $region18: #{patm_forward.1} parent=11 // pred_check_branch
          %371 = sbr.rel (%p369) target = $region20
        $region19: #{patm_forward.1} parent=11 // pred_region
          _
        $region20: #{patm_forward.1} parent=11 // pred_fallthru
          _
        // Predicated region
        $region21: #{patm_forward.1} parent=11 // pred_check
          %p372 = pneg %p115
        $region22: #{patm_forward.1} parent=11 // pred_check_branch
          %374 = sbr.rel (%p372) target = $region24
        $region23: #{patm_forward.1} parent=11 // pred_region
          _
        $region24: #{patm_forward.1} parent=11 // pred_fallthru
          _
        // Predicated region
        $region25: #{patm_forward.1} parent=11 // pred_check
          %p375 = pneg %p136
        $region26: #{patm_forward.1} parent=11 // pred_check_branch
          %377 = sbr.rel (%p375) target = $region28
        $region27: #{patm_forward.1} parent=11 // pred_region
          _
        $region28: #{patm_forward.1} parent=11 // pred_fallthru
          _
        // Predicated region
        $region29: #{patm_forward.1} parent=11 // pred_check
          %p378 = pneg %p157
        $region30: #{patm_forward.1} parent=11 // pred_check_branch
          %380 = sbr.rel (%p378) target = $region32
        $region31: #{patm_forward.1} parent=11 // pred_region
          _
        $region32: #{patm_forward.1} parent=11 // pred_fallthru
          _
        // Predicated region
        $region33: #{patm_forward.1} parent=11 // pred_check
          %p381 = pneg %p178
        $region34: #{patm_forward.1} parent=11 // pred_check_branch
          %383 = sbr.rel (%p381) target = $region36
        $region35: #{patm_forward.1} parent=11 // pred_region
          _
        $region36: #{patm_forward.1} parent=11 // pred_fallthru
          _
        // Predicated region
        $region37: #{patm_forward.1} parent=11 // pred_check
          %p384 = pneg %p199
        $region38: #{patm_forward.1} parent=11 // pred_check_branch
          %386 = sbr.rel (%p384) target = $region40
        $region39: #{patm_forward.1} parent=11 // pred_region
          _
        $region40: #{patm_forward.1} parent=11 // pred_fallthru
          _
        // Predicated region
        $region41: #{patm_forward.1} parent=11 // pred_check
          %p387 = pneg %p220
        $region42: #{patm_forward.1} parent=11 // pred_check_branch
          %389 = sbr.rel (%p387) target = $region44
        $region43: #{patm_forward.1} parent=11 // pred_region
          _
        $region44: #{patm_forward.1} parent=11 // pred_fallthru
          _
        // Predicated region
        $region45: #{patm_forward.1} parent=11 // pred_check
          %p390 = pneg %p241
        $region46: #{patm_forward.1} parent=11 // pred_check_branch
          %392 = sbr.rel (%p390) target = $region48
        $region47: #{patm_forward.1} parent=11 // pred_region
          _
        $region48: #{patm_forward.1} parent=11 // pred_fallthru
          _
        // Predicated region
        $region49: #{patm_forward.1} parent=11 // pred_check
          %p393 = pneg %p262
        $region50: #{patm_forward.1} parent=11 // pred_check_branch
          %395 = sbr.rel (%p393) target = $region52
        $region51: #{patm_forward.1} parent=11 // pred_region
          _
        $region52: #{patm_forward.1} parent=11 // pred_fallthru
          _
        // Predicated region
        $region53: #{patm_forward.1} parent=11 // pred_check
          %p396 = pneg %p283
        $region54: #{patm_forward.1} parent=11 // pred_check_branch
          %398 = sbr.rel (%p396) target = $region56
        $region55: #{patm_forward.1} parent=11 // pred_region
          _
        $region56: #{patm_forward.1} parent=11 // pred_fallthru
          _
        // Predicated region
        $region57: #{patm_forward.1} parent=11 // pred_check
          %p399 = pneg %p304
        $region58: #{patm_forward.1} parent=11 // pred_check_branch
          %401 = sbr.rel (%p399) target = $region60
        $region59: #{patm_forward.1} parent=11 // pred_region
          _
        $region60: #{patm_forward.1} parent=11 // pred_fallthru
          _
        // Predicated region
        $region61: #{patm_forward.1} parent=11 // pred_check
          %p402 = pneg %p325
        $region62: #{patm_forward.1} parent=11 // pred_check_branch
          %404 = sbr.rel (%p402) target = $region64
        $region63: #{patm_forward.1} parent=11 // pred_region
          _
        $region64: #{patm_forward.1} parent=11 // pred_fallthru
          _
      $region12: #{patm_forward.1} parent=5 // pred_fallthru
        _
      %p405 = scmp.lt.s32.totalorder %s26, 2
      // Predicated region
      $region65: #{patm_forward.1} parent=5 // pred_check
        %p406 = pneg %p405
      $region66: #{patm_forward.1} parent=5 // pred_check_branch
        %408 = sbr.rel (%p406) target = $region68
      $region67: #{patm_forward.1} parent=5 // pred_region
        // Predicated region
        $region69: #{patm_forward.1} parent=67 // pred_check
          %p409 = pneg %p46
        $region70: #{patm_forward.1} parent=67 // pred_check_branch
          %411 = sbr.rel (%p409) target = $region72
        $region71: #{patm_forward.1} parent=67 // pred_region
          %s412 = sand.u32 %s36, 1
          %s413 = scalar_lea.sflag [#allocation3], %s412
          %s414 = sand.u32 %s36, 1
          %s415 = smul.addr %s414, 256
          %s416 = scalar_lea.vmem [#allocation2], %s415
          %418 = vsyncadd %s413, 0
          %s419 = smul.addr %s26, 32
          %s420 = smul.addr %s419, 8
          %s421 = scalar_lea.hbm %s0, %s420
          %s422 = sshll.u32 %s421, 4
          %s423 = int_to_ptr.hbm [resolvable:$true] %s422
          %s424 = sshll.u32 %s416, 4
          %s425 = int_to_ptr.vmem [resolvable:$true] %s424
          %430 = dma.hbm_to_vmem [thread:$0]  %s423, 4096, %s425, %s413, 128, 128, 8
        $region72: #{patm_forward.1} parent=67 // pred_fallthru
          _
      $region68: #{patm_forward.1} parent=5 // pred_fallthru
        _
      %p431 = scmp.le.s32.totalorder 1, %s26
      %p432 = scmp.lt.s32.totalorder %s26, 3
      %p433 = pnand %p431, %p432
      %p434 = pneg %p433
      // Predicated region
      $region73: #{patm_forward.1} parent=5 // pred_check
        _
      $region74: #{patm_forward.1} parent=5 // pred_check_branch
        %436 = sbr.rel (%p433) target = $region76
      $region75: #{patm_forward.1} parent=5 // pred_region
        %s437 = ssub.s32 %s26, 1
        %s438 = sand.u32 %s39, 1
        %s439 = scalar_lea.sflag [#allocation3], %s438
        %s440 = sand.u32 %s39, 1
        %s441 = smul.addr %s440, 256
        %s442 = scalar_lea.vmem [#allocation2], %s441
        // Predicated region
        $region77: #{patm_forward.1} parent=75 // pred_check
          %p443 = pneg %p52
        $region78: #{patm_forward.1} parent=75 // pred_check_branch
          %445 = sbr.rel (%p443) target = $region80
        $region79: #{patm_forward.1} parent=75 // pred_region
          %447 = dma.done %s439, 4096
        $region80: #{patm_forward.1} parent=75 // pred_fallthru
          _
        %s448 = sand.u32 %s39, 1
        %s449 = scalar_lea.sflag [#allocation3], %s448
        %s450 = sand.u32 %s39, 1
        %s451 = smul.addr %s450, 256
        %s452 = scalar_lea.vmem [#allocation2], %s451
        %p453 = pneg %p52
        %p454 = pneg %p49
        %p455 = pneg %p73
        %p456 = pneg %p70
        %p457 = pneg %p94
        %p458 = pneg %p91
        %p459 = pneg %p115
        %p460 = pneg %p112
        %p461 = pneg %p136
        %p462 = pneg %p133
        %p463 = pneg %p157
        %p464 = pneg %p154
        %p465 = pneg %p178
        %p466 = pneg %p175
        %p467 = pneg %p199
        %p468 = pneg %p196
        %p469 = pneg %p220
        %p470 = pneg %p217
        %p471 = pneg %p241
        %p472 = pneg %p238
        %p473 = pneg %p262
        %p474 = pneg %p259
        %p475 = pneg %p283
        %p476 = pneg %p280
        %p477 = pneg %p304
        %p478 = pneg %p301
        %p479 = pneg %p325
        %p480 = pneg %p322
        %p481 = pneg %p351
        %p482 = pneg %p348
        %s483 = sand.u32 %s338, 1
        %s484 = scalar_lea.sflag [#allocation4], %s483
        %s485 = sand.u32 %s338, 1
        %s486 = smul.addr %s485, 256
        %s487 = scalar_lea.vmem [#allocation5], %s486
        %v489 = vld [vmem:[%s442] sm:$0xff]
        %v490 = vld [vmem:[%s442 + $0x8] sm:$0xff]
        %v491 = vld [vmem:[%s442 + $0x10] sm:$0xff]
        %v492 = vld [vmem:[%s442 + $0x18] sm:$0xff]
        %v493 = vld [vmem:[%s442 + $0x20] sm:$0xff]
        %v494 = vld [vmem:[%s442 + $0x28] sm:$0xff]
        %v495 = vld [vmem:[%s442 + $0x30] sm:$0xff]
        %v496 = vld [vmem:[%s442 + $0x38] sm:$0xff]
        %v497 = vld [vmem:[%s442 + $0x40] sm:$0xff]
        %v498 = vld [vmem:[%s442 + $0x48] sm:$0xff]
        %v499 = vld [vmem:[%s442 + $0x50] sm:$0xff]
        %v500 = vld [vmem:[%s442 + $0x58] sm:$0xff]
        %v501 = vld [vmem:[%s442 + $0x60] sm:$0xff]
        %v502 = vld [vmem:[%s442 + $0x68] sm:$0xff]
        %v503 = vld [vmem:[%s442 + $0x70] sm:$0xff]
        %v504 = vld [vmem:[%s442 + $0x78] sm:$0xff]
        %v505 = vld [vmem:[%s442 + $0x80] sm:$0xff]
        %v506 = vld [vmem:[%s442 + $0x88] sm:$0xff]
        %v507 = vld [vmem:[%s442 + $0x90] sm:$0xff]
        %v508 = vld [vmem:[%s442 + $0x98] sm:$0xff]
        %v509 = vld [vmem:[%s442 + $0xa0] sm:$0xff]
        %v510 = vld [vmem:[%s442 + $0xa8] sm:$0xff]
        %v511 = vld [vmem:[%s442 + $0xb0] sm:$0xff]
        %v512 = vld [vmem:[%s442 + $0xb8] sm:$0xff]
        %v513 = vld [vmem:[%s442 + $0xc0] sm:$0xff]
        %v514 = vld [vmem:[%s442 + $0xc8] sm:$0xff]
        %v515 = vld [vmem:[%s442 + $0xd0] sm:$0xff]
        %v516 = vld [vmem:[%s442 + $0xd8] sm:$0xff]
        %v517 = vld [vmem:[%s442 + $0xe0] sm:$0xff]
        %v518 = vld [vmem:[%s442 + $0xe8] sm:$0xff]
        %v519 = vld [vmem:[%s442 + $0xf0] sm:$0xff]
        %v520 = vld [vmem:[%s442 + $0xf8] sm:$0xff]
        %v521 = vpack.c.bf16 %v490, %v489
        %v522 = vpack.c.bf16 %v492, %v491
        %v523 = vpack.c.bf16 %v494, %v493
        %v524 = vpack.c.bf16 %v496, %v495
        %v525 = vpack.c.bf16 %v498, %v497
        %v526 = vpack.c.bf16 %v500, %v499
        %v527 = vpack.c.bf16 %v502, %v501
        %v528 = vpack.c.bf16 %v504, %v503
        %v529 = vpack.c.bf16 %v506, %v505
        %v530 = vpack.c.bf16 %v508, %v507
        %v531 = vpack.c.bf16 %v510, %v509
        %v532 = vpack.c.bf16 %v512, %v511
        %v533 = vpack.c.bf16 %v514, %v513
        %v534 = vpack.c.bf16 %v516, %v515
        %v535 = vpack.c.bf16 %v518, %v517
        %v536 = vpack.c.bf16 %v520, %v519
        %v537 = vld [vmem:[%s1] sm:$0xff]
        %v538 = vld [vmem:[%s1 + $0x8] sm:$0xf]
        %v539 = vld [vmem:[%s1 + $0xc] sm:$0xff]
        %v540 = vld [vmem:[%s1 + $0x14] sm:$0xf]
        %v541 = vld [vmem:[%s1 + $0x18] sm:$0xff]
        %v542 = vld [vmem:[%s1 + $0x20] sm:$0xf]
        %v543 = vld [vmem:[%s1 + $0x24] sm:$0xff]
        %v544 = vld [vmem:[%s1 + $0x2c] sm:$0xf]
        %v553 = vunpack.c.l.b16 %v537
        %v554 = vunpack.c.h.b16 %v537
        %v555 = vunpack.c.l.b16 %v538
        %v556 = vunpack.c.l.b16 %v539
        %v557 = vunpack.c.h.b16 %v539
        %v558 = vunpack.c.l.b16 %v540
        %v559 = vunpack.c.l.b16 %v541
        %v560 = vunpack.c.h.b16 %v541
        %v561 = vunpack.c.l.b16 %v542
        %v562 = vunpack.c.l.b16 %v543
        %v563 = vunpack.c.h.b16 %v543
        %v564 = vunpack.c.l.b16 %v544
        %v565 = vpack.c.b16 %v556, %v553
        %v566 = vpack.c.b16 %v557, %v554
        %v567 = vpack.c.b16 %v558, %v555
        %v568 = vpack.c.b16 %v562, %v559
        %v569 = vpack.c.b16 %v563, %v560
        %v570 = vpack.c.b16 %v564, %v561
        %vm577 = vcmask 261120
        %v579 = vsel %vm577, %v521, 0
        %v582 = vsel %vm577, %v522, 0
        %v585 = vsel %vm577, %v523, 0
        %v588 = vsel %vm577, %v524, 0
        %v591 = vsel %vm577, %v525, 0
        %v594 = vsel %vm577, %v526, 0
        %v597 = vsel %vm577, %v527, 0
        %v600 = vsel %vm577, %v528, 0
        %v603 = vsel %vm577, %v529, 0
        %v606 = vsel %vm577, %v530, 0
        %v609 = vsel %vm577, %v531, 0
        %v612 = vsel %vm577, %v532, 0
        %v615 = vsel %vm577, %v533, 0
        %v618 = vsel %vm577, %v534, 0
        %v621 = vsel %vm577, %v535, 0
        %v624 = vsel %vm577, %v536, 0
        %626 = vmatpush.bf16.msra.mxu0 0
        %627 = vmatpush.bf16.msra.mxu0 0
        %628 = vmatpush.bf16.msra.mxu0 0
        %629 = vmatpush.bf16.msra.mxu0 0
        %630 = vmatpush.bf16.msra.mxu0 0
        %631 = vmatpush.bf16.msra.mxu0 0
        %632 = vmatpush.bf16.msra.mxu0 %v568
        %633 = vmatpush.bf16.msra.mxu0 %v565
        %634 = vmatmul.bf16.gmra.mxu0 %v579
        %v635 = vpop.f32.mrf.mxu0
        %v636 = vadd.f32 0.0, %v635
        %v637 = vpop.f32.mrf.mxu0
        %v638 = vadd.f32 0.0, %v637
        %639 = vmatmul.bf16.gmra.mxu0 %v582
        %v640 = vpop.f32.mrf.mxu0
        %v641 = vadd.f32 0.0, %v640
        %v642 = vpop.f32.mrf.mxu0
        %v643 = vadd.f32 0.0, %v642
        %644 = vmatmul.bf16.gmra.mxu0 %v585
        %v645 = vpop.f32.mrf.mxu0
        %v646 = vadd.f32 0.0, %v645
        %v647 = vpop.f32.mrf.mxu0
        %v648 = vadd.f32 0.0, %v647
        %649 = vmatmul.bf16.gmra.mxu0 %v588
        %v650 = vpop.f32.mrf.mxu0
        %v651 = vadd.f32 0.0, %v650
        %v652 = vpop.f32.mrf.mxu0
        %v653 = vadd.f32 0.0, %v652
        %654 = vmatmul.bf16.gmra.mxu0 %v591
        %v655 = vpop.f32.mrf.mxu0
        %v656 = vadd.f32 0.0, %v655
        %v657 = vpop.f32.mrf.mxu0
        %v658 = vadd.f32 0.0, %v657
        %659 = vmatmul.bf16.gmra.mxu0 %v594
        %v660 = vpop.f32.mrf.mxu0
        %v661 = vadd.f32 0.0, %v660
        %v662 = vpop.f32.mrf.mxu0
        %v663 = vadd.f32 0.0, %v662
        %664 = vmatmul.bf16.gmra.mxu0 %v597
        %v665 = vpop.f32.mrf.mxu0
        %v666 = vadd.f32 0.0, %v665
        %v667 = vpop.f32.mrf.mxu0
        %v668 = vadd.f32 0.0, %v667
        %669 = vmatmul.bf16.gmra.mxu0 %v600
        %v670 = vpop.f32.mrf.mxu0
        %v671 = vadd.f32 0.0, %v670
        %v672 = vpop.f32.mrf.mxu0
        %v673 = vadd.f32 0.0, %v672
        %674 = vmatmul.bf16.gmra.mxu0 %v603
        %v675 = vpop.f32.mrf.mxu0
        %v676 = vadd.f32 0.0, %v675
        %v677 = vpop.f32.mrf.mxu0
        %v678 = vadd.f32 0.0, %v677
        %679 = vmatmul.bf16.gmra.mxu0 %v606
        %v680 = vpop.f32.mrf.mxu0
        %v681 = vadd.f32 0.0, %v680
        %v682 = vpop.f32.mrf.mxu0
        %v683 = vadd.f32 0.0, %v682
        %684 = vmatmul.bf16.gmra.mxu0 %v609
        %v685 = vpop.f32.mrf.mxu0
        %v686 = vadd.f32 0.0, %v685
        %v687 = vpop.f32.mrf.mxu0
        %v688 = vadd.f32 0.0, %v687
        %689 = vmatmul.bf16.gmra.mxu0 %v612
        %v690 = vpop.f32.mrf.mxu0
        %v691 = vadd.f32 0.0, %v690
        %v692 = vpop.f32.mrf.mxu0
        %v693 = vadd.f32 0.0, %v692
        %694 = vmatmul.bf16.gmra.mxu0 %v615
        %v695 = vpop.f32.mrf.mxu0
        %v696 = vadd.f32 0.0, %v695
        %v697 = vpop.f32.mrf.mxu0
        %v698 = vadd.f32 0.0, %v697
        %699 = vmatmul.bf16.gmra.mxu0 %v618
        %v700 = vpop.f32.mrf.mxu0
        %v701 = vadd.f32 0.0, %v700
        %v702 = vpop.f32.mrf.mxu0
        %v703 = vadd.f32 0.0, %v702
        %704 = vmatmul.bf16.gmra.mxu0 %v621
        %v705 = vpop.f32.mrf.mxu0
        %v706 = vadd.f32 0.0, %v705
        %v707 = vpop.f32.mrf.mxu0
        %v708 = vadd.f32 0.0, %v707
        %709 = vmatmul.bf16.gmra.mxu0 %v624
        %v710 = vpop.f32.mrf.mxu0
        %v711 = vadd.f32 0.0, %v710
        %v712 = vpop.f32.mrf.mxu0
        %v713 = vadd.f32 0.0, %v712
        %714 = vdwg.mxu0
        %715 = vmatpush.bf16.msra.mxu0 0
        %716 = vmatpush.bf16.msra.mxu0 0
        %717 = vmatpush.bf16.msra.mxu0 0
        %718 = vmatpush.bf16.msra.mxu0 0
        %719 = vmatpush.bf16.msra.mxu0 0
        %720 = vmatpush.bf16.msra.mxu0 0
        %721 = vmatpush.bf16.msra.mxu0 %v569
        %722 = vmatpush.bf16.msra.mxu0 %v566
        %723 = vmatmul.bf16.gmra.mxu0 %v579
        %v724 = vpop.f32.mrf.mxu0
        %v725 = vadd.f32 0.0, %v724
        %v726 = vpop.f32.mrf.mxu0
        %v727 = vadd.f32 0.0, %v726
        %728 = vmatmul.bf16.gmra.mxu0 %v582
        %v729 = vpop.f32.mrf.mxu0
        %v730 = vadd.f32 0.0, %v729
        %v731 = vpop.f32.mrf.mxu0
        %v732 = vadd.f32 0.0, %v731
        %733 = vmatmul.bf16.gmra.mxu0 %v585
        %v734 = vpop.f32.mrf.mxu0
        %v735 = vadd.f32 0.0, %v734
        %v736 = vpop.f32.mrf.mxu0
        %v737 = vadd.f32 0.0, %v736
        %738 = vmatmul.bf16.gmra.mxu0 %v588
        %v739 = vpop.f32.mrf.mxu0
        %v740 = vadd.f32 0.0, %v739
        %v741 = vpop.f32.mrf.mxu0
        %v742 = vadd.f32 0.0, %v741
        %743 = vmatmul.bf16.gmra.mxu0 %v591
        %v744 = vpop.f32.mrf.mxu0
        %v745 = vadd.f32 0.0, %v744
        %v746 = vpop.f32.mrf.mxu0
        %v747 = vadd.f32 0.0, %v746
        %748 = vmatmul.bf16.gmra.mxu0 %v594
        %v749 = vpop.f32.mrf.mxu0
        %v750 = vadd.f32 0.0, %v749
        %v751 = vpop.f32.mrf.mxu0
        %v752 = vadd.f32 0.0, %v751
        %753 = vmatmul.bf16.gmra.mxu0 %v597
        %v754 = vpop.f32.mrf.mxu0
        %v755 = vadd.f32 0.0, %v754
        %v756 = vpop.f32.mrf.mxu0
        %v757 = vadd.f32 0.0, %v756
        %758 = vmatmul.bf16.gmra.mxu0 %v600
        %v759 = vpop.f32.mrf.mxu0
        %v760 = vadd.f32 0.0, %v759
        %v761 = vpop.f32.mrf.mxu0
        %v762 = vadd.f32 0.0, %v761
        %763 = vmatmul.bf16.gmra.mxu0 %v603
        %v764 = vpop.f32.mrf.mxu0
        %v765 = vadd.f32 0.0, %v764
        %v766 = vpop.f32.mrf.mxu0
        %v767 = vadd.f32 0.0, %v766
        %768 = vmatmul.bf16.gmra.mxu0 %v606
        %v769 = vpop.f32.mrf.mxu0
        %v770 = vadd.f32 0.0, %v769
        %v771 = vpop.f32.mrf.mxu0
        %v772 = vadd.f32 0.0, %v771
        %773 = vmatmul.bf16.gmra.mxu0 %v609
        %v774 = vpop.f32.mrf.mxu0
        %v775 = vadd.f32 0.0, %v774
        %v776 = vpop.f32.mrf.mxu0
        %v777 = vadd.f32 0.0, %v776
        %778 = vmatmul.bf16.gmra.mxu0 %v612
        %v779 = vpop.f32.mrf.mxu0
        %v780 = vadd.f32 0.0, %v779
        %v781 = vpop.f32.mrf.mxu0
        %v782 = vadd.f32 0.0, %v781
        %783 = vmatmul.bf16.gmra.mxu0 %v615
        %v784 = vpop.f32.mrf.mxu0
        %v785 = vadd.f32 0.0, %v784
        %v786 = vpop.f32.mrf.mxu0
        %v787 = vadd.f32 0.0, %v786
        %788 = vmatmul.bf16.gmra.mxu0 %v618
        %v789 = vpop.f32.mrf.mxu0
        %v790 = vadd.f32 0.0, %v789
        %v791 = vpop.f32.mrf.mxu0
        %v792 = vadd.f32 0.0, %v791
        %793 = vmatmul.bf16.gmra.mxu0 %v621
        %v794 = vpop.f32.mrf.mxu0
        %v795 = vadd.f32 0.0, %v794
        %v796 = vpop.f32.mrf.mxu0
        %v797 = vadd.f32 0.0, %v796
        %798 = vmatmul.bf16.gmra.mxu0 %v624
        %v799 = vpop.f32.mrf.mxu0
        %v800 = vadd.f32 0.0, %v799
        %v801 = vpop.f32.mrf.mxu0
        %v802 = vadd.f32 0.0, %v801
        %803 = vdwg.mxu0
        %804 = vmatpush.bf16.msra.mxu0 0
        %805 = vmatpush.bf16.msra.mxu0 0
        %806 = vmatpush.bf16.msra.mxu0 0
        %807 = vmatpush.bf16.msra.mxu0 0
        %808 = vmatpush.bf16.msra.mxu0 0
        %809 = vmatpush.bf16.msra.mxu0 0
        %810 = vmatpush.bf16.msra.mxu0 %v570
        %811 = vmatpush.bf16.msra.mxu0 %v567
        %812 = vmatmul.bf16.gmra.mxu0 %v579
        %v813 = vpop.f32.mrf.mxu0
        %v814 = vadd.f32 0.0, %v813
        %v815 = vpop.f32.mrf.mxu0
        %v816 = vadd.f32 0.0, %v815
        %817 = vmatmul.bf16.gmra.mxu0 %v582
        %v818 = vpop.f32.mrf.mxu0
        %v819 = vadd.f32 0.0, %v818
        %v820 = vpop.f32.mrf.mxu0
        %v821 = vadd.f32 0.0, %v820
        %822 = vmatmul.bf16.gmra.mxu0 %v585
        %v823 = vpop.f32.mrf.mxu0
        %v824 = vadd.f32 0.0, %v823
        %v825 = vpop.f32.mrf.mxu0
        %v826 = vadd.f32 0.0, %v825
        %827 = vmatmul.bf16.gmra.mxu0 %v588
        %v828 = vpop.f32.mrf.mxu0
        %v829 = vadd.f32 0.0, %v828
        %v830 = vpop.f32.mrf.mxu0
        %v831 = vadd.f32 0.0, %v830
        %832 = vmatmul.bf16.gmra.mxu0 %v591
        %v833 = vpop.f32.mrf.mxu0
        %v834 = vadd.f32 0.0, %v833
        %v835 = vpop.f32.mrf.mxu0
        %v836 = vadd.f32 0.0, %v835
        %837 = vmatmul.bf16.gmra.mxu0 %v594
        %v838 = vpop.f32.mrf.mxu0
        %v839 = vadd.f32 0.0, %v838
        %v840 = vpop.f32.mrf.mxu0
        %v841 = vadd.f32 0.0, %v840
        %842 = vmatmul.bf16.gmra.mxu0 %v597
        %v843 = vpop.f32.mrf.mxu0
        %v844 = vadd.f32 0.0, %v843
        %v845 = vpop.f32.mrf.mxu0
        %v846 = vadd.f32 0.0, %v845
        %847 = vmatmul.bf16.gmra.mxu0 %v600
        %v848 = vpop.f32.mrf.mxu0
        %v849 = vadd.f32 0.0, %v848
        %v850 = vpop.f32.mrf.mxu0
        %v851 = vadd.f32 0.0, %v850
        %852 = vmatmul.bf16.gmra.mxu0 %v603
        %v853 = vpop.f32.mrf.mxu0
        %v854 = vadd.f32 0.0, %v853
        %v855 = vpop.f32.mrf.mxu0
        %v856 = vadd.f32 0.0, %v855
        %857 = vmatmul.bf16.gmra.mxu0 %v606
        %v858 = vpop.f32.mrf.mxu0
        %v859 = vadd.f32 0.0, %v858
        %v860 = vpop.f32.mrf.mxu0
        %v861 = vadd.f32 0.0, %v860
        %862 = vmatmul.bf16.gmra.mxu0 %v609
        %v863 = vpop.f32.mrf.mxu0
        %v864 = vadd.f32 0.0, %v863
        %v865 = vpop.f32.mrf.mxu0
        %v866 = vadd.f32 0.0, %v865
        %867 = vmatmul.bf16.gmra.mxu0 %v612
        %v868 = vpop.f32.mrf.mxu0
        %v869 = vadd.f32 0.0, %v868
        %v870 = vpop.f32.mrf.mxu0
        %v871 = vadd.f32 0.0, %v870
        %872 = vmatmul.bf16.gmra.mxu0 %v615
        %v873 = vpop.f32.mrf.mxu0
        %v874 = vadd.f32 0.0, %v873
        %v875 = vpop.f32.mrf.mxu0
        %v876 = vadd.f32 0.0, %v875
        %877 = vmatmul.bf16.gmra.mxu0 %v618
        %v878 = vpop.f32.mrf.mxu0
        %v879 = vadd.f32 0.0, %v878
        %v880 = vpop.f32.mrf.mxu0
        %v881 = vadd.f32 0.0, %v880
        %882 = vmatmul.bf16.gmra.mxu0 %v621
        %v883 = vpop.f32.mrf.mxu0
        %v884 = vadd.f32 0.0, %v883
        %v885 = vpop.f32.mrf.mxu0
        %v886 = vadd.f32 0.0, %v885
        %887 = vmatmul.bf16.gmra.mxu0 %v624
        %v888 = vpop.f32.mrf.mxu0
        %v889 = vadd.f32 0.0, %v888
        %v890 = vpop.f32.mrf.mxu0
        %v891 = vadd.f32 0.0, %v890
        %892 = vdwg.mxu0
        %v893 = vld [vmem:[%s2] sm:$0x1]
        %v895 = vperm.slane %v893, 0
        %v897 = vmul.f32 %v636, %v895
        %v898 = vmul.f32 %v638, %v895
        %v899 = vmul.f32 %v641, %v895
        %v900 = vmul.f32 %v643, %v895
        %v901 = vmul.f32 %v646, %v895
        %v902 = vmul.f32 %v648, %v895
        %v903 = vmul.f32 %v651, %v895
        %v904 = vmul.f32 %v653, %v895
        %v905 = vmul.f32 %v656, %v895
        %v906 = vmul.f32 %v658, %v895
        %v907 = vmul.f32 %v661, %v895
        %v908 = vmul.f32 %v663, %v895
        %v909 = vmul.f32 %v666, %v895
        %v910 = vmul.f32 %v668, %v895
        %v911 = vmul.f32 %v671, %v895
        %v912 = vmul.f32 %v673, %v895
        %v913 = vmul.f32 %v676, %v895
        %v914 = vmul.f32 %v678, %v895
        %v915 = vmul.f32 %v681, %v895
        %v916 = vmul.f32 %v683, %v895
        %v917 = vmul.f32 %v686, %v895
        %v918 = vmul.f32 %v688, %v895
        %v919 = vmul.f32 %v691, %v895
        %v920 = vmul.f32 %v693, %v895
        %v921 = vmul.f32 %v696, %v895
        %v922 = vmul.f32 %v698, %v895
        %v923 = vmul.f32 %v701, %v895
        %v924 = vmul.f32 %v703, %v895
        %v925 = vmul.f32 %v706, %v895
        %v926 = vmul.f32 %v708, %v895
        %v927 = vmul.f32 %v711, %v895
        %v928 = vmul.f32 %v713, %v895
        %v929 = vld [vmem:[%s3] sm:$0x1]
        %v931 = vperm.slane %v929, 0
        %v933 = vadd.f32 %v897, %v931
        %v934 = vadd.f32 %v898, %v931
        %v935 = vadd.f32 %v899, %v931
        %v936 = vadd.f32 %v900, %v931
        %v937 = vadd.f32 %v901, %v931
        %v938 = vadd.f32 %v902, %v931
        %v939 = vadd.f32 %v903, %v931
        %v940 = vadd.f32 %v904, %v931
        %v941 = vadd.f32 %v905, %v931
        %v942 = vadd.f32 %v906, %v931
        %v943 = vadd.f32 %v907, %v931
        %v944 = vadd.f32 %v908, %v931
        %v945 = vadd.f32 %v909, %v931
        %v946 = vadd.f32 %v910, %v931
        %v947 = vadd.f32 %v911, %v931
        %v948 = vadd.f32 %v912, %v931
        %v949 = vadd.f32 %v913, %v931
        %v950 = vadd.f32 %v914, %v931
        %v951 = vadd.f32 %v915, %v931
        %v952 = vadd.f32 %v916, %v931
        %v953 = vadd.f32 %v917, %v931
        %v954 = vadd.f32 %v918, %v931
        %v955 = vadd.f32 %v919, %v931
        %v956 = vadd.f32 %v920, %v931
        %v957 = vadd.f32 %v921, %v931
        %v958 = vadd.f32 %v922, %v931
        %v959 = vadd.f32 %v923, %v931
        %v960 = vadd.f32 %v924, %v931
        %v961 = vadd.f32 %v925, %v931
        %v962 = vadd.f32 %v926, %v931
        %v963 = vadd.f32 %v927, %v931
        %v964 = vadd.f32 %v928, %v931
        %v965 = vmax.f32 %v933, 0.0
        %v966 = vmax.f32 %v934, 0.0
        %v967 = vmax.f32 %v935, 0.0
        %v968 = vmax.f32 %v936, 0.0
        %v969 = vmax.f32 %v937, 0.0
        %v970 = vmax.f32 %v938, 0.0
        %v971 = vmax.f32 %v939, 0.0
        %v972 = vmax.f32 %v940, 0.0
        %v973 = vmax.f32 %v941, 0.0
        %v974 = vmax.f32 %v942, 0.0
        %v975 = vmax.f32 %v943, 0.0
        %v976 = vmax.f32 %v944, 0.0
        %v977 = vmax.f32 %v945, 0.0
        %v978 = vmax.f32 %v946, 0.0
        %v979 = vmax.f32 %v947, 0.0
        %v980 = vmax.f32 %v948, 0.0
        %v981 = vmax.f32 %v949, 0.0
        %v982 = vmax.f32 %v950, 0.0
        %v983 = vmax.f32 %v951, 0.0
        %v984 = vmax.f32 %v952, 0.0
        %v985 = vmax.f32 %v953, 0.0
        %v986 = vmax.f32 %v954, 0.0
        %v987 = vmax.f32 %v955, 0.0
        %v988 = vmax.f32 %v956, 0.0
        %v989 = vmax.f32 %v957, 0.0
        %v990 = vmax.f32 %v958, 0.0
        %v991 = vmax.f32 %v959, 0.0
        %v992 = vmax.f32 %v960, 0.0
        %v993 = vmax.f32 %v961, 0.0
        %v994 = vmax.f32 %v962, 0.0
        %v995 = vmax.f32 %v963, 0.0
        %v996 = vmax.f32 %v964, 0.0
        %v997 = vld [vmem:[%s4] sm:$0x1]
        %v999 = vperm.slane %v997, 0
        %v1001 = vsub.f32 %v965, %v999
        %v1002 = vsub.f32 %v966, %v999
        %v1003 = vsub.f32 %v967, %v999
        %v1004 = vsub.f32 %v968, %v999
        %v1005 = vsub.f32 %v969, %v999
        %v1006 = vsub.f32 %v970, %v999
        %v1007 = vsub.f32 %v971, %v999
        %v1008 = vsub.f32 %v972, %v999
        %v1009 = vsub.f32 %v973, %v999
        %v1010 = vsub.f32 %v974, %v999
        %v1011 = vsub.f32 %v975, %v999
        %v1012 = vsub.f32 %v976, %v999
        %v1013 = vsub.f32 %v977, %v999
        %v1014 = vsub.f32 %v978, %v999
        %v1015 = vsub.f32 %v979, %v999
        %v1016 = vsub.f32 %v980, %v999
        %v1017 = vsub.f32 %v981, %v999
        %v1018 = vsub.f32 %v982, %v999
        %v1019 = vsub.f32 %v983, %v999
        %v1020 = vsub.f32 %v984, %v999
        %v1021 = vsub.f32 %v985, %v999
        %v1022 = vsub.f32 %v986, %v999
        %v1023 = vsub.f32 %v987, %v999
        %v1024 = vsub.f32 %v988, %v999
        %v1025 = vsub.f32 %v989, %v999
        %v1026 = vsub.f32 %v990, %v999
        %v1027 = vsub.f32 %v991, %v999
        %v1028 = vsub.f32 %v992, %v999
        %v1029 = vsub.f32 %v993, %v999
        %v1030 = vsub.f32 %v994, %v999
        %v1031 = vsub.f32 %v995, %v999
        %v1032 = vsub.f32 %v996, %v999
        %v1033 = vand.u32 2147483647, %v1001
        %vm1034 = vcmp.le.f32.partialorder %v1033, 0.7853982
        %vm1035 = vcmp.lt.s32.totalorder %v1001, 0
        %v1036 = vand.u32 %v1001, 2139095040
        %v1037 = vshrl.u32 %v1036, 23
        %v1038 = vsub.s32 %v1037, 127
        %v1039 = vand.u32 2147483647, %v1001
        %v1040 = vand.u32 %v1039, 8388607
        %v1041 = vor.u32 %v1040, 8388608
        %v1042 = vsub.s32 0, %v1041
        %v1043 = vadd.s32 %v1038, 1
        %vm1044 = vcmp.gt.s32.totalorder %v1043, 0
        %v1045 = vsel %vm1044, %v1043, 0
        %v1046 = vshrl.u32 %v1045, 5
        %v1047 = vand.u32 %v1045, 31
        %v1048 = vsub.s32 32, %v1047
        %v1049 = vshrl.u32 683565275, %v1048
        %v1050 = vshll.u32 683565275, %v1047
        %v1051 = vshrl.u32 2475754826, %v1048
        %v1052 = vor.u32 %v1050, %v1051
        %v1053 = vshll.u32 2475754826, %v1047
        %v1054 = vshrl.u32 2131351028, %v1048
        %v1055 = vor.u32 %v1053, %v1054
        %v1056 = vshll.u32 2131351028, %v1047
        %v1057 = vshrl.u32 2102212464, %v1048
        %v1058 = vor.u32 %v1056, %v1057
        %v1059 = vshll.u32 2102212464, %v1047
        %v1060 = vshrl.u32 920167782, %v1048
        %v1061 = vor.u32 %v1059, %v1060
        %v1062 = vshll.u32 920167782, %v1047
        %v1063 = vshrl.u32 1326507024, %v1048
        %v1064 = vor.u32 %v1062, %v1063
        %vm1065 = vcmp.lt.s32.totalorder %v1046, 1
        %vm1066 = vcmp.lt.s32.totalorder %v1046, 2
        %vm1067 = vcmp.lt.s32.totalorder %v1046, 3
        %vm1068 = vcmp.lt.s32.totalorder %v1046, 4
        %v1069 = vsel %vm1065, %v1049, %v1052
        %v1070 = vsel %vm1068, %v1058, 2102212464
        %v1071 = vsel %vm1067, %v1055, %v1070
        %v1072 = vsel %vm1066, %v1069, %v1071
        %v1073 = vsel %vm1065, %v1052, %v1055
        %v1074 = vsel %vm1068, %v1061, 920167782
        %v1075 = vsel %vm1067, %v1058, %v1074
        %v1076 = vsel %vm1066, %v1073, %v1075
        %v1077 = vsel %vm1065, %v1055, %v1058
        %v1078 = vsel %vm1068, %v1064, 1326507024
        %v1079 = vsel %vm1067, %v1061, %v1078
        %v1080 = vsel %vm1066, %v1077, %v1079
        %v1081 = vshll.u32 %v1041, 8
        %v1082 = vand.u32 %v1081, 65535
        %v1083 = vshrl.u32 %v1081, 16
        %v1084 = vand.u32 %v1080, 65535
        %v1085 = vshrl.u32 %v1080, 16
        %v1086 = vmul.u32 %v1082, %v1084
        %v1087 = vmul.u32 %v1082, %v1085
        %v1088 = vmul.u32 %v1083, %v1084
        %v1089 = vmul.u32 %v1083, %v1085
        %v1090 = vshll.u32 %v1087, 16
        %v1091 = vshrl.u32 %v1087, 16
        %v1092 = vshll.u32 %v1088, 16
        %v1093 = vshrl.u32 %v1088, 16
        %vm1094 = vc.u32 %v1086, %v1090
        %v1095 = vsel %vm1094, 1, 0
        %v1096 = vadd.s32 %v1086, %v1090
        %v1097 = vadd.s32 %v1089, %v1095
        %vm1098 = vc.u32 %v1096, %v1092
        %v1099 = vsel %vm1098, 1, 0
        %v1100 = vadd.s32 %v1096, %v1092
        %v1101 = vadd.s32 %v1097, %v1099
        %v1102 = vadd.s32 %v1101, %v1091
        %v1103 = vadd.s32 %v1102, %v1093
        %v1104 = vand.u32 %v1081, 65535
        %v1105 = vshrl.u32 %v1081, 16
        %v1106 = vand.u32 %v1076, 65535
        %v1107 = vshrl.u32 %v1076, 16
        %v1108 = vmul.u32 %v1104, %v1106
        %v1109 = vmul.u32 %v1104, %v1107
        %v1110 = vmul.u32 %v1105, %v1106
        %v1111 = vmul.u32 %v1105, %v1107
        %v1112 = vshll.u32 %v1109, 16
        %v1113 = vshrl.u32 %v1109, 16
        %v1114 = vshll.u32 %v1110, 16
        %v1115 = vshrl.u32 %v1110, 16
        %vm1116 = vc.u32 %v1108, %v1112
        %v1117 = vsel %vm1116, 1, 0
        %v1118 = vadd.s32 %v1108, %v1112
        %v1119 = vadd.s32 %v1111, %v1117
        %vm1120 = vc.u32 %v1118, %v1114
        %v1121 = vsel %vm1120, 1, 0
        %v1122 = vadd.s32 %v1118, %v1114
        %v1123 = vadd.s32 %v1119, %v1121
        %v1124 = vadd.s32 %v1123, %v1113
        %v1125 = vadd.s32 %v1124, %v1115
        %v1126 = vmul.u32 %v1081, %v1072
        %v1127 = vadd.s32 %v1103, %v1122
        %vm1128 = vc.u32 %v1103, %v1122
        %v1129 = vadd.s32 %v1125, 1
        %v1130 = vsel %vm1128, %v1129, %v1125
        %v1131 = vadd.s32 %v1126, %v1130
        %v1132 = vadd.s32 %v1131, 536870912
        %v1133 = vshrl.u32 %v1132, 30
        %v1134 = vshll.u32 %v1133, 30
        %v1135 = vsub.s32 %v1131, %v1134
        %vm1136 = vcmp.lt.s32.totalorder %v1135, 0
        %v1137 = vsub.s32 0, %v1135
        %v1138 = vsel %vm1136, %v1137, %v1135
        %v1139 = vclz %v1138
        %v1140 = vsub.s32 %v1139, 2
        %vm1141 = vcmp.gt.s32.totalorder 0, %v1140
        %v1142 = vsel %vm1141, 0, %v1140
        %v1143 = vsub.s32 32, %v1142
        %v1144 = vshll.u32 %v1135, %v1142
        %v1145 = vshrl.u32 %v1127, %v1143
        %v1146 = vor.u32 %v1144, %v1145
        %v1147 = vsub.s32 4294967266, %v1142
        %v1148 = vadd.s32 %v1147, 127
        %v1149 = vshll.u32 %v1148, 23
        %v1150 = vor.u32 4788187, %v1149
        %v1151 = vand.u32 2147483647, %v1150
        %v1153 = vcvt.s32.f32 %v1146
        %v1154 = vmul.f32 %v1153, %v1151
        %v1155 = vxor.u32 %v1154, 2147483648
        %v1156 = vsel %vm1035, %v1155, %v1154
        %v1157 = vsub.s32 4, %v1133
        %v1158 = vsel %vm1035, %v1157, %v1133
        %v1159 = vsel %vm1034, %v1001, %v1156
        %v1160 = vsel %vm1034, 0, %v1158
        %v1161 = vmul.f32 %v1159, %v1159
        %v1162 = vmul.f32 %v1161, -0.001358992
        %v1163 = vadd.f32 %v1162, 0.041655596
        %v1164 = vmul.f32 %v1161, %v1163
        %v1165 = vadd.f32 %v1164, -0.4999988
        %v1166 = vmul.f32 %v1161, %v1165
        %v1167 = vadd.f32 1.0, %v1166
        %v1168 = vmul.f32 %v1159, %v1159
        %v1169 = vmul.f32 %v1168, -0.00019511016
        %v1170 = vadd.f32 %v1169, 0.008332121
        %v1171 = vmul.f32 %v1168, %v1170
        %v1172 = vadd.f32 %v1171, -0.16666654
        %v1173 = vmul.f32 %v1168, %v1172
        %v1174 = vadd.f32 %v1173, 1.0
        %v1175 = vmul.f32 %v1174, %v1159
        %vm1176 = vweird.f32 %v1001
        %v1177 = vand.u32 %v1160, 3
        %vm1178 = vcmp.lt.s32.totalorder %v1177, 2
        %vm1179 = vcmp.eq.s32.totalorder %v1177, 0
        %v1180 = vxor.u32 %v1175, 2147483648
        %v1181 = vsel %vm1179, %v1167, %v1180
        %vm1182 = vcmp.eq.s32.totalorder %v1177, 2
        %v1183 = vxor.u32 %v1167, 2147483648
        %v1184 = vsel %vm1182, %v1183, %v1175
        %v1185 = vsel %vm1178, %v1181, %v1184
        %v1186 = vsel %vm1176, nan, %v1185
        %v1187 = vand.u32 2147483647, %v1002
        %vm1188 = vcmp.le.f32.partialorder %v1187, 0.7853982
        %vm1189 = vcmp.lt.s32.totalorder %v1002, 0
        %v1190 = vand.u32 %v1002, 2139095040
        %v1191 = vshrl.u32 %v1190, 23
        %v1192 = vsub.s32 %v1191, 127
        %v1193 = vand.u32 2147483647, %v1002
        %v1194 = vand.u32 %v1193, 8388607
        %v1195 = vor.u32 %v1194, 8388608
        %v1196 = vsub.s32 0, %v1195
        %v1197 = vadd.s32 %v1192, 1
        %vm1198 = vcmp.gt.s32.totalorder %v1197, 0
        %v1199 = vsel %vm1198, %v1197, 0
        %v1200 = vshrl.u32 %v1199, 5
        %v1201 = vand.u32 %v1199, 31
        %v1202 = vsub.s32 32, %v1201
        %v1203 = vshrl.u32 683565275, %v1202
        %v1204 = vshll.u32 683565275, %v1201
        %v1205 = vshrl.u32 2475754826, %v1202
        %v1206 = vor.u32 %v1204, %v1205
        %v1207 = vshll.u32 2475754826, %v1201
        %v1208 = vshrl.u32 2131351028, %v1202
        %v1209 = vor.u32 %v1207, %v1208
        %v1210 = vshll.u32 2131351028, %v1201
        %v1211 = vshrl.u32 2102212464, %v1202
        %v1212 = vor.u32 %v1210, %v1211
        %v1213 = vshll.u32 2102212464, %v1201
        %v1214 = vshrl.u32 920167782, %v1202
        %v1215 = vor.u32 %v1213, %v1214
        %v1216 = vshll.u32 920167782, %v1201
        %v1217 = vshrl.u32 1326507024, %v1202
        %v1218 = vor.u32 %v1216, %v1217
        %vm1219 = vcmp.lt.s32.totalorder %v1200, 1
        %vm1220 = vcmp.lt.s32.totalorder %v1200, 2
        %vm1221 = vcmp.lt.s32.totalorder %v1200, 3
        %vm1222 = vcmp.lt.s32.totalorder %v1200, 4
        %v1223 = vsel %vm1219, %v1203, %v1206
        %v1224 = vsel %vm1222, %v1212, 2102212464
        %v1225 = vsel %vm1221, %v1209, %v1224
        %v1226 = vsel %vm1220, %v1223, %v1225
        %v1227 = vsel %vm1219, %v1206, %v1209
        %v1228 = vsel %vm1222, %v1215, 920167782
        %v1229 = vsel %vm1221, %v1212, %v1228
        %v1230 = vsel %vm1220, %v1227, %v1229
        %v1231 = vsel %vm1219, %v1209, %v1212
        %v1232 = vsel %vm1222, %v1218, 1326507024
        %v1233 = vsel %vm1221, %v1215, %v1232
        %v1234 = vsel %vm1220, %v1231, %v1233
        %v1235 = vshll.u32 %v1195, 8
        %v1236 = vand.u32 %v1235, 65535
        %v1237 = vshrl.u32 %v1235, 16
        %v1238 = vand.u32 %v1234, 65535
        %v1239 = vshrl.u32 %v1234, 16
        %v1240 = vmul.u32 %v1236, %v1238
        %v1241 = vmul.u32 %v1236, %v1239
        %v1242 = vmul.u32 %v1237, %v1238
        %v1243 = vmul.u32 %v1237, %v1239
        %v1244 = vshll.u32 %v1241, 16
        %v1245 = vshrl.u32 %v1241, 16
        %v1246 = vshll.u32 %v1242, 16
        %v1247 = vshrl.u32 %v1242, 16
        %vm1248 = vc.u32 %v1240, %v1244
        %v1249 = vsel %vm1248, 1, 0
        %v1250 = vadd.s32 %v1240, %v1244
        %v1251 = vadd.s32 %v1243, %v1249
        %vm1252 = vc.u32 %v1250, %v1246
        %v1253 = vsel %vm1252, 1, 0
        %v1254 = vadd.s32 %v1250, %v1246
        %v1255 = vadd.s32 %v1251, %v1253
        %v1256 = vadd.s32 %v1255, %v1245
        %v1257 = vadd.s32 %v1256, %v1247
        %v1258 = vand.u32 %v1235, 65535
        %v1259 = vshrl.u32 %v1235, 16
        %v1260 = vand.u32 %v1230, 65535
        %v1261 = vshrl.u32 %v1230, 16
        %v1262 = vmul.u32 %v1258, %v1260
        %v1263 = vmul.u32 %v1258, %v1261
        %v1264 = vmul.u32 %v1259, %v1260
        %v1265 = vmul.u32 %v1259, %v1261
        %v1266 = vshll.u32 %v1263, 16
        %v1267 = vshrl.u32 %v1263, 16
        %v1268 = vshll.u32 %v1264, 16
        %v1269 = vshrl.u32 %v1264, 16
        %vm1270 = vc.u32 %v1262, %v1266
        %v1271 = vsel %vm1270, 1, 0
        %v1272 = vadd.s32 %v1262, %v1266
        %v1273 = vadd.s32 %v1265, %v1271
        %vm1274 = vc.u32 %v1272, %v1268
        %v1275 = vsel %vm1274, 1, 0
        %v1276 = vadd.s32 %v1272, %v1268
        %v1277 = vadd.s32 %v1273, %v1275
        %v1278 = vadd.s32 %v1277, %v1267
        %v1279 = vadd.s32 %v1278, %v1269
        %v1280 = vmul.u32 %v1235, %v1226
        %v1281 = vadd.s32 %v1257, %v1276
        %vm1282 = vc.u32 %v1257, %v1276
        %v1283 = vadd.s32 %v1279, 1
        %v1284 = vsel %vm1282, %v1283, %v1279
        %v1285 = vadd.s32 %v1280, %v1284
        %v1286 = vadd.s32 %v1285, 536870912
        %v1287 = vshrl.u32 %v1286, 30
        %v1288 = vshll.u32 %v1287, 30
        %v1289 = vsub.s32 %v1285, %v1288
        %vm1290 = vcmp.lt.s32.totalorder %v1289, 0
        %v1291 = vsub.s32 0, %v1289
        %v1292 = vsel %vm1290, %v1291, %v1289
        %v1293 = vclz %v1292
        %v1294 = vsub.s32 %v1293, 2
        %vm1295 = vcmp.gt.s32.totalorder 0, %v1294
        %v1296 = vsel %vm1295, 0, %v1294
        %v1297 = vsub.s32 32, %v1296
        %v1298 = vshll.u32 %v1289, %v1296
        %v1299 = vshrl.u32 %v1281, %v1297
        %v1300 = vor.u32 %v1298, %v1299
        %v1301 = vsub.s32 4294967266, %v1296
        %v1302 = vadd.s32 %v1301, 127
        %v1303 = vshll.u32 %v1302, 23
        %v1304 = vor.u32 4788187, %v1303
        %v1305 = vand.u32 2147483647, %v1304
        %v1307 = vcvt.s32.f32 %v1300
        %v1308 = vmul.f32 %v1307, %v1305
        %v1309 = vxor.u32 %v1308, 2147483648
        %v1310 = vsel %vm1189, %v1309, %v1308
        %v1311 = vsub.s32 4, %v1287
        %v1312 = vsel %vm1189, %v1311, %v1287
        %v1313 = vsel %vm1188, %v1002, %v1310
        %v1314 = vsel %vm1188, 0, %v1312
        %v1315 = vmul.f32 %v1313, %v1313
        %v1316 = vmul.f32 %v1315, -0.001358992
        %v1317 = vadd.f32 %v1316, 0.041655596
        %v1318 = vmul.f32 %v1315, %v1317
        %v1319 = vadd.f32 %v1318, -0.4999988
        %v1320 = vmul.f32 %v1315, %v1319
        %v1321 = vadd.f32 1.0, %v1320
        %v1322 = vmul.f32 %v1313, %v1313
        %v1323 = vmul.f32 %v1322, -0.00019511016
        %v1324 = vadd.f32 %v1323, 0.008332121
        %v1325 = vmul.f32 %v1322, %v1324
        %v1326 = vadd.f32 %v1325, -0.16666654
        %v1327 = vmul.f32 %v1322, %v1326
        %v1328 = vadd.f32 %v1327, 1.0
        %v1329 = vmul.f32 %v1328, %v1313
        %vm1330 = vweird.f32 %v1002
        %v1331 = vand.u32 %v1314, 3
        %vm1332 = vcmp.lt.s32.totalorder %v1331, 2
        %vm1333 = vcmp.eq.s32.totalorder %v1331, 0
        %v1334 = vxor.u32 %v1329, 2147483648
        %v1335 = vsel %vm1333, %v1321, %v1334
        %vm1336 = vcmp.eq.s32.totalorder %v1331, 2
        %v1337 = vxor.u32 %v1321, 2147483648
        %v1338 = vsel %vm1336, %v1337, %v1329
        %v1339 = vsel %vm1332, %v1335, %v1338
        %v1340 = vsel %vm1330, nan, %v1339
        %v1341 = vand.u32 2147483647, %v1003
        %vm1342 = vcmp.le.f32.partialorder %v1341, 0.7853982
        %vm1343 = vcmp.lt.s32.totalorder %v1003, 0
        %v1344 = vand.u32 %v1003, 2139095040
        %v1345 = vshrl.u32 %v1344, 23
        %v1346 = vsub.s32 %v1345, 127
        %v1347 = vand.u32 2147483647, %v1003
        %v1348 = vand.u32 %v1347, 8388607
        %v1349 = vor.u32 %v1348, 8388608
        %v1350 = vsub.s32 0, %v1349
        %v1351 = vadd.s32 %v1346, 1
        %vm1352 = vcmp.gt.s32.totalorder %v1351, 0
        %v1353 = vsel %vm1352, %v1351, 0
        %v1354 = vshrl.u32 %v1353, 5
        %v1355 = vand.u32 %v1353, 31
        %v1356 = vsub.s32 32, %v1355
        %v1357 = vshrl.u32 683565275, %v1356
        %v1358 = vshll.u32 683565275, %v1355
        %v1359 = vshrl.u32 2475754826, %v1356
        %v1360 = vor.u32 %v1358, %v1359
        %v1361 = vshll.u32 2475754826, %v1355
        %v1362 = vshrl.u32 2131351028, %v1356
        %v1363 = vor.u32 %v1361, %v1362
        %v1364 = vshll.u32 2131351028, %v1355
        %v1365 = vshrl.u32 2102212464, %v1356
        %v1366 = vor.u32 %v1364, %v1365
        %v1367 = vshll.u32 2102212464, %v1355
        %v1368 = vshrl.u32 920167782, %v1356
        %v1369 = vor.u32 %v1367, %v1368
        %v1370 = vshll.u32 920167782, %v1355
        %v1371 = vshrl.u32 1326507024, %v1356
        %v1372 = vor.u32 %v1370, %v1371
        %vm1373 = vcmp.lt.s32.totalorder %v1354, 1
        %vm1374 = vcmp.lt.s32.totalorder %v1354, 2
        %vm1375 = vcmp.lt.s32.totalorder %v1354, 3
        %vm1376 = vcmp.lt.s32.totalorder %v1354, 4
        %v1377 = vsel %vm1373, %v1357, %v1360
        %v1378 = vsel %vm1376, %v1366, 2102212464
        %v1379 = vsel %vm1375, %v1363, %v1378
        %v1380 = vsel %vm1374, %v1377, %v1379
        %v1381 = vsel %vm1373, %v1360, %v1363
        %v1382 = vsel %vm1376, %v1369, 920167782
        %v1383 = vsel %vm1375, %v1366, %v1382
        %v1384 = vsel %vm1374, %v1381, %v1383
        %v1385 = vsel %vm1373, %v1363, %v1366
        %v1386 = vsel %vm1376, %v1372, 1326507024
        %v1387 = vsel %vm1375, %v1369, %v1386
        %v1388 = vsel %vm1374, %v1385, %v1387
        %v1389 = vshll.u32 %v1349, 8
        %v1390 = vand.u32 %v1389, 65535
        %v1391 = vshrl.u32 %v1389, 16
        %v1392 = vand.u32 %v1388, 65535
        %v1393 = vshrl.u32 %v1388, 16
        %v1394 = vmul.u32 %v1390, %v1392
        %v1395 = vmul.u32 %v1390, %v1393
        %v1396 = vmul.u32 %v1391, %v1392
        %v1397 = vmul.u32 %v1391, %v1393
        %v1398 = vshll.u32 %v1395, 16
        %v1399 = vshrl.u32 %v1395, 16
        %v1400 = vshll.u32 %v1396, 16
        %v1401 = vshrl.u32 %v1396, 16
        %vm1402 = vc.u32 %v1394, %v1398
        %v1403 = vsel %vm1402, 1, 0
        %v1404 = vadd.s32 %v1394, %v1398
        %v1405 = vadd.s32 %v1397, %v1403
        %vm1406 = vc.u32 %v1404, %v1400
        %v1407 = vsel %vm1406, 1, 0
        %v1408 = vadd.s32 %v1404, %v1400
        %v1409 = vadd.s32 %v1405, %v1407
        %v1410 = vadd.s32 %v1409, %v1399
        %v1411 = vadd.s32 %v1410, %v1401
        %v1412 = vand.u32 %v1389, 65535
        %v1413 = vshrl.u32 %v1389, 16
        %v1414 = vand.u32 %v1384, 65535
        %v1415 = vshrl.u32 %v1384, 16
        %v1416 = vmul.u32 %v1412, %v1414
        %v1417 = vmul.u32 %v1412, %v1415
        %v1418 = vmul.u32 %v1413, %v1414
        %v1419 = vmul.u32 %v1413, %v1415
        %v1420 = vshll.u32 %v1417, 16
        %v1421 = vshrl.u32 %v1417, 16
        %v1422 = vshll.u32 %v1418, 16
        %v1423 = vshrl.u32 %v1418, 16
        %vm1424 = vc.u32 %v1416, %v1420
        %v1425 = vsel %vm1424, 1, 0
        %v1426 = vadd.s32 %v1416, %v1420
        %v1427 = vadd.s32 %v1419, %v1425
        %vm1428 = vc.u32 %v1426, %v1422
        %v1429 = vsel %vm1428, 1, 0
        %v1430 = vadd.s32 %v1426, %v1422
        %v1431 = vadd.s32 %v1427, %v1429
        %v1432 = vadd.s32 %v1431, %v1421
        %v1433 = vadd.s32 %v1432, %v1423
        %v1434 = vmul.u32 %v1389, %v1380
        %v1435 = vadd.s32 %v1411, %v1430
        %vm1436 = vc.u32 %v1411, %v1430
        %v1437 = vadd.s32 %v1433, 1
        %v1438 = vsel %vm1436, %v1437, %v1433
        %v1439 = vadd.s32 %v1434, %v1438
        %v1440 = vadd.s32 %v1439, 536870912
        %v1441 = vshrl.u32 %v1440, 30
        %v1442 = vshll.u32 %v1441, 30
        %v1443 = vsub.s32 %v1439, %v1442
        %vm1444 = vcmp.lt.s32.totalorder %v1443, 0
        %v1445 = vsub.s32 0, %v1443
        %v1446 = vsel %vm1444, %v1445, %v1443
        %v1447 = vclz %v1446
        %v1448 = vsub.s32 %v1447, 2
        %vm1449 = vcmp.gt.s32.totalorder 0, %v1448
        %v1450 = vsel %vm1449, 0, %v1448
        %v1451 = vsub.s32 32, %v1450
        %v1452 = vshll.u32 %v1443, %v1450
        %v1453 = vshrl.u32 %v1435, %v1451
        %v1454 = vor.u32 %v1452, %v1453
        %v1455 = vsub.s32 4294967266, %v1450
        %v1456 = vadd.s32 %v1455, 127
        %v1457 = vshll.u32 %v1456, 23
        %v1458 = vor.u32 4788187, %v1457
        %v1459 = vand.u32 2147483647, %v1458
        %v1461 = vcvt.s32.f32 %v1454
        %v1462 = vmul.f32 %v1461, %v1459
        %v1463 = vxor.u32 %v1462, 2147483648
        %v1464 = vsel %vm1343, %v1463, %v1462
        %v1465 = vsub.s32 4, %v1441
        %v1466 = vsel %vm1343, %v1465, %v1441
        %v1467 = vsel %vm1342, %v1003, %v1464
        %v1468 = vsel %vm1342, 0, %v1466
        %v1469 = vmul.f32 %v1467, %v1467
        %v1470 = vmul.f32 %v1469, -0.001358992
        %v1471 = vadd.f32 %v1470, 0.041655596
        %v1472 = vmul.f32 %v1469, %v1471
        %v1473 = vadd.f32 %v1472, -0.4999988
        %v1474 = vmul.f32 %v1469, %v1473
        %v1475 = vadd.f32 1.0, %v1474
        %v1476 = vmul.f32 %v1467, %v1467
        %v1477 = vmul.f32 %v1476, -0.00019511016
        %v1478 = vadd.f32 %v1477, 0.008332121
        %v1479 = vmul.f32 %v1476, %v1478
        %v1480 = vadd.f32 %v1479, -0.16666654
        %v1481 = vmul.f32 %v1476, %v1480
        %v1482 = vadd.f32 %v1481, 1.0
        %v1483 = vmul.f32 %v1482, %v1467
        %vm1484 = vweird.f32 %v1003
        %v1485 = vand.u32 %v1468, 3
        %vm1486 = vcmp.lt.s32.totalorder %v1485, 2
        %vm1487 = vcmp.eq.s32.totalorder %v1485, 0
        %v1488 = vxor.u32 %v1483, 2147483648
        %v1489 = vsel %vm1487, %v1475, %v1488
        %vm1490 = vcmp.eq.s32.totalorder %v1485, 2
        %v1491 = vxor.u32 %v1475, 2147483648
        %v1492 = vsel %vm1490, %v1491, %v1483
        %v1493 = vsel %vm1486, %v1489, %v1492
        %v1494 = vsel %vm1484, nan, %v1493
        %v1495 = vand.u32 2147483647, %v1004
        %vm1496 = vcmp.le.f32.partialorder %v1495, 0.7853982
        %vm1497 = vcmp.lt.s32.totalorder %v1004, 0
        %v1498 = vand.u32 %v1004, 2139095040
        %v1499 = vshrl.u32 %v1498, 23
        %v1500 = vsub.s32 %v1499, 127
        %v1501 = vand.u32 2147483647, %v1004
        %v1502 = vand.u32 %v1501, 8388607
        %v1503 = vor.u32 %v1502, 8388608
        %v1504 = vsub.s32 0, %v1503
        %v1505 = vadd.s32 %v1500, 1
        %vm1506 = vcmp.gt.s32.totalorder %v1505, 0
        %v1507 = vsel %vm1506, %v1505, 0
        %v1508 = vshrl.u32 %v1507, 5
        %v1509 = vand.u32 %v1507, 31
        %v1510 = vsub.s32 32, %v1509
        %v1511 = vshrl.u32 683565275, %v1510
        %v1512 = vshll.u32 683565275, %v1509
        %v1513 = vshrl.u32 2475754826, %v1510
        %v1514 = vor.u32 %v1512, %v1513
        %v1515 = vshll.u32 2475754826, %v1509
        %v1516 = vshrl.u32 2131351028, %v1510
        %v1517 = vor.u32 %v1515, %v1516
        %v1518 = vshll.u32 2131351028, %v1509
        %v1519 = vshrl.u32 2102212464, %v1510
        %v1520 = vor.u32 %v1518, %v1519
        %v1521 = vshll.u32 2102212464, %v1509
        %v1522 = vshrl.u32 920167782, %v1510
        %v1523 = vor.u32 %v1521, %v1522
        %v1524 = vshll.u32 920167782, %v1509
        %v1525 = vshrl.u32 1326507024, %v1510
        %v1526 = vor.u32 %v1524, %v1525
        %vm1527 = vcmp.lt.s32.totalorder %v1508, 1
        %vm1528 = vcmp.lt.s32.totalorder %v1508, 2
        %vm1529 = vcmp.lt.s32.totalorder %v1508, 3
        %vm1530 = vcmp.lt.s32.totalorder %v1508, 4
        %v1531 = vsel %vm1527, %v1511, %v1514
        %v1532 = vsel %vm1530, %v1520, 2102212464
        %v1533 = vsel %vm1529, %v1517, %v1532
        %v1534 = vsel %vm1528, %v1531, %v1533
        %v1535 = vsel %vm1527, %v1514, %v1517
        %v1536 = vsel %vm1530, %v1523, 920167782
        %v1537 = vsel %vm1529, %v1520, %v1536
        %v1538 = vsel %vm1528, %v1535, %v1537
        %v1539 = vsel %vm1527, %v1517, %v1520
        %v1540 = vsel %vm1530, %v1526, 1326507024
        %v1541 = vsel %vm1529, %v1523, %v1540
        %v1542 = vsel %vm1528, %v1539, %v1541
        %v1543 = vshll.u32 %v1503, 8
        %v1544 = vand.u32 %v1543, 65535
        %v1545 = vshrl.u32 %v1543, 16
        %v1546 = vand.u32 %v1542, 65535
        %v1547 = vshrl.u32 %v1542, 16
        %v1548 = vmul.u32 %v1544, %v1546
        %v1549 = vmul.u32 %v1544, %v1547
        %v1550 = vmul.u32 %v1545, %v1546
        %v1551 = vmul.u32 %v1545, %v1547
        %v1552 = vshll.u32 %v1549, 16
        %v1553 = vshrl.u32 %v1549, 16
        %v1554 = vshll.u32 %v1550, 16
        %v1555 = vshrl.u32 %v1550, 16
        %vm1556 = vc.u32 %v1548, %v1552
        %v1557 = vsel %vm1556, 1, 0
        %v1558 = vadd.s32 %v1548, %v1552
        %v1559 = vadd.s32 %v1551, %v1557
        %vm1560 = vc.u32 %v1558, %v1554
        %v1561 = vsel %vm1560, 1, 0
        %v1562 = vadd.s32 %v1558, %v1554
        %v1563 = vadd.s32 %v1559, %v1561
        %v1564 = vadd.s32 %v1563, %v1553
        %v1565 = vadd.s32 %v1564, %v1555
        %v1566 = vand.u32 %v1543, 65535
        %v1567 = vshrl.u32 %v1543, 16
        %v1568 = vand.u32 %v1538, 65535
        %v1569 = vshrl.u32 %v1538, 16
        %v1570 = vmul.u32 %v1566, %v1568
        %v1571 = vmul.u32 %v1566, %v1569
        %v1572 = vmul.u32 %v1567, %v1568
        %v1573 = vmul.u32 %v1567, %v1569
        %v1574 = vshll.u32 %v1571, 16
        %v1575 = vshrl.u32 %v1571, 16
        %v1576 = vshll.u32 %v1572, 16
        %v1577 = vshrl.u32 %v1572, 16
        %vm1578 = vc.u32 %v1570, %v1574
        %v1579 = vsel %vm1578, 1, 0
        %v1580 = vadd.s32 %v1570, %v1574
        %v1581 = vadd.s32 %v1573, %v1579
        %vm1582 = vc.u32 %v1580, %v1576
        %v1583 = vsel %vm1582, 1, 0
        %v1584 = vadd.s32 %v1580, %v1576
        %v1585 = vadd.s32 %v1581, %v1583
        %v1586 = vadd.s32 %v1585, %v1575
        %v1587 = vadd.s32 %v1586, %v1577
        %v1588 = vmul.u32 %v1543, %v1534
        %v1589 = vadd.s32 %v1565, %v1584
        %vm1590 = vc.u32 %v1565, %v1584
        %v1591 = vadd.s32 %v1587, 1
        %v1592 = vsel %vm1590, %v1591, %v1587
        %v1593 = vadd.s32 %v1588, %v1592
        %v1594 = vadd.s32 %v1593, 536870912
        %v1595 = vshrl.u32 %v1594, 30
        %v1596 = vshll.u32 %v1595, 30
        %v1597 = vsub.s32 %v1593, %v1596
        %vm1598 = vcmp.lt.s32.totalorder %v1597, 0
        %v1599 = vsub.s32 0, %v1597
        %v1600 = vsel %vm1598, %v1599, %v1597
        %v1601 = vclz %v1600
        %v1602 = vsub.s32 %v1601, 2
        %vm1603 = vcmp.gt.s32.totalorder 0, %v1602
        %v1604 = vsel %vm1603, 0, %v1602
        %v1605 = vsub.s32 32, %v1604
        %v1606 = vshll.u32 %v1597, %v1604
        %v1607 = vshrl.u32 %v1589, %v1605
        %v1608 = vor.u32 %v1606, %v1607
        %v1609 = vsub.s32 4294967266, %v1604
        %v1610 = vadd.s32 %v1609, 127
        %v1611 = vshll.u32 %v1610, 23
        %v1612 = vor.u32 4788187, %v1611
        %v1613 = vand.u32 2147483647, %v1612
        %v1615 = vcvt.s32.f32 %v1608
        %v1616 = vmul.f32 %v1615, %v1613
        %v1617 = vxor.u32 %v1616, 2147483648
        %v1618 = vsel %vm1497, %v1617, %v1616
        %v1619 = vsub.s32 4, %v1595
        %v1620 = vsel %vm1497, %v1619, %v1595
        %v1621 = vsel %vm1496, %v1004, %v1618
        %v1622 = vsel %vm1496, 0, %v1620
        %v1623 = vmul.f32 %v1621, %v1621
        %v1624 = vmul.f32 %v1623, -0.001358992
        %v1625 = vadd.f32 %v1624, 0.041655596
        %v1626 = vmul.f32 %v1623, %v1625
        %v1627 = vadd.f32 %v1626, -0.4999988
        %v1628 = vmul.f32 %v1623, %v1627
        %v1629 = vadd.f32 1.0, %v1628
        %v1630 = vmul.f32 %v1621, %v1621
        %v1631 = vmul.f32 %v1630, -0.00019511016
        %v1632 = vadd.f32 %v1631, 0.008332121
        %v1633 = vmul.f32 %v1630, %v1632
        %v1634 = vadd.f32 %v1633, -0.16666654
        %v1635 = vmul.f32 %v1630, %v1634
        %v1636 = vadd.f32 %v1635, 1.0
        %v1637 = vmul.f32 %v1636, %v1621
        %vm1638 = vweird.f32 %v1004
        %v1639 = vand.u32 %v1622, 3
        %vm1640 = vcmp.lt.s32.totalorder %v1639, 2
        %vm1641 = vcmp.eq.s32.totalorder %v1639, 0
        %v1642 = vxor.u32 %v1637, 2147483648
        %v1643 = vsel %vm1641, %v1629, %v1642
        %vm1644 = vcmp.eq.s32.totalorder %v1639, 2
        %v1645 = vxor.u32 %v1629, 2147483648
        %v1646 = vsel %vm1644, %v1645, %v1637
        %v1647 = vsel %vm1640, %v1643, %v1646
        %v1648 = vsel %vm1638, nan, %v1647
        %v1649 = vand.u32 2147483647, %v1005
        %vm1650 = vcmp.le.f32.partialorder %v1649, 0.7853982
        %vm1651 = vcmp.lt.s32.totalorder %v1005, 0
        %v1652 = vand.u32 %v1005, 2139095040
        %v1653 = vshrl.u32 %v1652, 23
        %v1654 = vsub.s32 %v1653, 127
        %v1655 = vand.u32 2147483647, %v1005
        %v1656 = vand.u32 %v1655, 8388607
        %v1657 = vor.u32 %v1656, 8388608
        %v1658 = vsub.s32 0, %v1657
        %v1659 = vadd.s32 %v1654, 1
        %vm1660 = vcmp.gt.s32.totalorder %v1659, 0
        %v1661 = vsel %vm1660, %v1659, 0
        %v1662 = vshrl.u32 %v1661, 5
        %v1663 = vand.u32 %v1661, 31
        %v1664 = vsub.s32 32, %v1663
        %v1665 = vshrl.u32 683565275, %v1664
        %v1666 = vshll.u32 683565275, %v1663
        %v1667 = vshrl.u32 2475754826, %v1664
        %v1668 = vor.u32 %v1666, %v1667
        %v1669 = vshll.u32 2475754826, %v1663
        %v1670 = vshrl.u32 2131351028, %v1664
        %v1671 = vor.u32 %v1669, %v1670
        %v1672 = vshll.u32 2131351028, %v1663
        %v1673 = vshrl.u32 2102212464, %v1664
        %v1674 = vor.u32 %v1672, %v1673
        %v1675 = vshll.u32 2102212464, %v1663
        %v1676 = vshrl.u32 920167782, %v1664
        %v1677 = vor.u32 %v1675, %v1676
        %v1678 = vshll.u32 920167782, %v1663
        %v1679 = vshrl.u32 1326507024, %v1664
        %v1680 = vor.u32 %v1678, %v1679
        %vm1681 = vcmp.lt.s32.totalorder %v1662, 1
        %vm1682 = vcmp.lt.s32.totalorder %v1662, 2
        %vm1683 = vcmp.lt.s32.totalorder %v1662, 3
        %vm1684 = vcmp.lt.s32.totalorder %v1662, 4
        %v1685 = vsel %vm1681, %v1665, %v1668
        %v1686 = vsel %vm1684, %v1674, 2102212464
        %v1687 = vsel %vm1683, %v1671, %v1686
        %v1688 = vsel %vm1682, %v1685, %v1687
        %v1689 = vsel %vm1681, %v1668, %v1671
        %v1690 = vsel %vm1684, %v1677, 920167782
        %v1691 = vsel %vm1683, %v1674, %v1690
        %v1692 = vsel %vm1682, %v1689, %v1691
        %v1693 = vsel %vm1681, %v1671, %v1674
        %v1694 = vsel %vm1684, %v1680, 1326507024
        %v1695 = vsel %vm1683, %v1677, %v1694
        %v1696 = vsel %vm1682, %v1693, %v1695
        %v1697 = vshll.u32 %v1657, 8
        %v1698 = vand.u32 %v1697, 65535
        %v1699 = vshrl.u32 %v1697, 16
        %v1700 = vand.u32 %v1696, 65535
        %v1701 = vshrl.u32 %v1696, 16
        %v1702 = vmul.u32 %v1698, %v1700
        %v1703 = vmul.u32 %v1698, %v1701
        %v1704 = vmul.u32 %v1699, %v1700
        %v1705 = vmul.u32 %v1699, %v1701
        %v1706 = vshll.u32 %v1703, 16
        %v1707 = vshrl.u32 %v1703, 16
        %v1708 = vshll.u32 %v1704, 16
        %v1709 = vshrl.u32 %v1704, 16
        %vm1710 = vc.u32 %v1702, %v1706
        %v1711 = vsel %vm1710, 1, 0
        %v1712 = vadd.s32 %v1702, %v1706
        %v1713 = vadd.s32 %v1705, %v1711
        %vm1714 = vc.u32 %v1712, %v1708
        %v1715 = vsel %vm1714, 1, 0
        %v1716 = vadd.s32 %v1712, %v1708
        %v1717 = vadd.s32 %v1713, %v1715
        %v1718 = vadd.s32 %v1717, %v1707
        %v1719 = vadd.s32 %v1718, %v1709
        %v1720 = vand.u32 %v1697, 65535
        %v1721 = vshrl.u32 %v1697, 16
        %v1722 = vand.u32 %v1692, 65535
        %v1723 = vshrl.u32 %v1692, 16
        %v1724 = vmul.u32 %v1720, %v1722
        %v1725 = vmul.u32 %v1720, %v1723
        %v1726 = vmul.u32 %v1721, %v1722
        %v1727 = vmul.u32 %v1721, %v1723
        %v1728 = vshll.u32 %v1725, 16
        %v1729 = vshrl.u32 %v1725, 16
        %v1730 = vshll.u32 %v1726, 16
        %v1731 = vshrl.u32 %v1726, 16
        %vm1732 = vc.u32 %v1724, %v1728
        %v1733 = vsel %vm1732, 1, 0
        %v1734 = vadd.s32 %v1724, %v1728
        %v1735 = vadd.s32 %v1727, %v1733
        %vm1736 = vc.u32 %v1734, %v1730
        %v1737 = vsel %vm1736, 1, 0
        %v1738 = vadd.s32 %v1734, %v1730
        %v1739 = vadd.s32 %v1735, %v1737
        %v1740 = vadd.s32 %v1739, %v1729
        %v1741 = vadd.s32 %v1740, %v1731
        %v1742 = vmul.u32 %v1697, %v1688
        %v1743 = vadd.s32 %v1719, %v1738
        %vm1744 = vc.u32 %v1719, %v1738
        %v1745 = vadd.s32 %v1741, 1
        %v1746 = vsel %vm1744, %v1745, %v1741
        %v1747 = vadd.s32 %v1742, %v1746
        %v1748 = vadd.s32 %v1747, 536870912
        %v1749 = vshrl.u32 %v1748, 30
        %v1750 = vshll.u32 %v1749, 30
        %v1751 = vsub.s32 %v1747, %v1750
        %vm1752 = vcmp.lt.s32.totalorder %v1751, 0
        %v1753 = vsub.s32 0, %v1751
        %v1754 = vsel %vm1752, %v1753, %v1751
        %v1755 = vclz %v1754
        %v1756 = vsub.s32 %v1755, 2
        %vm1757 = vcmp.gt.s32.totalorder 0, %v1756
        %v1758 = vsel %vm1757, 0, %v1756
        %v1759 = vsub.s32 32, %v1758
        %v1760 = vshll.u32 %v1751, %v1758
        %v1761 = vshrl.u32 %v1743, %v1759
        %v1762 = vor.u32 %v1760, %v1761
        %v1763 = vsub.s32 4294967266, %v1758
        %v1764 = vadd.s32 %v1763, 127
        %v1765 = vshll.u32 %v1764, 23
        %v1766 = vor.u32 4788187, %v1765
        %v1767 = vand.u32 2147483647, %v1766
        %v1769 = vcvt.s32.f32 %v1762
        %v1770 = vmul.f32 %v1769, %v1767
        %v1771 = vxor.u32 %v1770, 2147483648
        %v1772 = vsel %vm1651, %v1771, %v1770
        %v1773 = vsub.s32 4, %v1749
        %v1774 = vsel %vm1651, %v1773, %v1749
        %v1775 = vsel %vm1650, %v1005, %v1772
        %v1776 = vsel %vm1650, 0, %v1774
        %v1777 = vmul.f32 %v1775, %v1775
        %v1778 = vmul.f32 %v1777, -0.001358992
        %v1779 = vadd.f32 %v1778, 0.041655596
        %v1780 = vmul.f32 %v1777, %v1779
        %v1781 = vadd.f32 %v1780, -0.4999988
        %v1782 = vmul.f32 %v1777, %v1781
        %v1783 = vadd.f32 1.0, %v1782
        %v1784 = vmul.f32 %v1775, %v1775
        %v1785 = vmul.f32 %v1784, -0.00019511016
        %v1786 = vadd.f32 %v1785, 0.008332121
        %v1787 = vmul.f32 %v1784, %v1786
        %v1788 = vadd.f32 %v1787, -0.16666654
        %v1789 = vmul.f32 %v1784, %v1788
        %v1790 = vadd.f32 %v1789, 1.0
        %v1791 = vmul.f32 %v1790, %v1775
        %vm1792 = vweird.f32 %v1005
        %v1793 = vand.u32 %v1776, 3
        %vm1794 = vcmp.lt.s32.totalorder %v1793, 2
        %vm1795 = vcmp.eq.s32.totalorder %v1793, 0
        %v1796 = vxor.u32 %v1791, 2147483648
        %v1797 = vsel %vm1795, %v1783, %v1796
        %vm1798 = vcmp.eq.s32.totalorder %v1793, 2
        %v1799 = vxor.u32 %v1783, 2147483648
        %v1800 = vsel %vm1798, %v1799, %v1791
        %v1801 = vsel %vm1794, %v1797, %v1800
        %v1802 = vsel %vm1792, nan, %v1801
        %v1803 = vand.u32 2147483647, %v1006
        %vm1804 = vcmp.le.f32.partialorder %v1803, 0.7853982
        %vm1805 = vcmp.lt.s32.totalorder %v1006, 0
        %v1806 = vand.u32 %v1006, 2139095040
        %v1807 = vshrl.u32 %v1806, 23
        %v1808 = vsub.s32 %v1807, 127
        %v1809 = vand.u32 2147483647, %v1006
        %v1810 = vand.u32 %v1809, 8388607
        %v1811 = vor.u32 %v1810, 8388608
        %v1812 = vsub.s32 0, %v1811
        %v1813 = vadd.s32 %v1808, 1
        %vm1814 = vcmp.gt.s32.totalorder %v1813, 0
        %v1815 = vsel %vm1814, %v1813, 0
        %v1816 = vshrl.u32 %v1815, 5
        %v1817 = vand.u32 %v1815, 31
        %v1818 = vsub.s32 32, %v1817
        %v1819 = vshrl.u32 683565275, %v1818
        %v1820 = vshll.u32 683565275, %v1817
        %v1821 = vshrl.u32 2475754826, %v1818
        %v1822 = vor.u32 %v1820, %v1821
        %v1823 = vshll.u32 2475754826, %v1817
        %v1824 = vshrl.u32 2131351028, %v1818
        %v1825 = vor.u32 %v1823, %v1824
        %v1826 = vshll.u32 2131351028, %v1817
        %v1827 = vshrl.u32 2102212464, %v1818
        %v1828 = vor.u32 %v1826, %v1827
        %v1829 = vshll.u32 2102212464, %v1817
        %v1830 = vshrl.u32 920167782, %v1818
        %v1831 = vor.u32 %v1829, %v1830
        %v1832 = vshll.u32 920167782, %v1817
        %v1833 = vshrl.u32 1326507024, %v1818
        %v1834 = vor.u32 %v1832, %v1833
        %vm1835 = vcmp.lt.s32.totalorder %v1816, 1
        %vm1836 = vcmp.lt.s32.totalorder %v1816, 2
        %vm1837 = vcmp.lt.s32.totalorder %v1816, 3
        %vm1838 = vcmp.lt.s32.totalorder %v1816, 4
        %v1839 = vsel %vm1835, %v1819, %v1822
        %v1840 = vsel %vm1838, %v1828, 2102212464
        %v1841 = vsel %vm1837, %v1825, %v1840
        %v1842 = vsel %vm1836, %v1839, %v1841
        %v1843 = vsel %vm1835, %v1822, %v1825
        %v1844 = vsel %vm1838, %v1831, 920167782
        %v1845 = vsel %vm1837, %v1828, %v1844
        %v1846 = vsel %vm1836, %v1843, %v1845
        %v1847 = vsel %vm1835, %v1825, %v1828
        %v1848 = vsel %vm1838, %v1834, 1326507024
        %v1849 = vsel %vm1837, %v1831, %v1848
        %v1850 = vsel %vm1836, %v1847, %v1849
        %v1851 = vshll.u32 %v1811, 8
        %v1852 = vand.u32 %v1851, 65535
        %v1853 = vshrl.u32 %v1851, 16
        %v1854 = vand.u32 %v1850, 65535
        %v1855 = vshrl.u32 %v1850, 16
        %v1856 = vmul.u32 %v1852, %v1854
        %v1857 = vmul.u32 %v1852, %v1855
        %v1858 = vmul.u32 %v1853, %v1854
        %v1859 = vmul.u32 %v1853, %v1855
        %v1860 = vshll.u32 %v1857, 16
        %v1861 = vshrl.u32 %v1857, 16
        %v1862 = vshll.u32 %v1858, 16
        %v1863 = vshrl.u32 %v1858, 16
        %vm1864 = vc.u32 %v1856, %v1860
        %v1865 = vsel %vm1864, 1, 0
        %v1866 = vadd.s32 %v1856, %v1860
        %v1867 = vadd.s32 %v1859, %v1865
        %vm1868 = vc.u32 %v1866, %v1862
        %v1869 = vsel %vm1868, 1, 0
        %v1870 = vadd.s32 %v1866, %v1862
        %v1871 = vadd.s32 %v1867, %v1869
        %v1872 = vadd.s32 %v1871, %v1861
        %v1873 = vadd.s32 %v1872, %v1863
        %v1874 = vand.u32 %v1851, 65535
        %v1875 = vshrl.u32 %v1851, 16
        %v1876 = vand.u32 %v1846, 65535
        %v1877 = vshrl.u32 %v1846, 16
        %v1878 = vmul.u32 %v1874, %v1876
        %v1879 = vmul.u32 %v1874, %v1877
        %v1880 = vmul.u32 %v1875, %v1876
        %v1881 = vmul.u32 %v1875, %v1877
        %v1882 = vshll.u32 %v1879, 16
        %v1883 = vshrl.u32 %v1879, 16
        %v1884 = vshll.u32 %v1880, 16
        %v1885 = vshrl.u32 %v1880, 16
        %vm1886 = vc.u32 %v1878, %v1882
        %v1887 = vsel %vm1886, 1, 0
        %v1888 = vadd.s32 %v1878, %v1882
        %v1889 = vadd.s32 %v1881, %v1887
        %vm1890 = vc.u32 %v1888, %v1884
        %v1891 = vsel %vm1890, 1, 0
        %v1892 = vadd.s32 %v1888, %v1884
        %v1893 = vadd.s32 %v1889, %v1891
        %v1894 = vadd.s32 %v1893, %v1883
        %v1895 = vadd.s32 %v1894, %v1885
        %v1896 = vmul.u32 %v1851, %v1842
        %v1897 = vadd.s32 %v1873, %v1892
        %vm1898 = vc.u32 %v1873, %v1892
        %v1899 = vadd.s32 %v1895, 1
        %v1900 = vsel %vm1898, %v1899, %v1895
        %v1901 = vadd.s32 %v1896, %v1900
        %v1902 = vadd.s32 %v1901, 536870912
        %v1903 = vshrl.u32 %v1902, 30
        %v1904 = vshll.u32 %v1903, 30
        %v1905 = vsub.s32 %v1901, %v1904
        %vm1906 = vcmp.lt.s32.totalorder %v1905, 0
        %v1907 = vsub.s32 0, %v1905
        %v1908 = vsel %vm1906, %v1907, %v1905
        %v1909 = vclz %v1908
        %v1910 = vsub.s32 %v1909, 2
        %vm1911 = vcmp.gt.s32.totalorder 0, %v1910
        %v1912 = vsel %vm1911, 0, %v1910
        %v1913 = vsub.s32 32, %v1912
        %v1914 = vshll.u32 %v1905, %v1912
        %v1915 = vshrl.u32 %v1897, %v1913
        %v1916 = vor.u32 %v1914, %v1915
        %v1917 = vsub.s32 4294967266, %v1912
        %v1918 = vadd.s32 %v1917, 127
        %v1919 = vshll.u32 %v1918, 23
        %v1920 = vor.u32 4788187, %v1919
        %v1921 = vand.u32 2147483647, %v1920
        %v1923 = vcvt.s32.f32 %v1916
        %v1924 = vmul.f32 %v1923, %v1921
        %v1925 = vxor.u32 %v1924, 2147483648
        %v1926 = vsel %vm1805, %v1925, %v1924
        %v1927 = vsub.s32 4, %v1903
        %v1928 = vsel %vm1805, %v1927, %v1903
        %v1929 = vsel %vm1804, %v1006, %v1926
        %v1930 = vsel %vm1804, 0, %v1928
        %v1931 = vmul.f32 %v1929, %v1929
        %v1932 = vmul.f32 %v1931, -0.001358992
        %v1933 = vadd.f32 %v1932, 0.041655596
        %v1934 = vmul.f32 %v1931, %v1933
        %v1935 = vadd.f32 %v1934, -0.4999988
        %v1936 = vmul.f32 %v1931, %v1935
        %v1937 = vadd.f32 1.0, %v1936
        %v1938 = vmul.f32 %v1929, %v1929
        %v1939 = vmul.f32 %v1938, -0.00019511016
        %v1940 = vadd.f32 %v1939, 0.008332121
        %v1941 = vmul.f32 %v1938, %v1940
        %v1942 = vadd.f32 %v1941, -0.16666654
        %v1943 = vmul.f32 %v1938, %v1942
        %v1944 = vadd.f32 %v1943, 1.0
        %v1945 = vmul.f32 %v1944, %v1929
        %vm1946 = vweird.f32 %v1006
        %v1947 = vand.u32 %v1930, 3
        %vm1948 = vcmp.lt.s32.totalorder %v1947, 2
        %vm1949 = vcmp.eq.s32.totalorder %v1947, 0
        %v1950 = vxor.u32 %v1945, 2147483648
        %v1951 = vsel %vm1949, %v1937, %v1950
        %vm1952 = vcmp.eq.s32.totalorder %v1947, 2
        %v1953 = vxor.u32 %v1937, 2147483648
        %v1954 = vsel %vm1952, %v1953, %v1945
        %v1955 = vsel %vm1948, %v1951, %v1954
        %v1956 = vsel %vm1946, nan, %v1955
        %v1957 = vand.u32 2147483647, %v1007
        %vm1958 = vcmp.le.f32.partialorder %v1957, 0.7853982
        %vm1959 = vcmp.lt.s32.totalorder %v1007, 0
        %v1960 = vand.u32 %v1007, 2139095040
        %v1961 = vshrl.u32 %v1960, 23
        %v1962 = vsub.s32 %v1961, 127
        %v1963 = vand.u32 2147483647, %v1007
        %v1964 = vand.u32 %v1963, 8388607
        %v1965 = vor.u32 %v1964, 8388608
        %v1966 = vsub.s32 0, %v1965
        %v1967 = vadd.s32 %v1962, 1
        %vm1968 = vcmp.gt.s32.totalorder %v1967, 0
        %v1969 = vsel %vm1968, %v1967, 0
        %v1970 = vshrl.u32 %v1969, 5
        %v1971 = vand.u32 %v1969, 31
        %v1972 = vsub.s32 32, %v1971
        %v1973 = vshrl.u32 683565275, %v1972
        %v1974 = vshll.u32 683565275, %v1971
        %v1975 = vshrl.u32 2475754826, %v1972
        %v1976 = vor.u32 %v1974, %v1975
        %v1977 = vshll.u32 2475754826, %v1971
        %v1978 = vshrl.u32 2131351028, %v1972
        %v1979 = vor.u32 %v1977, %v1978
        %v1980 = vshll.u32 2131351028, %v1971
        %v1981 = vshrl.u32 2102212464, %v1972
        %v1982 = vor.u32 %v1980, %v1981
        %v1983 = vshll.u32 2102212464, %v1971
        %v1984 = vshrl.u32 920167782, %v1972
        %v1985 = vor.u32 %v1983, %v1984
        %v1986 = vshll.u32 920167782, %v1971
        %v1987 = vshrl.u32 1326507024, %v1972
        %v1988 = vor.u32 %v1986, %v1987
        %vm1989 = vcmp.lt.s32.totalorder %v1970, 1
        %vm1990 = vcmp.lt.s32.totalorder %v1970, 2
        %vm1991 = vcmp.lt.s32.totalorder %v1970, 3
        %vm1992 = vcmp.lt.s32.totalorder %v1970, 4
        %v1993 = vsel %vm1989, %v1973, %v1976
        %v1994 = vsel %vm1992, %v1982, 2102212464
        %v1995 = vsel %vm1991, %v1979, %v1994
        %v1996 = vsel %vm1990, %v1993, %v1995
        %v1997 = vsel %vm1989, %v1976, %v1979
        %v1998 = vsel %vm1992, %v1985, 920167782
        %v1999 = vsel %vm1991, %v1982, %v1998
        %v2000 = vsel %vm1990, %v1997, %v1999
        %v2001 = vsel %vm1989, %v1979, %v1982
        %v2002 = vsel %vm1992, %v1988, 1326507024
        %v2003 = vsel %vm1991, %v1985, %v2002
        %v2004 = vsel %vm1990, %v2001, %v2003
        %v2005 = vshll.u32 %v1965, 8
        %v2006 = vand.u32 %v2005, 65535
        %v2007 = vshrl.u32 %v2005, 16
        %v2008 = vand.u32 %v2004, 65535
        %v2009 = vshrl.u32 %v2004, 16
        %v2010 = vmul.u32 %v2006, %v2008
        %v2011 = vmul.u32 %v2006, %v2009
        %v2012 = vmul.u32 %v2007, %v2008
        %v2013 = vmul.u32 %v2007, %v2009
        %v2014 = vshll.u32 %v2011, 16
        %v2015 = vshrl.u32 %v2011, 16
        %v2016 = vshll.u32 %v2012, 16
        %v2017 = vshrl.u32 %v2012, 16
        %vm2018 = vc.u32 %v2010, %v2014
        %v2019 = vsel %vm2018, 1, 0
        %v2020 = vadd.s32 %v2010, %v2014
        %v2021 = vadd.s32 %v2013, %v2019
        %vm2022 = vc.u32 %v2020, %v2016
        %v2023 = vsel %vm2022, 1, 0
        %v2024 = vadd.s32 %v2020, %v2016
        %v2025 = vadd.s32 %v2021, %v2023
        %v2026 = vadd.s32 %v2025, %v2015
        %v2027 = vadd.s32 %v2026, %v2017
        %v2028 = vand.u32 %v2005, 65535
        %v2029 = vshrl.u32 %v2005, 16
        %v2030 = vand.u32 %v2000, 65535
        %v2031 = vshrl.u32 %v2000, 16
        %v2032 = vmul.u32 %v2028, %v2030
        %v2033 = vmul.u32 %v2028, %v2031
        %v2034 = vmul.u32 %v2029, %v2030
        %v2035 = vmul.u32 %v2029, %v2031
        %v2036 = vshll.u32 %v2033, 16
        %v2037 = vshrl.u32 %v2033, 16
        %v2038 = vshll.u32 %v2034, 16
        %v2039 = vshrl.u32 %v2034, 16
        %vm2040 = vc.u32 %v2032, %v2036
        %v2041 = vsel %vm2040, 1, 0
        %v2042 = vadd.s32 %v2032, %v2036
        %v2043 = vadd.s32 %v2035, %v2041
        %vm2044 = vc.u32 %v2042, %v2038
        %v2045 = vsel %vm2044, 1, 0
        %v2046 = vadd.s32 %v2042, %v2038
        %v2047 = vadd.s32 %v2043, %v2045
        %v2048 = vadd.s32 %v2047, %v2037
        %v2049 = vadd.s32 %v2048, %v2039
        %v2050 = vmul.u32 %v2005, %v1996
        %v2051 = vadd.s32 %v2027, %v2046
        %vm2052 = vc.u32 %v2027, %v2046
        %v2053 = vadd.s32 %v2049, 1
        %v2054 = vsel %vm2052, %v2053, %v2049
        %v2055 = vadd.s32 %v2050, %v2054
        %v2056 = vadd.s32 %v2055, 536870912
        %v2057 = vshrl.u32 %v2056, 30
        %v2058 = vshll.u32 %v2057, 30
        %v2059 = vsub.s32 %v2055, %v2058
        %vm2060 = vcmp.lt.s32.totalorder %v2059, 0
        %v2061 = vsub.s32 0, %v2059
        %v2062 = vsel %vm2060, %v2061, %v2059
        %v2063 = vclz %v2062
        %v2064 = vsub.s32 %v2063, 2
        %vm2065 = vcmp.gt.s32.totalorder 0, %v2064
        %v2066 = vsel %vm2065, 0, %v2064
        %v2067 = vsub.s32 32, %v2066
        %v2068 = vshll.u32 %v2059, %v2066
        %v2069 = vshrl.u32 %v2051, %v2067
        %v2070 = vor.u32 %v2068, %v2069
        %v2071 = vsub.s32 4294967266, %v2066
        %v2072 = vadd.s32 %v2071, 127
        %v2073 = vshll.u32 %v2072, 23
        %v2074 = vor.u32 4788187, %v2073
        %v2075 = vand.u32 2147483647, %v2074
        %v2077 = vcvt.s32.f32 %v2070
        %v2078 = vmul.f32 %v2077, %v2075
        %v2079 = vxor.u32 %v2078, 2147483648
        %v2080 = vsel %vm1959, %v2079, %v2078
        %v2081 = vsub.s32 4, %v2057
        %v2082 = vsel %vm1959, %v2081, %v2057
        %v2083 = vsel %vm1958, %v1007, %v2080
        %v2084 = vsel %vm1958, 0, %v2082
        %v2085 = vmul.f32 %v2083, %v2083
        %v2086 = vmul.f32 %v2085, -0.001358992
        %v2087 = vadd.f32 %v2086, 0.041655596
        %v2088 = vmul.f32 %v2085, %v2087
        %v2089 = vadd.f32 %v2088, -0.4999988
        %v2090 = vmul.f32 %v2085, %v2089
        %v2091 = vadd.f32 1.0, %v2090
        %v2092 = vmul.f32 %v2083, %v2083
        %v2093 = vmul.f32 %v2092, -0.00019511016
        %v2094 = vadd.f32 %v2093, 0.008332121
        %v2095 = vmul.f32 %v2092, %v2094
        %v2096 = vadd.f32 %v2095, -0.16666654
        %v2097 = vmul.f32 %v2092, %v2096
        %v2098 = vadd.f32 %v2097, 1.0
        %v2099 = vmul.f32 %v2098, %v2083
        %vm2100 = vweird.f32 %v1007
        %v2101 = vand.u32 %v2084, 3
        %vm2102 = vcmp.lt.s32.totalorder %v2101, 2
        %vm2103 = vcmp.eq.s32.totalorder %v2101, 0
        %v2104 = vxor.u32 %v2099, 2147483648
        %v2105 = vsel %vm2103, %v2091, %v2104
        %vm2106 = vcmp.eq.s32.totalorder %v2101, 2
        %v2107 = vxor.u32 %v2091, 2147483648
        %v2108 = vsel %vm2106, %v2107, %v2099
        %v2109 = vsel %vm2102, %v2105, %v2108
        %v2110 = vsel %vm2100, nan, %v2109
        %v2111 = vand.u32 2147483647, %v1008
        %vm2112 = vcmp.le.f32.partialorder %v2111, 0.7853982
        %vm2113 = vcmp.lt.s32.totalorder %v1008, 0
        %v2114 = vand.u32 %v1008, 2139095040
        %v2115 = vshrl.u32 %v2114, 23
        %v2116 = vsub.s32 %v2115, 127
        %v2117 = vand.u32 2147483647, %v1008
        %v2118 = vand.u32 %v2117, 8388607
        %v2119 = vor.u32 %v2118, 8388608
        %v2120 = vsub.s32 0, %v2119
        %v2121 = vadd.s32 %v2116, 1
        %vm2122 = vcmp.gt.s32.totalorder %v2121, 0
        %v2123 = vsel %vm2122, %v2121, 0
        %v2124 = vshrl.u32 %v2123, 5
        %v2125 = vand.u32 %v2123, 31
        %v2126 = vsub.s32 32, %v2125
        %v2127 = vshrl.u32 683565275, %v2126
        %v2128 = vshll.u32 683565275, %v2125
        %v2129 = vshrl.u32 2475754826, %v2126
        %v2130 = vor.u32 %v2128, %v2129
        %v2131 = vshll.u32 2475754826, %v2125
        %v2132 = vshrl.u32 2131351028, %v2126
        %v2133 = vor.u32 %v2131, %v2132
        %v2134 = vshll.u32 2131351028, %v2125
        %v2135 = vshrl.u32 2102212464, %v2126
        %v2136 = vor.u32 %v2134, %v2135
        %v2137 = vshll.u32 2102212464, %v2125
        %v2138 = vshrl.u32 920167782, %v2126
        %v2139 = vor.u32 %v2137, %v2138
        %v2140 = vshll.u32 920167782, %v2125
        %v2141 = vshrl.u32 1326507024, %v2126
        %v2142 = vor.u32 %v2140, %v2141
        %vm2143 = vcmp.lt.s32.totalorder %v2124, 1
        %vm2144 = vcmp.lt.s32.totalorder %v2124, 2
        %vm2145 = vcmp.lt.s32.totalorder %v2124, 3
        %vm2146 = vcmp.lt.s32.totalorder %v2124, 4
        %v2147 = vsel %vm2143, %v2127, %v2130
        %v2148 = vsel %vm2146, %v2136, 2102212464
        %v2149 = vsel %vm2145, %v2133, %v2148
        %v2150 = vsel %vm2144, %v2147, %v2149
        %v2151 = vsel %vm2143, %v2130, %v2133
        %v2152 = vsel %vm2146, %v2139, 920167782
        %v2153 = vsel %vm2145, %v2136, %v2152
        %v2154 = vsel %vm2144, %v2151, %v2153
        %v2155 = vsel %vm2143, %v2133, %v2136
        %v2156 = vsel %vm2146, %v2142, 1326507024
        %v2157 = vsel %vm2145, %v2139, %v2156
        %v2158 = vsel %vm2144, %v2155, %v2157
        %v2159 = vshll.u32 %v2119, 8
        %v2160 = vand.u32 %v2159, 65535
        %v2161 = vshrl.u32 %v2159, 16
        %v2162 = vand.u32 %v2158, 65535
        %v2163 = vshrl.u32 %v2158, 16
        %v2164 = vmul.u32 %v2160, %v2162
        %v2165 = vmul.u32 %v2160, %v2163
        %v2166 = vmul.u32 %v2161, %v2162
        %v2167 = vmul.u32 %v2161, %v2163
        %v2168 = vshll.u32 %v2165, 16
        %v2169 = vshrl.u32 %v2165, 16
        %v2170 = vshll.u32 %v2166, 16
        %v2171 = vshrl.u32 %v2166, 16
        %vm2172 = vc.u32 %v2164, %v2168
        %v2173 = vsel %vm2172, 1, 0
        %v2174 = vadd.s32 %v2164, %v2168
        %v2175 = vadd.s32 %v2167, %v2173
        %vm2176 = vc.u32 %v2174, %v2170
        %v2177 = vsel %vm2176, 1, 0
        %v2178 = vadd.s32 %v2174, %v2170
        %v2179 = vadd.s32 %v2175, %v2177
        %v2180 = vadd.s32 %v2179, %v2169
        %v2181 = vadd.s32 %v2180, %v2171
        %v2182 = vand.u32 %v2159, 65535
        %v2183 = vshrl.u32 %v2159, 16
        %v2184 = vand.u32 %v2154, 65535
        %v2185 = vshrl.u32 %v2154, 16
        %v2186 = vmul.u32 %v2182, %v2184
        %v2187 = vmul.u32 %v2182, %v2185
        %v2188 = vmul.u32 %v2183, %v2184
        %v2189 = vmul.u32 %v2183, %v2185
        %v2190 = vshll.u32 %v2187, 16
        %v2191 = vshrl.u32 %v2187, 16
        %v2192 = vshll.u32 %v2188, 16
        %v2193 = vshrl.u32 %v2188, 16
        %vm2194 = vc.u32 %v2186, %v2190
        %v2195 = vsel %vm2194, 1, 0
        %v2196 = vadd.s32 %v2186, %v2190
        %v2197 = vadd.s32 %v2189, %v2195
        %vm2198 = vc.u32 %v2196, %v2192
        %v2199 = vsel %vm2198, 1, 0
        %v2200 = vadd.s32 %v2196, %v2192
        %v2201 = vadd.s32 %v2197, %v2199
        %v2202 = vadd.s32 %v2201, %v2191
        %v2203 = vadd.s32 %v2202, %v2193
        %v2204 = vmul.u32 %v2159, %v2150
        %v2205 = vadd.s32 %v2181, %v2200
        %vm2206 = vc.u32 %v2181, %v2200
        %v2207 = vadd.s32 %v2203, 1
        %v2208 = vsel %vm2206, %v2207, %v2203
        %v2209 = vadd.s32 %v2204, %v2208
        %v2210 = vadd.s32 %v2209, 536870912
        %v2211 = vshrl.u32 %v2210, 30
        %v2212 = vshll.u32 %v2211, 30
        %v2213 = vsub.s32 %v2209, %v2212
        %vm2214 = vcmp.lt.s32.totalorder %v2213, 0
        %v2215 = vsub.s32 0, %v2213
        %v2216 = vsel %vm2214, %v2215, %v2213
        %v2217 = vclz %v2216
        %v2218 = vsub.s32 %v2217, 2
        %vm2219 = vcmp.gt.s32.totalorder 0, %v2218
        %v2220 = vsel %vm2219, 0, %v2218
        %v2221 = vsub.s32 32, %v2220
        %v2222 = vshll.u32 %v2213, %v2220
        %v2223 = vshrl.u32 %v2205, %v2221
        %v2224 = vor.u32 %v2222, %v2223
        %v2225 = vsub.s32 4294967266, %v2220
        %v2226 = vadd.s32 %v2225, 127
        %v2227 = vshll.u32 %v2226, 23
        %v2228 = vor.u32 4788187, %v2227
        %v2229 = vand.u32 2147483647, %v2228
        %v2231 = vcvt.s32.f32 %v2224
        %v2232 = vmul.f32 %v2231, %v2229
        %v2233 = vxor.u32 %v2232, 2147483648
        %v2234 = vsel %vm2113, %v2233, %v2232
        %v2235 = vsub.s32 4, %v2211
        %v2236 = vsel %vm2113, %v2235, %v2211
        %v2237 = vsel %vm2112, %v1008, %v2234
        %v2238 = vsel %vm2112, 0, %v2236
        %v2239 = vmul.f32 %v2237, %v2237
        %v2240 = vmul.f32 %v2239, -0.001358992
        %v2241 = vadd.f32 %v2240, 0.041655596
        %v2242 = vmul.f32 %v2239, %v2241
        %v2243 = vadd.f32 %v2242, -0.4999988
        %v2244 = vmul.f32 %v2239, %v2243
        %v2245 = vadd.f32 1.0, %v2244
        %v2246 = vmul.f32 %v2237, %v2237
        %v2247 = vmul.f32 %v2246, -0.00019511016
        %v2248 = vadd.f32 %v2247, 0.008332121
        %v2249 = vmul.f32 %v2246, %v2248
        %v2250 = vadd.f32 %v2249, -0.16666654
        %v2251 = vmul.f32 %v2246, %v2250
        %v2252 = vadd.f32 %v2251, 1.0
        %v2253 = vmul.f32 %v2252, %v2237
        %vm2254 = vweird.f32 %v1008
        %v2255 = vand.u32 %v2238, 3
        %vm2256 = vcmp.lt.s32.totalorder %v2255, 2
        %vm2257 = vcmp.eq.s32.totalorder %v2255, 0
        %v2258 = vxor.u32 %v2253, 2147483648
        %v2259 = vsel %vm2257, %v2245, %v2258
        %vm2260 = vcmp.eq.s32.totalorder %v2255, 2
        %v2261 = vxor.u32 %v2245, 2147483648
        %v2262 = vsel %vm2260, %v2261, %v2253
        %v2263 = vsel %vm2256, %v2259, %v2262
        %v2264 = vsel %vm2254, nan, %v2263
        %v2265 = vand.u32 2147483647, %v1009
        %vm2266 = vcmp.le.f32.partialorder %v2265, 0.7853982
        %vm2267 = vcmp.lt.s32.totalorder %v1009, 0
        %v2268 = vand.u32 %v1009, 2139095040
        %v2269 = vshrl.u32 %v2268, 23
        %v2270 = vsub.s32 %v2269, 127
        %v2271 = vand.u32 2147483647, %v1009
        %v2272 = vand.u32 %v2271, 8388607
        %v2273 = vor.u32 %v2272, 8388608
        %v2274 = vsub.s32 0, %v2273
        %v2275 = vadd.s32 %v2270, 1
        %vm2276 = vcmp.gt.s32.totalorder %v2275, 0
        %v2277 = vsel %vm2276, %v2275, 0
        %v2278 = vshrl.u32 %v2277, 5
        %v2279 = vand.u32 %v2277, 31
        %v2280 = vsub.s32 32, %v2279
        %v2281 = vshrl.u32 683565275, %v2280
        %v2282 = vshll.u32 683565275, %v2279
        %v2283 = vshrl.u32 2475754826, %v2280
        %v2284 = vor.u32 %v2282, %v2283
        %v2285 = vshll.u32 2475754826, %v2279
        %v2286 = vshrl.u32 2131351028, %v2280
        %v2287 = vor.u32 %v2285, %v2286
        %v2288 = vshll.u32 2131351028, %v2279
        %v2289 = vshrl.u32 2102212464, %v2280
        %v2290 = vor.u32 %v2288, %v2289
        %v2291 = vshll.u32 2102212464, %v2279
        %v2292 = vshrl.u32 920167782, %v2280
        %v2293 = vor.u32 %v2291, %v2292
        %v2294 = vshll.u32 920167782, %v2279
        %v2295 = vshrl.u32 1326507024, %v2280
        %v2296 = vor.u32 %v2294, %v2295
        %vm2297 = vcmp.lt.s32.totalorder %v2278, 1
        %vm2298 = vcmp.lt.s32.totalorder %v2278, 2
        %vm2299 = vcmp.lt.s32.totalorder %v2278, 3
        %vm2300 = vcmp.lt.s32.totalorder %v2278, 4
        %v2301 = vsel %vm2297, %v2281, %v2284
        %v2302 = vsel %vm2300, %v2290, 2102212464
        %v2303 = vsel %vm2299, %v2287, %v2302
        %v2304 = vsel %vm2298, %v2301, %v2303
        %v2305 = vsel %vm2297, %v2284, %v2287
        %v2306 = vsel %vm2300, %v2293, 920167782
        %v2307 = vsel %vm2299, %v2290, %v2306
        %v2308 = vsel %vm2298, %v2305, %v2307
        %v2309 = vsel %vm2297, %v2287, %v2290
        %v2310 = vsel %vm2300, %v2296, 1326507024
        %v2311 = vsel %vm2299, %v2293, %v2310
        %v2312 = vsel %vm2298, %v2309, %v2311
        %v2313 = vshll.u32 %v2273, 8
        %v2314 = vand.u32 %v2313, 65535
        %v2315 = vshrl.u32 %v2313, 16
        %v2316 = vand.u32 %v2312, 65535
        %v2317 = vshrl.u32 %v2312, 16
        %v2318 = vmul.u32 %v2314, %v2316
        %v2319 = vmul.u32 %v2314, %v2317
        %v2320 = vmul.u32 %v2315, %v2316
        %v2321 = vmul.u32 %v2315, %v2317
        %v2322 = vshll.u32 %v2319, 16
        %v2323 = vshrl.u32 %v2319, 16
        %v2324 = vshll.u32 %v2320, 16
        %v2325 = vshrl.u32 %v2320, 16
        %vm2326 = vc.u32 %v2318, %v2322
        %v2327 = vsel %vm2326, 1, 0
        %v2328 = vadd.s32 %v2318, %v2322
        %v2329 = vadd.s32 %v2321, %v2327
        %vm2330 = vc.u32 %v2328, %v2324
        %v2331 = vsel %vm2330, 1, 0
        %v2332 = vadd.s32 %v2328, %v2324
        %v2333 = vadd.s32 %v2329, %v2331
        %v2334 = vadd.s32 %v2333, %v2323
        %v2335 = vadd.s32 %v2334, %v2325
        %v2336 = vand.u32 %v2313, 65535
        %v2337 = vshrl.u32 %v2313, 16
        %v2338 = vand.u32 %v2308, 65535
        %v2339 = vshrl.u32 %v2308, 16
        %v2340 = vmul.u32 %v2336, %v2338
        %v2341 = vmul.u32 %v2336, %v2339
        %v2342 = vmul.u32 %v2337, %v2338
        %v2343 = vmul.u32 %v2337, %v2339
        %v2344 = vshll.u32 %v2341, 16
        %v2345 = vshrl.u32 %v2341, 16
        %v2346 = vshll.u32 %v2342, 16
        %v2347 = vshrl.u32 %v2342, 16
        %vm2348 = vc.u32 %v2340, %v2344
        %v2349 = vsel %vm2348, 1, 0
        %v2350 = vadd.s32 %v2340, %v2344
        %v2351 = vadd.s32 %v2343, %v2349
        %vm2352 = vc.u32 %v2350, %v2346
        %v2353 = vsel %vm2352, 1, 0
        %v2354 = vadd.s32 %v2350, %v2346
        %v2355 = vadd.s32 %v2351, %v2353
        %v2356 = vadd.s32 %v2355, %v2345
        %v2357 = vadd.s32 %v2356, %v2347
        %v2358 = vmul.u32 %v2313, %v2304
        %v2359 = vadd.s32 %v2335, %v2354
        %vm2360 = vc.u32 %v2335, %v2354
        %v2361 = vadd.s32 %v2357, 1
        %v2362 = vsel %vm2360, %v2361, %v2357
        %v2363 = vadd.s32 %v2358, %v2362
        %v2364 = vadd.s32 %v2363, 536870912
        %v2365 = vshrl.u32 %v2364, 30
        %v2366 = vshll.u32 %v2365, 30
        %v2367 = vsub.s32 %v2363, %v2366
        %vm2368 = vcmp.lt.s32.totalorder %v2367, 0
        %v2369 = vsub.s32 0, %v2367
        %v2370 = vsel %vm2368, %v2369, %v2367
        %v2371 = vclz %v2370
        %v2372 = vsub.s32 %v2371, 2
        %vm2373 = vcmp.gt.s32.totalorder 0, %v2372
        %v2374 = vsel %vm2373, 0, %v2372
        %v2375 = vsub.s32 32, %v2374
        %v2376 = vshll.u32 %v2367, %v2374
        %v2377 = vshrl.u32 %v2359, %v2375
        %v2378 = vor.u32 %v2376, %v2377
        %v2379 = vsub.s32 4294967266, %v2374
        %v2380 = vadd.s32 %v2379, 127
        %v2381 = vshll.u32 %v2380, 23
        %v2382 = vor.u32 4788187, %v2381
        %v2383 = vand.u32 2147483647, %v2382
        %v2385 = vcvt.s32.f32 %v2378
        %v2386 = vmul.f32 %v2385, %v2383
        %v2387 = vxor.u32 %v2386, 2147483648
        %v2388 = vsel %vm2267, %v2387, %v2386
        %v2389 = vsub.s32 4, %v2365
        %v2390 = vsel %vm2267, %v2389, %v2365
        %v2391 = vsel %vm2266, %v1009, %v2388
        %v2392 = vsel %vm2266, 0, %v2390
        %v2393 = vmul.f32 %v2391, %v2391
        %v2394 = vmul.f32 %v2393, -0.001358992
        %v2395 = vadd.f32 %v2394, 0.041655596
        %v2396 = vmul.f32 %v2393, %v2395
        %v2397 = vadd.f32 %v2396, -0.4999988
        %v2398 = vmul.f32 %v2393, %v2397
        %v2399 = vadd.f32 1.0, %v2398
        %v2400 = vmul.f32 %v2391, %v2391
        %v2401 = vmul.f32 %v2400, -0.00019511016
        %v2402 = vadd.f32 %v2401, 0.008332121
        %v2403 = vmul.f32 %v2400, %v2402
        %v2404 = vadd.f32 %v2403, -0.16666654
        %v2405 = vmul.f32 %v2400, %v2404
        %v2406 = vadd.f32 %v2405, 1.0
        %v2407 = vmul.f32 %v2406, %v2391
        %vm2408 = vweird.f32 %v1009
        %v2409 = vand.u32 %v2392, 3
        %vm2410 = vcmp.lt.s32.totalorder %v2409, 2
        %vm2411 = vcmp.eq.s32.totalorder %v2409, 0
        %v2412 = vxor.u32 %v2407, 2147483648
        %v2413 = vsel %vm2411, %v2399, %v2412
        %vm2414 = vcmp.eq.s32.totalorder %v2409, 2
        %v2415 = vxor.u32 %v2399, 2147483648
        %v2416 = vsel %vm2414, %v2415, %v2407
        %v2417 = vsel %vm2410, %v2413, %v2416
        %v2418 = vsel %vm2408, nan, %v2417
        %v2419 = vand.u32 2147483647, %v1010
        %vm2420 = vcmp.le.f32.partialorder %v2419, 0.7853982
        %vm2421 = vcmp.lt.s32.totalorder %v1010, 0
        %v2422 = vand.u32 %v1010, 2139095040
        %v2423 = vshrl.u32 %v2422, 23
        %v2424 = vsub.s32 %v2423, 127
        %v2425 = vand.u32 2147483647, %v1010
        %v2426 = vand.u32 %v2425, 8388607
        %v2427 = vor.u32 %v2426, 8388608
        %v2428 = vsub.s32 0, %v2427
        %v2429 = vadd.s32 %v2424, 1
        %vm2430 = vcmp.gt.s32.totalorder %v2429, 0
        %v2431 = vsel %vm2430, %v2429, 0
        %v2432 = vshrl.u32 %v2431, 5
        %v2433 = vand.u32 %v2431, 31
        %v2434 = vsub.s32 32, %v2433
        %v2435 = vshrl.u32 683565275, %v2434
        %v2436 = vshll.u32 683565275, %v2433
        %v2437 = vshrl.u32 2475754826, %v2434
        %v2438 = vor.u32 %v2436, %v2437
        %v2439 = vshll.u32 2475754826, %v2433
        %v2440 = vshrl.u32 2131351028, %v2434
        %v2441 = vor.u32 %v2439, %v2440
        %v2442 = vshll.u32 2131351028, %v2433
        %v2443 = vshrl.u32 2102212464, %v2434
        %v2444 = vor.u32 %v2442, %v2443
        %v2445 = vshll.u32 2102212464, %v2433
        %v2446 = vshrl.u32 920167782, %v2434
        %v2447 = vor.u32 %v2445, %v2446
        %v2448 = vshll.u32 920167782, %v2433
        %v2449 = vshrl.u32 1326507024, %v2434
        %v2450 = vor.u32 %v2448, %v2449
        %vm2451 = vcmp.lt.s32.totalorder %v2432, 1
        %vm2452 = vcmp.lt.s32.totalorder %v2432, 2
        %vm2453 = vcmp.lt.s32.totalorder %v2432, 3
        %vm2454 = vcmp.lt.s32.totalorder %v2432, 4
        %v2455 = vsel %vm2451, %v2435, %v2438
        %v2456 = vsel %vm2454, %v2444, 2102212464
        %v2457 = vsel %vm2453, %v2441, %v2456
        %v2458 = vsel %vm2452, %v2455, %v2457
        %v2459 = vsel %vm2451, %v2438, %v2441
        %v2460 = vsel %vm2454, %v2447, 920167782
        %v2461 = vsel %vm2453, %v2444, %v2460
        %v2462 = vsel %vm2452, %v2459, %v2461
        %v2463 = vsel %vm2451, %v2441, %v2444
        %v2464 = vsel %vm2454, %v2450, 1326507024
        %v2465 = vsel %vm2453, %v2447, %v2464
        %v2466 = vsel %vm2452, %v2463, %v2465
        %v2467 = vshll.u32 %v2427, 8
        %v2468 = vand.u32 %v2467, 65535
        %v2469 = vshrl.u32 %v2467, 16
        %v2470 = vand.u32 %v2466, 65535
        %v2471 = vshrl.u32 %v2466, 16
        %v2472 = vmul.u32 %v2468, %v2470
        %v2473 = vmul.u32 %v2468, %v2471
        %v2474 = vmul.u32 %v2469, %v2470
        %v2475 = vmul.u32 %v2469, %v2471
        %v2476 = vshll.u32 %v2473, 16
        %v2477 = vshrl.u32 %v2473, 16
        %v2478 = vshll.u32 %v2474, 16
        %v2479 = vshrl.u32 %v2474, 16
        %vm2480 = vc.u32 %v2472, %v2476
        %v2481 = vsel %vm2480, 1, 0
        %v2482 = vadd.s32 %v2472, %v2476
        %v2483 = vadd.s32 %v2475, %v2481
        %vm2484 = vc.u32 %v2482, %v2478
        %v2485 = vsel %vm2484, 1, 0
        %v2486 = vadd.s32 %v2482, %v2478
        %v2487 = vadd.s32 %v2483, %v2485
        %v2488 = vadd.s32 %v2487, %v2477
        %v2489 = vadd.s32 %v2488, %v2479
        %v2490 = vand.u32 %v2467, 65535
        %v2491 = vshrl.u32 %v2467, 16
        %v2492 = vand.u32 %v2462, 65535
        %v2493 = vshrl.u32 %v2462, 16
        %v2494 = vmul.u32 %v2490, %v2492
        %v2495 = vmul.u32 %v2490, %v2493
        %v2496 = vmul.u32 %v2491, %v2492
        %v2497 = vmul.u32 %v2491, %v2493
        %v2498 = vshll.u32 %v2495, 16
        %v2499 = vshrl.u32 %v2495, 16
        %v2500 = vshll.u32 %v2496, 16
        %v2501 = vshrl.u32 %v2496, 16
        %vm2502 = vc.u32 %v2494, %v2498
        %v2503 = vsel %vm2502, 1, 0
        %v2504 = vadd.s32 %v2494, %v2498
        %v2505 = vadd.s32 %v2497, %v2503
        %vm2506 = vc.u32 %v2504, %v2500
        %v2507 = vsel %vm2506, 1, 0
        %v2508 = vadd.s32 %v2504, %v2500
        %v2509 = vadd.s32 %v2505, %v2507
        %v2510 = vadd.s32 %v2509, %v2499
        %v2511 = vadd.s32 %v2510, %v2501
        %v2512 = vmul.u32 %v2467, %v2458
        %v2513 = vadd.s32 %v2489, %v2508
        %vm2514 = vc.u32 %v2489, %v2508
        %v2515 = vadd.s32 %v2511, 1
        %v2516 = vsel %vm2514, %v2515, %v2511
        %v2517 = vadd.s32 %v2512, %v2516
        %v2518 = vadd.s32 %v2517, 536870912
        %v2519 = vshrl.u32 %v2518, 30
        %v2520 = vshll.u32 %v2519, 30
        %v2521 = vsub.s32 %v2517, %v2520
        %vm2522 = vcmp.lt.s32.totalorder %v2521, 0
        %v2523 = vsub.s32 0, %v2521
        %v2524 = vsel %vm2522, %v2523, %v2521
        %v2525 = vclz %v2524
        %v2526 = vsub.s32 %v2525, 2
        %vm2527 = vcmp.gt.s32.totalorder 0, %v2526
        %v2528 = vsel %vm2527, 0, %v2526
        %v2529 = vsub.s32 32, %v2528
        %v2530 = vshll.u32 %v2521, %v2528
        %v2531 = vshrl.u32 %v2513, %v2529
        %v2532 = vor.u32 %v2530, %v2531
        %v2533 = vsub.s32 4294967266, %v2528
        %v2534 = vadd.s32 %v2533, 127
        %v2535 = vshll.u32 %v2534, 23
        %v2536 = vor.u32 4788187, %v2535
        %v2537 = vand.u32 2147483647, %v2536
        %v2539 = vcvt.s32.f32 %v2532
        %v2540 = vmul.f32 %v2539, %v2537
        %v2541 = vxor.u32 %v2540, 2147483648
        %v2542 = vsel %vm2421, %v2541, %v2540
        %v2543 = vsub.s32 4, %v2519
        %v2544 = vsel %vm2421, %v2543, %v2519
        %v2545 = vsel %vm2420, %v1010, %v2542
        %v2546 = vsel %vm2420, 0, %v2544
        %v2547 = vmul.f32 %v2545, %v2545
        %v2548 = vmul.f32 %v2547, -0.001358992
        %v2549 = vadd.f32 %v2548, 0.041655596
        %v2550 = vmul.f32 %v2547, %v2549
        %v2551 = vadd.f32 %v2550, -0.4999988
        %v2552 = vmul.f32 %v2547, %v2551
        %v2553 = vadd.f32 1.0, %v2552
        %v2554 = vmul.f32 %v2545, %v2545
        %v2555 = vmul.f32 %v2554, -0.00019511016
        %v2556 = vadd.f32 %v2555, 0.008332121
        %v2557 = vmul.f32 %v2554, %v2556
        %v2558 = vadd.f32 %v2557, -0.16666654
        %v2559 = vmul.f32 %v2554, %v2558
        %v2560 = vadd.f32 %v2559, 1.0
        %v2561 = vmul.f32 %v2560, %v2545
        %vm2562 = vweird.f32 %v1010
        %v2563 = vand.u32 %v2546, 3
        %vm2564 = vcmp.lt.s32.totalorder %v2563, 2
        %vm2565 = vcmp.eq.s32.totalorder %v2563, 0
        %v2566 = vxor.u32 %v2561, 2147483648
        %v2567 = vsel %vm2565, %v2553, %v2566
        %vm2568 = vcmp.eq.s32.totalorder %v2563, 2
        %v2569 = vxor.u32 %v2553, 2147483648
        %v2570 = vsel %vm2568, %v2569, %v2561
        %v2571 = vsel %vm2564, %v2567, %v2570
        %v2572 = vsel %vm2562, nan, %v2571
        %v2573 = vand.u32 2147483647, %v1011
        %vm2574 = vcmp.le.f32.partialorder %v2573, 0.7853982
        %vm2575 = vcmp.lt.s32.totalorder %v1011, 0
        %v2576 = vand.u32 %v1011, 2139095040
        %v2577 = vshrl.u32 %v2576, 23
        %v2578 = vsub.s32 %v2577, 127
        %v2579 = vand.u32 2147483647, %v1011
        %v2580 = vand.u32 %v2579, 8388607
        %v2581 = vor.u32 %v2580, 8388608
        %v2582 = vsub.s32 0, %v2581
        %v2583 = vadd.s32 %v2578, 1
        %vm2584 = vcmp.gt.s32.totalorder %v2583, 0
        %v2585 = vsel %vm2584, %v2583, 0
        %v2586 = vshrl.u32 %v2585, 5
        %v2587 = vand.u32 %v2585, 31
        %v2588 = vsub.s32 32, %v2587
        %v2589 = vshrl.u32 683565275, %v2588
        %v2590 = vshll.u32 683565275, %v2587
        %v2591 = vshrl.u32 2475754826, %v2588
        %v2592 = vor.u32 %v2590, %v2591
        %v2593 = vshll.u32 2475754826, %v2587
        %v2594 = vshrl.u32 2131351028, %v2588
        %v2595 = vor.u32 %v2593, %v2594
        %v2596 = vshll.u32 2131351028, %v2587
        %v2597 = vshrl.u32 2102212464, %v2588
        %v2598 = vor.u32 %v2596, %v2597
        %v2599 = vshll.u32 2102212464, %v2587
        %v2600 = vshrl.u32 920167782, %v2588
        %v2601 = vor.u32 %v2599, %v2600
        %v2602 = vshll.u32 920167782, %v2587
        %v2603 = vshrl.u32 1326507024, %v2588
        %v2604 = vor.u32 %v2602, %v2603
        %vm2605 = vcmp.lt.s32.totalorder %v2586, 1
        %vm2606 = vcmp.lt.s32.totalorder %v2586, 2
        %vm2607 = vcmp.lt.s32.totalorder %v2586, 3
        %vm2608 = vcmp.lt.s32.totalorder %v2586, 4
        %v2609 = vsel %vm2605, %v2589, %v2592
        %v2610 = vsel %vm2608, %v2598, 2102212464
        %v2611 = vsel %vm2607, %v2595, %v2610
        %v2612 = vsel %vm2606, %v2609, %v2611
        %v2613 = vsel %vm2605, %v2592, %v2595
        %v2614 = vsel %vm2608, %v2601, 920167782
        %v2615 = vsel %vm2607, %v2598, %v2614
        %v2616 = vsel %vm2606, %v2613, %v2615
        %v2617 = vsel %vm2605, %v2595, %v2598
        %v2618 = vsel %vm2608, %v2604, 1326507024
        %v2619 = vsel %vm2607, %v2601, %v2618
        %v2620 = vsel %vm2606, %v2617, %v2619
        %v2621 = vshll.u32 %v2581, 8
        %v2622 = vand.u32 %v2621, 65535
        %v2623 = vshrl.u32 %v2621, 16
        %v2624 = vand.u32 %v2620, 65535
        %v2625 = vshrl.u32 %v2620, 16
        %v2626 = vmul.u32 %v2622, %v2624
        %v2627 = vmul.u32 %v2622, %v2625
        %v2628 = vmul.u32 %v2623, %v2624
        %v2629 = vmul.u32 %v2623, %v2625
        %v2630 = vshll.u32 %v2627, 16
        %v2631 = vshrl.u32 %v2627, 16
        %v2632 = vshll.u32 %v2628, 16
        %v2633 = vshrl.u32 %v2628, 16
        %vm2634 = vc.u32 %v2626, %v2630
        %v2635 = vsel %vm2634, 1, 0
        %v2636 = vadd.s32 %v2626, %v2630
        %v2637 = vadd.s32 %v2629, %v2635
        %vm2638 = vc.u32 %v2636, %v2632
        %v2639 = vsel %vm2638, 1, 0
        %v2640 = vadd.s32 %v2636, %v2632
        %v2641 = vadd.s32 %v2637, %v2639
        %v2642 = vadd.s32 %v2641, %v2631
        %v2643 = vadd.s32 %v2642, %v2633
        %v2644 = vand.u32 %v2621, 65535
        %v2645 = vshrl.u32 %v2621, 16
        %v2646 = vand.u32 %v2616, 65535
        %v2647 = vshrl.u32 %v2616, 16
        %v2648 = vmul.u32 %v2644, %v2646
        %v2649 = vmul.u32 %v2644, %v2647
        %v2650 = vmul.u32 %v2645, %v2646
        %v2651 = vmul.u32 %v2645, %v2647
        %v2652 = vshll.u32 %v2649, 16
        %v2653 = vshrl.u32 %v2649, 16
        %v2654 = vshll.u32 %v2650, 16
        %v2655 = vshrl.u32 %v2650, 16
        %vm2656 = vc.u32 %v2648, %v2652
        %v2657 = vsel %vm2656, 1, 0
        %v2658 = vadd.s32 %v2648, %v2652
        %v2659 = vadd.s32 %v2651, %v2657
        %vm2660 = vc.u32 %v2658, %v2654
        %v2661 = vsel %vm2660, 1, 0
        %v2662 = vadd.s32 %v2658, %v2654
        %v2663 = vadd.s32 %v2659, %v2661
        %v2664 = vadd.s32 %v2663, %v2653
        %v2665 = vadd.s32 %v2664, %v2655
        %v2666 = vmul.u32 %v2621, %v2612
        %v2667 = vadd.s32 %v2643, %v2662
        %vm2668 = vc.u32 %v2643, %v2662
        %v2669 = vadd.s32 %v2665, 1
        %v2670 = vsel %vm2668, %v2669, %v2665
        %v2671 = vadd.s32 %v2666, %v2670
        %v2672 = vadd.s32 %v2671, 536870912
        %v2673 = vshrl.u32 %v2672, 30
        %v2674 = vshll.u32 %v2673, 30
        %v2675 = vsub.s32 %v2671, %v2674
        %vm2676 = vcmp.lt.s32.totalorder %v2675, 0
        %v2677 = vsub.s32 0, %v2675
        %v2678 = vsel %vm2676, %v2677, %v2675
        %v2679 = vclz %v2678
        %v2680 = vsub.s32 %v2679, 2
        %vm2681 = vcmp.gt.s32.totalorder 0, %v2680
        %v2682 = vsel %vm2681, 0, %v2680
        %v2683 = vsub.s32 32, %v2682
        %v2684 = vshll.u32 %v2675, %v2682
        %v2685 = vshrl.u32 %v2667, %v2683
        %v2686 = vor.u32 %v2684, %v2685
        %v2687 = vsub.s32 4294967266, %v2682
        %v2688 = vadd.s32 %v2687, 127
        %v2689 = vshll.u32 %v2688, 23
        %v2690 = vor.u32 4788187, %v2689
        %v2691 = vand.u32 2147483647, %v2690
        %v2693 = vcvt.s32.f32 %v2686
        %v2694 = vmul.f32 %v2693, %v2691
        %v2695 = vxor.u32 %v2694, 2147483648
        %v2696 = vsel %vm2575, %v2695, %v2694
        %v2697 = vsub.s32 4, %v2673
        %v2698 = vsel %vm2575, %v2697, %v2673
        %v2699 = vsel %vm2574, %v1011, %v2696
        %v2700 = vsel %vm2574, 0, %v2698
        %v2701 = vmul.f32 %v2699, %v2699
        %v2702 = vmul.f32 %v2701, -0.001358992
        %v2703 = vadd.f32 %v2702, 0.041655596
        %v2704 = vmul.f32 %v2701, %v2703
        %v2705 = vadd.f32 %v2704, -0.4999988
        %v2706 = vmul.f32 %v2701, %v2705
        %v2707 = vadd.f32 1.0, %v2706
        %v2708 = vmul.f32 %v2699, %v2699
        %v2709 = vmul.f32 %v2708, -0.00019511016
        %v2710 = vadd.f32 %v2709, 0.008332121
        %v2711 = vmul.f32 %v2708, %v2710
        %v2712 = vadd.f32 %v2711, -0.16666654
        %v2713 = vmul.f32 %v2708, %v2712
        %v2714 = vadd.f32 %v2713, 1.0
        %v2715 = vmul.f32 %v2714, %v2699
        %vm2716 = vweird.f32 %v1011
        %v2717 = vand.u32 %v2700, 3
        %vm2718 = vcmp.lt.s32.totalorder %v2717, 2
        %vm2719 = vcmp.eq.s32.totalorder %v2717, 0
        %v2720 = vxor.u32 %v2715, 2147483648
        %v2721 = vsel %vm2719, %v2707, %v2720
        %vm2722 = vcmp.eq.s32.totalorder %v2717, 2
        %v2723 = vxor.u32 %v2707, 2147483648
        %v2724 = vsel %vm2722, %v2723, %v2715
        %v2725 = vsel %vm2718, %v2721, %v2724
        %v2726 = vsel %vm2716, nan, %v2725
        %v2727 = vand.u32 2147483647, %v1012
        %vm2728 = vcmp.le.f32.partialorder %v2727, 0.7853982
        %vm2729 = vcmp.lt.s32.totalorder %v1012, 0
        %v2730 = vand.u32 %v1012, 2139095040
        %v2731 = vshrl.u32 %v2730, 23
        %v2732 = vsub.s32 %v2731, 127
        %v2733 = vand.u32 2147483647, %v1012
        %v2734 = vand.u32 %v2733, 8388607
        %v2735 = vor.u32 %v2734, 8388608
        %v2736 = vsub.s32 0, %v2735
        %v2737 = vadd.s32 %v2732, 1
        %vm2738 = vcmp.gt.s32.totalorder %v2737, 0
        %v2739 = vsel %vm2738, %v2737, 0
        %v2740 = vshrl.u32 %v2739, 5
        %v2741 = vand.u32 %v2739, 31
        %v2742 = vsub.s32 32, %v2741
        %v2743 = vshrl.u32 683565275, %v2742
        %v2744 = vshll.u32 683565275, %v2741
        %v2745 = vshrl.u32 2475754826, %v2742
        %v2746 = vor.u32 %v2744, %v2745
        %v2747 = vshll.u32 2475754826, %v2741
        %v2748 = vshrl.u32 2131351028, %v2742
        %v2749 = vor.u32 %v2747, %v2748
        %v2750 = vshll.u32 2131351028, %v2741
        %v2751 = vshrl.u32 2102212464, %v2742
        %v2752 = vor.u32 %v2750, %v2751
        %v2753 = vshll.u32 2102212464, %v2741
        %v2754 = vshrl.u32 920167782, %v2742
        %v2755 = vor.u32 %v2753, %v2754
        %v2756 = vshll.u32 920167782, %v2741
        %v2757 = vshrl.u32 1326507024, %v2742
        %v2758 = vor.u32 %v2756, %v2757
        %vm2759 = vcmp.lt.s32.totalorder %v2740, 1
        %vm2760 = vcmp.lt.s32.totalorder %v2740, 2
        %vm2761 = vcmp.lt.s32.totalorder %v2740, 3
        %vm2762 = vcmp.lt.s32.totalorder %v2740, 4
        %v2763 = vsel %vm2759, %v2743, %v2746
        %v2764 = vsel %vm2762, %v2752, 2102212464
        %v2765 = vsel %vm2761, %v2749, %v2764
        %v2766 = vsel %vm2760, %v2763, %v2765
        %v2767 = vsel %vm2759, %v2746, %v2749
        %v2768 = vsel %vm2762, %v2755, 920167782
        %v2769 = vsel %vm2761, %v2752, %v2768
        %v2770 = vsel %vm2760, %v2767, %v2769
        %v2771 = vsel %vm2759, %v2749, %v2752
        %v2772 = vsel %vm2762, %v2758, 1326507024
        %v2773 = vsel %vm2761, %v2755, %v2772
        %v2774 = vsel %vm2760, %v2771, %v2773
        %v2775 = vshll.u32 %v2735, 8
        %v2776 = vand.u32 %v2775, 65535
        %v2777 = vshrl.u32 %v2775, 16
        %v2778 = vand.u32 %v2774, 65535
        %v2779 = vshrl.u32 %v2774, 16
        %v2780 = vmul.u32 %v2776, %v2778
        %v2781 = vmul.u32 %v2776, %v2779
        %v2782 = vmul.u32 %v2777, %v2778
        %v2783 = vmul.u32 %v2777, %v2779
        %v2784 = vshll.u32 %v2781, 16
        %v2785 = vshrl.u32 %v2781, 16
        %v2786 = vshll.u32 %v2782, 16
        %v2787 = vshrl.u32 %v2782, 16
        %vm2788 = vc.u32 %v2780, %v2784
        %v2789 = vsel %vm2788, 1, 0
        %v2790 = vadd.s32 %v2780, %v2784
        %v2791 = vadd.s32 %v2783, %v2789
        %vm2792 = vc.u32 %v2790, %v2786
        %v2793 = vsel %vm2792, 1, 0
        %v2794 = vadd.s32 %v2790, %v2786
        %v2795 = vadd.s32 %v2791, %v2793
        %v2796 = vadd.s32 %v2795, %v2785
        %v2797 = vadd.s32 %v2796, %v2787
        %v2798 = vand.u32 %v2775, 65535
        %v2799 = vshrl.u32 %v2775, 16
        %v2800 = vand.u32 %v2770, 65535
        %v2801 = vshrl.u32 %v2770, 16
        %v2802 = vmul.u32 %v2798, %v2800
        %v2803 = vmul.u32 %v2798, %v2801
        %v2804 = vmul.u32 %v2799, %v2800
        %v2805 = vmul.u32 %v2799, %v2801
        %v2806 = vshll.u32 %v2803, 16
        %v2807 = vshrl.u32 %v2803, 16
        %v2808 = vshll.u32 %v2804, 16
        %v2809 = vshrl.u32 %v2804, 16
        %vm2810 = vc.u32 %v2802, %v2806
        %v2811 = vsel %vm2810, 1, 0
        %v2812 = vadd.s32 %v2802, %v2806
        %v2813 = vadd.s32 %v2805, %v2811
        %vm2814 = vc.u32 %v2812, %v2808
        %v2815 = vsel %vm2814, 1, 0
        %v2816 = vadd.s32 %v2812, %v2808
        %v2817 = vadd.s32 %v2813, %v2815
        %v2818 = vadd.s32 %v2817, %v2807
        %v2819 = vadd.s32 %v2818, %v2809
        %v2820 = vmul.u32 %v2775, %v2766
        %v2821 = vadd.s32 %v2797, %v2816
        %vm2822 = vc.u32 %v2797, %v2816
        %v2823 = vadd.s32 %v2819, 1
        %v2824 = vsel %vm2822, %v2823, %v2819
        %v2825 = vadd.s32 %v2820, %v2824
        %v2826 = vadd.s32 %v2825, 536870912
        %v2827 = vshrl.u32 %v2826, 30
        %v2828 = vshll.u32 %v2827, 30
        %v2829 = vsub.s32 %v2825, %v2828
        %vm2830 = vcmp.lt.s32.totalorder %v2829, 0
        %v2831 = vsub.s32 0, %v2829
        %v2832 = vsel %vm2830, %v2831, %v2829
        %v2833 = vclz %v2832
        %v2834 = vsub.s32 %v2833, 2
        %vm2835 = vcmp.gt.s32.totalorder 0, %v2834
        %v2836 = vsel %vm2835, 0, %v2834
        %v2837 = vsub.s32 32, %v2836
        %v2838 = vshll.u32 %v2829, %v2836
        %v2839 = vshrl.u32 %v2821, %v2837
        %v2840 = vor.u32 %v2838, %v2839
        %v2841 = vsub.s32 4294967266, %v2836
        %v2842 = vadd.s32 %v2841, 127
        %v2843 = vshll.u32 %v2842, 23
        %v2844 = vor.u32 4788187, %v2843
        %v2845 = vand.u32 2147483647, %v2844
        %v2847 = vcvt.s32.f32 %v2840
        %v2848 = vmul.f32 %v2847, %v2845
        %v2849 = vxor.u32 %v2848, 2147483648
        %v2850 = vsel %vm2729, %v2849, %v2848
        %v2851 = vsub.s32 4, %v2827
        %v2852 = vsel %vm2729, %v2851, %v2827
        %v2853 = vsel %vm2728, %v1012, %v2850
        %v2854 = vsel %vm2728, 0, %v2852
        %v2855 = vmul.f32 %v2853, %v2853
        %v2856 = vmul.f32 %v2855, -0.001358992
        %v2857 = vadd.f32 %v2856, 0.041655596
        %v2858 = vmul.f32 %v2855, %v2857
        %v2859 = vadd.f32 %v2858, -0.4999988
        %v2860 = vmul.f32 %v2855, %v2859
        %v2861 = vadd.f32 1.0, %v2860
        %v2862 = vmul.f32 %v2853, %v2853
        %v2863 = vmul.f32 %v2862, -0.00019511016
        %v2864 = vadd.f32 %v2863, 0.008332121
        %v2865 = vmul.f32 %v2862, %v2864
        %v2866 = vadd.f32 %v2865, -0.16666654
        %v2867 = vmul.f32 %v2862, %v2866
        %v2868 = vadd.f32 %v2867, 1.0
        %v2869 = vmul.f32 %v2868, %v2853
        %vm2870 = vweird.f32 %v1012
        %v2871 = vand.u32 %v2854, 3
        %vm2872 = vcmp.lt.s32.totalorder %v2871, 2
        %vm2873 = vcmp.eq.s32.totalorder %v2871, 0
        %v2874 = vxor.u32 %v2869, 2147483648
        %v2875 = vsel %vm2873, %v2861, %v2874
        %vm2876 = vcmp.eq.s32.totalorder %v2871, 2
        %v2877 = vxor.u32 %v2861, 2147483648
        %v2878 = vsel %vm2876, %v2877, %v2869
        %v2879 = vsel %vm2872, %v2875, %v2878
        %v2880 = vsel %vm2870, nan, %v2879
        %v2881 = vand.u32 2147483647, %v1013
        %vm2882 = vcmp.le.f32.partialorder %v2881, 0.7853982
        %vm2883 = vcmp.lt.s32.totalorder %v1013, 0
        %v2884 = vand.u32 %v1013, 2139095040
        %v2885 = vshrl.u32 %v2884, 23
        %v2886 = vsub.s32 %v2885, 127
        %v2887 = vand.u32 2147483647, %v1013
        %v2888 = vand.u32 %v2887, 8388607
        %v2889 = vor.u32 %v2888, 8388608
        %v2890 = vsub.s32 0, %v2889
        %v2891 = vadd.s32 %v2886, 1
        %vm2892 = vcmp.gt.s32.totalorder %v2891, 0
        %v2893 = vsel %vm2892, %v2891, 0
        %v2894 = vshrl.u32 %v2893, 5
        %v2895 = vand.u32 %v2893, 31
        %v2896 = vsub.s32 32, %v2895
        %v2897 = vshrl.u32 683565275, %v2896
        %v2898 = vshll.u32 683565275, %v2895
        %v2899 = vshrl.u32 2475754826, %v2896
        %v2900 = vor.u32 %v2898, %v2899
        %v2901 = vshll.u32 2475754826, %v2895
        %v2902 = vshrl.u32 2131351028, %v2896
        %v2903 = vor.u32 %v2901, %v2902
        %v2904 = vshll.u32 2131351028, %v2895
        %v2905 = vshrl.u32 2102212464, %v2896
        %v2906 = vor.u32 %v2904, %v2905
        %v2907 = vshll.u32 2102212464, %v2895
        %v2908 = vshrl.u32 920167782, %v2896
        %v2909 = vor.u32 %v2907, %v2908
        %v2910 = vshll.u32 920167782, %v2895
        %v2911 = vshrl.u32 1326507024, %v2896
        %v2912 = vor.u32 %v2910, %v2911
        %vm2913 = vcmp.lt.s32.totalorder %v2894, 1
        %vm2914 = vcmp.lt.s32.totalorder %v2894, 2
        %vm2915 = vcmp.lt.s32.totalorder %v2894, 3
        %vm2916 = vcmp.lt.s32.totalorder %v2894, 4
        %v2917 = vsel %vm2913, %v2897, %v2900
        %v2918 = vsel %vm2916, %v2906, 2102212464
        %v2919 = vsel %vm2915, %v2903, %v2918
        %v2920 = vsel %vm2914, %v2917, %v2919
        %v2921 = vsel %vm2913, %v2900, %v2903
        %v2922 = vsel %vm2916, %v2909, 920167782
        %v2923 = vsel %vm2915, %v2906, %v2922
        %v2924 = vsel %vm2914, %v2921, %v2923
        %v2925 = vsel %vm2913, %v2903, %v2906
        %v2926 = vsel %vm2916, %v2912, 1326507024
        %v2927 = vsel %vm2915, %v2909, %v2926
        %v2928 = vsel %vm2914, %v2925, %v2927
        %v2929 = vshll.u32 %v2889, 8
        %v2930 = vand.u32 %v2929, 65535
        %v2931 = vshrl.u32 %v2929, 16
        %v2932 = vand.u32 %v2928, 65535
        %v2933 = vshrl.u32 %v2928, 16
        %v2934 = vmul.u32 %v2930, %v2932
        %v2935 = vmul.u32 %v2930, %v2933
        %v2936 = vmul.u32 %v2931, %v2932
        %v2937 = vmul.u32 %v2931, %v2933
        %v2938 = vshll.u32 %v2935, 16
        %v2939 = vshrl.u32 %v2935, 16
        %v2940 = vshll.u32 %v2936, 16
        %v2941 = vshrl.u32 %v2936, 16
        %vm2942 = vc.u32 %v2934, %v2938
        %v2943 = vsel %vm2942, 1, 0
        %v2944 = vadd.s32 %v2934, %v2938
        %v2945 = vadd.s32 %v2937, %v2943
        %vm2946 = vc.u32 %v2944, %v2940
        %v2947 = vsel %vm2946, 1, 0
        %v2948 = vadd.s32 %v2944, %v2940
        %v2949 = vadd.s32 %v2945, %v2947
        %v2950 = vadd.s32 %v2949, %v2939
        %v2951 = vadd.s32 %v2950, %v2941
        %v2952 = vand.u32 %v2929, 65535
        %v2953 = vshrl.u32 %v2929, 16
        %v2954 = vand.u32 %v2924, 65535
        %v2955 = vshrl.u32 %v2924, 16
        %v2956 = vmul.u32 %v2952, %v2954
        %v2957 = vmul.u32 %v2952, %v2955
        %v2958 = vmul.u32 %v2953, %v2954
        %v2959 = vmul.u32 %v2953, %v2955
        %v2960 = vshll.u32 %v2957, 16
        %v2961 = vshrl.u32 %v2957, 16
        %v2962 = vshll.u32 %v2958, 16
        %v2963 = vshrl.u32 %v2958, 16
        %vm2964 = vc.u32 %v2956, %v2960
        %v2965 = vsel %vm2964, 1, 0
        %v2966 = vadd.s32 %v2956, %v2960
        %v2967 = vadd.s32 %v2959, %v2965
        %vm2968 = vc.u32 %v2966, %v2962
        %v2969 = vsel %vm2968, 1, 0
        %v2970 = vadd.s32 %v2966, %v2962
        %v2971 = vadd.s32 %v2967, %v2969
        %v2972 = vadd.s32 %v2971, %v2961
        %v2973 = vadd.s32 %v2972, %v2963
        %v2974 = vmul.u32 %v2929, %v2920
        %v2975 = vadd.s32 %v2951, %v2970
        %vm2976 = vc.u32 %v2951, %v2970
        %v2977 = vadd.s32 %v2973, 1
        %v2978 = vsel %vm2976, %v2977, %v2973
        %v2979 = vadd.s32 %v2974, %v2978
        %v2980 = vadd.s32 %v2979, 536870912
        %v2981 = vshrl.u32 %v2980, 30
        %v2982 = vshll.u32 %v2981, 30
        %v2983 = vsub.s32 %v2979, %v2982
        %vm2984 = vcmp.lt.s32.totalorder %v2983, 0
        %v2985 = vsub.s32 0, %v2983
        %v2986 = vsel %vm2984, %v2985, %v2983
        %v2987 = vclz %v2986
        %v2988 = vsub.s32 %v2987, 2
        %vm2989 = vcmp.gt.s32.totalorder 0, %v2988
        %v2990 = vsel %vm2989, 0, %v2988
        %v2991 = vsub.s32 32, %v2990
        %v2992 = vshll.u32 %v2983, %v2990
        %v2993 = vshrl.u32 %v2975, %v2991
        %v2994 = vor.u32 %v2992, %v2993
        %v2995 = vsub.s32 4294967266, %v2990
        %v2996 = vadd.s32 %v2995, 127
        %v2997 = vshll.u32 %v2996, 23
        %v2998 = vor.u32 4788187, %v2997
        %v2999 = vand.u32 2147483647, %v2998
        %v3001 = vcvt.s32.f32 %v2994
        %v3002 = vmul.f32 %v3001, %v2999
        %v3003 = vxor.u32 %v3002, 2147483648
        %v3004 = vsel %vm2883, %v3003, %v3002
        %v3005 = vsub.s32 4, %v2981
        %v3006 = vsel %vm2883, %v3005, %v2981
        %v3007 = vsel %vm2882, %v1013, %v3004
        %v3008 = vsel %vm2882, 0, %v3006
        %v3009 = vmul.f32 %v3007, %v3007
        %v3010 = vmul.f32 %v3009, -0.001358992
        %v3011 = vadd.f32 %v3010, 0.041655596
        %v3012 = vmul.f32 %v3009, %v3011
        %v3013 = vadd.f32 %v3012, -0.4999988
        %v3014 = vmul.f32 %v3009, %v3013
        %v3015 = vadd.f32 1.0, %v3014
        %v3016 = vmul.f32 %v3007, %v3007
        %v3017 = vmul.f32 %v3016, -0.00019511016
        %v3018 = vadd.f32 %v3017, 0.008332121
        %v3019 = vmul.f32 %v3016, %v3018
        %v3020 = vadd.f32 %v3019, -0.16666654
        %v3021 = vmul.f32 %v3016, %v3020
        %v3022 = vadd.f32 %v3021, 1.0
        %v3023 = vmul.f32 %v3022, %v3007
        %vm3024 = vweird.f32 %v1013
        %v3025 = vand.u32 %v3008, 3
        %vm3026 = vcmp.lt.s32.totalorder %v3025, 2
        %vm3027 = vcmp.eq.s32.totalorder %v3025, 0
        %v3028 = vxor.u32 %v3023, 2147483648
        %v3029 = vsel %vm3027, %v3015, %v3028
        %vm3030 = vcmp.eq.s32.totalorder %v3025, 2
        %v3031 = vxor.u32 %v3015, 2147483648
        %v3032 = vsel %vm3030, %v3031, %v3023
        %v3033 = vsel %vm3026, %v3029, %v3032
        %v3034 = vsel %vm3024, nan, %v3033
        %v3035 = vand.u32 2147483647, %v1014
        %vm3036 = vcmp.le.f32.partialorder %v3035, 0.7853982
        %vm3037 = vcmp.lt.s32.totalorder %v1014, 0
        %v3038 = vand.u32 %v1014, 2139095040
        %v3039 = vshrl.u32 %v3038, 23
        %v3040 = vsub.s32 %v3039, 127
        %v3041 = vand.u32 2147483647, %v1014
        %v3042 = vand.u32 %v3041, 8388607
        %v3043 = vor.u32 %v3042, 8388608
        %v3044 = vsub.s32 0, %v3043
        %v3045 = vadd.s32 %v3040, 1
        %vm3046 = vcmp.gt.s32.totalorder %v3045, 0
        %v3047 = vsel %vm3046, %v3045, 0
        %v3048 = vshrl.u32 %v3047, 5
        %v3049 = vand.u32 %v3047, 31
        %v3050 = vsub.s32 32, %v3049
        %v3051 = vshrl.u32 683565275, %v3050
        %v3052 = vshll.u32 683565275, %v3049
        %v3053 = vshrl.u32 2475754826, %v3050
        %v3054 = vor.u32 %v3052, %v3053
        %v3055 = vshll.u32 2475754826, %v3049
        %v3056 = vshrl.u32 2131351028, %v3050
        %v3057 = vor.u32 %v3055, %v3056
        %v3058 = vshll.u32 2131351028, %v3049
        %v3059 = vshrl.u32 2102212464, %v3050
        %v3060 = vor.u32 %v3058, %v3059
        %v3061 = vshll.u32 2102212464, %v3049
        %v3062 = vshrl.u32 920167782, %v3050
        %v3063 = vor.u32 %v3061, %v3062
        %v3064 = vshll.u32 920167782, %v3049
        %v3065 = vshrl.u32 1326507024, %v3050
        %v3066 = vor.u32 %v3064, %v3065
        %vm3067 = vcmp.lt.s32.totalorder %v3048, 1
        %vm3068 = vcmp.lt.s32.totalorder %v3048, 2
        %vm3069 = vcmp.lt.s32.totalorder %v3048, 3
        %vm3070 = vcmp.lt.s32.totalorder %v3048, 4
        %v3071 = vsel %vm3067, %v3051, %v3054
        %v3072 = vsel %vm3070, %v3060, 2102212464
        %v3073 = vsel %vm3069, %v3057, %v3072
        %v3074 = vsel %vm3068, %v3071, %v3073
        %v3075 = vsel %vm3067, %v3054, %v3057
        %v3076 = vsel %vm3070, %v3063, 920167782
        %v3077 = vsel %vm3069, %v3060, %v3076
        %v3078 = vsel %vm3068, %v3075, %v3077
        %v3079 = vsel %vm3067, %v3057, %v3060
        %v3080 = vsel %vm3070, %v3066, 1326507024
        %v3081 = vsel %vm3069, %v3063, %v3080
        %v3082 = vsel %vm3068, %v3079, %v3081
        %v3083 = vshll.u32 %v3043, 8
        %v3084 = vand.u32 %v3083, 65535
        %v3085 = vshrl.u32 %v3083, 16
        %v3086 = vand.u32 %v3082, 65535
        %v3087 = vshrl.u32 %v3082, 16
        %v3088 = vmul.u32 %v3084, %v3086
        %v3089 = vmul.u32 %v3084, %v3087
        %v3090 = vmul.u32 %v3085, %v3086
        %v3091 = vmul.u32 %v3085, %v3087
        %v3092 = vshll.u32 %v3089, 16
        %v3093 = vshrl.u32 %v3089, 16
        %v3094 = vshll.u32 %v3090, 16
        %v3095 = vshrl.u32 %v3090, 16
        %vm3096 = vc.u32 %v3088, %v3092
        %v3097 = vsel %vm3096, 1, 0
        %v3098 = vadd.s32 %v3088, %v3092
        %v3099 = vadd.s32 %v3091, %v3097
        %vm3100 = vc.u32 %v3098, %v3094
        %v3101 = vsel %vm3100, 1, 0
        %v3102 = vadd.s32 %v3098, %v3094
        %v3103 = vadd.s32 %v3099, %v3101
        %v3104 = vadd.s32 %v3103, %v3093
        %v3105 = vadd.s32 %v3104, %v3095
        %v3106 = vand.u32 %v3083, 65535
        %v3107 = vshrl.u32 %v3083, 16
        %v3108 = vand.u32 %v3078, 65535
        %v3109 = vshrl.u32 %v3078, 16
        %v3110 = vmul.u32 %v3106, %v3108
        %v3111 = vmul.u32 %v3106, %v3109
        %v3112 = vmul.u32 %v3107, %v3108
        %v3113 = vmul.u32 %v3107, %v3109
        %v3114 = vshll.u32 %v3111, 16
        %v3115 = vshrl.u32 %v3111, 16
        %v3116 = vshll.u32 %v3112, 16
        %v3117 = vshrl.u32 %v3112, 16
        %vm3118 = vc.u32 %v3110, %v3114
        %v3119 = vsel %vm3118, 1, 0
        %v3120 = vadd.s32 %v3110, %v3114
        %v3121 = vadd.s32 %v3113, %v3119
        %vm3122 = vc.u32 %v3120, %v3116
        %v3123 = vsel %vm3122, 1, 0
        %v3124 = vadd.s32 %v3120, %v3116
        %v3125 = vadd.s32 %v3121, %v3123
        %v3126 = vadd.s32 %v3125, %v3115
        %v3127 = vadd.s32 %v3126, %v3117
        %v3128 = vmul.u32 %v3083, %v3074
        %v3129 = vadd.s32 %v3105, %v3124
        %vm3130 = vc.u32 %v3105, %v3124
        %v3131 = vadd.s32 %v3127, 1
        %v3132 = vsel %vm3130, %v3131, %v3127
        %v3133 = vadd.s32 %v3128, %v3132
        %v3134 = vadd.s32 %v3133, 536870912
        %v3135 = vshrl.u32 %v3134, 30
        %v3136 = vshll.u32 %v3135, 30
        %v3137 = vsub.s32 %v3133, %v3136
        %vm3138 = vcmp.lt.s32.totalorder %v3137, 0
        %v3139 = vsub.s32 0, %v3137
        %v3140 = vsel %vm3138, %v3139, %v3137
        %v3141 = vclz %v3140
        %v3142 = vsub.s32 %v3141, 2
        %vm3143 = vcmp.gt.s32.totalorder 0, %v3142
        %v3144 = vsel %vm3143, 0, %v3142
        %v3145 = vsub.s32 32, %v3144
        %v3146 = vshll.u32 %v3137, %v3144
        %v3147 = vshrl.u32 %v3129, %v3145
        %v3148 = vor.u32 %v3146, %v3147
        %v3149 = vsub.s32 4294967266, %v3144
        %v3150 = vadd.s32 %v3149, 127
        %v3151 = vshll.u32 %v3150, 23
        %v3152 = vor.u32 4788187, %v3151
        %v3153 = vand.u32 2147483647, %v3152
        %v3155 = vcvt.s32.f32 %v3148
        %v3156 = vmul.f32 %v3155, %v3153
        %v3157 = vxor.u32 %v3156, 2147483648
        %v3158 = vsel %vm3037, %v3157, %v3156
        %v3159 = vsub.s32 4, %v3135
        %v3160 = vsel %vm3037, %v3159, %v3135
        %v3161 = vsel %vm3036, %v1014, %v3158
        %v3162 = vsel %vm3036, 0, %v3160
        %v3163 = vmul.f32 %v3161, %v3161
        %v3164 = vmul.f32 %v3163, -0.001358992
        %v3165 = vadd.f32 %v3164, 0.041655596
        %v3166 = vmul.f32 %v3163, %v3165
        %v3167 = vadd.f32 %v3166, -0.4999988
        %v3168 = vmul.f32 %v3163, %v3167
        %v3169 = vadd.f32 1.0, %v3168
        %v3170 = vmul.f32 %v3161, %v3161
        %v3171 = vmul.f32 %v3170, -0.00019511016
        %v3172 = vadd.f32 %v3171, 0.008332121
        %v3173 = vmul.f32 %v3170, %v3172
        %v3174 = vadd.f32 %v3173, -0.16666654
        %v3175 = vmul.f32 %v3170, %v3174
        %v3176 = vadd.f32 %v3175, 1.0
        %v3177 = vmul.f32 %v3176, %v3161
        %vm3178 = vweird.f32 %v1014
        %v3179 = vand.u32 %v3162, 3
        %vm3180 = vcmp.lt.s32.totalorder %v3179, 2
        %vm3181 = vcmp.eq.s32.totalorder %v3179, 0
        %v3182 = vxor.u32 %v3177, 2147483648
        %v3183 = vsel %vm3181, %v3169, %v3182
        %vm3184 = vcmp.eq.s32.totalorder %v3179, 2
        %v3185 = vxor.u32 %v3169, 2147483648
        %v3186 = vsel %vm3184, %v3185, %v3177
        %v3187 = vsel %vm3180, %v3183, %v3186
        %v3188 = vsel %vm3178, nan, %v3187
        %v3189 = vand.u32 2147483647, %v1015
        %vm3190 = vcmp.le.f32.partialorder %v3189, 0.7853982
        %vm3191 = vcmp.lt.s32.totalorder %v1015, 0
        %v3192 = vand.u32 %v1015, 2139095040
        %v3193 = vshrl.u32 %v3192, 23
        %v3194 = vsub.s32 %v3193, 127
        %v3195 = vand.u32 2147483647, %v1015
        %v3196 = vand.u32 %v3195, 8388607
        %v3197 = vor.u32 %v3196, 8388608
        %v3198 = vsub.s32 0, %v3197
        %v3199 = vadd.s32 %v3194, 1
        %vm3200 = vcmp.gt.s32.totalorder %v3199, 0
        %v3201 = vsel %vm3200, %v3199, 0
        %v3202 = vshrl.u32 %v3201, 5
        %v3203 = vand.u32 %v3201, 31
        %v3204 = vsub.s32 32, %v3203
        %v3205 = vshrl.u32 683565275, %v3204
        %v3206 = vshll.u32 683565275, %v3203
        %v3207 = vshrl.u32 2475754826, %v3204
        %v3208 = vor.u32 %v3206, %v3207
        %v3209 = vshll.u32 2475754826, %v3203
        %v3210 = vshrl.u32 2131351028, %v3204
        %v3211 = vor.u32 %v3209, %v3210
        %v3212 = vshll.u32 2131351028, %v3203
        %v3213 = vshrl.u32 2102212464, %v3204
        %v3214 = vor.u32 %v3212, %v3213
        %v3215 = vshll.u32 2102212464, %v3203
        %v3216 = vshrl.u32 920167782, %v3204
        %v3217 = vor.u32 %v3215, %v3216
        %v3218 = vshll.u32 920167782, %v3203
        %v3219 = vshrl.u32 1326507024, %v3204
        %v3220 = vor.u32 %v3218, %v3219
        %vm3221 = vcmp.lt.s32.totalorder %v3202, 1
        %vm3222 = vcmp.lt.s32.totalorder %v3202, 2
        %vm3223 = vcmp.lt.s32.totalorder %v3202, 3
        %vm3224 = vcmp.lt.s32.totalorder %v3202, 4
        %v3225 = vsel %vm3221, %v3205, %v3208
        %v3226 = vsel %vm3224, %v3214, 2102212464
        %v3227 = vsel %vm3223, %v3211, %v3226
        %v3228 = vsel %vm3222, %v3225, %v3227
        %v3229 = vsel %vm3221, %v3208, %v3211
        %v3230 = vsel %vm3224, %v3217, 920167782
        %v3231 = vsel %vm3223, %v3214, %v3230
        %v3232 = vsel %vm3222, %v3229, %v3231
        %v3233 = vsel %vm3221, %v3211, %v3214
        %v3234 = vsel %vm3224, %v3220, 1326507024
        %v3235 = vsel %vm3223, %v3217, %v3234
        %v3236 = vsel %vm3222, %v3233, %v3235
        %v3237 = vshll.u32 %v3197, 8
        %v3238 = vand.u32 %v3237, 65535
        %v3239 = vshrl.u32 %v3237, 16
        %v3240 = vand.u32 %v3236, 65535
        %v3241 = vshrl.u32 %v3236, 16
        %v3242 = vmul.u32 %v3238, %v3240
        %v3243 = vmul.u32 %v3238, %v3241
        %v3244 = vmul.u32 %v3239, %v3240
        %v3245 = vmul.u32 %v3239, %v3241
        %v3246 = vshll.u32 %v3243, 16
        %v3247 = vshrl.u32 %v3243, 16
        %v3248 = vshll.u32 %v3244, 16
        %v3249 = vshrl.u32 %v3244, 16
        %vm3250 = vc.u32 %v3242, %v3246
        %v3251 = vsel %vm3250, 1, 0
        %v3252 = vadd.s32 %v3242, %v3246
        %v3253 = vadd.s32 %v3245, %v3251
        %vm3254 = vc.u32 %v3252, %v3248
        %v3255 = vsel %vm3254, 1, 0
        %v3256 = vadd.s32 %v3252, %v3248
        %v3257 = vadd.s32 %v3253, %v3255
        %v3258 = vadd.s32 %v3257, %v3247
        %v3259 = vadd.s32 %v3258, %v3249
        %v3260 = vand.u32 %v3237, 65535
        %v3261 = vshrl.u32 %v3237, 16
        %v3262 = vand.u32 %v3232, 65535
        %v3263 = vshrl.u32 %v3232, 16
        %v3264 = vmul.u32 %v3260, %v3262
        %v3265 = vmul.u32 %v3260, %v3263
        %v3266 = vmul.u32 %v3261, %v3262
        %v3267 = vmul.u32 %v3261, %v3263
        %v3268 = vshll.u32 %v3265, 16
        %v3269 = vshrl.u32 %v3265, 16
        %v3270 = vshll.u32 %v3266, 16
        %v3271 = vshrl.u32 %v3266, 16
        %vm3272 = vc.u32 %v3264, %v3268
        %v3273 = vsel %vm3272, 1, 0
        %v3274 = vadd.s32 %v3264, %v3268
        %v3275 = vadd.s32 %v3267, %v3273
        %vm3276 = vc.u32 %v3274, %v3270
        %v3277 = vsel %vm3276, 1, 0
        %v3278 = vadd.s32 %v3274, %v3270
        %v3279 = vadd.s32 %v3275, %v3277
        %v3280 = vadd.s32 %v3279, %v3269
        %v3281 = vadd.s32 %v3280, %v3271
        %v3282 = vmul.u32 %v3237, %v3228
        %v3283 = vadd.s32 %v3259, %v3278
        %vm3284 = vc.u32 %v3259, %v3278
        %v3285 = vadd.s32 %v3281, 1
        %v3286 = vsel %vm3284, %v3285, %v3281
        %v3287 = vadd.s32 %v3282, %v3286
        %v3288 = vadd.s32 %v3287, 536870912
        %v3289 = vshrl.u32 %v3288, 30
        %v3290 = vshll.u32 %v3289, 30
        %v3291 = vsub.s32 %v3287, %v3290
        %vm3292 = vcmp.lt.s32.totalorder %v3291, 0
        %v3293 = vsub.s32 0, %v3291
        %v3294 = vsel %vm3292, %v3293, %v3291
        %v3295 = vclz %v3294
        %v3296 = vsub.s32 %v3295, 2
        %vm3297 = vcmp.gt.s32.totalorder 0, %v3296
        %v3298 = vsel %vm3297, 0, %v3296
        %v3299 = vsub.s32 32, %v3298
        %v3300 = vshll.u32 %v3291, %v3298
        %v3301 = vshrl.u32 %v3283, %v3299
        %v3302 = vor.u32 %v3300, %v3301
        %v3303 = vsub.s32 4294967266, %v3298
        %v3304 = vadd.s32 %v3303, 127
        %v3305 = vshll.u32 %v3304, 23
        %v3306 = vor.u32 4788187, %v3305
        %v3307 = vand.u32 2147483647, %v3306
        %v3309 = vcvt.s32.f32 %v3302
        %v3310 = vmul.f32 %v3309, %v3307
        %v3311 = vxor.u32 %v3310, 2147483648
        %v3312 = vsel %vm3191, %v3311, %v3310
        %v3313 = vsub.s32 4, %v3289
        %v3314 = vsel %vm3191, %v3313, %v3289
        %v3315 = vsel %vm3190, %v1015, %v3312
        %v3316 = vsel %vm3190, 0, %v3314
        %v3317 = vmul.f32 %v3315, %v3315
        %v3318 = vmul.f32 %v3317, -0.001358992
        %v3319 = vadd.f32 %v3318, 0.041655596
        %v3320 = vmul.f32 %v3317, %v3319
        %v3321 = vadd.f32 %v3320, -0.4999988
        %v3322 = vmul.f32 %v3317, %v3321
        %v3323 = vadd.f32 1.0, %v3322
        %v3324 = vmul.f32 %v3315, %v3315
        %v3325 = vmul.f32 %v3324, -0.00019511016
        %v3326 = vadd.f32 %v3325, 0.008332121
        %v3327 = vmul.f32 %v3324, %v3326
        %v3328 = vadd.f32 %v3327, -0.16666654
        %v3329 = vmul.f32 %v3324, %v3328
        %v3330 = vadd.f32 %v3329, 1.0
        %v3331 = vmul.f32 %v3330, %v3315
        %vm3332 = vweird.f32 %v1015
        %v3333 = vand.u32 %v3316, 3
        %vm3334 = vcmp.lt.s32.totalorder %v3333, 2
        %vm3335 = vcmp.eq.s32.totalorder %v3333, 0
        %v3336 = vxor.u32 %v3331, 2147483648
        %v3337 = vsel %vm3335, %v3323, %v3336
        %vm3338 = vcmp.eq.s32.totalorder %v3333, 2
        %v3339 = vxor.u32 %v3323, 2147483648
        %v3340 = vsel %vm3338, %v3339, %v3331
        %v3341 = vsel %vm3334, %v3337, %v3340
        %v3342 = vsel %vm3332, nan, %v3341
        %v3343 = vand.u32 2147483647, %v1016
        %vm3344 = vcmp.le.f32.partialorder %v3343, 0.7853982
        %vm3345 = vcmp.lt.s32.totalorder %v1016, 0
        %v3346 = vand.u32 %v1016, 2139095040
        %v3347 = vshrl.u32 %v3346, 23
        %v3348 = vsub.s32 %v3347, 127
        %v3349 = vand.u32 2147483647, %v1016
        %v3350 = vand.u32 %v3349, 8388607
        %v3351 = vor.u32 %v3350, 8388608
        %v3352 = vsub.s32 0, %v3351
        %v3353 = vadd.s32 %v3348, 1
        %vm3354 = vcmp.gt.s32.totalorder %v3353, 0
        %v3355 = vsel %vm3354, %v3353, 0
        %v3356 = vshrl.u32 %v3355, 5
        %v3357 = vand.u32 %v3355, 31
        %v3358 = vsub.s32 32, %v3357
        %v3359 = vshrl.u32 683565275, %v3358
        %v3360 = vshll.u32 683565275, %v3357
        %v3361 = vshrl.u32 2475754826, %v3358
        %v3362 = vor.u32 %v3360, %v3361
        %v3363 = vshll.u32 2475754826, %v3357
        %v3364 = vshrl.u32 2131351028, %v3358
        %v3365 = vor.u32 %v3363, %v3364
        %v3366 = vshll.u32 2131351028, %v3357
        %v3367 = vshrl.u32 2102212464, %v3358
        %v3368 = vor.u32 %v3366, %v3367
        %v3369 = vshll.u32 2102212464, %v3357
        %v3370 = vshrl.u32 920167782, %v3358
        %v3371 = vor.u32 %v3369, %v3370
        %v3372 = vshll.u32 920167782, %v3357
        %v3373 = vshrl.u32 1326507024, %v3358
        %v3374 = vor.u32 %v3372, %v3373
        %vm3375 = vcmp.lt.s32.totalorder %v3356, 1
        %vm3376 = vcmp.lt.s32.totalorder %v3356, 2
        %vm3377 = vcmp.lt.s32.totalorder %v3356, 3
        %vm3378 = vcmp.lt.s32.totalorder %v3356, 4
        %v3379 = vsel %vm3375, %v3359, %v3362
        %v3380 = vsel %vm3378, %v3368, 2102212464
        %v3381 = vsel %vm3377, %v3365, %v3380
        %v3382 = vsel %vm3376, %v3379, %v3381
        %v3383 = vsel %vm3375, %v3362, %v3365
        %v3384 = vsel %vm3378, %v3371, 920167782
        %v3385 = vsel %vm3377, %v3368, %v3384
        %v3386 = vsel %vm3376, %v3383, %v3385
        %v3387 = vsel %vm3375, %v3365, %v3368
        %v3388 = vsel %vm3378, %v3374, 1326507024
        %v3389 = vsel %vm3377, %v3371, %v3388
        %v3390 = vsel %vm3376, %v3387, %v3389
        %v3391 = vshll.u32 %v3351, 8
        %v3392 = vand.u32 %v3391, 65535
        %v3393 = vshrl.u32 %v3391, 16
        %v3394 = vand.u32 %v3390, 65535
        %v3395 = vshrl.u32 %v3390, 16
        %v3396 = vmul.u32 %v3392, %v3394
        %v3397 = vmul.u32 %v3392, %v3395
        %v3398 = vmul.u32 %v3393, %v3394
        %v3399 = vmul.u32 %v3393, %v3395
        %v3400 = vshll.u32 %v3397, 16
        %v3401 = vshrl.u32 %v3397, 16
        %v3402 = vshll.u32 %v3398, 16
        %v3403 = vshrl.u32 %v3398, 16
        %vm3404 = vc.u32 %v3396, %v3400
        %v3405 = vsel %vm3404, 1, 0
        %v3406 = vadd.s32 %v3396, %v3400
        %v3407 = vadd.s32 %v3399, %v3405
        %vm3408 = vc.u32 %v3406, %v3402
        %v3409 = vsel %vm3408, 1, 0
        %v3410 = vadd.s32 %v3406, %v3402
        %v3411 = vadd.s32 %v3407, %v3409
        %v3412 = vadd.s32 %v3411, %v3401
        %v3413 = vadd.s32 %v3412, %v3403
        %v3414 = vand.u32 %v3391, 65535
        %v3415 = vshrl.u32 %v3391, 16
        %v3416 = vand.u32 %v3386, 65535
        %v3417 = vshrl.u32 %v3386, 16
        %v3418 = vmul.u32 %v3414, %v3416
        %v3419 = vmul.u32 %v3414, %v3417
        %v3420 = vmul.u32 %v3415, %v3416
        %v3421 = vmul.u32 %v3415, %v3417
        %v3422 = vshll.u32 %v3419, 16
        %v3423 = vshrl.u32 %v3419, 16
        %v3424 = vshll.u32 %v3420, 16
        %v3425 = vshrl.u32 %v3420, 16
        %vm3426 = vc.u32 %v3418, %v3422
        %v3427 = vsel %vm3426, 1, 0
        %v3428 = vadd.s32 %v3418, %v3422
        %v3429 = vadd.s32 %v3421, %v3427
        %vm3430 = vc.u32 %v3428, %v3424
        %v3431 = vsel %vm3430, 1, 0
        %v3432 = vadd.s32 %v3428, %v3424
        %v3433 = vadd.s32 %v3429, %v3431
        %v3434 = vadd.s32 %v3433, %v3423
        %v3435 = vadd.s32 %v3434, %v3425
        %v3436 = vmul.u32 %v3391, %v3382
        %v3437 = vadd.s32 %v3413, %v3432
        %vm3438 = vc.u32 %v3413, %v3432
        %v3439 = vadd.s32 %v3435, 1
        %v3440 = vsel %vm3438, %v3439, %v3435
        %v3441 = vadd.s32 %v3436, %v3440
        %v3442 = vadd.s32 %v3441, 536870912
        %v3443 = vshrl.u32 %v3442, 30
        %v3444 = vshll.u32 %v3443, 30
        %v3445 = vsub.s32 %v3441, %v3444
        %vm3446 = vcmp.lt.s32.totalorder %v3445, 0
        %v3447 = vsub.s32 0, %v3445
        %v3448 = vsel %vm3446, %v3447, %v3445
        %v3449 = vclz %v3448
        %v3450 = vsub.s32 %v3449, 2
        %vm3451 = vcmp.gt.s32.totalorder 0, %v3450
        %v3452 = vsel %vm3451, 0, %v3450
        %v3453 = vsub.s32 32, %v3452
        %v3454 = vshll.u32 %v3445, %v3452
        %v3455 = vshrl.u32 %v3437, %v3453
        %v3456 = vor.u32 %v3454, %v3455
        %v3457 = vsub.s32 4294967266, %v3452
        %v3458 = vadd.s32 %v3457, 127
        %v3459 = vshll.u32 %v3458, 23
        %v3460 = vor.u32 4788187, %v3459
        %v3461 = vand.u32 2147483647, %v3460
        %v3463 = vcvt.s32.f32 %v3456
        %v3464 = vmul.f32 %v3463, %v3461
        %v3465 = vxor.u32 %v3464, 2147483648
        %v3466 = vsel %vm3345, %v3465, %v3464
        %v3467 = vsub.s32 4, %v3443
        %v3468 = vsel %vm3345, %v3467, %v3443
        %v3469 = vsel %vm3344, %v1016, %v3466
        %v3470 = vsel %vm3344, 0, %v3468
        %v3471 = vmul.f32 %v3469, %v3469
        %v3472 = vmul.f32 %v3471, -0.001358992
        %v3473 = vadd.f32 %v3472, 0.041655596
        %v3474 = vmul.f32 %v3471, %v3473
        %v3475 = vadd.f32 %v3474, -0.4999988
        %v3476 = vmul.f32 %v3471, %v3475
        %v3477 = vadd.f32 1.0, %v3476
        %v3478 = vmul.f32 %v3469, %v3469
        %v3479 = vmul.f32 %v3478, -0.00019511016
        %v3480 = vadd.f32 %v3479, 0.008332121
        %v3481 = vmul.f32 %v3478, %v3480
        %v3482 = vadd.f32 %v3481, -0.16666654
        %v3483 = vmul.f32 %v3478, %v3482
        %v3484 = vadd.f32 %v3483, 1.0
        %v3485 = vmul.f32 %v3484, %v3469
        %vm3486 = vweird.f32 %v1016
        %v3487 = vand.u32 %v3470, 3
        %vm3488 = vcmp.lt.s32.totalorder %v3487, 2
        %vm3489 = vcmp.eq.s32.totalorder %v3487, 0
        %v3490 = vxor.u32 %v3485, 2147483648
        %v3491 = vsel %vm3489, %v3477, %v3490
        %vm3492 = vcmp.eq.s32.totalorder %v3487, 2
        %v3493 = vxor.u32 %v3477, 2147483648
        %v3494 = vsel %vm3492, %v3493, %v3485
        %v3495 = vsel %vm3488, %v3491, %v3494
        %v3496 = vsel %vm3486, nan, %v3495
        %v3497 = vand.u32 2147483647, %v1017
        %vm3498 = vcmp.le.f32.partialorder %v3497, 0.7853982
        %vm3499 = vcmp.lt.s32.totalorder %v1017, 0
        %v3500 = vand.u32 %v1017, 2139095040
        %v3501 = vshrl.u32 %v3500, 23
        %v3502 = vsub.s32 %v3501, 127
        %v3503 = vand.u32 2147483647, %v1017
        %v3504 = vand.u32 %v3503, 8388607
        %v3505 = vor.u32 %v3504, 8388608
        %v3506 = vsub.s32 0, %v3505
        %v3507 = vadd.s32 %v3502, 1
        %vm3508 = vcmp.gt.s32.totalorder %v3507, 0
        %v3509 = vsel %vm3508, %v3507, 0
        %v3510 = vshrl.u32 %v3509, 5
        %v3511 = vand.u32 %v3509, 31
        %v3512 = vsub.s32 32, %v3511
        %v3513 = vshrl.u32 683565275, %v3512
        %v3514 = vshll.u32 683565275, %v3511
        %v3515 = vshrl.u32 2475754826, %v3512
        %v3516 = vor.u32 %v3514, %v3515
        %v3517 = vshll.u32 2475754826, %v3511
        %v3518 = vshrl.u32 2131351028, %v3512
        %v3519 = vor.u32 %v3517, %v3518
        %v3520 = vshll.u32 2131351028, %v3511
        %v3521 = vshrl.u32 2102212464, %v3512
        %v3522 = vor.u32 %v3520, %v3521
        %v3523 = vshll.u32 2102212464, %v3511
        %v3524 = vshrl.u32 920167782, %v3512
        %v3525 = vor.u32 %v3523, %v3524
        %v3526 = vshll.u32 920167782, %v3511
        %v3527 = vshrl.u32 1326507024, %v3512
        %v3528 = vor.u32 %v3526, %v3527
        %vm3529 = vcmp.lt.s32.totalorder %v3510, 1
        %vm3530 = vcmp.lt.s32.totalorder %v3510, 2
        %vm3531 = vcmp.lt.s32.totalorder %v3510, 3
        %vm3532 = vcmp.lt.s32.totalorder %v3510, 4
        %v3533 = vsel %vm3529, %v3513, %v3516
        %v3534 = vsel %vm3532, %v3522, 2102212464
        %v3535 = vsel %vm3531, %v3519, %v3534
        %v3536 = vsel %vm3530, %v3533, %v3535
        %v3537 = vsel %vm3529, %v3516, %v3519
        %v3538 = vsel %vm3532, %v3525, 920167782
        %v3539 = vsel %vm3531, %v3522, %v3538
        %v3540 = vsel %vm3530, %v3537, %v3539
        %v3541 = vsel %vm3529, %v3519, %v3522
        %v3542 = vsel %vm3532, %v3528, 1326507024
        %v3543 = vsel %vm3531, %v3525, %v3542
        %v3544 = vsel %vm3530, %v3541, %v3543
        %v3545 = vshll.u32 %v3505, 8
        %v3546 = vand.u32 %v3545, 65535
        %v3547 = vshrl.u32 %v3545, 16
        %v3548 = vand.u32 %v3544, 65535
        %v3549 = vshrl.u32 %v3544, 16
        %v3550 = vmul.u32 %v3546, %v3548
        %v3551 = vmul.u32 %v3546, %v3549
        %v3552 = vmul.u32 %v3547, %v3548
        %v3553 = vmul.u32 %v3547, %v3549
        %v3554 = vshll.u32 %v3551, 16
        %v3555 = vshrl.u32 %v3551, 16
        %v3556 = vshll.u32 %v3552, 16
        %v3557 = vshrl.u32 %v3552, 16
        %vm3558 = vc.u32 %v3550, %v3554
        %v3559 = vsel %vm3558, 1, 0
        %v3560 = vadd.s32 %v3550, %v3554
        %v3561 = vadd.s32 %v3553, %v3559
        %vm3562 = vc.u32 %v3560, %v3556
        %v3563 = vsel %vm3562, 1, 0
        %v3564 = vadd.s32 %v3560, %v3556
        %v3565 = vadd.s32 %v3561, %v3563
        %v3566 = vadd.s32 %v3565, %v3555
        %v3567 = vadd.s32 %v3566, %v3557
        %v3568 = vand.u32 %v3545, 65535
        %v3569 = vshrl.u32 %v3545, 16
        %v3570 = vand.u32 %v3540, 65535
        %v3571 = vshrl.u32 %v3540, 16
        %v3572 = vmul.u32 %v3568, %v3570
        %v3573 = vmul.u32 %v3568, %v3571
        %v3574 = vmul.u32 %v3569, %v3570
        %v3575 = vmul.u32 %v3569, %v3571
        %v3576 = vshll.u32 %v3573, 16
        %v3577 = vshrl.u32 %v3573, 16
        %v3578 = vshll.u32 %v3574, 16
        %v3579 = vshrl.u32 %v3574, 16
        %vm3580 = vc.u32 %v3572, %v3576
        %v3581 = vsel %vm3580, 1, 0
        %v3582 = vadd.s32 %v3572, %v3576
        %v3583 = vadd.s32 %v3575, %v3581
        %vm3584 = vc.u32 %v3582, %v3578
        %v3585 = vsel %vm3584, 1, 0
        %v3586 = vadd.s32 %v3582, %v3578
        %v3587 = vadd.s32 %v3583, %v3585
        %v3588 = vadd.s32 %v3587, %v3577
        %v3589 = vadd.s32 %v3588, %v3579
        %v3590 = vmul.u32 %v3545, %v3536
        %v3591 = vadd.s32 %v3567, %v3586
        %vm3592 = vc.u32 %v3567, %v3586
        %v3593 = vadd.s32 %v3589, 1
        %v3594 = vsel %vm3592, %v3593, %v3589
        %v3595 = vadd.s32 %v3590, %v3594
        %v3596 = vadd.s32 %v3595, 536870912
        %v3597 = vshrl.u32 %v3596, 30
        %v3598 = vshll.u32 %v3597, 30
        %v3599 = vsub.s32 %v3595, %v3598
        %vm3600 = vcmp.lt.s32.totalorder %v3599, 0
        %v3601 = vsub.s32 0, %v3599
        %v3602 = vsel %vm3600, %v3601, %v3599
        %v3603 = vclz %v3602
        %v3604 = vsub.s32 %v3603, 2
        %vm3605 = vcmp.gt.s32.totalorder 0, %v3604
        %v3606 = vsel %vm3605, 0, %v3604
        %v3607 = vsub.s32 32, %v3606
        %v3608 = vshll.u32 %v3599, %v3606
        %v3609 = vshrl.u32 %v3591, %v3607
        %v3610 = vor.u32 %v3608, %v3609
        %v3611 = vsub.s32 4294967266, %v3606
        %v3612 = vadd.s32 %v3611, 127
        %v3613 = vshll.u32 %v3612, 23
        %v3614 = vor.u32 4788187, %v3613
        %v3615 = vand.u32 2147483647, %v3614
        %v3617 = vcvt.s32.f32 %v3610
        %v3618 = vmul.f32 %v3617, %v3615
        %v3619 = vxor.u32 %v3618, 2147483648
        %v3620 = vsel %vm3499, %v3619, %v3618
        %v3621 = vsub.s32 4, %v3597
        %v3622 = vsel %vm3499, %v3621, %v3597
        %v3623 = vsel %vm3498, %v1017, %v3620
        %v3624 = vsel %vm3498, 0, %v3622
        %v3625 = vmul.f32 %v3623, %v3623
        %v3626 = vmul.f32 %v3625, -0.001358992
        %v3627 = vadd.f32 %v3626, 0.041655596
        %v3628 = vmul.f32 %v3625, %v3627
        %v3629 = vadd.f32 %v3628, -0.4999988
        %v3630 = vmul.f32 %v3625, %v3629
        %v3631 = vadd.f32 1.0, %v3630
        %v3632 = vmul.f32 %v3623, %v3623
        %v3633 = vmul.f32 %v3632, -0.00019511016
        %v3634 = vadd.f32 %v3633, 0.008332121
        %v3635 = vmul.f32 %v3632, %v3634
        %v3636 = vadd.f32 %v3635, -0.16666654
        %v3637 = vmul.f32 %v3632, %v3636
        %v3638 = vadd.f32 %v3637, 1.0
        %v3639 = vmul.f32 %v3638, %v3623
        %vm3640 = vweird.f32 %v1017
        %v3641 = vand.u32 %v3624, 3
        %vm3642 = vcmp.lt.s32.totalorder %v3641, 2
        %vm3643 = vcmp.eq.s32.totalorder %v3641, 0
        %v3644 = vxor.u32 %v3639, 2147483648
        %v3645 = vsel %vm3643, %v3631, %v3644
        %vm3646 = vcmp.eq.s32.totalorder %v3641, 2
        %v3647 = vxor.u32 %v3631, 2147483648
        %v3648 = vsel %vm3646, %v3647, %v3639
        %v3649 = vsel %vm3642, %v3645, %v3648
        %v3650 = vsel %vm3640, nan, %v3649
        %v3651 = vand.u32 2147483647, %v1018
        %vm3652 = vcmp.le.f32.partialorder %v3651, 0.7853982
        %vm3653 = vcmp.lt.s32.totalorder %v1018, 0
        %v3654 = vand.u32 %v1018, 2139095040
        %v3655 = vshrl.u32 %v3654, 23
        %v3656 = vsub.s32 %v3655, 127
        %v3657 = vand.u32 2147483647, %v1018
        %v3658 = vand.u32 %v3657, 8388607
        %v3659 = vor.u32 %v3658, 8388608
        %v3660 = vsub.s32 0, %v3659
        %v3661 = vadd.s32 %v3656, 1
        %vm3662 = vcmp.gt.s32.totalorder %v3661, 0
        %v3663 = vsel %vm3662, %v3661, 0
        %v3664 = vshrl.u32 %v3663, 5
        %v3665 = vand.u32 %v3663, 31
        %v3666 = vsub.s32 32, %v3665
        %v3667 = vshrl.u32 683565275, %v3666
        %v3668 = vshll.u32 683565275, %v3665
        %v3669 = vshrl.u32 2475754826, %v3666
        %v3670 = vor.u32 %v3668, %v3669
        %v3671 = vshll.u32 2475754826, %v3665
        %v3672 = vshrl.u32 2131351028, %v3666
        %v3673 = vor.u32 %v3671, %v3672
        %v3674 = vshll.u32 2131351028, %v3665
        %v3675 = vshrl.u32 2102212464, %v3666
        %v3676 = vor.u32 %v3674, %v3675
        %v3677 = vshll.u32 2102212464, %v3665
        %v3678 = vshrl.u32 920167782, %v3666
        %v3679 = vor.u32 %v3677, %v3678
        %v3680 = vshll.u32 920167782, %v3665
        %v3681 = vshrl.u32 1326507024, %v3666
        %v3682 = vor.u32 %v3680, %v3681
        %vm3683 = vcmp.lt.s32.totalorder %v3664, 1
        %vm3684 = vcmp.lt.s32.totalorder %v3664, 2
        %vm3685 = vcmp.lt.s32.totalorder %v3664, 3
        %vm3686 = vcmp.lt.s32.totalorder %v3664, 4
        %v3687 = vsel %vm3683, %v3667, %v3670
        %v3688 = vsel %vm3686, %v3676, 2102212464
        %v3689 = vsel %vm3685, %v3673, %v3688
        %v3690 = vsel %vm3684, %v3687, %v3689
        %v3691 = vsel %vm3683, %v3670, %v3673
        %v3692 = vsel %vm3686, %v3679, 920167782
        %v3693 = vsel %vm3685, %v3676, %v3692
        %v3694 = vsel %vm3684, %v3691, %v3693
        %v3695 = vsel %vm3683, %v3673, %v3676
        %v3696 = vsel %vm3686, %v3682, 1326507024
        %v3697 = vsel %vm3685, %v3679, %v3696
        %v3698 = vsel %vm3684, %v3695, %v3697
        %v3699 = vshll.u32 %v3659, 8
        %v3700 = vand.u32 %v3699, 65535
        %v3701 = vshrl.u32 %v3699, 16
        %v3702 = vand.u32 %v3698, 65535
        %v3703 = vshrl.u32 %v3698, 16
        %v3704 = vmul.u32 %v3700, %v3702
        %v3705 = vmul.u32 %v3700, %v3703
        %v3706 = vmul.u32 %v3701, %v3702
        %v3707 = vmul.u32 %v3701, %v3703
        %v3708 = vshll.u32 %v3705, 16
        %v3709 = vshrl.u32 %v3705, 16
        %v3710 = vshll.u32 %v3706, 16
        %v3711 = vshrl.u32 %v3706, 16
        %vm3712 = vc.u32 %v3704, %v3708
        %v3713 = vsel %vm3712, 1, 0
        %v3714 = vadd.s32 %v3704, %v3708
        %v3715 = vadd.s32 %v3707, %v3713
        %vm3716 = vc.u32 %v3714, %v3710
        %v3717 = vsel %vm3716, 1, 0
        %v3718 = vadd.s32 %v3714, %v3710
        %v3719 = vadd.s32 %v3715, %v3717
        %v3720 = vadd.s32 %v3719, %v3709
        %v3721 = vadd.s32 %v3720, %v3711
        %v3722 = vand.u32 %v3699, 65535
        %v3723 = vshrl.u32 %v3699, 16
        %v3724 = vand.u32 %v3694, 65535
        %v3725 = vshrl.u32 %v3694, 16
        %v3726 = vmul.u32 %v3722, %v3724
        %v3727 = vmul.u32 %v3722, %v3725
        %v3728 = vmul.u32 %v3723, %v3724
        %v3729 = vmul.u32 %v3723, %v3725
        %v3730 = vshll.u32 %v3727, 16
        %v3731 = vshrl.u32 %v3727, 16
        %v3732 = vshll.u32 %v3728, 16
        %v3733 = vshrl.u32 %v3728, 16
        %vm3734 = vc.u32 %v3726, %v3730
        %v3735 = vsel %vm3734, 1, 0
        %v3736 = vadd.s32 %v3726, %v3730
        %v3737 = vadd.s32 %v3729, %v3735
        %vm3738 = vc.u32 %v3736, %v3732
        %v3739 = vsel %vm3738, 1, 0
        %v3740 = vadd.s32 %v3736, %v3732
        %v3741 = vadd.s32 %v3737, %v3739
        %v3742 = vadd.s32 %v3741, %v3731
        %v3743 = vadd.s32 %v3742, %v3733
        %v3744 = vmul.u32 %v3699, %v3690
        %v3745 = vadd.s32 %v3721, %v3740
        %vm3746 = vc.u32 %v3721, %v3740
        %v3747 = vadd.s32 %v3743, 1
        %v3748 = vsel %vm3746, %v3747, %v3743
        %v3749 = vadd.s32 %v3744, %v3748
        %v3750 = vadd.s32 %v3749, 536870912
        %v3751 = vshrl.u32 %v3750, 30
        %v3752 = vshll.u32 %v3751, 30
        %v3753 = vsub.s32 %v3749, %v3752
        %vm3754 = vcmp.lt.s32.totalorder %v3753, 0
        %v3755 = vsub.s32 0, %v3753
        %v3756 = vsel %vm3754, %v3755, %v3753
        %v3757 = vclz %v3756
        %v3758 = vsub.s32 %v3757, 2
        %vm3759 = vcmp.gt.s32.totalorder 0, %v3758
        %v3760 = vsel %vm3759, 0, %v3758
        %v3761 = vsub.s32 32, %v3760
        %v3762 = vshll.u32 %v3753, %v3760
        %v3763 = vshrl.u32 %v3745, %v3761
        %v3764 = vor.u32 %v3762, %v3763
        %v3765 = vsub.s32 4294967266, %v3760
        %v3766 = vadd.s32 %v3765, 127
        %v3767 = vshll.u32 %v3766, 23
        %v3768 = vor.u32 4788187, %v3767
        %v3769 = vand.u32 2147483647, %v3768
        %v3771 = vcvt.s32.f32 %v3764
        %v3772 = vmul.f32 %v3771, %v3769
        %v3773 = vxor.u32 %v3772, 2147483648
        %v3774 = vsel %vm3653, %v3773, %v3772
        %v3775 = vsub.s32 4, %v3751
        %v3776 = vsel %vm3653, %v3775, %v3751
        %v3777 = vsel %vm3652, %v1018, %v3774
        %v3778 = vsel %vm3652, 0, %v3776
        %v3779 = vmul.f32 %v3777, %v3777
        %v3780 = vmul.f32 %v3779, -0.001358992
        %v3781 = vadd.f32 %v3780, 0.041655596
        %v3782 = vmul.f32 %v3779, %v3781
        %v3783 = vadd.f32 %v3782, -0.4999988
        %v3784 = vmul.f32 %v3779, %v3783
        %v3785 = vadd.f32 1.0, %v3784
        %v3786 = vmul.f32 %v3777, %v3777
        %v3787 = vmul.f32 %v3786, -0.00019511016
        %v3788 = vadd.f32 %v3787, 0.008332121
        %v3789 = vmul.f32 %v3786, %v3788
        %v3790 = vadd.f32 %v3789, -0.16666654
        %v3791 = vmul.f32 %v3786, %v3790
        %v3792 = vadd.f32 %v3791, 1.0
        %v3793 = vmul.f32 %v3792, %v3777
        %vm3794 = vweird.f32 %v1018
        %v3795 = vand.u32 %v3778, 3
        %vm3796 = vcmp.lt.s32.totalorder %v3795, 2
        %vm3797 = vcmp.eq.s32.totalorder %v3795, 0
        %v3798 = vxor.u32 %v3793, 2147483648
        %v3799 = vsel %vm3797, %v3785, %v3798
        %vm3800 = vcmp.eq.s32.totalorder %v3795, 2
        %v3801 = vxor.u32 %v3785, 2147483648
        %v3802 = vsel %vm3800, %v3801, %v3793
        %v3803 = vsel %vm3796, %v3799, %v3802
        %v3804 = vsel %vm3794, nan, %v3803
        %v3805 = vand.u32 2147483647, %v1019
        %vm3806 = vcmp.le.f32.partialorder %v3805, 0.7853982
        %vm3807 = vcmp.lt.s32.totalorder %v1019, 0
        %v3808 = vand.u32 %v1019, 2139095040
        %v3809 = vshrl.u32 %v3808, 23
        %v3810 = vsub.s32 %v3809, 127
        %v3811 = vand.u32 2147483647, %v1019
        %v3812 = vand.u32 %v3811, 8388607
        %v3813 = vor.u32 %v3812, 8388608
        %v3814 = vsub.s32 0, %v3813
        %v3815 = vadd.s32 %v3810, 1
        %vm3816 = vcmp.gt.s32.totalorder %v3815, 0
        %v3817 = vsel %vm3816, %v3815, 0
        %v3818 = vshrl.u32 %v3817, 5
        %v3819 = vand.u32 %v3817, 31
        %v3820 = vsub.s32 32, %v3819
        %v3821 = vshrl.u32 683565275, %v3820
        %v3822 = vshll.u32 683565275, %v3819
        %v3823 = vshrl.u32 2475754826, %v3820
        %v3824 = vor.u32 %v3822, %v3823
        %v3825 = vshll.u32 2475754826, %v3819
        %v3826 = vshrl.u32 2131351028, %v3820
        %v3827 = vor.u32 %v3825, %v3826
        %v3828 = vshll.u32 2131351028, %v3819
        %v3829 = vshrl.u32 2102212464, %v3820
        %v3830 = vor.u32 %v3828, %v3829
        %v3831 = vshll.u32 2102212464, %v3819
        %v3832 = vshrl.u32 920167782, %v3820
        %v3833 = vor.u32 %v3831, %v3832
        %v3834 = vshll.u32 920167782, %v3819
        %v3835 = vshrl.u32 1326507024, %v3820
        %v3836 = vor.u32 %v3834, %v3835
        %vm3837 = vcmp.lt.s32.totalorder %v3818, 1
        %vm3838 = vcmp.lt.s32.totalorder %v3818, 2
        %vm3839 = vcmp.lt.s32.totalorder %v3818, 3
        %vm3840 = vcmp.lt.s32.totalorder %v3818, 4
        %v3841 = vsel %vm3837, %v3821, %v3824
        %v3842 = vsel %vm3840, %v3830, 2102212464
        %v3843 = vsel %vm3839, %v3827, %v3842
        %v3844 = vsel %vm3838, %v3841, %v3843
        %v3845 = vsel %vm3837, %v3824, %v3827
        %v3846 = vsel %vm3840, %v3833, 920167782
        %v3847 = vsel %vm3839, %v3830, %v3846
        %v3848 = vsel %vm3838, %v3845, %v3847
        %v3849 = vsel %vm3837, %v3827, %v3830
        %v3850 = vsel %vm3840, %v3836, 1326507024
        %v3851 = vsel %vm3839, %v3833, %v3850
        %v3852 = vsel %vm3838, %v3849, %v3851
        %v3853 = vshll.u32 %v3813, 8
        %v3854 = vand.u32 %v3853, 65535
        %v3855 = vshrl.u32 %v3853, 16
        %v3856 = vand.u32 %v3852, 65535
        %v3857 = vshrl.u32 %v3852, 16
        %v3858 = vmul.u32 %v3854, %v3856
        %v3859 = vmul.u32 %v3854, %v3857
        %v3860 = vmul.u32 %v3855, %v3856
        %v3861 = vmul.u32 %v3855, %v3857
        %v3862 = vshll.u32 %v3859, 16
        %v3863 = vshrl.u32 %v3859, 16
        %v3864 = vshll.u32 %v3860, 16
        %v3865 = vshrl.u32 %v3860, 16
        %vm3866 = vc.u32 %v3858, %v3862
        %v3867 = vsel %vm3866, 1, 0
        %v3868 = vadd.s32 %v3858, %v3862
        %v3869 = vadd.s32 %v3861, %v3867
        %vm3870 = vc.u32 %v3868, %v3864
        %v3871 = vsel %vm3870, 1, 0
        %v3872 = vadd.s32 %v3868, %v3864
        %v3873 = vadd.s32 %v3869, %v3871
        %v3874 = vadd.s32 %v3873, %v3863
        %v3875 = vadd.s32 %v3874, %v3865
        %v3876 = vand.u32 %v3853, 65535
        %v3877 = vshrl.u32 %v3853, 16
        %v3878 = vand.u32 %v3848, 65535
        %v3879 = vshrl.u32 %v3848, 16
        %v3880 = vmul.u32 %v3876, %v3878
        %v3881 = vmul.u32 %v3876, %v3879
        %v3882 = vmul.u32 %v3877, %v3878
        %v3883 = vmul.u32 %v3877, %v3879
        %v3884 = vshll.u32 %v3881, 16
        %v3885 = vshrl.u32 %v3881, 16
        %v3886 = vshll.u32 %v3882, 16
        %v3887 = vshrl.u32 %v3882, 16
        %vm3888 = vc.u32 %v3880, %v3884
        %v3889 = vsel %vm3888, 1, 0
        %v3890 = vadd.s32 %v3880, %v3884
        %v3891 = vadd.s32 %v3883, %v3889
        %vm3892 = vc.u32 %v3890, %v3886
        %v3893 = vsel %vm3892, 1, 0
        %v3894 = vadd.s32 %v3890, %v3886
        %v3895 = vadd.s32 %v3891, %v3893
        %v3896 = vadd.s32 %v3895, %v3885
        %v3897 = vadd.s32 %v3896, %v3887
        %v3898 = vmul.u32 %v3853, %v3844
        %v3899 = vadd.s32 %v3875, %v3894
        %vm3900 = vc.u32 %v3875, %v3894
        %v3901 = vadd.s32 %v3897, 1
        %v3902 = vsel %vm3900, %v3901, %v3897
        %v3903 = vadd.s32 %v3898, %v3902
        %v3904 = vadd.s32 %v3903, 536870912
        %v3905 = vshrl.u32 %v3904, 30
        %v3906 = vshll.u32 %v3905, 30
        %v3907 = vsub.s32 %v3903, %v3906
        %vm3908 = vcmp.lt.s32.totalorder %v3907, 0
        %v3909 = vsub.s32 0, %v3907
        %v3910 = vsel %vm3908, %v3909, %v3907
        %v3911 = vclz %v3910
        %v3912 = vsub.s32 %v3911, 2
        %vm3913 = vcmp.gt.s32.totalorder 0, %v3912
        %v3914 = vsel %vm3913, 0, %v3912
        %v3915 = vsub.s32 32, %v3914
        %v3916 = vshll.u32 %v3907, %v3914
        %v3917 = vshrl.u32 %v3899, %v3915
        %v3918 = vor.u32 %v3916, %v3917
        %v3919 = vsub.s32 4294967266, %v3914
        %v3920 = vadd.s32 %v3919, 127
        %v3921 = vshll.u32 %v3920, 23
        %v3922 = vor.u32 4788187, %v3921
        %v3923 = vand.u32 2147483647, %v3922
        %v3925 = vcvt.s32.f32 %v3918
        %v3926 = vmul.f32 %v3925, %v3923
        %v3927 = vxor.u32 %v3926, 2147483648
        %v3928 = vsel %vm3807, %v3927, %v3926
        %v3929 = vsub.s32 4, %v3905
        %v3930 = vsel %vm3807, %v3929, %v3905
        %v3931 = vsel %vm3806, %v1019, %v3928
        %v3932 = vsel %vm3806, 0, %v3930
        %v3933 = vmul.f32 %v3931, %v3931
        %v3934 = vmul.f32 %v3933, -0.001358992
        %v3935 = vadd.f32 %v3934, 0.041655596
        %v3936 = vmul.f32 %v3933, %v3935
        %v3937 = vadd.f32 %v3936, -0.4999988
        %v3938 = vmul.f32 %v3933, %v3937
        %v3939 = vadd.f32 1.0, %v3938
        %v3940 = vmul.f32 %v3931, %v3931
        %v3941 = vmul.f32 %v3940, -0.00019511016
        %v3942 = vadd.f32 %v3941, 0.008332121
        %v3943 = vmul.f32 %v3940, %v3942
        %v3944 = vadd.f32 %v3943, -0.16666654
        %v3945 = vmul.f32 %v3940, %v3944
        %v3946 = vadd.f32 %v3945, 1.0
        %v3947 = vmul.f32 %v3946, %v3931
        %vm3948 = vweird.f32 %v1019
        %v3949 = vand.u32 %v3932, 3
        %vm3950 = vcmp.lt.s32.totalorder %v3949, 2
        %vm3951 = vcmp.eq.s32.totalorder %v3949, 0
        %v3952 = vxor.u32 %v3947, 2147483648
        %v3953 = vsel %vm3951, %v3939, %v3952
        %vm3954 = vcmp.eq.s32.totalorder %v3949, 2
        %v3955 = vxor.u32 %v3939, 2147483648
        %v3956 = vsel %vm3954, %v3955, %v3947
        %v3957 = vsel %vm3950, %v3953, %v3956
        %v3958 = vsel %vm3948, nan, %v3957
        %v3959 = vand.u32 2147483647, %v1020
        %vm3960 = vcmp.le.f32.partialorder %v3959, 0.7853982
        %vm3961 = vcmp.lt.s32.totalorder %v1020, 0
        %v3962 = vand.u32 %v1020, 2139095040
        %v3963 = vshrl.u32 %v3962, 23
        %v3964 = vsub.s32 %v3963, 127
        %v3965 = vand.u32 2147483647, %v1020
        %v3966 = vand.u32 %v3965, 8388607
        %v3967 = vor.u32 %v3966, 8388608
        %v3968 = vsub.s32 0, %v3967
        %v3969 = vadd.s32 %v3964, 1
        %vm3970 = vcmp.gt.s32.totalorder %v3969, 0
        %v3971 = vsel %vm3970, %v3969, 0
        %v3972 = vshrl.u32 %v3971, 5
        %v3973 = vand.u32 %v3971, 31
        %v3974 = vsub.s32 32, %v3973
        %v3975 = vshrl.u32 683565275, %v3974
        %v3976 = vshll.u32 683565275, %v3973
        %v3977 = vshrl.u32 2475754826, %v3974
        %v3978 = vor.u32 %v3976, %v3977
        %v3979 = vshll.u32 2475754826, %v3973
        %v3980 = vshrl.u32 2131351028, %v3974
        %v3981 = vor.u32 %v3979, %v3980
        %v3982 = vshll.u32 2131351028, %v3973
        %v3983 = vshrl.u32 2102212464, %v3974
        %v3984 = vor.u32 %v3982, %v3983
        %v3985 = vshll.u32 2102212464, %v3973
        %v3986 = vshrl.u32 920167782, %v3974
        %v3987 = vor.u32 %v3985, %v3986
        %v3988 = vshll.u32 920167782, %v3973
        %v3989 = vshrl.u32 1326507024, %v3974
        %v3990 = vor.u32 %v3988, %v3989
        %vm3991 = vcmp.lt.s32.totalorder %v3972, 1
        %vm3992 = vcmp.lt.s32.totalorder %v3972, 2
        %vm3993 = vcmp.lt.s32.totalorder %v3972, 3
        %vm3994 = vcmp.lt.s32.totalorder %v3972, 4
        %v3995 = vsel %vm3991, %v3975, %v3978
        %v3996 = vsel %vm3994, %v3984, 2102212464
        %v3997 = vsel %vm3993, %v3981, %v3996
        %v3998 = vsel %vm3992, %v3995, %v3997
        %v3999 = vsel %vm3991, %v3978, %v3981
        %v4000 = vsel %vm3994, %v3987, 920167782
        %v4001 = vsel %vm3993, %v3984, %v4000
        %v4002 = vsel %vm3992, %v3999, %v4001
        %v4003 = vsel %vm3991, %v3981, %v3984
        %v4004 = vsel %vm3994, %v3990, 1326507024
        %v4005 = vsel %vm3993, %v3987, %v4004
        %v4006 = vsel %vm3992, %v4003, %v4005
        %v4007 = vshll.u32 %v3967, 8
        %v4008 = vand.u32 %v4007, 65535
        %v4009 = vshrl.u32 %v4007, 16
        %v4010 = vand.u32 %v4006, 65535
        %v4011 = vshrl.u32 %v4006, 16
        %v4012 = vmul.u32 %v4008, %v4010
        %v4013 = vmul.u32 %v4008, %v4011
        %v4014 = vmul.u32 %v4009, %v4010
        %v4015 = vmul.u32 %v4009, %v4011
        %v4016 = vshll.u32 %v4013, 16
        %v4017 = vshrl.u32 %v4013, 16
        %v4018 = vshll.u32 %v4014, 16
        %v4019 = vshrl.u32 %v4014, 16
        %vm4020 = vc.u32 %v4012, %v4016
        %v4021 = vsel %vm4020, 1, 0
        %v4022 = vadd.s32 %v4012, %v4016
        %v4023 = vadd.s32 %v4015, %v4021
        %vm4024 = vc.u32 %v4022, %v4018
        %v4025 = vsel %vm4024, 1, 0
        %v4026 = vadd.s32 %v4022, %v4018
        %v4027 = vadd.s32 %v4023, %v4025
        %v4028 = vadd.s32 %v4027, %v4017
        %v4029 = vadd.s32 %v4028, %v4019
        %v4030 = vand.u32 %v4007, 65535
        %v4031 = vshrl.u32 %v4007, 16
        %v4032 = vand.u32 %v4002, 65535
        %v4033 = vshrl.u32 %v4002, 16
        %v4034 = vmul.u32 %v4030, %v4032
        %v4035 = vmul.u32 %v4030, %v4033
        %v4036 = vmul.u32 %v4031, %v4032
        %v4037 = vmul.u32 %v4031, %v4033
        %v4038 = vshll.u32 %v4035, 16
        %v4039 = vshrl.u32 %v4035, 16
        %v4040 = vshll.u32 %v4036, 16
        %v4041 = vshrl.u32 %v4036, 16
        %vm4042 = vc.u32 %v4034, %v4038
        %v4043 = vsel %vm4042, 1, 0
        %v4044 = vadd.s32 %v4034, %v4038
        %v4045 = vadd.s32 %v4037, %v4043
        %vm4046 = vc.u32 %v4044, %v4040
        %v4047 = vsel %vm4046, 1, 0
        %v4048 = vadd.s32 %v4044, %v4040
        %v4049 = vadd.s32 %v4045, %v4047
        %v4050 = vadd.s32 %v4049, %v4039
        %v4051 = vadd.s32 %v4050, %v4041
        %v4052 = vmul.u32 %v4007, %v3998
        %v4053 = vadd.s32 %v4029, %v4048
        %vm4054 = vc.u32 %v4029, %v4048
        %v4055 = vadd.s32 %v4051, 1
        %v4056 = vsel %vm4054, %v4055, %v4051
        %v4057 = vadd.s32 %v4052, %v4056
        %v4058 = vadd.s32 %v4057, 536870912
        %v4059 = vshrl.u32 %v4058, 30
        %v4060 = vshll.u32 %v4059, 30
        %v4061 = vsub.s32 %v4057, %v4060
        %vm4062 = vcmp.lt.s32.totalorder %v4061, 0
        %v4063 = vsub.s32 0, %v4061
        %v4064 = vsel %vm4062, %v4063, %v4061
        %v4065 = vclz %v4064
        %v4066 = vsub.s32 %v4065, 2
        %vm4067 = vcmp.gt.s32.totalorder 0, %v4066
        %v4068 = vsel %vm4067, 0, %v4066
        %v4069 = vsub.s32 32, %v4068
        %v4070 = vshll.u32 %v4061, %v4068
        %v4071 = vshrl.u32 %v4053, %v4069
        %v4072 = vor.u32 %v4070, %v4071
        %v4073 = vsub.s32 4294967266, %v4068
        %v4074 = vadd.s32 %v4073, 127
        %v4075 = vshll.u32 %v4074, 23
        %v4076 = vor.u32 4788187, %v4075
        %v4077 = vand.u32 2147483647, %v4076
        %v4079 = vcvt.s32.f32 %v4072
        %v4080 = vmul.f32 %v4079, %v4077
        %v4081 = vxor.u32 %v4080, 2147483648
        %v4082 = vsel %vm3961, %v4081, %v4080
        %v4083 = vsub.s32 4, %v4059
        %v4084 = vsel %vm3961, %v4083, %v4059
        %v4085 = vsel %vm3960, %v1020, %v4082
        %v4086 = vsel %vm3960, 0, %v4084
        %v4087 = vmul.f32 %v4085, %v4085
        %v4088 = vmul.f32 %v4087, -0.001358992
        %v4089 = vadd.f32 %v4088, 0.041655596
        %v4090 = vmul.f32 %v4087, %v4089
        %v4091 = vadd.f32 %v4090, -0.4999988
        %v4092 = vmul.f32 %v4087, %v4091
        %v4093 = vadd.f32 1.0, %v4092
        %v4094 = vmul.f32 %v4085, %v4085
        %v4095 = vmul.f32 %v4094, -0.00019511016
        %v4096 = vadd.f32 %v4095, 0.008332121
        %v4097 = vmul.f32 %v4094, %v4096
        %v4098 = vadd.f32 %v4097, -0.16666654
        %v4099 = vmul.f32 %v4094, %v4098
        %v4100 = vadd.f32 %v4099, 1.0
        %v4101 = vmul.f32 %v4100, %v4085
        %vm4102 = vweird.f32 %v1020
        %v4103 = vand.u32 %v4086, 3
        %vm4104 = vcmp.lt.s32.totalorder %v4103, 2
        %vm4105 = vcmp.eq.s32.totalorder %v4103, 0
        %v4106 = vxor.u32 %v4101, 2147483648
        %v4107 = vsel %vm4105, %v4093, %v4106
        %vm4108 = vcmp.eq.s32.totalorder %v4103, 2
        %v4109 = vxor.u32 %v4093, 2147483648
        %v4110 = vsel %vm4108, %v4109, %v4101
        %v4111 = vsel %vm4104, %v4107, %v4110
        %v4112 = vsel %vm4102, nan, %v4111
        %v4113 = vand.u32 2147483647, %v1021
        %vm4114 = vcmp.le.f32.partialorder %v4113, 0.7853982
        %vm4115 = vcmp.lt.s32.totalorder %v1021, 0
        %v4116 = vand.u32 %v1021, 2139095040
        %v4117 = vshrl.u32 %v4116, 23
        %v4118 = vsub.s32 %v4117, 127
        %v4119 = vand.u32 2147483647, %v1021
        %v4120 = vand.u32 %v4119, 8388607
        %v4121 = vor.u32 %v4120, 8388608
        %v4122 = vsub.s32 0, %v4121
        %v4123 = vadd.s32 %v4118, 1
        %vm4124 = vcmp.gt.s32.totalorder %v4123, 0
        %v4125 = vsel %vm4124, %v4123, 0
        %v4126 = vshrl.u32 %v4125, 5
        %v4127 = vand.u32 %v4125, 31
        %v4128 = vsub.s32 32, %v4127
        %v4129 = vshrl.u32 683565275, %v4128
        %v4130 = vshll.u32 683565275, %v4127
        %v4131 = vshrl.u32 2475754826, %v4128
        %v4132 = vor.u32 %v4130, %v4131
        %v4133 = vshll.u32 2475754826, %v4127
        %v4134 = vshrl.u32 2131351028, %v4128
        %v4135 = vor.u32 %v4133, %v4134
        %v4136 = vshll.u32 2131351028, %v4127
        %v4137 = vshrl.u32 2102212464, %v4128
        %v4138 = vor.u32 %v4136, %v4137
        %v4139 = vshll.u32 2102212464, %v4127
        %v4140 = vshrl.u32 920167782, %v4128
        %v4141 = vor.u32 %v4139, %v4140
        %v4142 = vshll.u32 920167782, %v4127
        %v4143 = vshrl.u32 1326507024, %v4128
        %v4144 = vor.u32 %v4142, %v4143
        %vm4145 = vcmp.lt.s32.totalorder %v4126, 1
        %vm4146 = vcmp.lt.s32.totalorder %v4126, 2
        %vm4147 = vcmp.lt.s32.totalorder %v4126, 3
        %vm4148 = vcmp.lt.s32.totalorder %v4126, 4
        %v4149 = vsel %vm4145, %v4129, %v4132
        %v4150 = vsel %vm4148, %v4138, 2102212464
        %v4151 = vsel %vm4147, %v4135, %v4150
        %v4152 = vsel %vm4146, %v4149, %v4151
        %v4153 = vsel %vm4145, %v4132, %v4135
        %v4154 = vsel %vm4148, %v4141, 920167782
        %v4155 = vsel %vm4147, %v4138, %v4154
        %v4156 = vsel %vm4146, %v4153, %v4155
        %v4157 = vsel %vm4145, %v4135, %v4138
        %v4158 = vsel %vm4148, %v4144, 1326507024
        %v4159 = vsel %vm4147, %v4141, %v4158
        %v4160 = vsel %vm4146, %v4157, %v4159
        %v4161 = vshll.u32 %v4121, 8
        %v4162 = vand.u32 %v4161, 65535
        %v4163 = vshrl.u32 %v4161, 16
        %v4164 = vand.u32 %v4160, 65535
        %v4165 = vshrl.u32 %v4160, 16
        %v4166 = vmul.u32 %v4162, %v4164
        %v4167 = vmul.u32 %v4162, %v4165
        %v4168 = vmul.u32 %v4163, %v4164
        %v4169 = vmul.u32 %v4163, %v4165
        %v4170 = vshll.u32 %v4167, 16
        %v4171 = vshrl.u32 %v4167, 16
        %v4172 = vshll.u32 %v4168, 16
        %v4173 = vshrl.u32 %v4168, 16
        %vm4174 = vc.u32 %v4166, %v4170
        %v4175 = vsel %vm4174, 1, 0
        %v4176 = vadd.s32 %v4166, %v4170
        %v4177 = vadd.s32 %v4169, %v4175
        %vm4178 = vc.u32 %v4176, %v4172
        %v4179 = vsel %vm4178, 1, 0
        %v4180 = vadd.s32 %v4176, %v4172
        %v4181 = vadd.s32 %v4177, %v4179
        %v4182 = vadd.s32 %v4181, %v4171
        %v4183 = vadd.s32 %v4182, %v4173
        %v4184 = vand.u32 %v4161, 65535
        %v4185 = vshrl.u32 %v4161, 16
        %v4186 = vand.u32 %v4156, 65535
        %v4187 = vshrl.u32 %v4156, 16
        %v4188 = vmul.u32 %v4184, %v4186
        %v4189 = vmul.u32 %v4184, %v4187
        %v4190 = vmul.u32 %v4185, %v4186
        %v4191 = vmul.u32 %v4185, %v4187
        %v4192 = vshll.u32 %v4189, 16
        %v4193 = vshrl.u32 %v4189, 16
        %v4194 = vshll.u32 %v4190, 16
        %v4195 = vshrl.u32 %v4190, 16
        %vm4196 = vc.u32 %v4188, %v4192
        %v4197 = vsel %vm4196, 1, 0
        %v4198 = vadd.s32 %v4188, %v4192
        %v4199 = vadd.s32 %v4191, %v4197
        %vm4200 = vc.u32 %v4198, %v4194
        %v4201 = vsel %vm4200, 1, 0
        %v4202 = vadd.s32 %v4198, %v4194
        %v4203 = vadd.s32 %v4199, %v4201
        %v4204 = vadd.s32 %v4203, %v4193
        %v4205 = vadd.s32 %v4204, %v4195
        %v4206 = vmul.u32 %v4161, %v4152
        %v4207 = vadd.s32 %v4183, %v4202
        %vm4208 = vc.u32 %v4183, %v4202
        %v4209 = vadd.s32 %v4205, 1
        %v4210 = vsel %vm4208, %v4209, %v4205
        %v4211 = vadd.s32 %v4206, %v4210
        %v4212 = vadd.s32 %v4211, 536870912
        %v4213 = vshrl.u32 %v4212, 30
        %v4214 = vshll.u32 %v4213, 30
        %v4215 = vsub.s32 %v4211, %v4214
        %vm4216 = vcmp.lt.s32.totalorder %v4215, 0
        %v4217 = vsub.s32 0, %v4215
        %v4218 = vsel %vm4216, %v4217, %v4215
        %v4219 = vclz %v4218
        %v4220 = vsub.s32 %v4219, 2
        %vm4221 = vcmp.gt.s32.totalorder 0, %v4220
        %v4222 = vsel %vm4221, 0, %v4220
        %v4223 = vsub.s32 32, %v4222
        %v4224 = vshll.u32 %v4215, %v4222
        %v4225 = vshrl.u32 %v4207, %v4223
        %v4226 = vor.u32 %v4224, %v4225
        %v4227 = vsub.s32 4294967266, %v4222
        %v4228 = vadd.s32 %v4227, 127
        %v4229 = vshll.u32 %v4228, 23
        %v4230 = vor.u32 4788187, %v4229
        %v4231 = vand.u32 2147483647, %v4230
        %v4233 = vcvt.s32.f32 %v4226
        %v4234 = vmul.f32 %v4233, %v4231
        %v4235 = vxor.u32 %v4234, 2147483648
        %v4236 = vsel %vm4115, %v4235, %v4234
        %v4237 = vsub.s32 4, %v4213
        %v4238 = vsel %vm4115, %v4237, %v4213
        %v4239 = vsel %vm4114, %v1021, %v4236
        %v4240 = vsel %vm4114, 0, %v4238
        %v4241 = vmul.f32 %v4239, %v4239
        %v4242 = vmul.f32 %v4241, -0.001358992
        %v4243 = vadd.f32 %v4242, 0.041655596
        %v4244 = vmul.f32 %v4241, %v4243
        %v4245 = vadd.f32 %v4244, -0.4999988
        %v4246 = vmul.f32 %v4241, %v4245
        %v4247 = vadd.f32 1.0, %v4246
        %v4248 = vmul.f32 %v4239, %v4239
        %v4249 = vmul.f32 %v4248, -0.00019511016
        %v4250 = vadd.f32 %v4249, 0.008332121
        %v4251 = vmul.f32 %v4248, %v4250
        %v4252 = vadd.f32 %v4251, -0.16666654
        %v4253 = vmul.f32 %v4248, %v4252
        %v4254 = vadd.f32 %v4253, 1.0
        %v4255 = vmul.f32 %v4254, %v4239
        %vm4256 = vweird.f32 %v1021
        %v4257 = vand.u32 %v4240, 3
        %vm4258 = vcmp.lt.s32.totalorder %v4257, 2
        %vm4259 = vcmp.eq.s32.totalorder %v4257, 0
        %v4260 = vxor.u32 %v4255, 2147483648
        %v4261 = vsel %vm4259, %v4247, %v4260
        %vm4262 = vcmp.eq.s32.totalorder %v4257, 2
        %v4263 = vxor.u32 %v4247, 2147483648
        %v4264 = vsel %vm4262, %v4263, %v4255
        %v4265 = vsel %vm4258, %v4261, %v4264
        %v4266 = vsel %vm4256, nan, %v4265
        %v4267 = vand.u32 2147483647, %v1022
        %vm4268 = vcmp.le.f32.partialorder %v4267, 0.7853982
        %vm4269 = vcmp.lt.s32.totalorder %v1022, 0
        %v4270 = vand.u32 %v1022, 2139095040
        %v4271 = vshrl.u32 %v4270, 23
        %v4272 = vsub.s32 %v4271, 127
        %v4273 = vand.u32 2147483647, %v1022
        %v4274 = vand.u32 %v4273, 8388607
        %v4275 = vor.u32 %v4274, 8388608
        %v4276 = vsub.s32 0, %v4275
        %v4277 = vadd.s32 %v4272, 1
        %vm4278 = vcmp.gt.s32.totalorder %v4277, 0
        %v4279 = vsel %vm4278, %v4277, 0
        %v4280 = vshrl.u32 %v4279, 5
        %v4281 = vand.u32 %v4279, 31
        %v4282 = vsub.s32 32, %v4281
        %v4283 = vshrl.u32 683565275, %v4282
        %v4284 = vshll.u32 683565275, %v4281
        %v4285 = vshrl.u32 2475754826, %v4282
        %v4286 = vor.u32 %v4284, %v4285
        %v4287 = vshll.u32 2475754826, %v4281
        %v4288 = vshrl.u32 2131351028, %v4282
        %v4289 = vor.u32 %v4287, %v4288
        %v4290 = vshll.u32 2131351028, %v4281
        %v4291 = vshrl.u32 2102212464, %v4282
        %v4292 = vor.u32 %v4290, %v4291
        %v4293 = vshll.u32 2102212464, %v4281
        %v4294 = vshrl.u32 920167782, %v4282
        %v4295 = vor.u32 %v4293, %v4294
        %v4296 = vshll.u32 920167782, %v4281
        %v4297 = vshrl.u32 1326507024, %v4282
        %v4298 = vor.u32 %v4296, %v4297
        %vm4299 = vcmp.lt.s32.totalorder %v4280, 1
        %vm4300 = vcmp.lt.s32.totalorder %v4280, 2
        %vm4301 = vcmp.lt.s32.totalorder %v4280, 3
        %vm4302 = vcmp.lt.s32.totalorder %v4280, 4
        %v4303 = vsel %vm4299, %v4283, %v4286
        %v4304 = vsel %vm4302, %v4292, 2102212464
        %v4305 = vsel %vm4301, %v4289, %v4304
        %v4306 = vsel %vm4300, %v4303, %v4305
        %v4307 = vsel %vm4299, %v4286, %v4289
        %v4308 = vsel %vm4302, %v4295, 920167782
        %v4309 = vsel %vm4301, %v4292, %v4308
        %v4310 = vsel %vm4300, %v4307, %v4309
        %v4311 = vsel %vm4299, %v4289, %v4292
        %v4312 = vsel %vm4302, %v4298, 1326507024
        %v4313 = vsel %vm4301, %v4295, %v4312
        %v4314 = vsel %vm4300, %v4311, %v4313
        %v4315 = vshll.u32 %v4275, 8
        %v4316 = vand.u32 %v4315, 65535
        %v4317 = vshrl.u32 %v4315, 16
        %v4318 = vand.u32 %v4314, 65535
        %v4319 = vshrl.u32 %v4314, 16
        %v4320 = vmul.u32 %v4316, %v4318
        %v4321 = vmul.u32 %v4316, %v4319
        %v4322 = vmul.u32 %v4317, %v4318
        %v4323 = vmul.u32 %v4317, %v4319
        %v4324 = vshll.u32 %v4321, 16
        %v4325 = vshrl.u32 %v4321, 16
        %v4326 = vshll.u32 %v4322, 16
        %v4327 = vshrl.u32 %v4322, 16
        %vm4328 = vc.u32 %v4320, %v4324
        %v4329 = vsel %vm4328, 1, 0
        %v4330 = vadd.s32 %v4320, %v4324
        %v4331 = vadd.s32 %v4323, %v4329
        %vm4332 = vc.u32 %v4330, %v4326
        %v4333 = vsel %vm4332, 1, 0
        %v4334 = vadd.s32 %v4330, %v4326
        %v4335 = vadd.s32 %v4331, %v4333
        %v4336 = vadd.s32 %v4335, %v4325
        %v4337 = vadd.s32 %v4336, %v4327
        %v4338 = vand.u32 %v4315, 65535
        %v4339 = vshrl.u32 %v4315, 16
        %v4340 = vand.u32 %v4310, 65535
        %v4341 = vshrl.u32 %v4310, 16
        %v4342 = vmul.u32 %v4338, %v4340
        %v4343 = vmul.u32 %v4338, %v4341
        %v4344 = vmul.u32 %v4339, %v4340
        %v4345 = vmul.u32 %v4339, %v4341
        %v4346 = vshll.u32 %v4343, 16
        %v4347 = vshrl.u32 %v4343, 16
        %v4348 = vshll.u32 %v4344, 16
        %v4349 = vshrl.u32 %v4344, 16
        %vm4350 = vc.u32 %v4342, %v4346
        %v4351 = vsel %vm4350, 1, 0
        %v4352 = vadd.s32 %v4342, %v4346
        %v4353 = vadd.s32 %v4345, %v4351
        %vm4354 = vc.u32 %v4352, %v4348
        %v4355 = vsel %vm4354, 1, 0
        %v4356 = vadd.s32 %v4352, %v4348
        %v4357 = vadd.s32 %v4353, %v4355
        %v4358 = vadd.s32 %v4357, %v4347
        %v4359 = vadd.s32 %v4358, %v4349
        %v4360 = vmul.u32 %v4315, %v4306
        %v4361 = vadd.s32 %v4337, %v4356
        %vm4362 = vc.u32 %v4337, %v4356
        %v4363 = vadd.s32 %v4359, 1
        %v4364 = vsel %vm4362, %v4363, %v4359
        %v4365 = vadd.s32 %v4360, %v4364
        %v4366 = vadd.s32 %v4365, 536870912
        %v4367 = vshrl.u32 %v4366, 30
        %v4368 = vshll.u32 %v4367, 30
        %v4369 = vsub.s32 %v4365, %v4368
        %vm4370 = vcmp.lt.s32.totalorder %v4369, 0
        %v4371 = vsub.s32 0, %v4369
        %v4372 = vsel %vm4370, %v4371, %v4369
        %v4373 = vclz %v4372
        %v4374 = vsub.s32 %v4373, 2
        %vm4375 = vcmp.gt.s32.totalorder 0, %v4374
        %v4376 = vsel %vm4375, 0, %v4374
        %v4377 = vsub.s32 32, %v4376
        %v4378 = vshll.u32 %v4369, %v4376
        %v4379 = vshrl.u32 %v4361, %v4377
        %v4380 = vor.u32 %v4378, %v4379
        %v4381 = vsub.s32 4294967266, %v4376
        %v4382 = vadd.s32 %v4381, 127
        %v4383 = vshll.u32 %v4382, 23
        %v4384 = vor.u32 4788187, %v4383
        %v4385 = vand.u32 2147483647, %v4384
        %v4387 = vcvt.s32.f32 %v4380
        %v4388 = vmul.f32 %v4387, %v4385
        %v4389 = vxor.u32 %v4388, 2147483648
        %v4390 = vsel %vm4269, %v4389, %v4388
        %v4391 = vsub.s32 4, %v4367
        %v4392 = vsel %vm4269, %v4391, %v4367
        %v4393 = vsel %vm4268, %v1022, %v4390
        %v4394 = vsel %vm4268, 0, %v4392
        %v4395 = vmul.f32 %v4393, %v4393
        %v4396 = vmul.f32 %v4395, -0.001358992
        %v4397 = vadd.f32 %v4396, 0.041655596
        %v4398 = vmul.f32 %v4395, %v4397
        %v4399 = vadd.f32 %v4398, -0.4999988
        %v4400 = vmul.f32 %v4395, %v4399
        %v4401 = vadd.f32 1.0, %v4400
        %v4402 = vmul.f32 %v4393, %v4393
        %v4403 = vmul.f32 %v4402, -0.00019511016
        %v4404 = vadd.f32 %v4403, 0.008332121
        %v4405 = vmul.f32 %v4402, %v4404
        %v4406 = vadd.f32 %v4405, -0.16666654
        %v4407 = vmul.f32 %v4402, %v4406
        %v4408 = vadd.f32 %v4407, 1.0
        %v4409 = vmul.f32 %v4408, %v4393
        %vm4410 = vweird.f32 %v1022
        %v4411 = vand.u32 %v4394, 3
        %vm4412 = vcmp.lt.s32.totalorder %v4411, 2
        %vm4413 = vcmp.eq.s32.totalorder %v4411, 0
        %v4414 = vxor.u32 %v4409, 2147483648
        %v4415 = vsel %vm4413, %v4401, %v4414
        %vm4416 = vcmp.eq.s32.totalorder %v4411, 2
        %v4417 = vxor.u32 %v4401, 2147483648
        %v4418 = vsel %vm4416, %v4417, %v4409
        %v4419 = vsel %vm4412, %v4415, %v4418
        %v4420 = vsel %vm4410, nan, %v4419
        %v4421 = vand.u32 2147483647, %v1023
        %vm4422 = vcmp.le.f32.partialorder %v4421, 0.7853982
        %vm4423 = vcmp.lt.s32.totalorder %v1023, 0
        %v4424 = vand.u32 %v1023, 2139095040
        %v4425 = vshrl.u32 %v4424, 23
        %v4426 = vsub.s32 %v4425, 127
        %v4427 = vand.u32 2147483647, %v1023
        %v4428 = vand.u32 %v4427, 8388607
        %v4429 = vor.u32 %v4428, 8388608
        %v4430 = vsub.s32 0, %v4429
        %v4431 = vadd.s32 %v4426, 1
        %vm4432 = vcmp.gt.s32.totalorder %v4431, 0
        %v4433 = vsel %vm4432, %v4431, 0
        %v4434 = vshrl.u32 %v4433, 5
        %v4435 = vand.u32 %v4433, 31
        %v4436 = vsub.s32 32, %v4435
        %v4437 = vshrl.u32 683565275, %v4436
        %v4438 = vshll.u32 683565275, %v4435
        %v4439 = vshrl.u32 2475754826, %v4436
        %v4440 = vor.u32 %v4438, %v4439
        %v4441 = vshll.u32 2475754826, %v4435
        %v4442 = vshrl.u32 2131351028, %v4436
        %v4443 = vor.u32 %v4441, %v4442
        %v4444 = vshll.u32 2131351028, %v4435
        %v4445 = vshrl.u32 2102212464, %v4436
        %v4446 = vor.u32 %v4444, %v4445
        %v4447 = vshll.u32 2102212464, %v4435
        %v4448 = vshrl.u32 920167782, %v4436
        %v4449 = vor.u32 %v4447, %v4448
        %v4450 = vshll.u32 920167782, %v4435
        %v4451 = vshrl.u32 1326507024, %v4436
        %v4452 = vor.u32 %v4450, %v4451
        %vm4453 = vcmp.lt.s32.totalorder %v4434, 1
        %vm4454 = vcmp.lt.s32.totalorder %v4434, 2
        %vm4455 = vcmp.lt.s32.totalorder %v4434, 3
        %vm4456 = vcmp.lt.s32.totalorder %v4434, 4
        %v4457 = vsel %vm4453, %v4437, %v4440
        %v4458 = vsel %vm4456, %v4446, 2102212464
        %v4459 = vsel %vm4455, %v4443, %v4458
        %v4460 = vsel %vm4454, %v4457, %v4459
        %v4461 = vsel %vm4453, %v4440, %v4443
        %v4462 = vsel %vm4456, %v4449, 920167782
        %v4463 = vsel %vm4455, %v4446, %v4462
        %v4464 = vsel %vm4454, %v4461, %v4463
        %v4465 = vsel %vm4453, %v4443, %v4446
        %v4466 = vsel %vm4456, %v4452, 1326507024
        %v4467 = vsel %vm4455, %v4449, %v4466
        %v4468 = vsel %vm4454, %v4465, %v4467
        %v4469 = vshll.u32 %v4429, 8
        %v4470 = vand.u32 %v4469, 65535
        %v4471 = vshrl.u32 %v4469, 16
        %v4472 = vand.u32 %v4468, 65535
        %v4473 = vshrl.u32 %v4468, 16
        %v4474 = vmul.u32 %v4470, %v4472
        %v4475 = vmul.u32 %v4470, %v4473
        %v4476 = vmul.u32 %v4471, %v4472
        %v4477 = vmul.u32 %v4471, %v4473
        %v4478 = vshll.u32 %v4475, 16
        %v4479 = vshrl.u32 %v4475, 16
        %v4480 = vshll.u32 %v4476, 16
        %v4481 = vshrl.u32 %v4476, 16
        %vm4482 = vc.u32 %v4474, %v4478
        %v4483 = vsel %vm4482, 1, 0
        %v4484 = vadd.s32 %v4474, %v4478
        %v4485 = vadd.s32 %v4477, %v4483
        %vm4486 = vc.u32 %v4484, %v4480
        %v4487 = vsel %vm4486, 1, 0
        %v4488 = vadd.s32 %v4484, %v4480
        %v4489 = vadd.s32 %v4485, %v4487
        %v4490 = vadd.s32 %v4489, %v4479
        %v4491 = vadd.s32 %v4490, %v4481
        %v4492 = vand.u32 %v4469, 65535
        %v4493 = vshrl.u32 %v4469, 16
        %v4494 = vand.u32 %v4464, 65535
        %v4495 = vshrl.u32 %v4464, 16
        %v4496 = vmul.u32 %v4492, %v4494
        %v4497 = vmul.u32 %v4492, %v4495
        %v4498 = vmul.u32 %v4493, %v4494
        %v4499 = vmul.u32 %v4493, %v4495
        %v4500 = vshll.u32 %v4497, 16
        %v4501 = vshrl.u32 %v4497, 16
        %v4502 = vshll.u32 %v4498, 16
        %v4503 = vshrl.u32 %v4498, 16
        %vm4504 = vc.u32 %v4496, %v4500
        %v4505 = vsel %vm4504, 1, 0
        %v4506 = vadd.s32 %v4496, %v4500
        %v4507 = vadd.s32 %v4499, %v4505
        %vm4508 = vc.u32 %v4506, %v4502
        %v4509 = vsel %vm4508, 1, 0
        %v4510 = vadd.s32 %v4506, %v4502
        %v4511 = vadd.s32 %v4507, %v4509
        %v4512 = vadd.s32 %v4511, %v4501
        %v4513 = vadd.s32 %v4512, %v4503
        %v4514 = vmul.u32 %v4469, %v4460
        %v4515 = vadd.s32 %v4491, %v4510
        %vm4516 = vc.u32 %v4491, %v4510
        %v4517 = vadd.s32 %v4513, 1
        %v4518 = vsel %vm4516, %v4517, %v4513
        %v4519 = vadd.s32 %v4514, %v4518
        %v4520 = vadd.s32 %v4519, 536870912
        %v4521 = vshrl.u32 %v4520, 30
        %v4522 = vshll.u32 %v4521, 30
        %v4523 = vsub.s32 %v4519, %v4522
        %vm4524 = vcmp.lt.s32.totalorder %v4523, 0
        %v4525 = vsub.s32 0, %v4523
        %v4526 = vsel %vm4524, %v4525, %v4523
        %v4527 = vclz %v4526
        %v4528 = vsub.s32 %v4527, 2
        %vm4529 = vcmp.gt.s32.totalorder 0, %v4528
        %v4530 = vsel %vm4529, 0, %v4528
        %v4531 = vsub.s32 32, %v4530
        %v4532 = vshll.u32 %v4523, %v4530
        %v4533 = vshrl.u32 %v4515, %v4531
        %v4534 = vor.u32 %v4532, %v4533
        %v4535 = vsub.s32 4294967266, %v4530
        %v4536 = vadd.s32 %v4535, 127
        %v4537 = vshll.u32 %v4536, 23
        %v4538 = vor.u32 4788187, %v4537
        %v4539 = vand.u32 2147483647, %v4538
        %v4541 = vcvt.s32.f32 %v4534
        %v4542 = vmul.f32 %v4541, %v4539
        %v4543 = vxor.u32 %v4542, 2147483648
        %v4544 = vsel %vm4423, %v4543, %v4542
        %v4545 = vsub.s32 4, %v4521
        %v4546 = vsel %vm4423, %v4545, %v4521
        %v4547 = vsel %vm4422, %v1023, %v4544
        %v4548 = vsel %vm4422, 0, %v4546
        %v4549 = vmul.f32 %v4547, %v4547
        %v4550 = vmul.f32 %v4549, -0.001358992
        %v4551 = vadd.f32 %v4550, 0.041655596
        %v4552 = vmul.f32 %v4549, %v4551
        %v4553 = vadd.f32 %v4552, -0.4999988
        %v4554 = vmul.f32 %v4549, %v4553
        %v4555 = vadd.f32 1.0, %v4554
        %v4556 = vmul.f32 %v4547, %v4547
        %v4557 = vmul.f32 %v4556, -0.00019511016
        %v4558 = vadd.f32 %v4557, 0.008332121
        %v4559 = vmul.f32 %v4556, %v4558
        %v4560 = vadd.f32 %v4559, -0.16666654
        %v4561 = vmul.f32 %v4556, %v4560
        %v4562 = vadd.f32 %v4561, 1.0
        %v4563 = vmul.f32 %v4562, %v4547
        %vm4564 = vweird.f32 %v1023
        %v4565 = vand.u32 %v4548, 3
        %vm4566 = vcmp.lt.s32.totalorder %v4565, 2
        %vm4567 = vcmp.eq.s32.totalorder %v4565, 0
        %v4568 = vxor.u32 %v4563, 2147483648
        %v4569 = vsel %vm4567, %v4555, %v4568
        %vm4570 = vcmp.eq.s32.totalorder %v4565, 2
        %v4571 = vxor.u32 %v4555, 2147483648
        %v4572 = vsel %vm4570, %v4571, %v4563
        %v4573 = vsel %vm4566, %v4569, %v4572
        %v4574 = vsel %vm4564, nan, %v4573
        %v4575 = vand.u32 2147483647, %v1024
        %vm4576 = vcmp.le.f32.partialorder %v4575, 0.7853982
        %vm4577 = vcmp.lt.s32.totalorder %v1024, 0
        %v4578 = vand.u32 %v1024, 2139095040
        %v4579 = vshrl.u32 %v4578, 23
        %v4580 = vsub.s32 %v4579, 127
        %v4581 = vand.u32 2147483647, %v1024
        %v4582 = vand.u32 %v4581, 8388607
        %v4583 = vor.u32 %v4582, 8388608
        %v4584 = vsub.s32 0, %v4583
        %v4585 = vadd.s32 %v4580, 1
        %vm4586 = vcmp.gt.s32.totalorder %v4585, 0
        %v4587 = vsel %vm4586, %v4585, 0
        %v4588 = vshrl.u32 %v4587, 5
        %v4589 = vand.u32 %v4587, 31
        %v4590 = vsub.s32 32, %v4589
        %v4591 = vshrl.u32 683565275, %v4590
        %v4592 = vshll.u32 683565275, %v4589
        %v4593 = vshrl.u32 2475754826, %v4590
        %v4594 = vor.u32 %v4592, %v4593
        %v4595 = vshll.u32 2475754826, %v4589
        %v4596 = vshrl.u32 2131351028, %v4590
        %v4597 = vor.u32 %v4595, %v4596
        %v4598 = vshll.u32 2131351028, %v4589
        %v4599 = vshrl.u32 2102212464, %v4590
        %v4600 = vor.u32 %v4598, %v4599
        %v4601 = vshll.u32 2102212464, %v4589
        %v4602 = vshrl.u32 920167782, %v4590
        %v4603 = vor.u32 %v4601, %v4602
        %v4604 = vshll.u32 920167782, %v4589
        %v4605 = vshrl.u32 1326507024, %v4590
        %v4606 = vor.u32 %v4604, %v4605
        %vm4607 = vcmp.lt.s32.totalorder %v4588, 1
        %vm4608 = vcmp.lt.s32.totalorder %v4588, 2
        %vm4609 = vcmp.lt.s32.totalorder %v4588, 3
        %vm4610 = vcmp.lt.s32.totalorder %v4588, 4
        %v4611 = vsel %vm4607, %v4591, %v4594
        %v4612 = vsel %vm4610, %v4600, 2102212464
        %v4613 = vsel %vm4609, %v4597, %v4612
        %v4614 = vsel %vm4608, %v4611, %v4613
        %v4615 = vsel %vm4607, %v4594, %v4597
        %v4616 = vsel %vm4610, %v4603, 920167782
        %v4617 = vsel %vm4609, %v4600, %v4616
        %v4618 = vsel %vm4608, %v4615, %v4617
        %v4619 = vsel %vm4607, %v4597, %v4600
        %v4620 = vsel %vm4610, %v4606, 1326507024
        %v4621 = vsel %vm4609, %v4603, %v4620
        %v4622 = vsel %vm4608, %v4619, %v4621
        %v4623 = vshll.u32 %v4583, 8
        %v4624 = vand.u32 %v4623, 65535
        %v4625 = vshrl.u32 %v4623, 16
        %v4626 = vand.u32 %v4622, 65535
        %v4627 = vshrl.u32 %v4622, 16
        %v4628 = vmul.u32 %v4624, %v4626
        %v4629 = vmul.u32 %v4624, %v4627
        %v4630 = vmul.u32 %v4625, %v4626
        %v4631 = vmul.u32 %v4625, %v4627
        %v4632 = vshll.u32 %v4629, 16
        %v4633 = vshrl.u32 %v4629, 16
        %v4634 = vshll.u32 %v4630, 16
        %v4635 = vshrl.u32 %v4630, 16
        %vm4636 = vc.u32 %v4628, %v4632
        %v4637 = vsel %vm4636, 1, 0
        %v4638 = vadd.s32 %v4628, %v4632
        %v4639 = vadd.s32 %v4631, %v4637
        %vm4640 = vc.u32 %v4638, %v4634
        %v4641 = vsel %vm4640, 1, 0
        %v4642 = vadd.s32 %v4638, %v4634
        %v4643 = vadd.s32 %v4639, %v4641
        %v4644 = vadd.s32 %v4643, %v4633
        %v4645 = vadd.s32 %v4644, %v4635
        %v4646 = vand.u32 %v4623, 65535
        %v4647 = vshrl.u32 %v4623, 16
        %v4648 = vand.u32 %v4618, 65535
        %v4649 = vshrl.u32 %v4618, 16
        %v4650 = vmul.u32 %v4646, %v4648
        %v4651 = vmul.u32 %v4646, %v4649
        %v4652 = vmul.u32 %v4647, %v4648
        %v4653 = vmul.u32 %v4647, %v4649
        %v4654 = vshll.u32 %v4651, 16
        %v4655 = vshrl.u32 %v4651, 16
        %v4656 = vshll.u32 %v4652, 16
        %v4657 = vshrl.u32 %v4652, 16
        %vm4658 = vc.u32 %v4650, %v4654
        %v4659 = vsel %vm4658, 1, 0
        %v4660 = vadd.s32 %v4650, %v4654
        %v4661 = vadd.s32 %v4653, %v4659
        %vm4662 = vc.u32 %v4660, %v4656
        %v4663 = vsel %vm4662, 1, 0
        %v4664 = vadd.s32 %v4660, %v4656
        %v4665 = vadd.s32 %v4661, %v4663
        %v4666 = vadd.s32 %v4665, %v4655
        %v4667 = vadd.s32 %v4666, %v4657
        %v4668 = vmul.u32 %v4623, %v4614
        %v4669 = vadd.s32 %v4645, %v4664
        %vm4670 = vc.u32 %v4645, %v4664
        %v4671 = vadd.s32 %v4667, 1
        %v4672 = vsel %vm4670, %v4671, %v4667
        %v4673 = vadd.s32 %v4668, %v4672
        %v4674 = vadd.s32 %v4673, 536870912
        %v4675 = vshrl.u32 %v4674, 30
        %v4676 = vshll.u32 %v4675, 30
        %v4677 = vsub.s32 %v4673, %v4676
        %vm4678 = vcmp.lt.s32.totalorder %v4677, 0
        %v4679 = vsub.s32 0, %v4677
        %v4680 = vsel %vm4678, %v4679, %v4677
        %v4681 = vclz %v4680
        %v4682 = vsub.s32 %v4681, 2
        %vm4683 = vcmp.gt.s32.totalorder 0, %v4682
        %v4684 = vsel %vm4683, 0, %v4682
        %v4685 = vsub.s32 32, %v4684
        %v4686 = vshll.u32 %v4677, %v4684
        %v4687 = vshrl.u32 %v4669, %v4685
        %v4688 = vor.u32 %v4686, %v4687
        %v4689 = vsub.s32 4294967266, %v4684
        %v4690 = vadd.s32 %v4689, 127
        %v4691 = vshll.u32 %v4690, 23
        %v4692 = vor.u32 4788187, %v4691
        %v4693 = vand.u32 2147483647, %v4692
        %v4695 = vcvt.s32.f32 %v4688
        %v4696 = vmul.f32 %v4695, %v4693
        %v4697 = vxor.u32 %v4696, 2147483648
        %v4698 = vsel %vm4577, %v4697, %v4696
        %v4699 = vsub.s32 4, %v4675
        %v4700 = vsel %vm4577, %v4699, %v4675
        %v4701 = vsel %vm4576, %v1024, %v4698
        %v4702 = vsel %vm4576, 0, %v4700
        %v4703 = vmul.f32 %v4701, %v4701
        %v4704 = vmul.f32 %v4703, -0.001358992
        %v4705 = vadd.f32 %v4704, 0.041655596
        %v4706 = vmul.f32 %v4703, %v4705
        %v4707 = vadd.f32 %v4706, -0.4999988
        %v4708 = vmul.f32 %v4703, %v4707
        %v4709 = vadd.f32 1.0, %v4708
        %v4710 = vmul.f32 %v4701, %v4701
        %v4711 = vmul.f32 %v4710, -0.00019511016
        %v4712 = vadd.f32 %v4711, 0.008332121
        %v4713 = vmul.f32 %v4710, %v4712
        %v4714 = vadd.f32 %v4713, -0.16666654
        %v4715 = vmul.f32 %v4710, %v4714
        %v4716 = vadd.f32 %v4715, 1.0
        %v4717 = vmul.f32 %v4716, %v4701
        %vm4718 = vweird.f32 %v1024
        %v4719 = vand.u32 %v4702, 3
        %vm4720 = vcmp.lt.s32.totalorder %v4719, 2
        %vm4721 = vcmp.eq.s32.totalorder %v4719, 0
        %v4722 = vxor.u32 %v4717, 2147483648
        %v4723 = vsel %vm4721, %v4709, %v4722
        %vm4724 = vcmp.eq.s32.totalorder %v4719, 2
        %v4725 = vxor.u32 %v4709, 2147483648
        %v4726 = vsel %vm4724, %v4725, %v4717
        %v4727 = vsel %vm4720, %v4723, %v4726
        %v4728 = vsel %vm4718, nan, %v4727
        %v4729 = vand.u32 2147483647, %v1025
        %vm4730 = vcmp.le.f32.partialorder %v4729, 0.7853982
        %vm4731 = vcmp.lt.s32.totalorder %v1025, 0
        %v4732 = vand.u32 %v1025, 2139095040
        %v4733 = vshrl.u32 %v4732, 23
        %v4734 = vsub.s32 %v4733, 127
        %v4735 = vand.u32 2147483647, %v1025
        %v4736 = vand.u32 %v4735, 8388607
        %v4737 = vor.u32 %v4736, 8388608
        %v4738 = vsub.s32 0, %v4737
        %v4739 = vadd.s32 %v4734, 1
        %vm4740 = vcmp.gt.s32.totalorder %v4739, 0
        %v4741 = vsel %vm4740, %v4739, 0
        %v4742 = vshrl.u32 %v4741, 5
        %v4743 = vand.u32 %v4741, 31
        %v4744 = vsub.s32 32, %v4743
        %v4745 = vshrl.u32 683565275, %v4744
        %v4746 = vshll.u32 683565275, %v4743
        %v4747 = vshrl.u32 2475754826, %v4744
        %v4748 = vor.u32 %v4746, %v4747
        %v4749 = vshll.u32 2475754826, %v4743
        %v4750 = vshrl.u32 2131351028, %v4744
        %v4751 = vor.u32 %v4749, %v4750
        %v4752 = vshll.u32 2131351028, %v4743
        %v4753 = vshrl.u32 2102212464, %v4744
        %v4754 = vor.u32 %v4752, %v4753
        %v4755 = vshll.u32 2102212464, %v4743
        %v4756 = vshrl.u32 920167782, %v4744
        %v4757 = vor.u32 %v4755, %v4756
        %v4758 = vshll.u32 920167782, %v4743
        %v4759 = vshrl.u32 1326507024, %v4744
        %v4760 = vor.u32 %v4758, %v4759
        %vm4761 = vcmp.lt.s32.totalorder %v4742, 1
        %vm4762 = vcmp.lt.s32.totalorder %v4742, 2
        %vm4763 = vcmp.lt.s32.totalorder %v4742, 3
        %vm4764 = vcmp.lt.s32.totalorder %v4742, 4
        %v4765 = vsel %vm4761, %v4745, %v4748
        %v4766 = vsel %vm4764, %v4754, 2102212464
        %v4767 = vsel %vm4763, %v4751, %v4766
        %v4768 = vsel %vm4762, %v4765, %v4767
        %v4769 = vsel %vm4761, %v4748, %v4751
        %v4770 = vsel %vm4764, %v4757, 920167782
        %v4771 = vsel %vm4763, %v4754, %v4770
        %v4772 = vsel %vm4762, %v4769, %v4771
        %v4773 = vsel %vm4761, %v4751, %v4754
        %v4774 = vsel %vm4764, %v4760, 1326507024
        %v4775 = vsel %vm4763, %v4757, %v4774
        %v4776 = vsel %vm4762, %v4773, %v4775
        %v4777 = vshll.u32 %v4737, 8
        %v4778 = vand.u32 %v4777, 65535
        %v4779 = vshrl.u32 %v4777, 16
        %v4780 = vand.u32 %v4776, 65535
        %v4781 = vshrl.u32 %v4776, 16
        %v4782 = vmul.u32 %v4778, %v4780
        %v4783 = vmul.u32 %v4778, %v4781
        %v4784 = vmul.u32 %v4779, %v4780
        %v4785 = vmul.u32 %v4779, %v4781
        %v4786 = vshll.u32 %v4783, 16
        %v4787 = vshrl.u32 %v4783, 16
        %v4788 = vshll.u32 %v4784, 16
        %v4789 = vshrl.u32 %v4784, 16
        %vm4790 = vc.u32 %v4782, %v4786
        %v4791 = vsel %vm4790, 1, 0
        %v4792 = vadd.s32 %v4782, %v4786
        %v4793 = vadd.s32 %v4785, %v4791
        %vm4794 = vc.u32 %v4792, %v4788
        %v4795 = vsel %vm4794, 1, 0
        %v4796 = vadd.s32 %v4792, %v4788
        %v4797 = vadd.s32 %v4793, %v4795
        %v4798 = vadd.s32 %v4797, %v4787
        %v4799 = vadd.s32 %v4798, %v4789
        %v4800 = vand.u32 %v4777, 65535
        %v4801 = vshrl.u32 %v4777, 16
        %v4802 = vand.u32 %v4772, 65535
        %v4803 = vshrl.u32 %v4772, 16
        %v4804 = vmul.u32 %v4800, %v4802
        %v4805 = vmul.u32 %v4800, %v4803
        %v4806 = vmul.u32 %v4801, %v4802
        %v4807 = vmul.u32 %v4801, %v4803
        %v4808 = vshll.u32 %v4805, 16
        %v4809 = vshrl.u32 %v4805, 16
        %v4810 = vshll.u32 %v4806, 16
        %v4811 = vshrl.u32 %v4806, 16
        %vm4812 = vc.u32 %v4804, %v4808
        %v4813 = vsel %vm4812, 1, 0
        %v4814 = vadd.s32 %v4804, %v4808
        %v4815 = vadd.s32 %v4807, %v4813
        %vm4816 = vc.u32 %v4814, %v4810
        %v4817 = vsel %vm4816, 1, 0
        %v4818 = vadd.s32 %v4814, %v4810
        %v4819 = vadd.s32 %v4815, %v4817
        %v4820 = vadd.s32 %v4819, %v4809
        %v4821 = vadd.s32 %v4820, %v4811
        %v4822 = vmul.u32 %v4777, %v4768
        %v4823 = vadd.s32 %v4799, %v4818
        %vm4824 = vc.u32 %v4799, %v4818
        %v4825 = vadd.s32 %v4821, 1
        %v4826 = vsel %vm4824, %v4825, %v4821
        %v4827 = vadd.s32 %v4822, %v4826
        %v4828 = vadd.s32 %v4827, 536870912
        %v4829 = vshrl.u32 %v4828, 30
        %v4830 = vshll.u32 %v4829, 30
        %v4831 = vsub.s32 %v4827, %v4830
        %vm4832 = vcmp.lt.s32.totalorder %v4831, 0
        %v4833 = vsub.s32 0, %v4831
        %v4834 = vsel %vm4832, %v4833, %v4831
        %v4835 = vclz %v4834
        %v4836 = vsub.s32 %v4835, 2
        %vm4837 = vcmp.gt.s32.totalorder 0, %v4836
        %v4838 = vsel %vm4837, 0, %v4836
        %v4839 = vsub.s32 32, %v4838
        %v4840 = vshll.u32 %v4831, %v4838
        %v4841 = vshrl.u32 %v4823, %v4839
        %v4842 = vor.u32 %v4840, %v4841
        %v4843 = vsub.s32 4294967266, %v4838
        %v4844 = vadd.s32 %v4843, 127
        %v4845 = vshll.u32 %v4844, 23
        %v4846 = vor.u32 4788187, %v4845
        %v4847 = vand.u32 2147483647, %v4846
        %v4849 = vcvt.s32.f32 %v4842
        %v4850 = vmul.f32 %v4849, %v4847
        %v4851 = vxor.u32 %v4850, 2147483648
        %v4852 = vsel %vm4731, %v4851, %v4850
        %v4853 = vsub.s32 4, %v4829
        %v4854 = vsel %vm4731, %v4853, %v4829
        %v4855 = vsel %vm4730, %v1025, %v4852
        %v4856 = vsel %vm4730, 0, %v4854
        %v4857 = vmul.f32 %v4855, %v4855
        %v4858 = vmul.f32 %v4857, -0.001358992
        %v4859 = vadd.f32 %v4858, 0.041655596
        %v4860 = vmul.f32 %v4857, %v4859
        %v4861 = vadd.f32 %v4860, -0.4999988
        %v4862 = vmul.f32 %v4857, %v4861
        %v4863 = vadd.f32 1.0, %v4862
        %v4864 = vmul.f32 %v4855, %v4855
        %v4865 = vmul.f32 %v4864, -0.00019511016
        %v4866 = vadd.f32 %v4865, 0.008332121
        %v4867 = vmul.f32 %v4864, %v4866
        %v4868 = vadd.f32 %v4867, -0.16666654
        %v4869 = vmul.f32 %v4864, %v4868
        %v4870 = vadd.f32 %v4869, 1.0
        %v4871 = vmul.f32 %v4870, %v4855
        %vm4872 = vweird.f32 %v1025
        %v4873 = vand.u32 %v4856, 3
        %vm4874 = vcmp.lt.s32.totalorder %v4873, 2
        %vm4875 = vcmp.eq.s32.totalorder %v4873, 0
        %v4876 = vxor.u32 %v4871, 2147483648
        %v4877 = vsel %vm4875, %v4863, %v4876
        %vm4878 = vcmp.eq.s32.totalorder %v4873, 2
        %v4879 = vxor.u32 %v4863, 2147483648
        %v4880 = vsel %vm4878, %v4879, %v4871
        %v4881 = vsel %vm4874, %v4877, %v4880
        %v4882 = vsel %vm4872, nan, %v4881
        %v4883 = vand.u32 2147483647, %v1026
        %vm4884 = vcmp.le.f32.partialorder %v4883, 0.7853982
        %vm4885 = vcmp.lt.s32.totalorder %v1026, 0
        %v4886 = vand.u32 %v1026, 2139095040
        %v4887 = vshrl.u32 %v4886, 23
        %v4888 = vsub.s32 %v4887, 127
        %v4889 = vand.u32 2147483647, %v1026
        %v4890 = vand.u32 %v4889, 8388607
        %v4891 = vor.u32 %v4890, 8388608
        %v4892 = vsub.s32 0, %v4891
        %v4893 = vadd.s32 %v4888, 1
        %vm4894 = vcmp.gt.s32.totalorder %v4893, 0
        %v4895 = vsel %vm4894, %v4893, 0
        %v4896 = vshrl.u32 %v4895, 5
        %v4897 = vand.u32 %v4895, 31
        %v4898 = vsub.s32 32, %v4897
        %v4899 = vshrl.u32 683565275, %v4898
        %v4900 = vshll.u32 683565275, %v4897
        %v4901 = vshrl.u32 2475754826, %v4898
        %v4902 = vor.u32 %v4900, %v4901
        %v4903 = vshll.u32 2475754826, %v4897
        %v4904 = vshrl.u32 2131351028, %v4898
        %v4905 = vor.u32 %v4903, %v4904
        %v4906 = vshll.u32 2131351028, %v4897
        %v4907 = vshrl.u32 2102212464, %v4898
        %v4908 = vor.u32 %v4906, %v4907
        %v4909 = vshll.u32 2102212464, %v4897
        %v4910 = vshrl.u32 920167782, %v4898
        %v4911 = vor.u32 %v4909, %v4910
        %v4912 = vshll.u32 920167782, %v4897
        %v4913 = vshrl.u32 1326507024, %v4898
        %v4914 = vor.u32 %v4912, %v4913
        %vm4915 = vcmp.lt.s32.totalorder %v4896, 1
        %vm4916 = vcmp.lt.s32.totalorder %v4896, 2
        %vm4917 = vcmp.lt.s32.totalorder %v4896, 3
        %vm4918 = vcmp.lt.s32.totalorder %v4896, 4
        %v4919 = vsel %vm4915, %v4899, %v4902
        %v4920 = vsel %vm4918, %v4908, 2102212464
        %v4921 = vsel %vm4917, %v4905, %v4920
        %v4922 = vsel %vm4916, %v4919, %v4921
        %v4923 = vsel %vm4915, %v4902, %v4905
        %v4924 = vsel %vm4918, %v4911, 920167782
        %v4925 = vsel %vm4917, %v4908, %v4924
        %v4926 = vsel %vm4916, %v4923, %v4925
        %v4927 = vsel %vm4915, %v4905, %v4908
        %v4928 = vsel %vm4918, %v4914, 1326507024
        %v4929 = vsel %vm4917, %v4911, %v4928
        %v4930 = vsel %vm4916, %v4927, %v4929
        %v4931 = vshll.u32 %v4891, 8
        %v4932 = vand.u32 %v4931, 65535
        %v4933 = vshrl.u32 %v4931, 16
        %v4934 = vand.u32 %v4930, 65535
        %v4935 = vshrl.u32 %v4930, 16
        %v4936 = vmul.u32 %v4932, %v4934
        %v4937 = vmul.u32 %v4932, %v4935
        %v4938 = vmul.u32 %v4933, %v4934
        %v4939 = vmul.u32 %v4933, %v4935
        %v4940 = vshll.u32 %v4937, 16
        %v4941 = vshrl.u32 %v4937, 16
        %v4942 = vshll.u32 %v4938, 16
        %v4943 = vshrl.u32 %v4938, 16
        %vm4944 = vc.u32 %v4936, %v4940
        %v4945 = vsel %vm4944, 1, 0
        %v4946 = vadd.s32 %v4936, %v4940
        %v4947 = vadd.s32 %v4939, %v4945
        %vm4948 = vc.u32 %v4946, %v4942
        %v4949 = vsel %vm4948, 1, 0
        %v4950 = vadd.s32 %v4946, %v4942
        %v4951 = vadd.s32 %v4947, %v4949
        %v4952 = vadd.s32 %v4951, %v4941
        %v4953 = vadd.s32 %v4952, %v4943
        %v4954 = vand.u32 %v4931, 65535
        %v4955 = vshrl.u32 %v4931, 16
        %v4956 = vand.u32 %v4926, 65535
        %v4957 = vshrl.u32 %v4926, 16
        %v4958 = vmul.u32 %v4954, %v4956
        %v4959 = vmul.u32 %v4954, %v4957
        %v4960 = vmul.u32 %v4955, %v4956
        %v4961 = vmul.u32 %v4955, %v4957
        %v4962 = vshll.u32 %v4959, 16
        %v4963 = vshrl.u32 %v4959, 16
        %v4964 = vshll.u32 %v4960, 16
        %v4965 = vshrl.u32 %v4960, 16
        %vm4966 = vc.u32 %v4958, %v4962
        %v4967 = vsel %vm4966, 1, 0
        %v4968 = vadd.s32 %v4958, %v4962
        %v4969 = vadd.s32 %v4961, %v4967
        %vm4970 = vc.u32 %v4968, %v4964
        %v4971 = vsel %vm4970, 1, 0
        %v4972 = vadd.s32 %v4968, %v4964
        %v4973 = vadd.s32 %v4969, %v4971
        %v4974 = vadd.s32 %v4973, %v4963
        %v4975 = vadd.s32 %v4974, %v4965
        %v4976 = vmul.u32 %v4931, %v4922
        %v4977 = vadd.s32 %v4953, %v4972
        %vm4978 = vc.u32 %v4953, %v4972
        %v4979 = vadd.s32 %v4975, 1
        %v4980 = vsel %vm4978, %v4979, %v4975
        %v4981 = vadd.s32 %v4976, %v4980
        %v4982 = vadd.s32 %v4981, 536870912
        %v4983 = vshrl.u32 %v4982, 30
        %v4984 = vshll.u32 %v4983, 30
        %v4985 = vsub.s32 %v4981, %v4984
        %vm4986 = vcmp.lt.s32.totalorder %v4985, 0
        %v4987 = vsub.s32 0, %v4985
        %v4988 = vsel %vm4986, %v4987, %v4985
        %v4989 = vclz %v4988
        %v4990 = vsub.s32 %v4989, 2
        %vm4991 = vcmp.gt.s32.totalorder 0, %v4990
        %v4992 = vsel %vm4991, 0, %v4990
        %v4993 = vsub.s32 32, %v4992
        %v4994 = vshll.u32 %v4985, %v4992
        %v4995 = vshrl.u32 %v4977, %v4993
        %v4996 = vor.u32 %v4994, %v4995
        %v4997 = vsub.s32 4294967266, %v4992
        %v4998 = vadd.s32 %v4997, 127
        %v4999 = vshll.u32 %v4998, 23
        %v5000 = vor.u32 4788187, %v4999
        %v5001 = vand.u32 2147483647, %v5000
        %v5003 = vcvt.s32.f32 %v4996
        %v5004 = vmul.f32 %v5003, %v5001
        %v5005 = vxor.u32 %v5004, 2147483648
        %v5006 = vsel %vm4885, %v5005, %v5004
        %v5007 = vsub.s32 4, %v4983
        %v5008 = vsel %vm4885, %v5007, %v4983
        %v5009 = vsel %vm4884, %v1026, %v5006
        %v5010 = vsel %vm4884, 0, %v5008
        %v5011 = vmul.f32 %v5009, %v5009
        %v5012 = vmul.f32 %v5011, -0.001358992
        %v5013 = vadd.f32 %v5012, 0.041655596
        %v5014 = vmul.f32 %v5011, %v5013
        %v5015 = vadd.f32 %v5014, -0.4999988
        %v5016 = vmul.f32 %v5011, %v5015
        %v5017 = vadd.f32 1.0, %v5016
        %v5018 = vmul.f32 %v5009, %v5009
        %v5019 = vmul.f32 %v5018, -0.00019511016
        %v5020 = vadd.f32 %v5019, 0.008332121
        %v5021 = vmul.f32 %v5018, %v5020
        %v5022 = vadd.f32 %v5021, -0.16666654
        %v5023 = vmul.f32 %v5018, %v5022
        %v5024 = vadd.f32 %v5023, 1.0
        %v5025 = vmul.f32 %v5024, %v5009
        %vm5026 = vweird.f32 %v1026
        %v5027 = vand.u32 %v5010, 3
        %vm5028 = vcmp.lt.s32.totalorder %v5027, 2
        %vm5029 = vcmp.eq.s32.totalorder %v5027, 0
        %v5030 = vxor.u32 %v5025, 2147483648
        %v5031 = vsel %vm5029, %v5017, %v5030
        %vm5032 = vcmp.eq.s32.totalorder %v5027, 2
        %v5033 = vxor.u32 %v5017, 2147483648
        %v5034 = vsel %vm5032, %v5033, %v5025
        %v5035 = vsel %vm5028, %v5031, %v5034
        %v5036 = vsel %vm5026, nan, %v5035
        %v5037 = vand.u32 2147483647, %v1027
        %vm5038 = vcmp.le.f32.partialorder %v5037, 0.7853982
        %vm5039 = vcmp.lt.s32.totalorder %v1027, 0
        %v5040 = vand.u32 %v1027, 2139095040
        %v5041 = vshrl.u32 %v5040, 23
        %v5042 = vsub.s32 %v5041, 127
        %v5043 = vand.u32 2147483647, %v1027
        %v5044 = vand.u32 %v5043, 8388607
        %v5045 = vor.u32 %v5044, 8388608
        %v5046 = vsub.s32 0, %v5045
        %v5047 = vadd.s32 %v5042, 1
        %vm5048 = vcmp.gt.s32.totalorder %v5047, 0
        %v5049 = vsel %vm5048, %v5047, 0
        %v5050 = vshrl.u32 %v5049, 5
        %v5051 = vand.u32 %v5049, 31
        %v5052 = vsub.s32 32, %v5051
        %v5053 = vshrl.u32 683565275, %v5052
        %v5054 = vshll.u32 683565275, %v5051
        %v5055 = vshrl.u32 2475754826, %v5052
        %v5056 = vor.u32 %v5054, %v5055
        %v5057 = vshll.u32 2475754826, %v5051
        %v5058 = vshrl.u32 2131351028, %v5052
        %v5059 = vor.u32 %v5057, %v5058
        %v5060 = vshll.u32 2131351028, %v5051
        %v5061 = vshrl.u32 2102212464, %v5052
        %v5062 = vor.u32 %v5060, %v5061
        %v5063 = vshll.u32 2102212464, %v5051
        %v5064 = vshrl.u32 920167782, %v5052
        %v5065 = vor.u32 %v5063, %v5064
        %v5066 = vshll.u32 920167782, %v5051
        %v5067 = vshrl.u32 1326507024, %v5052
        %v5068 = vor.u32 %v5066, %v5067
        %vm5069 = vcmp.lt.s32.totalorder %v5050, 1
        %vm5070 = vcmp.lt.s32.totalorder %v5050, 2
        %vm5071 = vcmp.lt.s32.totalorder %v5050, 3
        %vm5072 = vcmp.lt.s32.totalorder %v5050, 4
        %v5073 = vsel %vm5069, %v5053, %v5056
        %v5074 = vsel %vm5072, %v5062, 2102212464
        %v5075 = vsel %vm5071, %v5059, %v5074
        %v5076 = vsel %vm5070, %v5073, %v5075
        %v5077 = vsel %vm5069, %v5056, %v5059
        %v5078 = vsel %vm5072, %v5065, 920167782
        %v5079 = vsel %vm5071, %v5062, %v5078
        %v5080 = vsel %vm5070, %v5077, %v5079
        %v5081 = vsel %vm5069, %v5059, %v5062
        %v5082 = vsel %vm5072, %v5068, 1326507024
        %v5083 = vsel %vm5071, %v5065, %v5082
        %v5084 = vsel %vm5070, %v5081, %v5083
        %v5085 = vshll.u32 %v5045, 8
        %v5086 = vand.u32 %v5085, 65535
        %v5087 = vshrl.u32 %v5085, 16
        %v5088 = vand.u32 %v5084, 65535
        %v5089 = vshrl.u32 %v5084, 16
        %v5090 = vmul.u32 %v5086, %v5088
        %v5091 = vmul.u32 %v5086, %v5089
        %v5092 = vmul.u32 %v5087, %v5088
        %v5093 = vmul.u32 %v5087, %v5089
        %v5094 = vshll.u32 %v5091, 16
        %v5095 = vshrl.u32 %v5091, 16
        %v5096 = vshll.u32 %v5092, 16
        %v5097 = vshrl.u32 %v5092, 16
        %vm5098 = vc.u32 %v5090, %v5094
        %v5099 = vsel %vm5098, 1, 0
        %v5100 = vadd.s32 %v5090, %v5094
        %v5101 = vadd.s32 %v5093, %v5099
        %vm5102 = vc.u32 %v5100, %v5096
        %v5103 = vsel %vm5102, 1, 0
        %v5104 = vadd.s32 %v5100, %v5096
        %v5105 = vadd.s32 %v5101, %v5103
        %v5106 = vadd.s32 %v5105, %v5095
        %v5107 = vadd.s32 %v5106, %v5097
        %v5108 = vand.u32 %v5085, 65535
        %v5109 = vshrl.u32 %v5085, 16
        %v5110 = vand.u32 %v5080, 65535
        %v5111 = vshrl.u32 %v5080, 16
        %v5112 = vmul.u32 %v5108, %v5110
        %v5113 = vmul.u32 %v5108, %v5111
        %v5114 = vmul.u32 %v5109, %v5110
        %v5115 = vmul.u32 %v5109, %v5111
        %v5116 = vshll.u32 %v5113, 16
        %v5117 = vshrl.u32 %v5113, 16
        %v5118 = vshll.u32 %v5114, 16
        %v5119 = vshrl.u32 %v5114, 16
        %vm5120 = vc.u32 %v5112, %v5116
        %v5121 = vsel %vm5120, 1, 0
        %v5122 = vadd.s32 %v5112, %v5116
        %v5123 = vadd.s32 %v5115, %v5121
        %vm5124 = vc.u32 %v5122, %v5118
        %v5125 = vsel %vm5124, 1, 0
        %v5126 = vadd.s32 %v5122, %v5118
        %v5127 = vadd.s32 %v5123, %v5125
        %v5128 = vadd.s32 %v5127, %v5117
        %v5129 = vadd.s32 %v5128, %v5119
        %v5130 = vmul.u32 %v5085, %v5076
        %v5131 = vadd.s32 %v5107, %v5126
        %vm5132 = vc.u32 %v5107, %v5126
        %v5133 = vadd.s32 %v5129, 1
        %v5134 = vsel %vm5132, %v5133, %v5129
        %v5135 = vadd.s32 %v5130, %v5134
        %v5136 = vadd.s32 %v5135, 536870912
        %v5137 = vshrl.u32 %v5136, 30
        %v5138 = vshll.u32 %v5137, 30
        %v5139 = vsub.s32 %v5135, %v5138
        %vm5140 = vcmp.lt.s32.totalorder %v5139, 0
        %v5141 = vsub.s32 0, %v5139
        %v5142 = vsel %vm5140, %v5141, %v5139
        %v5143 = vclz %v5142
        %v5144 = vsub.s32 %v5143, 2
        %vm5145 = vcmp.gt.s32.totalorder 0, %v5144
        %v5146 = vsel %vm5145, 0, %v5144
        %v5147 = vsub.s32 32, %v5146
        %v5148 = vshll.u32 %v5139, %v5146
        %v5149 = vshrl.u32 %v5131, %v5147
        %v5150 = vor.u32 %v5148, %v5149
        %v5151 = vsub.s32 4294967266, %v5146
        %v5152 = vadd.s32 %v5151, 127
        %v5153 = vshll.u32 %v5152, 23
        %v5154 = vor.u32 4788187, %v5153
        %v5155 = vand.u32 2147483647, %v5154
        %v5157 = vcvt.s32.f32 %v5150
        %v5158 = vmul.f32 %v5157, %v5155
        %v5159 = vxor.u32 %v5158, 2147483648
        %v5160 = vsel %vm5039, %v5159, %v5158
        %v5161 = vsub.s32 4, %v5137
        %v5162 = vsel %vm5039, %v5161, %v5137
        %v5163 = vsel %vm5038, %v1027, %v5160
        %v5164 = vsel %vm5038, 0, %v5162
        %v5165 = vmul.f32 %v5163, %v5163
        %v5166 = vmul.f32 %v5165, -0.001358992
        %v5167 = vadd.f32 %v5166, 0.041655596
        %v5168 = vmul.f32 %v5165, %v5167
        %v5169 = vadd.f32 %v5168, -0.4999988
        %v5170 = vmul.f32 %v5165, %v5169
        %v5171 = vadd.f32 1.0, %v5170
        %v5172 = vmul.f32 %v5163, %v5163
        %v5173 = vmul.f32 %v5172, -0.00019511016
        %v5174 = vadd.f32 %v5173, 0.008332121
        %v5175 = vmul.f32 %v5172, %v5174
        %v5176 = vadd.f32 %v5175, -0.16666654
        %v5177 = vmul.f32 %v5172, %v5176
        %v5178 = vadd.f32 %v5177, 1.0
        %v5179 = vmul.f32 %v5178, %v5163
        %vm5180 = vweird.f32 %v1027
        %v5181 = vand.u32 %v5164, 3
        %vm5182 = vcmp.lt.s32.totalorder %v5181, 2
        %vm5183 = vcmp.eq.s32.totalorder %v5181, 0
        %v5184 = vxor.u32 %v5179, 2147483648
        %v5185 = vsel %vm5183, %v5171, %v5184
        %vm5186 = vcmp.eq.s32.totalorder %v5181, 2
        %v5187 = vxor.u32 %v5171, 2147483648
        %v5188 = vsel %vm5186, %v5187, %v5179
        %v5189 = vsel %vm5182, %v5185, %v5188
        %v5190 = vsel %vm5180, nan, %v5189
        %v5191 = vand.u32 2147483647, %v1028
        %vm5192 = vcmp.le.f32.partialorder %v5191, 0.7853982
        %vm5193 = vcmp.lt.s32.totalorder %v1028, 0
        %v5194 = vand.u32 %v1028, 2139095040
        %v5195 = vshrl.u32 %v5194, 23
        %v5196 = vsub.s32 %v5195, 127
        %v5197 = vand.u32 2147483647, %v1028
        %v5198 = vand.u32 %v5197, 8388607
        %v5199 = vor.u32 %v5198, 8388608
        %v5200 = vsub.s32 0, %v5199
        %v5201 = vadd.s32 %v5196, 1
        %vm5202 = vcmp.gt.s32.totalorder %v5201, 0
        %v5203 = vsel %vm5202, %v5201, 0
        %v5204 = vshrl.u32 %v5203, 5
        %v5205 = vand.u32 %v5203, 31
        %v5206 = vsub.s32 32, %v5205
        %v5207 = vshrl.u32 683565275, %v5206
        %v5208 = vshll.u32 683565275, %v5205
        %v5209 = vshrl.u32 2475754826, %v5206
        %v5210 = vor.u32 %v5208, %v5209
        %v5211 = vshll.u32 2475754826, %v5205
        %v5212 = vshrl.u32 2131351028, %v5206
        %v5213 = vor.u32 %v5211, %v5212
        %v5214 = vshll.u32 2131351028, %v5205
        %v5215 = vshrl.u32 2102212464, %v5206
        %v5216 = vor.u32 %v5214, %v5215
        %v5217 = vshll.u32 2102212464, %v5205
        %v5218 = vshrl.u32 920167782, %v5206
        %v5219 = vor.u32 %v5217, %v5218
        %v5220 = vshll.u32 920167782, %v5205
        %v5221 = vshrl.u32 1326507024, %v5206
        %v5222 = vor.u32 %v5220, %v5221
        %vm5223 = vcmp.lt.s32.totalorder %v5204, 1
        %vm5224 = vcmp.lt.s32.totalorder %v5204, 2
        %vm5225 = vcmp.lt.s32.totalorder %v5204, 3
        %vm5226 = vcmp.lt.s32.totalorder %v5204, 4
        %v5227 = vsel %vm5223, %v5207, %v5210
        %v5228 = vsel %vm5226, %v5216, 2102212464
        %v5229 = vsel %vm5225, %v5213, %v5228
        %v5230 = vsel %vm5224, %v5227, %v5229
        %v5231 = vsel %vm5223, %v5210, %v5213
        %v5232 = vsel %vm5226, %v5219, 920167782
        %v5233 = vsel %vm5225, %v5216, %v5232
        %v5234 = vsel %vm5224, %v5231, %v5233
        %v5235 = vsel %vm5223, %v5213, %v5216
        %v5236 = vsel %vm5226, %v5222, 1326507024
        %v5237 = vsel %vm5225, %v5219, %v5236
        %v5238 = vsel %vm5224, %v5235, %v5237
        %v5239 = vshll.u32 %v5199, 8
        %v5240 = vand.u32 %v5239, 65535
        %v5241 = vshrl.u32 %v5239, 16
        %v5242 = vand.u32 %v5238, 65535
        %v5243 = vshrl.u32 %v5238, 16
        %v5244 = vmul.u32 %v5240, %v5242
        %v5245 = vmul.u32 %v5240, %v5243
        %v5246 = vmul.u32 %v5241, %v5242
        %v5247 = vmul.u32 %v5241, %v5243
        %v5248 = vshll.u32 %v5245, 16
        %v5249 = vshrl.u32 %v5245, 16
        %v5250 = vshll.u32 %v5246, 16
        %v5251 = vshrl.u32 %v5246, 16
        %vm5252 = vc.u32 %v5244, %v5248
        %v5253 = vsel %vm5252, 1, 0
        %v5254 = vadd.s32 %v5244, %v5248
        %v5255 = vadd.s32 %v5247, %v5253
        %vm5256 = vc.u32 %v5254, %v5250
        %v5257 = vsel %vm5256, 1, 0
        %v5258 = vadd.s32 %v5254, %v5250
        %v5259 = vadd.s32 %v5255, %v5257
        %v5260 = vadd.s32 %v5259, %v5249
        %v5261 = vadd.s32 %v5260, %v5251
        %v5262 = vand.u32 %v5239, 65535
        %v5263 = vshrl.u32 %v5239, 16
        %v5264 = vand.u32 %v5234, 65535
        %v5265 = vshrl.u32 %v5234, 16
        %v5266 = vmul.u32 %v5262, %v5264
        %v5267 = vmul.u32 %v5262, %v5265
        %v5268 = vmul.u32 %v5263, %v5264
        %v5269 = vmul.u32 %v5263, %v5265
        %v5270 = vshll.u32 %v5267, 16
        %v5271 = vshrl.u32 %v5267, 16
        %v5272 = vshll.u32 %v5268, 16
        %v5273 = vshrl.u32 %v5268, 16
        %vm5274 = vc.u32 %v5266, %v5270
        %v5275 = vsel %vm5274, 1, 0
        %v5276 = vadd.s32 %v5266, %v5270
        %v5277 = vadd.s32 %v5269, %v5275
        %vm5278 = vc.u32 %v5276, %v5272
        %v5279 = vsel %vm5278, 1, 0
        %v5280 = vadd.s32 %v5276, %v5272
        %v5281 = vadd.s32 %v5277, %v5279
        %v5282 = vadd.s32 %v5281, %v5271
        %v5283 = vadd.s32 %v5282, %v5273
        %v5284 = vmul.u32 %v5239, %v5230
        %v5285 = vadd.s32 %v5261, %v5280
        %vm5286 = vc.u32 %v5261, %v5280
        %v5287 = vadd.s32 %v5283, 1
        %v5288 = vsel %vm5286, %v5287, %v5283
        %v5289 = vadd.s32 %v5284, %v5288
        %v5290 = vadd.s32 %v5289, 536870912
        %v5291 = vshrl.u32 %v5290, 30
        %v5292 = vshll.u32 %v5291, 30
        %v5293 = vsub.s32 %v5289, %v5292
        %vm5294 = vcmp.lt.s32.totalorder %v5293, 0
        %v5295 = vsub.s32 0, %v5293
        %v5296 = vsel %vm5294, %v5295, %v5293
        %v5297 = vclz %v5296
        %v5298 = vsub.s32 %v5297, 2
        %vm5299 = vcmp.gt.s32.totalorder 0, %v5298
        %v5300 = vsel %vm5299, 0, %v5298
        %v5301 = vsub.s32 32, %v5300
        %v5302 = vshll.u32 %v5293, %v5300
        %v5303 = vshrl.u32 %v5285, %v5301
        %v5304 = vor.u32 %v5302, %v5303
        %v5305 = vsub.s32 4294967266, %v5300
        %v5306 = vadd.s32 %v5305, 127
        %v5307 = vshll.u32 %v5306, 23
        %v5308 = vor.u32 4788187, %v5307
        %v5309 = vand.u32 2147483647, %v5308
        %v5311 = vcvt.s32.f32 %v5304
        %v5312 = vmul.f32 %v5311, %v5309
        %v5313 = vxor.u32 %v5312, 2147483648
        %v5314 = vsel %vm5193, %v5313, %v5312
        %v5315 = vsub.s32 4, %v5291
        %v5316 = vsel %vm5193, %v5315, %v5291
        %v5317 = vsel %vm5192, %v1028, %v5314
        %v5318 = vsel %vm5192, 0, %v5316
        %v5319 = vmul.f32 %v5317, %v5317
        %v5320 = vmul.f32 %v5319, -0.001358992
        %v5321 = vadd.f32 %v5320, 0.041655596
        %v5322 = vmul.f32 %v5319, %v5321
        %v5323 = vadd.f32 %v5322, -0.4999988
        %v5324 = vmul.f32 %v5319, %v5323
        %v5325 = vadd.f32 1.0, %v5324
        %v5326 = vmul.f32 %v5317, %v5317
        %v5327 = vmul.f32 %v5326, -0.00019511016
        %v5328 = vadd.f32 %v5327, 0.008332121
        %v5329 = vmul.f32 %v5326, %v5328
        %v5330 = vadd.f32 %v5329, -0.16666654
        %v5331 = vmul.f32 %v5326, %v5330
        %v5332 = vadd.f32 %v5331, 1.0
        %v5333 = vmul.f32 %v5332, %v5317
        %vm5334 = vweird.f32 %v1028
        %v5335 = vand.u32 %v5318, 3
        %vm5336 = vcmp.lt.s32.totalorder %v5335, 2
        %vm5337 = vcmp.eq.s32.totalorder %v5335, 0
        %v5338 = vxor.u32 %v5333, 2147483648
        %v5339 = vsel %vm5337, %v5325, %v5338
        %vm5340 = vcmp.eq.s32.totalorder %v5335, 2
        %v5341 = vxor.u32 %v5325, 2147483648
        %v5342 = vsel %vm5340, %v5341, %v5333
        %v5343 = vsel %vm5336, %v5339, %v5342
        %v5344 = vsel %vm5334, nan, %v5343
        %v5345 = vand.u32 2147483647, %v1029
        %vm5346 = vcmp.le.f32.partialorder %v5345, 0.7853982
        %vm5347 = vcmp.lt.s32.totalorder %v1029, 0
        %v5348 = vand.u32 %v1029, 2139095040
        %v5349 = vshrl.u32 %v5348, 23
        %v5350 = vsub.s32 %v5349, 127
        %v5351 = vand.u32 2147483647, %v1029
        %v5352 = vand.u32 %v5351, 8388607
        %v5353 = vor.u32 %v5352, 8388608
        %v5354 = vsub.s32 0, %v5353
        %v5355 = vadd.s32 %v5350, 1
        %vm5356 = vcmp.gt.s32.totalorder %v5355, 0
        %v5357 = vsel %vm5356, %v5355, 0
        %v5358 = vshrl.u32 %v5357, 5
        %v5359 = vand.u32 %v5357, 31
        %v5360 = vsub.s32 32, %v5359
        %v5361 = vshrl.u32 683565275, %v5360
        %v5362 = vshll.u32 683565275, %v5359
        %v5363 = vshrl.u32 2475754826, %v5360
        %v5364 = vor.u32 %v5362, %v5363
        %v5365 = vshll.u32 2475754826, %v5359
        %v5366 = vshrl.u32 2131351028, %v5360
        %v5367 = vor.u32 %v5365, %v5366
        %v5368 = vshll.u32 2131351028, %v5359
        %v5369 = vshrl.u32 2102212464, %v5360
        %v5370 = vor.u32 %v5368, %v5369
        %v5371 = vshll.u32 2102212464, %v5359
        %v5372 = vshrl.u32 920167782, %v5360
        %v5373 = vor.u32 %v5371, %v5372
        %v5374 = vshll.u32 920167782, %v5359
        %v5375 = vshrl.u32 1326507024, %v5360
        %v5376 = vor.u32 %v5374, %v5375
        %vm5377 = vcmp.lt.s32.totalorder %v5358, 1
        %vm5378 = vcmp.lt.s32.totalorder %v5358, 2
        %vm5379 = vcmp.lt.s32.totalorder %v5358, 3
        %vm5380 = vcmp.lt.s32.totalorder %v5358, 4
        %v5381 = vsel %vm5377, %v5361, %v5364
        %v5382 = vsel %vm5380, %v5370, 2102212464
        %v5383 = vsel %vm5379, %v5367, %v5382
        %v5384 = vsel %vm5378, %v5381, %v5383
        %v5385 = vsel %vm5377, %v5364, %v5367
        %v5386 = vsel %vm5380, %v5373, 920167782
        %v5387 = vsel %vm5379, %v5370, %v5386
        %v5388 = vsel %vm5378, %v5385, %v5387
        %v5389 = vsel %vm5377, %v5367, %v5370
        %v5390 = vsel %vm5380, %v5376, 1326507024
        %v5391 = vsel %vm5379, %v5373, %v5390
        %v5392 = vsel %vm5378, %v5389, %v5391
        %v5393 = vshll.u32 %v5353, 8
        %v5394 = vand.u32 %v5393, 65535
        %v5395 = vshrl.u32 %v5393, 16
        %v5396 = vand.u32 %v5392, 65535
        %v5397 = vshrl.u32 %v5392, 16
        %v5398 = vmul.u32 %v5394, %v5396
        %v5399 = vmul.u32 %v5394, %v5397
        %v5400 = vmul.u32 %v5395, %v5396
        %v5401 = vmul.u32 %v5395, %v5397
        %v5402 = vshll.u32 %v5399, 16
        %v5403 = vshrl.u32 %v5399, 16
        %v5404 = vshll.u32 %v5400, 16
        %v5405 = vshrl.u32 %v5400, 16
        %vm5406 = vc.u32 %v5398, %v5402
        %v5407 = vsel %vm5406, 1, 0
        %v5408 = vadd.s32 %v5398, %v5402
        %v5409 = vadd.s32 %v5401, %v5407
        %vm5410 = vc.u32 %v5408, %v5404
        %v5411 = vsel %vm5410, 1, 0
        %v5412 = vadd.s32 %v5408, %v5404
        %v5413 = vadd.s32 %v5409, %v5411
        %v5414 = vadd.s32 %v5413, %v5403
        %v5415 = vadd.s32 %v5414, %v5405
        %v5416 = vand.u32 %v5393, 65535
        %v5417 = vshrl.u32 %v5393, 16
        %v5418 = vand.u32 %v5388, 65535
        %v5419 = vshrl.u32 %v5388, 16
        %v5420 = vmul.u32 %v5416, %v5418
        %v5421 = vmul.u32 %v5416, %v5419
        %v5422 = vmul.u32 %v5417, %v5418
        %v5423 = vmul.u32 %v5417, %v5419
        %v5424 = vshll.u32 %v5421, 16
        %v5425 = vshrl.u32 %v5421, 16
        %v5426 = vshll.u32 %v5422, 16
        %v5427 = vshrl.u32 %v5422, 16
        %vm5428 = vc.u32 %v5420, %v5424
        %v5429 = vsel %vm5428, 1, 0
        %v5430 = vadd.s32 %v5420, %v5424
        %v5431 = vadd.s32 %v5423, %v5429
        %vm5432 = vc.u32 %v5430, %v5426
        %v5433 = vsel %vm5432, 1, 0
        %v5434 = vadd.s32 %v5430, %v5426
        %v5435 = vadd.s32 %v5431, %v5433
        %v5436 = vadd.s32 %v5435, %v5425
        %v5437 = vadd.s32 %v5436, %v5427
        %v5438 = vmul.u32 %v5393, %v5384
        %v5439 = vadd.s32 %v5415, %v5434
        %vm5440 = vc.u32 %v5415, %v5434
        %v5441 = vadd.s32 %v5437, 1
        %v5442 = vsel %vm5440, %v5441, %v5437
        %v5443 = vadd.s32 %v5438, %v5442
        %v5444 = vadd.s32 %v5443, 536870912
        %v5445 = vshrl.u32 %v5444, 30
        %v5446 = vshll.u32 %v5445, 30
        %v5447 = vsub.s32 %v5443, %v5446
        %vm5448 = vcmp.lt.s32.totalorder %v5447, 0
        %v5449 = vsub.s32 0, %v5447
        %v5450 = vsel %vm5448, %v5449, %v5447
        %v5451 = vclz %v5450
        %v5452 = vsub.s32 %v5451, 2
        %vm5453 = vcmp.gt.s32.totalorder 0, %v5452
        %v5454 = vsel %vm5453, 0, %v5452
        %v5455 = vsub.s32 32, %v5454
        %v5456 = vshll.u32 %v5447, %v5454
        %v5457 = vshrl.u32 %v5439, %v5455
        %v5458 = vor.u32 %v5456, %v5457
        %v5459 = vsub.s32 4294967266, %v5454
        %v5460 = vadd.s32 %v5459, 127
        %v5461 = vshll.u32 %v5460, 23
        %v5462 = vor.u32 4788187, %v5461
        %v5463 = vand.u32 2147483647, %v5462
        %v5465 = vcvt.s32.f32 %v5458
        %v5466 = vmul.f32 %v5465, %v5463
        %v5467 = vxor.u32 %v5466, 2147483648
        %v5468 = vsel %vm5347, %v5467, %v5466
        %v5469 = vsub.s32 4, %v5445
        %v5470 = vsel %vm5347, %v5469, %v5445
        %v5471 = vsel %vm5346, %v1029, %v5468
        %v5472 = vsel %vm5346, 0, %v5470
        %v5473 = vmul.f32 %v5471, %v5471
        %v5474 = vmul.f32 %v5473, -0.001358992
        %v5475 = vadd.f32 %v5474, 0.041655596
        %v5476 = vmul.f32 %v5473, %v5475
        %v5477 = vadd.f32 %v5476, -0.4999988
        %v5478 = vmul.f32 %v5473, %v5477
        %v5479 = vadd.f32 1.0, %v5478
        %v5480 = vmul.f32 %v5471, %v5471
        %v5481 = vmul.f32 %v5480, -0.00019511016
        %v5482 = vadd.f32 %v5481, 0.008332121
        %v5483 = vmul.f32 %v5480, %v5482
        %v5484 = vadd.f32 %v5483, -0.16666654
        %v5485 = vmul.f32 %v5480, %v5484
        %v5486 = vadd.f32 %v5485, 1.0
        %v5487 = vmul.f32 %v5486, %v5471
        %vm5488 = vweird.f32 %v1029
        %v5489 = vand.u32 %v5472, 3
        %vm5490 = vcmp.lt.s32.totalorder %v5489, 2
        %vm5491 = vcmp.eq.s32.totalorder %v5489, 0
        %v5492 = vxor.u32 %v5487, 2147483648
        %v5493 = vsel %vm5491, %v5479, %v5492
        %vm5494 = vcmp.eq.s32.totalorder %v5489, 2
        %v5495 = vxor.u32 %v5479, 2147483648
        %v5496 = vsel %vm5494, %v5495, %v5487
        %v5497 = vsel %vm5490, %v5493, %v5496
        %v5498 = vsel %vm5488, nan, %v5497
        %v5499 = vand.u32 2147483647, %v1030
        %vm5500 = vcmp.le.f32.partialorder %v5499, 0.7853982
        %vm5501 = vcmp.lt.s32.totalorder %v1030, 0
        %v5502 = vand.u32 %v1030, 2139095040
        %v5503 = vshrl.u32 %v5502, 23
        %v5504 = vsub.s32 %v5503, 127
        %v5505 = vand.u32 2147483647, %v1030
        %v5506 = vand.u32 %v5505, 8388607
        %v5507 = vor.u32 %v5506, 8388608
        %v5508 = vsub.s32 0, %v5507
        %v5509 = vadd.s32 %v5504, 1
        %vm5510 = vcmp.gt.s32.totalorder %v5509, 0
        %v5511 = vsel %vm5510, %v5509, 0
        %v5512 = vshrl.u32 %v5511, 5
        %v5513 = vand.u32 %v5511, 31
        %v5514 = vsub.s32 32, %v5513
        %v5515 = vshrl.u32 683565275, %v5514
        %v5516 = vshll.u32 683565275, %v5513
        %v5517 = vshrl.u32 2475754826, %v5514
        %v5518 = vor.u32 %v5516, %v5517
        %v5519 = vshll.u32 2475754826, %v5513
        %v5520 = vshrl.u32 2131351028, %v5514
        %v5521 = vor.u32 %v5519, %v5520
        %v5522 = vshll.u32 2131351028, %v5513
        %v5523 = vshrl.u32 2102212464, %v5514
        %v5524 = vor.u32 %v5522, %v5523
        %v5525 = vshll.u32 2102212464, %v5513
        %v5526 = vshrl.u32 920167782, %v5514
        %v5527 = vor.u32 %v5525, %v5526
        %v5528 = vshll.u32 920167782, %v5513
        %v5529 = vshrl.u32 1326507024, %v5514
        %v5530 = vor.u32 %v5528, %v5529
        %vm5531 = vcmp.lt.s32.totalorder %v5512, 1
        %vm5532 = vcmp.lt.s32.totalorder %v5512, 2
        %vm5533 = vcmp.lt.s32.totalorder %v5512, 3
        %vm5534 = vcmp.lt.s32.totalorder %v5512, 4
        %v5535 = vsel %vm5531, %v5515, %v5518
        %v5536 = vsel %vm5534, %v5524, 2102212464
        %v5537 = vsel %vm5533, %v5521, %v5536
        %v5538 = vsel %vm5532, %v5535, %v5537
        %v5539 = vsel %vm5531, %v5518, %v5521
        %v5540 = vsel %vm5534, %v5527, 920167782
        %v5541 = vsel %vm5533, %v5524, %v5540
        %v5542 = vsel %vm5532, %v5539, %v5541
        %v5543 = vsel %vm5531, %v5521, %v5524
        %v5544 = vsel %vm5534, %v5530, 1326507024
        %v5545 = vsel %vm5533, %v5527, %v5544
        %v5546 = vsel %vm5532, %v5543, %v5545
        %v5547 = vshll.u32 %v5507, 8
        %v5548 = vand.u32 %v5547, 65535
        %v5549 = vshrl.u32 %v5547, 16
        %v5550 = vand.u32 %v5546, 65535
        %v5551 = vshrl.u32 %v5546, 16
        %v5552 = vmul.u32 %v5548, %v5550
        %v5553 = vmul.u32 %v5548, %v5551
        %v5554 = vmul.u32 %v5549, %v5550
        %v5555 = vmul.u32 %v5549, %v5551
        %v5556 = vshll.u32 %v5553, 16
        %v5557 = vshrl.u32 %v5553, 16
        %v5558 = vshll.u32 %v5554, 16
        %v5559 = vshrl.u32 %v5554, 16
        %vm5560 = vc.u32 %v5552, %v5556
        %v5561 = vsel %vm5560, 1, 0
        %v5562 = vadd.s32 %v5552, %v5556
        %v5563 = vadd.s32 %v5555, %v5561
        %vm5564 = vc.u32 %v5562, %v5558
        %v5565 = vsel %vm5564, 1, 0
        %v5566 = vadd.s32 %v5562, %v5558
        %v5567 = vadd.s32 %v5563, %v5565
        %v5568 = vadd.s32 %v5567, %v5557
        %v5569 = vadd.s32 %v5568, %v5559
        %v5570 = vand.u32 %v5547, 65535
        %v5571 = vshrl.u32 %v5547, 16
        %v5572 = vand.u32 %v5542, 65535
        %v5573 = vshrl.u32 %v5542, 16
        %v5574 = vmul.u32 %v5570, %v5572
        %v5575 = vmul.u32 %v5570, %v5573
        %v5576 = vmul.u32 %v5571, %v5572
        %v5577 = vmul.u32 %v5571, %v5573
        %v5578 = vshll.u32 %v5575, 16
        %v5579 = vshrl.u32 %v5575, 16
        %v5580 = vshll.u32 %v5576, 16
        %v5581 = vshrl.u32 %v5576, 16
        %vm5582 = vc.u32 %v5574, %v5578
        %v5583 = vsel %vm5582, 1, 0
        %v5584 = vadd.s32 %v5574, %v5578
        %v5585 = vadd.s32 %v5577, %v5583
        %vm5586 = vc.u32 %v5584, %v5580
        %v5587 = vsel %vm5586, 1, 0
        %v5588 = vadd.s32 %v5584, %v5580
        %v5589 = vadd.s32 %v5585, %v5587
        %v5590 = vadd.s32 %v5589, %v5579
        %v5591 = vadd.s32 %v5590, %v5581
        %v5592 = vmul.u32 %v5547, %v5538
        %v5593 = vadd.s32 %v5569, %v5588
        %vm5594 = vc.u32 %v5569, %v5588
        %v5595 = vadd.s32 %v5591, 1
        %v5596 = vsel %vm5594, %v5595, %v5591
        %v5597 = vadd.s32 %v5592, %v5596
        %v5598 = vadd.s32 %v5597, 536870912
        %v5599 = vshrl.u32 %v5598, 30
        %v5600 = vshll.u32 %v5599, 30
        %v5601 = vsub.s32 %v5597, %v5600
        %vm5602 = vcmp.lt.s32.totalorder %v5601, 0
        %v5603 = vsub.s32 0, %v5601
        %v5604 = vsel %vm5602, %v5603, %v5601
        %v5605 = vclz %v5604
        %v5606 = vsub.s32 %v5605, 2
        %vm5607 = vcmp.gt.s32.totalorder 0, %v5606
        %v5608 = vsel %vm5607, 0, %v5606
        %v5609 = vsub.s32 32, %v5608
        %v5610 = vshll.u32 %v5601, %v5608
        %v5611 = vshrl.u32 %v5593, %v5609
        %v5612 = vor.u32 %v5610, %v5611
        %v5613 = vsub.s32 4294967266, %v5608
        %v5614 = vadd.s32 %v5613, 127
        %v5615 = vshll.u32 %v5614, 23
        %v5616 = vor.u32 4788187, %v5615
        %v5617 = vand.u32 2147483647, %v5616
        %v5619 = vcvt.s32.f32 %v5612
        %v5620 = vmul.f32 %v5619, %v5617
        %v5621 = vxor.u32 %v5620, 2147483648
        %v5622 = vsel %vm5501, %v5621, %v5620
        %v5623 = vsub.s32 4, %v5599
        %v5624 = vsel %vm5501, %v5623, %v5599
        %v5625 = vsel %vm5500, %v1030, %v5622
        %v5626 = vsel %vm5500, 0, %v5624
        %v5627 = vmul.f32 %v5625, %v5625
        %v5628 = vmul.f32 %v5627, -0.001358992
        %v5629 = vadd.f32 %v5628, 0.041655596
        %v5630 = vmul.f32 %v5627, %v5629
        %v5631 = vadd.f32 %v5630, -0.4999988
        %v5632 = vmul.f32 %v5627, %v5631
        %v5633 = vadd.f32 1.0, %v5632
        %v5634 = vmul.f32 %v5625, %v5625
        %v5635 = vmul.f32 %v5634, -0.00019511016
        %v5636 = vadd.f32 %v5635, 0.008332121
        %v5637 = vmul.f32 %v5634, %v5636
        %v5638 = vadd.f32 %v5637, -0.16666654
        %v5639 = vmul.f32 %v5634, %v5638
        %v5640 = vadd.f32 %v5639, 1.0
        %v5641 = vmul.f32 %v5640, %v5625
        %vm5642 = vweird.f32 %v1030
        %v5643 = vand.u32 %v5626, 3
        %vm5644 = vcmp.lt.s32.totalorder %v5643, 2
        %vm5645 = vcmp.eq.s32.totalorder %v5643, 0
        %v5646 = vxor.u32 %v5641, 2147483648
        %v5647 = vsel %vm5645, %v5633, %v5646
        %vm5648 = vcmp.eq.s32.totalorder %v5643, 2
        %v5649 = vxor.u32 %v5633, 2147483648
        %v5650 = vsel %vm5648, %v5649, %v5641
        %v5651 = vsel %vm5644, %v5647, %v5650
        %v5652 = vsel %vm5642, nan, %v5651
        %v5653 = vand.u32 2147483647, %v1031
        %vm5654 = vcmp.le.f32.partialorder %v5653, 0.7853982
        %vm5655 = vcmp.lt.s32.totalorder %v1031, 0
        %v5656 = vand.u32 %v1031, 2139095040
        %v5657 = vshrl.u32 %v5656, 23
        %v5658 = vsub.s32 %v5657, 127
        %v5659 = vand.u32 2147483647, %v1031
        %v5660 = vand.u32 %v5659, 8388607
        %v5661 = vor.u32 %v5660, 8388608
        %v5662 = vsub.s32 0, %v5661
        %v5663 = vadd.s32 %v5658, 1
        %vm5664 = vcmp.gt.s32.totalorder %v5663, 0
        %v5665 = vsel %vm5664, %v5663, 0
        %v5666 = vshrl.u32 %v5665, 5
        %v5667 = vand.u32 %v5665, 31
        %v5668 = vsub.s32 32, %v5667
        %v5669 = vshrl.u32 683565275, %v5668
        %v5670 = vshll.u32 683565275, %v5667
        %v5671 = vshrl.u32 2475754826, %v5668
        %v5672 = vor.u32 %v5670, %v5671
        %v5673 = vshll.u32 2475754826, %v5667
        %v5674 = vshrl.u32 2131351028, %v5668
        %v5675 = vor.u32 %v5673, %v5674
        %v5676 = vshll.u32 2131351028, %v5667
        %v5677 = vshrl.u32 2102212464, %v5668
        %v5678 = vor.u32 %v5676, %v5677
        %v5679 = vshll.u32 2102212464, %v5667
        %v5680 = vshrl.u32 920167782, %v5668
        %v5681 = vor.u32 %v5679, %v5680
        %v5682 = vshll.u32 920167782, %v5667
        %v5683 = vshrl.u32 1326507024, %v5668
        %v5684 = vor.u32 %v5682, %v5683
        %vm5685 = vcmp.lt.s32.totalorder %v5666, 1
        %vm5686 = vcmp.lt.s32.totalorder %v5666, 2
        %vm5687 = vcmp.lt.s32.totalorder %v5666, 3
        %vm5688 = vcmp.lt.s32.totalorder %v5666, 4
        %v5689 = vsel %vm5685, %v5669, %v5672
        %v5690 = vsel %vm5688, %v5678, 2102212464
        %v5691 = vsel %vm5687, %v5675, %v5690
        %v5692 = vsel %vm5686, %v5689, %v5691
        %v5693 = vsel %vm5685, %v5672, %v5675
        %v5694 = vsel %vm5688, %v5681, 920167782
        %v5695 = vsel %vm5687, %v5678, %v5694
        %v5696 = vsel %vm5686, %v5693, %v5695
        %v5697 = vsel %vm5685, %v5675, %v5678
        %v5698 = vsel %vm5688, %v5684, 1326507024
        %v5699 = vsel %vm5687, %v5681, %v5698
        %v5700 = vsel %vm5686, %v5697, %v5699
        %v5701 = vshll.u32 %v5661, 8
        %v5702 = vand.u32 %v5701, 65535
        %v5703 = vshrl.u32 %v5701, 16
        %v5704 = vand.u32 %v5700, 65535
        %v5705 = vshrl.u32 %v5700, 16
        %v5706 = vmul.u32 %v5702, %v5704
        %v5707 = vmul.u32 %v5702, %v5705
        %v5708 = vmul.u32 %v5703, %v5704
        %v5709 = vmul.u32 %v5703, %v5705
        %v5710 = vshll.u32 %v5707, 16
        %v5711 = vshrl.u32 %v5707, 16
        %v5712 = vshll.u32 %v5708, 16
        %v5713 = vshrl.u32 %v5708, 16
        %vm5714 = vc.u32 %v5706, %v5710
        %v5715 = vsel %vm5714, 1, 0
        %v5716 = vadd.s32 %v5706, %v5710
        %v5717 = vadd.s32 %v5709, %v5715
        %vm5718 = vc.u32 %v5716, %v5712
        %v5719 = vsel %vm5718, 1, 0
        %v5720 = vadd.s32 %v5716, %v5712
        %v5721 = vadd.s32 %v5717, %v5719
        %v5722 = vadd.s32 %v5721, %v5711
        %v5723 = vadd.s32 %v5722, %v5713
        %v5724 = vand.u32 %v5701, 65535
        %v5725 = vshrl.u32 %v5701, 16
        %v5726 = vand.u32 %v5696, 65535
        %v5727 = vshrl.u32 %v5696, 16
        %v5728 = vmul.u32 %v5724, %v5726
        %v5729 = vmul.u32 %v5724, %v5727
        %v5730 = vmul.u32 %v5725, %v5726
        %v5731 = vmul.u32 %v5725, %v5727
        %v5732 = vshll.u32 %v5729, 16
        %v5733 = vshrl.u32 %v5729, 16
        %v5734 = vshll.u32 %v5730, 16
        %v5735 = vshrl.u32 %v5730, 16
        %vm5736 = vc.u32 %v5728, %v5732
        %v5737 = vsel %vm5736, 1, 0
        %v5738 = vadd.s32 %v5728, %v5732
        %v5739 = vadd.s32 %v5731, %v5737
        %vm5740 = vc.u32 %v5738, %v5734
        %v5741 = vsel %vm5740, 1, 0
        %v5742 = vadd.s32 %v5738, %v5734
        %v5743 = vadd.s32 %v5739, %v5741
        %v5744 = vadd.s32 %v5743, %v5733
        %v5745 = vadd.s32 %v5744, %v5735
        %v5746 = vmul.u32 %v5701, %v5692
        %v5747 = vadd.s32 %v5723, %v5742
        %vm5748 = vc.u32 %v5723, %v5742
        %v5749 = vadd.s32 %v5745, 1
        %v5750 = vsel %vm5748, %v5749, %v5745
        %v5751 = vadd.s32 %v5746, %v5750
        %v5752 = vadd.s32 %v5751, 536870912
        %v5753 = vshrl.u32 %v5752, 30
        %v5754 = vshll.u32 %v5753, 30
        %v5755 = vsub.s32 %v5751, %v5754
        %vm5756 = vcmp.lt.s32.totalorder %v5755, 0
        %v5757 = vsub.s32 0, %v5755
        %v5758 = vsel %vm5756, %v5757, %v5755
        %v5759 = vclz %v5758
        %v5760 = vsub.s32 %v5759, 2
        %vm5761 = vcmp.gt.s32.totalorder 0, %v5760
        %v5762 = vsel %vm5761, 0, %v5760
        %v5763 = vsub.s32 32, %v5762
        %v5764 = vshll.u32 %v5755, %v5762
        %v5765 = vshrl.u32 %v5747, %v5763
        %v5766 = vor.u32 %v5764, %v5765
        %v5767 = vsub.s32 4294967266, %v5762
        %v5768 = vadd.s32 %v5767, 127
        %v5769 = vshll.u32 %v5768, 23
        %v5770 = vor.u32 4788187, %v5769
        %v5771 = vand.u32 2147483647, %v5770
        %v5773 = vcvt.s32.f32 %v5766
        %v5774 = vmul.f32 %v5773, %v5771
        %v5775 = vxor.u32 %v5774, 2147483648
        %v5776 = vsel %vm5655, %v5775, %v5774
        %v5777 = vsub.s32 4, %v5753
        %v5778 = vsel %vm5655, %v5777, %v5753
        %v5779 = vsel %vm5654, %v1031, %v5776
        %v5780 = vsel %vm5654, 0, %v5778
        %v5781 = vmul.f32 %v5779, %v5779
        %v5782 = vmul.f32 %v5781, -0.001358992
        %v5783 = vadd.f32 %v5782, 0.041655596
        %v5784 = vmul.f32 %v5781, %v5783
        %v5785 = vadd.f32 %v5784, -0.4999988
        %v5786 = vmul.f32 %v5781, %v5785
        %v5787 = vadd.f32 1.0, %v5786
        %v5788 = vmul.f32 %v5779, %v5779
        %v5789 = vmul.f32 %v5788, -0.00019511016
        %v5790 = vadd.f32 %v5789, 0.008332121
        %v5791 = vmul.f32 %v5788, %v5790
        %v5792 = vadd.f32 %v5791, -0.16666654
        %v5793 = vmul.f32 %v5788, %v5792
        %v5794 = vadd.f32 %v5793, 1.0
        %v5795 = vmul.f32 %v5794, %v5779
        %vm5796 = vweird.f32 %v1031
        %v5797 = vand.u32 %v5780, 3
        %vm5798 = vcmp.lt.s32.totalorder %v5797, 2
        %vm5799 = vcmp.eq.s32.totalorder %v5797, 0
        %v5800 = vxor.u32 %v5795, 2147483648
        %v5801 = vsel %vm5799, %v5787, %v5800
        %vm5802 = vcmp.eq.s32.totalorder %v5797, 2
        %v5803 = vxor.u32 %v5787, 2147483648
        %v5804 = vsel %vm5802, %v5803, %v5795
        %v5805 = vsel %vm5798, %v5801, %v5804
        %v5806 = vsel %vm5796, nan, %v5805
        %v5807 = vand.u32 2147483647, %v1032
        %vm5808 = vcmp.le.f32.partialorder %v5807, 0.7853982
        %vm5809 = vcmp.lt.s32.totalorder %v1032, 0
        %v5810 = vand.u32 %v1032, 2139095040
        %v5811 = vshrl.u32 %v5810, 23
        %v5812 = vsub.s32 %v5811, 127
        %v5813 = vand.u32 2147483647, %v1032
        %v5814 = vand.u32 %v5813, 8388607
        %v5815 = vor.u32 %v5814, 8388608
        %v5816 = vsub.s32 0, %v5815
        %v5817 = vadd.s32 %v5812, 1
        %vm5818 = vcmp.gt.s32.totalorder %v5817, 0
        %v5819 = vsel %vm5818, %v5817, 0
        %v5820 = vshrl.u32 %v5819, 5
        %v5821 = vand.u32 %v5819, 31
        %v5822 = vsub.s32 32, %v5821
        %v5823 = vshrl.u32 683565275, %v5822
        %v5824 = vshll.u32 683565275, %v5821
        %v5825 = vshrl.u32 2475754826, %v5822
        %v5826 = vor.u32 %v5824, %v5825
        %v5827 = vshll.u32 2475754826, %v5821
        %v5828 = vshrl.u32 2131351028, %v5822
        %v5829 = vor.u32 %v5827, %v5828
        %v5830 = vshll.u32 2131351028, %v5821
        %v5831 = vshrl.u32 2102212464, %v5822
        %v5832 = vor.u32 %v5830, %v5831
        %v5833 = vshll.u32 2102212464, %v5821
        %v5834 = vshrl.u32 920167782, %v5822
        %v5835 = vor.u32 %v5833, %v5834
        %v5836 = vshll.u32 920167782, %v5821
        %v5837 = vshrl.u32 1326507024, %v5822
        %v5838 = vor.u32 %v5836, %v5837
        %vm5839 = vcmp.lt.s32.totalorder %v5820, 1
        %vm5840 = vcmp.lt.s32.totalorder %v5820, 2
        %vm5841 = vcmp.lt.s32.totalorder %v5820, 3
        %vm5842 = vcmp.lt.s32.totalorder %v5820, 4
        %v5843 = vsel %vm5839, %v5823, %v5826
        %v5844 = vsel %vm5842, %v5832, 2102212464
        %v5845 = vsel %vm5841, %v5829, %v5844
        %v5846 = vsel %vm5840, %v5843, %v5845
        %v5847 = vsel %vm5839, %v5826, %v5829
        %v5848 = vsel %vm5842, %v5835, 920167782
        %v5849 = vsel %vm5841, %v5832, %v5848
        %v5850 = vsel %vm5840, %v5847, %v5849
        %v5851 = vsel %vm5839, %v5829, %v5832
        %v5852 = vsel %vm5842, %v5838, 1326507024
        %v5853 = vsel %vm5841, %v5835, %v5852
        %v5854 = vsel %vm5840, %v5851, %v5853
        %v5855 = vshll.u32 %v5815, 8
        %v5856 = vand.u32 %v5855, 65535
        %v5857 = vshrl.u32 %v5855, 16
        %v5858 = vand.u32 %v5854, 65535
        %v5859 = vshrl.u32 %v5854, 16
        %v5860 = vmul.u32 %v5856, %v5858
        %v5861 = vmul.u32 %v5856, %v5859
        %v5862 = vmul.u32 %v5857, %v5858
        %v5863 = vmul.u32 %v5857, %v5859
        %v5864 = vshll.u32 %v5861, 16
        %v5865 = vshrl.u32 %v5861, 16
        %v5866 = vshll.u32 %v5862, 16
        %v5867 = vshrl.u32 %v5862, 16
        %vm5868 = vc.u32 %v5860, %v5864
        %v5869 = vsel %vm5868, 1, 0
        %v5870 = vadd.s32 %v5860, %v5864
        %v5871 = vadd.s32 %v5863, %v5869
        %vm5872 = vc.u32 %v5870, %v5866
        %v5873 = vsel %vm5872, 1, 0
        %v5874 = vadd.s32 %v5870, %v5866
        %v5875 = vadd.s32 %v5871, %v5873
        %v5876 = vadd.s32 %v5875, %v5865
        %v5877 = vadd.s32 %v5876, %v5867
        %v5878 = vand.u32 %v5855, 65535
        %v5879 = vshrl.u32 %v5855, 16
        %v5880 = vand.u32 %v5850, 65535
        %v5881 = vshrl.u32 %v5850, 16
        %v5882 = vmul.u32 %v5878, %v5880
        %v5883 = vmul.u32 %v5878, %v5881
        %v5884 = vmul.u32 %v5879, %v5880
        %v5885 = vmul.u32 %v5879, %v5881
        %v5886 = vshll.u32 %v5883, 16
        %v5887 = vshrl.u32 %v5883, 16
        %v5888 = vshll.u32 %v5884, 16
        %v5889 = vshrl.u32 %v5884, 16
        %vm5890 = vc.u32 %v5882, %v5886
        %v5891 = vsel %vm5890, 1, 0
        %v5892 = vadd.s32 %v5882, %v5886
        %v5893 = vadd.s32 %v5885, %v5891
        %vm5894 = vc.u32 %v5892, %v5888
        %v5895 = vsel %vm5894, 1, 0
        %v5896 = vadd.s32 %v5892, %v5888
        %v5897 = vadd.s32 %v5893, %v5895
        %v5898 = vadd.s32 %v5897, %v5887
        %v5899 = vadd.s32 %v5898, %v5889
        %v5900 = vmul.u32 %v5855, %v5846
        %v5901 = vadd.s32 %v5877, %v5896
        %vm5902 = vc.u32 %v5877, %v5896
        %v5903 = vadd.s32 %v5899, 1
        %v5904 = vsel %vm5902, %v5903, %v5899
        %v5905 = vadd.s32 %v5900, %v5904
        %v5906 = vadd.s32 %v5905, 536870912
        %v5907 = vshrl.u32 %v5906, 30
        %v5908 = vshll.u32 %v5907, 30
        %v5909 = vsub.s32 %v5905, %v5908
        %vm5910 = vcmp.lt.s32.totalorder %v5909, 0
        %v5911 = vsub.s32 0, %v5909
        %v5912 = vsel %vm5910, %v5911, %v5909
        %v5913 = vclz %v5912
        %v5914 = vsub.s32 %v5913, 2
        %vm5915 = vcmp.gt.s32.totalorder 0, %v5914
        %v5916 = vsel %vm5915, 0, %v5914
        %v5917 = vsub.s32 32, %v5916
        %v5918 = vshll.u32 %v5909, %v5916
        %v5919 = vshrl.u32 %v5901, %v5917
        %v5920 = vor.u32 %v5918, %v5919
        %v5921 = vsub.s32 4294967266, %v5916
        %v5922 = vadd.s32 %v5921, 127
        %v5923 = vshll.u32 %v5922, 23
        %v5924 = vor.u32 4788187, %v5923
        %v5925 = vand.u32 2147483647, %v5924
        %v5927 = vcvt.s32.f32 %v5920
        %v5928 = vmul.f32 %v5927, %v5925
        %v5929 = vxor.u32 %v5928, 2147483648
        %v5930 = vsel %vm5809, %v5929, %v5928
        %v5931 = vsub.s32 4, %v5907
        %v5932 = vsel %vm5809, %v5931, %v5907
        %v5933 = vsel %vm5808, %v1032, %v5930
        %v5934 = vsel %vm5808, 0, %v5932
        %v5935 = vmul.f32 %v5933, %v5933
        %v5936 = vmul.f32 %v5935, -0.001358992
        %v5937 = vadd.f32 %v5936, 0.041655596
        %v5938 = vmul.f32 %v5935, %v5937
        %v5939 = vadd.f32 %v5938, -0.4999988
        %v5940 = vmul.f32 %v5935, %v5939
        %v5941 = vadd.f32 1.0, %v5940
        %v5942 = vmul.f32 %v5933, %v5933
        %v5943 = vmul.f32 %v5942, -0.00019511016
        %v5944 = vadd.f32 %v5943, 0.008332121
        %v5945 = vmul.f32 %v5942, %v5944
        %v5946 = vadd.f32 %v5945, -0.16666654
        %v5947 = vmul.f32 %v5942, %v5946
        %v5948 = vadd.f32 %v5947, 1.0
        %v5949 = vmul.f32 %v5948, %v5933
        %vm5950 = vweird.f32 %v1032
        %v5951 = vand.u32 %v5934, 3
        %vm5952 = vcmp.lt.s32.totalorder %v5951, 2
        %vm5953 = vcmp.eq.s32.totalorder %v5951, 0
        %v5954 = vxor.u32 %v5949, 2147483648
        %v5955 = vsel %vm5953, %v5941, %v5954
        %vm5956 = vcmp.eq.s32.totalorder %v5951, 2
        %v5957 = vxor.u32 %v5941, 2147483648
        %v5958 = vsel %vm5956, %v5957, %v5949
        %v5959 = vsel %vm5952, %v5955, %v5958
        %v5960 = vsel %vm5950, nan, %v5959
        %v5961 = vmul.f32 %v725, %v1186
        %v5962 = vmul.f32 %v727, %v1340
        %v5963 = vmul.f32 %v730, %v1494
        %v5964 = vmul.f32 %v732, %v1648
        %v5965 = vmul.f32 %v735, %v1802
        %v5966 = vmul.f32 %v737, %v1956
        %v5967 = vmul.f32 %v740, %v2110
        %v5968 = vmul.f32 %v742, %v2264
        %v5969 = vmul.f32 %v745, %v2418
        %v5970 = vmul.f32 %v747, %v2572
        %v5971 = vmul.f32 %v750, %v2726
        %v5972 = vmul.f32 %v752, %v2880
        %v5973 = vmul.f32 %v755, %v3034
        %v5974 = vmul.f32 %v757, %v3188
        %v5975 = vmul.f32 %v760, %v3342
        %v5976 = vmul.f32 %v762, %v3496
        %v5977 = vmul.f32 %v765, %v3650
        %v5978 = vmul.f32 %v767, %v3804
        %v5979 = vmul.f32 %v770, %v3958
        %v5980 = vmul.f32 %v772, %v4112
        %v5981 = vmul.f32 %v775, %v4266
        %v5982 = vmul.f32 %v777, %v4420
        %v5983 = vmul.f32 %v780, %v4574
        %v5984 = vmul.f32 %v782, %v4728
        %v5985 = vmul.f32 %v785, %v4882
        %v5986 = vmul.f32 %v787, %v5036
        %v5987 = vmul.f32 %v790, %v5190
        %v5988 = vmul.f32 %v792, %v5344
        %v5989 = vmul.f32 %v795, %v5498
        %v5990 = vmul.f32 %v797, %v5652
        %v5991 = vmul.f32 %v800, %v5806
        %v5992 = vmul.f32 %v802, %v5960
        %v5993 = vlaneseq
        %v5994 = vshrl.u32 %v5993, 7
        %v5995 = vadd.s32 %v5994, 8
        %v5996 = vadd.s32 %v5994, 16
        %v5997 = vadd.s32 %v5994, 24
        %v5998 = vadd.s32 %v5994, 32
        %v5999 = vadd.s32 %v5994, 40
        %v6000 = vadd.s32 %v5994, 48
        %v6001 = vadd.s32 %v5994, 56
        %v6002 = vadd.s32 %v5994, 64
        %v6003 = vadd.s32 %v5994, 72
        %v6004 = vadd.s32 %v5994, 80
        %v6005 = vadd.s32 %v5994, 88
        %v6006 = vadd.s32 %v5994, 96
        %v6007 = vadd.s32 %v5994, 104
        %v6008 = vadd.s32 %v5994, 112
        %v6009 = vadd.s32 %v5994, 120
        %v6010 = vadd.s32 %v5994, 128
        %v6011 = vadd.s32 %v5994, 136
        %v6012 = vadd.s32 %v5994, 144
        %v6013 = vadd.s32 %v5994, 152
        %v6014 = vadd.s32 %v5994, 160
        %v6015 = vadd.s32 %v5994, 168
        %v6016 = vadd.s32 %v5994, 176
        %v6017 = vadd.s32 %v5994, 184
        %v6018 = vadd.s32 %v5994, 192
        %v6019 = vadd.s32 %v5994, 200
        %v6020 = vadd.s32 %v5994, 208
        %v6021 = vadd.s32 %v5994, 216
        %v6022 = vadd.s32 %v5994, 224
        %v6023 = vadd.s32 %v5994, 232
        %v6024 = vadd.s32 %v5994, 240
        %v6025 = vadd.s32 %v5994, 248
        %vm6026 = vcmp.lt.s32.totalorder %v5994, 0
        %v6027 = vsub.s32 0, %v5994
        %v6028 = vsel %vm6026, %v6027, %v5994
        %v6029 = vshrl.u32 %v6028, 4
        %v6030 = vand.u32 %v6028, 15
        %v6031 = vsub.s32 0, %v6030
        %v6032 = vsel %vm6026, %v6031, %v6030
        %vm6033 = vcmp.lt.s32.totalorder %v5995, 0
        %v6034 = vsub.s32 0, %v5995
        %v6035 = vsel %vm6033, %v6034, %v5995
        %v6036 = vshrl.u32 %v6035, 4
        %v6037 = vand.u32 %v6035, 15
        %v6038 = vsub.s32 0, %v6037
        %v6039 = vsel %vm6033, %v6038, %v6037
        %vm6040 = vcmp.lt.s32.totalorder %v5996, 0
        %v6041 = vsub.s32 0, %v5996
        %v6042 = vsel %vm6040, %v6041, %v5996
        %v6043 = vshrl.u32 %v6042, 4
        %v6044 = vand.u32 %v6042, 15
        %v6045 = vsub.s32 0, %v6044
        %v6046 = vsel %vm6040, %v6045, %v6044
        %vm6047 = vcmp.lt.s32.totalorder %v5997, 0
        %v6048 = vsub.s32 0, %v5997
        %v6049 = vsel %vm6047, %v6048, %v5997
        %v6050 = vshrl.u32 %v6049, 4
        %v6051 = vand.u32 %v6049, 15
        %v6052 = vsub.s32 0, %v6051
        %v6053 = vsel %vm6047, %v6052, %v6051
        %vm6054 = vcmp.lt.s32.totalorder %v5998, 0
        %v6055 = vsub.s32 0, %v5998
        %v6056 = vsel %vm6054, %v6055, %v5998
        %v6057 = vshrl.u32 %v6056, 4
        %v6058 = vand.u32 %v6056, 15
        %v6059 = vsub.s32 0, %v6058
        %v6060 = vsel %vm6054, %v6059, %v6058
        %vm6061 = vcmp.lt.s32.totalorder %v5999, 0
        %v6062 = vsub.s32 0, %v5999
        %v6063 = vsel %vm6061, %v6062, %v5999
        %v6064 = vshrl.u32 %v6063, 4
        %v6065 = vand.u32 %v6063, 15
        %v6066 = vsub.s32 0, %v6065
        %v6067 = vsel %vm6061, %v6066, %v6065
        %vm6068 = vcmp.lt.s32.totalorder %v6000, 0
        %v6069 = vsub.s32 0, %v6000
        %v6070 = vsel %vm6068, %v6069, %v6000
        %v6071 = vshrl.u32 %v6070, 4
        %v6072 = vand.u32 %v6070, 15
        %v6073 = vsub.s32 0, %v6072
        %v6074 = vsel %vm6068, %v6073, %v6072
        %vm6075 = vcmp.lt.s32.totalorder %v6001, 0
        %v6076 = vsub.s32 0, %v6001
        %v6077 = vsel %vm6075, %v6076, %v6001
        %v6078 = vshrl.u32 %v6077, 4
        %v6079 = vand.u32 %v6077, 15
        %v6080 = vsub.s32 0, %v6079
        %v6081 = vsel %vm6075, %v6080, %v6079
        %vm6082 = vcmp.lt.s32.totalorder %v6002, 0
        %v6083 = vsub.s32 0, %v6002
        %v6084 = vsel %vm6082, %v6083, %v6002
        %v6085 = vshrl.u32 %v6084, 4
        %v6086 = vand.u32 %v6084, 15
        %v6087 = vsub.s32 0, %v6086
        %v6088 = vsel %vm6082, %v6087, %v6086
        %vm6089 = vcmp.lt.s32.totalorder %v6003, 0
        %v6090 = vsub.s32 0, %v6003
        %v6091 = vsel %vm6089, %v6090, %v6003
        %v6092 = vshrl.u32 %v6091, 4
        %v6093 = vand.u32 %v6091, 15
        %v6094 = vsub.s32 0, %v6093
        %v6095 = vsel %vm6089, %v6094, %v6093
        %vm6096 = vcmp.lt.s32.totalorder %v6004, 0
        %v6097 = vsub.s32 0, %v6004
        %v6098 = vsel %vm6096, %v6097, %v6004
        %v6099 = vshrl.u32 %v6098, 4
        %v6100 = vand.u32 %v6098, 15
        %v6101 = vsub.s32 0, %v6100
        %v6102 = vsel %vm6096, %v6101, %v6100
        %vm6103 = vcmp.lt.s32.totalorder %v6005, 0
        %v6104 = vsub.s32 0, %v6005
        %v6105 = vsel %vm6103, %v6104, %v6005
        %v6106 = vshrl.u32 %v6105, 4
        %v6107 = vand.u32 %v6105, 15
        %v6108 = vsub.s32 0, %v6107
        %v6109 = vsel %vm6103, %v6108, %v6107
        %vm6110 = vcmp.lt.s32.totalorder %v6006, 0
        %v6111 = vsub.s32 0, %v6006
        %v6112 = vsel %vm6110, %v6111, %v6006
        %v6113 = vshrl.u32 %v6112, 4
        %v6114 = vand.u32 %v6112, 15
        %v6115 = vsub.s32 0, %v6114
        %v6116 = vsel %vm6110, %v6115, %v6114
        %vm6117 = vcmp.lt.s32.totalorder %v6007, 0
        %v6118 = vsub.s32 0, %v6007
        %v6119 = vsel %vm6117, %v6118, %v6007
        %v6120 = vshrl.u32 %v6119, 4
        %v6121 = vand.u32 %v6119, 15
        %v6122 = vsub.s32 0, %v6121
        %v6123 = vsel %vm6117, %v6122, %v6121
        %vm6124 = vcmp.lt.s32.totalorder %v6008, 0
        %v6125 = vsub.s32 0, %v6008
        %v6126 = vsel %vm6124, %v6125, %v6008
        %v6127 = vshrl.u32 %v6126, 4
        %v6128 = vand.u32 %v6126, 15
        %v6129 = vsub.s32 0, %v6128
        %v6130 = vsel %vm6124, %v6129, %v6128
        %vm6131 = vcmp.lt.s32.totalorder %v6009, 0
        %v6132 = vsub.s32 0, %v6009
        %v6133 = vsel %vm6131, %v6132, %v6009
        %v6134 = vshrl.u32 %v6133, 4
        %v6135 = vand.u32 %v6133, 15
        %v6136 = vsub.s32 0, %v6135
        %v6137 = vsel %vm6131, %v6136, %v6135
        %vm6138 = vcmp.lt.s32.totalorder %v6010, 0
        %v6139 = vsub.s32 0, %v6010
        %v6140 = vsel %vm6138, %v6139, %v6010
        %v6141 = vshrl.u32 %v6140, 4
        %v6142 = vand.u32 %v6140, 15
        %v6143 = vsub.s32 0, %v6142
        %v6144 = vsel %vm6138, %v6143, %v6142
        %vm6145 = vcmp.lt.s32.totalorder %v6011, 0
        %v6146 = vsub.s32 0, %v6011
        %v6147 = vsel %vm6145, %v6146, %v6011
        %v6148 = vshrl.u32 %v6147, 4
        %v6149 = vand.u32 %v6147, 15
        %v6150 = vsub.s32 0, %v6149
        %v6151 = vsel %vm6145, %v6150, %v6149
        %vm6152 = vcmp.lt.s32.totalorder %v6012, 0
        %v6153 = vsub.s32 0, %v6012
        %v6154 = vsel %vm6152, %v6153, %v6012
        %v6155 = vshrl.u32 %v6154, 4
        %v6156 = vand.u32 %v6154, 15
        %v6157 = vsub.s32 0, %v6156
        %v6158 = vsel %vm6152, %v6157, %v6156
        %vm6159 = vcmp.lt.s32.totalorder %v6013, 0
        %v6160 = vsub.s32 0, %v6013
        %v6161 = vsel %vm6159, %v6160, %v6013
        %v6162 = vshrl.u32 %v6161, 4
        %v6163 = vand.u32 %v6161, 15
        %v6164 = vsub.s32 0, %v6163
        %v6165 = vsel %vm6159, %v6164, %v6163
        %vm6166 = vcmp.lt.s32.totalorder %v6014, 0
        %v6167 = vsub.s32 0, %v6014
        %v6168 = vsel %vm6166, %v6167, %v6014
        %v6169 = vshrl.u32 %v6168, 4
        %v6170 = vand.u32 %v6168, 15
        %v6171 = vsub.s32 0, %v6170
        %v6172 = vsel %vm6166, %v6171, %v6170
        %vm6173 = vcmp.lt.s32.totalorder %v6015, 0
        %v6174 = vsub.s32 0, %v6015
        %v6175 = vsel %vm6173, %v6174, %v6015
        %v6176 = vshrl.u32 %v6175, 4
        %v6177 = vand.u32 %v6175, 15
        %v6178 = vsub.s32 0, %v6177
        %v6179 = vsel %vm6173, %v6178, %v6177
        %vm6180 = vcmp.lt.s32.totalorder %v6016, 0
        %v6181 = vsub.s32 0, %v6016
        %v6182 = vsel %vm6180, %v6181, %v6016
        %v6183 = vshrl.u32 %v6182, 4
        %v6184 = vand.u32 %v6182, 15
        %v6185 = vsub.s32 0, %v6184
        %v6186 = vsel %vm6180, %v6185, %v6184
        %vm6187 = vcmp.lt.s32.totalorder %v6017, 0
        %v6188 = vsub.s32 0, %v6017
        %v6189 = vsel %vm6187, %v6188, %v6017
        %v6190 = vshrl.u32 %v6189, 4
        %v6191 = vand.u32 %v6189, 15
        %v6192 = vsub.s32 0, %v6191
        %v6193 = vsel %vm6187, %v6192, %v6191
        %vm6194 = vcmp.lt.s32.totalorder %v6018, 0
        %v6195 = vsub.s32 0, %v6018
        %v6196 = vsel %vm6194, %v6195, %v6018
        %v6197 = vshrl.u32 %v6196, 4
        %v6198 = vand.u32 %v6196, 15
        %v6199 = vsub.s32 0, %v6198
        %v6200 = vsel %vm6194, %v6199, %v6198
        %vm6201 = vcmp.lt.s32.totalorder %v6019, 0
        %v6202 = vsub.s32 0, %v6019
        %v6203 = vsel %vm6201, %v6202, %v6019
        %v6204 = vshrl.u32 %v6203, 4
        %v6205 = vand.u32 %v6203, 15
        %v6206 = vsub.s32 0, %v6205
        %v6207 = vsel %vm6201, %v6206, %v6205
        %vm6208 = vcmp.lt.s32.totalorder %v6020, 0
        %v6209 = vsub.s32 0, %v6020
        %v6210 = vsel %vm6208, %v6209, %v6020
        %v6211 = vshrl.u32 %v6210, 4
        %v6212 = vand.u32 %v6210, 15
        %v6213 = vsub.s32 0, %v6212
        %v6214 = vsel %vm6208, %v6213, %v6212
        %vm6215 = vcmp.lt.s32.totalorder %v6021, 0
        %v6216 = vsub.s32 0, %v6021
        %v6217 = vsel %vm6215, %v6216, %v6021
        %v6218 = vshrl.u32 %v6217, 4
        %v6219 = vand.u32 %v6217, 15
        %v6220 = vsub.s32 0, %v6219
        %v6221 = vsel %vm6215, %v6220, %v6219
        %vm6222 = vcmp.lt.s32.totalorder %v6022, 0
        %v6223 = vsub.s32 0, %v6022
        %v6224 = vsel %vm6222, %v6223, %v6022
        %v6225 = vshrl.u32 %v6224, 4
        %v6226 = vand.u32 %v6224, 15
        %v6227 = vsub.s32 0, %v6226
        %v6228 = vsel %vm6222, %v6227, %v6226
        %vm6229 = vcmp.lt.s32.totalorder %v6023, 0
        %v6230 = vsub.s32 0, %v6023
        %v6231 = vsel %vm6229, %v6230, %v6023
        %v6232 = vshrl.u32 %v6231, 4
        %v6233 = vand.u32 %v6231, 15
        %v6234 = vsub.s32 0, %v6233
        %v6235 = vsel %vm6229, %v6234, %v6233
        %vm6236 = vcmp.lt.s32.totalorder %v6024, 0
        %v6237 = vsub.s32 0, %v6024
        %v6238 = vsel %vm6236, %v6237, %v6024
        %v6239 = vshrl.u32 %v6238, 4
        %v6240 = vand.u32 %v6238, 15
        %v6241 = vsub.s32 0, %v6240
        %v6242 = vsel %vm6236, %v6241, %v6240
        %vm6243 = vcmp.lt.s32.totalorder %v6025, 0
        %v6244 = vsub.s32 0, %v6025
        %v6245 = vsel %vm6243, %v6244, %v6025
        %v6246 = vshrl.u32 %v6245, 4
        %v6247 = vand.u32 %v6245, 15
        %v6248 = vsub.s32 0, %v6247
        %v6249 = vsel %vm6243, %v6248, %v6247
        %vm6250 = vcmp.ne.s32.totalorder %v6032, 0
        %vm6251 = vcmp.ne.s32.totalorder %v6039, 0
        %vm6252 = vcmp.ne.s32.totalorder %v6046, 0
        %vm6253 = vcmp.ne.s32.totalorder %v6053, 0
        %vm6254 = vcmp.ne.s32.totalorder %v6060, 0
        %vm6255 = vcmp.ne.s32.totalorder %v6067, 0
        %vm6256 = vcmp.ne.s32.totalorder %v6074, 0
        %vm6257 = vcmp.ne.s32.totalorder %v6081, 0
        %vm6258 = vcmp.ne.s32.totalorder %v6088, 0
        %vm6259 = vcmp.ne.s32.totalorder %v6095, 0
        %vm6260 = vcmp.ne.s32.totalorder %v6102, 0
        %vm6261 = vcmp.ne.s32.totalorder %v6109, 0
        %vm6262 = vcmp.ne.s32.totalorder %v6116, 0
        %vm6263 = vcmp.ne.s32.totalorder %v6123, 0
        %vm6264 = vcmp.ne.s32.totalorder %v6130, 0
        %vm6265 = vcmp.ne.s32.totalorder %v6137, 0
        %vm6266 = vcmp.ne.s32.totalorder %v6144, 0
        %vm6267 = vcmp.ne.s32.totalorder %v6151, 0
        %vm6268 = vcmp.ne.s32.totalorder %v6158, 0
        %vm6269 = vcmp.ne.s32.totalorder %v6165, 0
        %vm6270 = vcmp.ne.s32.totalorder %v6172, 0
        %vm6271 = vcmp.ne.s32.totalorder %v6179, 0
        %vm6272 = vcmp.ne.s32.totalorder %v6186, 0
        %vm6273 = vcmp.ne.s32.totalorder %v6193, 0
        %vm6274 = vcmp.ne.s32.totalorder %v6200, 0
        %vm6275 = vcmp.ne.s32.totalorder %v6207, 0
        %vm6276 = vcmp.ne.s32.totalorder %v6214, 0
        %vm6277 = vcmp.ne.s32.totalorder %v6221, 0
        %vm6278 = vcmp.ne.s32.totalorder %v6228, 0
        %vm6279 = vcmp.ne.s32.totalorder %v6235, 0
        %vm6280 = vcmp.ne.s32.totalorder %v6242, 0
        %vm6281 = vcmp.ne.s32.totalorder %v6249, 0
        %vm6282 = vcmp.lt.s32.totalorder %v6032, 0
        %vm6283 = vcmp.lt.s32.totalorder %v6039, 0
        %vm6284 = vcmp.lt.s32.totalorder %v6046, 0
        %vm6285 = vcmp.lt.s32.totalorder %v6053, 0
        %vm6286 = vcmp.lt.s32.totalorder %v6060, 0
        %vm6287 = vcmp.lt.s32.totalorder %v6067, 0
        %vm6288 = vcmp.lt.s32.totalorder %v6074, 0
        %vm6289 = vcmp.lt.s32.totalorder %v6081, 0
        %vm6290 = vcmp.lt.s32.totalorder %v6088, 0
        %vm6291 = vcmp.lt.s32.totalorder %v6095, 0
        %vm6292 = vcmp.lt.s32.totalorder %v6102, 0
        %vm6293 = vcmp.lt.s32.totalorder %v6109, 0
        %vm6294 = vcmp.lt.s32.totalorder %v6116, 0
        %vm6295 = vcmp.lt.s32.totalorder %v6123, 0
        %vm6296 = vcmp.lt.s32.totalorder %v6130, 0
        %vm6297 = vcmp.lt.s32.totalorder %v6137, 0
        %vm6298 = vcmp.lt.s32.totalorder %v6144, 0
        %vm6299 = vcmp.lt.s32.totalorder %v6151, 0
        %vm6300 = vcmp.lt.s32.totalorder %v6158, 0
        %vm6301 = vcmp.lt.s32.totalorder %v6165, 0
        %vm6302 = vcmp.lt.s32.totalorder %v6172, 0
        %vm6303 = vcmp.lt.s32.totalorder %v6179, 0
        %vm6304 = vcmp.lt.s32.totalorder %v6186, 0
        %vm6305 = vcmp.lt.s32.totalorder %v6193, 0
        %vm6306 = vcmp.lt.s32.totalorder %v6200, 0
        %vm6307 = vcmp.lt.s32.totalorder %v6207, 0
        %vm6308 = vcmp.lt.s32.totalorder %v6214, 0
        %vm6309 = vcmp.lt.s32.totalorder %v6221, 0
        %vm6310 = vcmp.lt.s32.totalorder %v6228, 0
        %vm6311 = vcmp.lt.s32.totalorder %v6235, 0
        %vm6312 = vcmp.lt.s32.totalorder %v6242, 0
        %vm6313 = vcmp.lt.s32.totalorder %v6249, 0
        %vm6314 = vmand %vm6282, %vm6250
        %vm6315 = vmand %vm6283, %vm6251
        %vm6316 = vmand %vm6284, %vm6252
        %vm6317 = vmand %vm6285, %vm6253
        %vm6318 = vmand %vm6286, %vm6254
        %vm6319 = vmand %vm6287, %vm6255
        %vm6320 = vmand %vm6288, %vm6256
        %vm6321 = vmand %vm6289, %vm6257
        %vm6322 = vmand %vm6290, %vm6258
        %vm6323 = vmand %vm6291, %vm6259
        %vm6324 = vmand %vm6292, %vm6260
        %vm6325 = vmand %vm6293, %vm6261
        %vm6326 = vmand %vm6294, %vm6262
        %vm6327 = vmand %vm6295, %vm6263
        %vm6328 = vmand %vm6296, %vm6264
        %vm6329 = vmand %vm6297, %vm6265
        %vm6330 = vmand %vm6298, %vm6266
        %vm6331 = vmand %vm6299, %vm6267
        %vm6332 = vmand %vm6300, %vm6268
        %vm6333 = vmand %vm6301, %vm6269
        %vm6334 = vmand %vm6302, %vm6270
        %vm6335 = vmand %vm6303, %vm6271
        %vm6336 = vmand %vm6304, %vm6272
        %vm6337 = vmand %vm6305, %vm6273
        %vm6338 = vmand %vm6306, %vm6274
        %vm6339 = vmand %vm6307, %vm6275
        %vm6340 = vmand %vm6308, %vm6276
        %vm6341 = vmand %vm6309, %vm6277
        %vm6342 = vmand %vm6310, %vm6278
        %vm6343 = vmand %vm6311, %vm6279
        %vm6344 = vmand %vm6312, %vm6280
        %vm6345 = vmand %vm6313, %vm6281
        %v6346 = vadd.s32 %v6032, 16
        %v6347 = vadd.s32 %v6039, 16
        %v6348 = vadd.s32 %v6046, 16
        %v6349 = vadd.s32 %v6053, 16
        %v6350 = vadd.s32 %v6060, 16
        %v6351 = vadd.s32 %v6067, 16
        %v6352 = vadd.s32 %v6074, 16
        %v6353 = vadd.s32 %v6081, 16
        %v6354 = vadd.s32 %v6088, 16
        %v6355 = vadd.s32 %v6095, 16
        %v6356 = vadd.s32 %v6102, 16
        %v6357 = vadd.s32 %v6109, 16
        %v6358 = vadd.s32 %v6116, 16
        %v6359 = vadd.s32 %v6123, 16
        %v6360 = vadd.s32 %v6130, 16
        %v6361 = vadd.s32 %v6137, 16
        %v6362 = vadd.s32 %v6144, 16
        %v6363 = vadd.s32 %v6151, 16
        %v6364 = vadd.s32 %v6158, 16
        %v6365 = vadd.s32 %v6165, 16
        %v6366 = vadd.s32 %v6172, 16
        %v6367 = vadd.s32 %v6179, 16
        %v6368 = vadd.s32 %v6186, 16
        %v6369 = vadd.s32 %v6193, 16
        %v6370 = vadd.s32 %v6200, 16
        %v6371 = vadd.s32 %v6207, 16
        %v6372 = vadd.s32 %v6214, 16
        %v6373 = vadd.s32 %v6221, 16
        %v6374 = vadd.s32 %v6228, 16
        %v6375 = vadd.s32 %v6235, 16
        %v6376 = vadd.s32 %v6242, 16
        %v6377 = vadd.s32 %v6249, 16
        %v6378 = vsel %vm6314, %v6346, %v6032
        %v6379 = vsel %vm6315, %v6347, %v6039
        %v6380 = vsel %vm6316, %v6348, %v6046
        %v6381 = vsel %vm6317, %v6349, %v6053
        %v6382 = vsel %vm6318, %v6350, %v6060
        %v6383 = vsel %vm6319, %v6351, %v6067
        %v6384 = vsel %vm6320, %v6352, %v6074
        %v6385 = vsel %vm6321, %v6353, %v6081
        %v6386 = vsel %vm6322, %v6354, %v6088
        %v6387 = vsel %vm6323, %v6355, %v6095
        %v6388 = vsel %vm6324, %v6356, %v6102
        %v6389 = vsel %vm6325, %v6357, %v6109
        %v6390 = vsel %vm6326, %v6358, %v6116
        %v6391 = vsel %vm6327, %v6359, %v6123
        %v6392 = vsel %vm6328, %v6360, %v6130
        %v6393 = vsel %vm6329, %v6361, %v6137
        %v6394 = vsel %vm6330, %v6362, %v6144
        %v6395 = vsel %vm6331, %v6363, %v6151
        %v6396 = vsel %vm6332, %v6364, %v6158
        %v6397 = vsel %vm6333, %v6365, %v6165
        %v6398 = vsel %vm6334, %v6366, %v6172
        %v6399 = vsel %vm6335, %v6367, %v6179
        %v6400 = vsel %vm6336, %v6368, %v6186
        %v6401 = vsel %vm6337, %v6369, %v6193
        %v6402 = vsel %vm6338, %v6370, %v6200
        %v6403 = vsel %vm6339, %v6371, %v6207
        %v6404 = vsel %vm6340, %v6372, %v6214
        %v6405 = vsel %vm6341, %v6373, %v6221
        %v6406 = vsel %vm6342, %v6374, %v6228
        %v6407 = vsel %vm6343, %v6375, %v6235
        %v6408 = vsel %vm6344, %v6376, %v6242
        %v6409 = vsel %vm6345, %v6377, %v6249
        %v6410 = vrot.slane %v5961, 5
        %v6411 = vrot.slane %v5962, 5
        %v6412 = vrot.slane %v5963, 5
        %v6413 = vrot.slane %v5964, 5
        %v6414 = vrot.slane %v5965, 5
        %v6415 = vrot.slane %v5966, 5
        %v6416 = vrot.slane %v5967, 5
        %v6417 = vrot.slane %v5968, 5
        %v6418 = vrot.slane %v5969, 5
        %v6419 = vrot.slane %v5970, 5
        %v6420 = vrot.slane %v5971, 5
        %v6421 = vrot.slane %v5972, 5
        %v6422 = vrot.slane %v5973, 5
        %v6423 = vrot.slane %v5974, 5
        %v6424 = vrot.slane %v5975, 5
        %v6425 = vrot.slane %v5976, 5
        %v6426 = vrot.slane %v5977, 5
        %v6427 = vrot.slane %v5978, 5
        %v6428 = vrot.slane %v5979, 5
        %v6429 = vrot.slane %v5980, 5
        %v6430 = vrot.slane %v5981, 5
        %v6431 = vrot.slane %v5982, 5
        %v6432 = vrot.slane %v5983, 5
        %v6433 = vrot.slane %v5984, 5
        %v6434 = vrot.slane %v5985, 5
        %v6435 = vrot.slane %v5986, 5
        %v6436 = vrot.slane %v5987, 5
        %v6437 = vrot.slane %v5988, 5
        %v6438 = vrot.slane %v5989, 5
        %v6439 = vrot.slane %v5990, 5
        %v6440 = vrot.slane %v5991, 5
        %v6441 = vrot.slane %v5992, 5
        %vm6442 = vcmp.lt.s32.totalorder %v5994, 3
        %v6443 = vsel %vm6442, %v6440, %v6441
        %v6444 = vsel %vm6442, %v6439, %v6440
        %v6445 = vsel %vm6442, %v6438, %v6439
        %v6446 = vsel %vm6442, %v6437, %v6438
        %v6447 = vsel %vm6442, %v6436, %v6437
        %v6448 = vsel %vm6442, %v6435, %v6436
        %v6449 = vsel %vm6442, %v6434, %v6435
        %v6450 = vsel %vm6442, %v6433, %v6434
        %v6451 = vsel %vm6442, %v6432, %v6433
        %v6452 = vsel %vm6442, %v6431, %v6432
        %v6453 = vsel %vm6442, %v6430, %v6431
        %v6454 = vsel %vm6442, %v6429, %v6430
        %v6455 = vsel %vm6442, %v6428, %v6429
        %v6456 = vsel %vm6442, %v6427, %v6428
        %v6457 = vsel %vm6442, %v6426, %v6427
        %v6458 = vsel %vm6442, %v6425, %v6426
        %v6459 = vsel %vm6442, %v6424, %v6425
        %v6460 = vsel %vm6442, %v6423, %v6424
        %v6461 = vsel %vm6442, %v6422, %v6423
        %v6462 = vsel %vm6442, %v6421, %v6422
        %v6463 = vsel %vm6442, %v6420, %v6421
        %v6464 = vsel %vm6442, %v6419, %v6420
        %v6465 = vsel %vm6442, %v6418, %v6419
        %v6466 = vsel %vm6442, %v6417, %v6418
        %v6467 = vsel %vm6442, %v6416, %v6417
        %v6468 = vsel %vm6442, %v6415, %v6416
        %v6469 = vsel %vm6442, %v6414, %v6415
        %v6470 = vsel %vm6442, %v6413, %v6414
        %v6471 = vsel %vm6442, %v6412, %v6413
        %v6472 = vsel %vm6442, %v6411, %v6412
        %v6473 = vsel %vm6442, %v6410, %v6411
        %v6474 = vsel %vm6442, %v6441, %v6410
        %v6475 = vadd.s32 %v6378, 4294967293
        %v6476 = vadd.s32 %v6379, 4294967293
        %v6477 = vadd.s32 %v6380, 4294967293
        %v6478 = vadd.s32 %v6381, 4294967293
        %v6479 = vadd.s32 %v6382, 4294967293
        %v6480 = vadd.s32 %v6383, 4294967293
        %v6481 = vadd.s32 %v6384, 4294967293
        %v6482 = vadd.s32 %v6385, 4294967293
        %v6483 = vadd.s32 %v6386, 4294967293
        %v6484 = vadd.s32 %v6387, 4294967293
        %v6485 = vadd.s32 %v6388, 4294967293
        %v6486 = vadd.s32 %v6389, 4294967293
        %v6487 = vadd.s32 %v6390, 4294967293
        %v6488 = vadd.s32 %v6391, 4294967293
        %v6489 = vadd.s32 %v6392, 4294967293
        %v6490 = vadd.s32 %v6393, 4294967293
        %v6491 = vadd.s32 %v6394, 4294967293
        %v6492 = vadd.s32 %v6395, 4294967293
        %v6493 = vadd.s32 %v6396, 4294967293
        %v6494 = vadd.s32 %v6397, 4294967293
        %v6495 = vadd.s32 %v6398, 4294967293
        %v6496 = vadd.s32 %v6399, 4294967293
        %v6497 = vadd.s32 %v6400, 4294967293
        %v6498 = vadd.s32 %v6401, 4294967293
        %v6499 = vadd.s32 %v6402, 4294967293
        %v6500 = vadd.s32 %v6403, 4294967293
        %v6501 = vadd.s32 %v6404, 4294967293
        %v6502 = vadd.s32 %v6405, 4294967293
        %v6503 = vadd.s32 %v6406, 4294967293
        %v6504 = vadd.s32 %v6407, 4294967293
        %v6505 = vadd.s32 %v6408, 4294967293
        %v6506 = vadd.s32 %v6409, 4294967293
        %vm6507 = vcmp.ge.s32.totalorder %v6475, 0
        %vm6508 = vcmp.ge.s32.totalorder %v6476, 0
        %vm6509 = vcmp.ge.s32.totalorder %v6477, 0
        %vm6510 = vcmp.ge.s32.totalorder %v6478, 0
        %vm6511 = vcmp.ge.s32.totalorder %v6479, 0
        %vm6512 = vcmp.ge.s32.totalorder %v6480, 0
        %vm6513 = vcmp.ge.s32.totalorder %v6481, 0
        %vm6514 = vcmp.ge.s32.totalorder %v6482, 0
        %vm6515 = vcmp.ge.s32.totalorder %v6483, 0
        %vm6516 = vcmp.ge.s32.totalorder %v6484, 0
        %vm6517 = vcmp.ge.s32.totalorder %v6485, 0
        %vm6518 = vcmp.ge.s32.totalorder %v6486, 0
        %vm6519 = vcmp.ge.s32.totalorder %v6487, 0
        %vm6520 = vcmp.ge.s32.totalorder %v6488, 0
        %vm6521 = vcmp.ge.s32.totalorder %v6489, 0
        %vm6522 = vcmp.ge.s32.totalorder %v6490, 0
        %vm6523 = vcmp.ge.s32.totalorder %v6491, 0
        %vm6524 = vcmp.ge.s32.totalorder %v6492, 0
        %vm6525 = vcmp.ge.s32.totalorder %v6493, 0
        %vm6526 = vcmp.ge.s32.totalorder %v6494, 0
        %vm6527 = vcmp.ge.s32.totalorder %v6495, 0
        %vm6528 = vcmp.ge.s32.totalorder %v6496, 0
        %vm6529 = vcmp.ge.s32.totalorder %v6497, 0
        %vm6530 = vcmp.ge.s32.totalorder %v6498, 0
        %vm6531 = vcmp.ge.s32.totalorder %v6499, 0
        %vm6532 = vcmp.ge.s32.totalorder %v6500, 0
        %vm6533 = vcmp.ge.s32.totalorder %v6501, 0
        %vm6534 = vcmp.ge.s32.totalorder %v6502, 0
        %vm6535 = vcmp.ge.s32.totalorder %v6503, 0
        %vm6536 = vcmp.ge.s32.totalorder %v6504, 0
        %vm6537 = vcmp.ge.s32.totalorder %v6505, 0
        %vm6538 = vcmp.ge.s32.totalorder %v6506, 0
        %vm6539 = vcmp.lt.s32.totalorder %v6475, 16
        %vm6540 = vcmp.lt.s32.totalorder %v6476, 16
        %vm6541 = vcmp.lt.s32.totalorder %v6477, 16
        %vm6542 = vcmp.lt.s32.totalorder %v6478, 16
        %vm6543 = vcmp.lt.s32.totalorder %v6479, 16
        %vm6544 = vcmp.lt.s32.totalorder %v6480, 16
        %vm6545 = vcmp.lt.s32.totalorder %v6481, 16
        %vm6546 = vcmp.lt.s32.totalorder %v6482, 16
        %vm6547 = vcmp.lt.s32.totalorder %v6483, 16
        %vm6548 = vcmp.lt.s32.totalorder %v6484, 16
        %vm6549 = vcmp.lt.s32.totalorder %v6485, 16
        %vm6550 = vcmp.lt.s32.totalorder %v6486, 16
        %vm6551 = vcmp.lt.s32.totalorder %v6487, 16
        %vm6552 = vcmp.lt.s32.totalorder %v6488, 16
        %vm6553 = vcmp.lt.s32.totalorder %v6489, 16
        %vm6554 = vcmp.lt.s32.totalorder %v6490, 16
        %vm6555 = vcmp.lt.s32.totalorder %v6491, 16
        %vm6556 = vcmp.lt.s32.totalorder %v6492, 16
        %vm6557 = vcmp.lt.s32.totalorder %v6493, 16
        %vm6558 = vcmp.lt.s32.totalorder %v6494, 16
        %vm6559 = vcmp.lt.s32.totalorder %v6495, 16
        %vm6560 = vcmp.lt.s32.totalorder %v6496, 16
        %vm6561 = vcmp.lt.s32.totalorder %v6497, 16
        %vm6562 = vcmp.lt.s32.totalorder %v6498, 16
        %vm6563 = vcmp.lt.s32.totalorder %v6499, 16
        %vm6564 = vcmp.lt.s32.totalorder %v6500, 16
        %vm6565 = vcmp.lt.s32.totalorder %v6501, 16
        %vm6566 = vcmp.lt.s32.totalorder %v6502, 16
        %vm6567 = vcmp.lt.s32.totalorder %v6503, 16
        %vm6568 = vcmp.lt.s32.totalorder %v6504, 16
        %vm6569 = vcmp.lt.s32.totalorder %v6505, 16
        %vm6570 = vcmp.lt.s32.totalorder %v6506, 16
        %vm6571 = vmand %vm6507, %vm6539
        %vm6572 = vmand %vm6508, %vm6540
        %vm6573 = vmand %vm6509, %vm6541
        %vm6574 = vmand %vm6510, %vm6542
        %vm6575 = vmand %vm6511, %vm6543
        %vm6576 = vmand %vm6512, %vm6544
        %vm6577 = vmand %vm6513, %vm6545
        %vm6578 = vmand %vm6514, %vm6546
        %vm6579 = vmand %vm6515, %vm6547
        %vm6580 = vmand %vm6516, %vm6548
        %vm6581 = vmand %vm6517, %vm6549
        %vm6582 = vmand %vm6518, %vm6550
        %vm6583 = vmand %vm6519, %vm6551
        %vm6584 = vmand %vm6520, %vm6552
        %vm6585 = vmand %vm6521, %vm6553
        %vm6586 = vmand %vm6522, %vm6554
        %vm6587 = vmand %vm6523, %vm6555
        %vm6588 = vmand %vm6524, %vm6556
        %vm6589 = vmand %vm6525, %vm6557
        %vm6590 = vmand %vm6526, %vm6558
        %vm6591 = vmand %vm6527, %vm6559
        %vm6592 = vmand %vm6528, %vm6560
        %vm6593 = vmand %vm6529, %vm6561
        %vm6594 = vmand %vm6530, %vm6562
        %vm6595 = vmand %vm6531, %vm6563
        %vm6596 = vmand %vm6532, %vm6564
        %vm6597 = vmand %vm6533, %vm6565
        %vm6598 = vmand %vm6534, %vm6566
        %vm6599 = vmand %vm6535, %vm6567
        %vm6600 = vmand %vm6536, %vm6568
        %vm6601 = vmand %vm6537, %vm6569
        %vm6602 = vmand %vm6538, %vm6570
        %v6603 = vsel %vm6571, 1, 0
        %v6604 = vsel %vm6572, 1, 0
        %v6605 = vsel %vm6573, 1, 0
        %v6606 = vsel %vm6574, 1, 0
        %v6607 = vsel %vm6575, 1, 0
        %v6608 = vsel %vm6576, 1, 0
        %v6609 = vsel %vm6577, 1, 0
        %v6610 = vsel %vm6578, 1, 0
        %v6611 = vsel %vm6579, 1, 0
        %v6612 = vsel %vm6580, 1, 0
        %v6613 = vsel %vm6581, 1, 0
        %v6614 = vsel %vm6582, 1, 0
        %v6615 = vsel %vm6583, 1, 0
        %v6616 = vsel %vm6584, 1, 0
        %v6617 = vsel %vm6585, 1, 0
        %v6618 = vsel %vm6586, 1, 0
        %v6619 = vsel %vm6587, 1, 0
        %v6620 = vsel %vm6588, 1, 0
        %v6621 = vsel %vm6589, 1, 0
        %v6622 = vsel %vm6590, 1, 0
        %v6623 = vsel %vm6591, 1, 0
        %v6624 = vsel %vm6592, 1, 0
        %v6625 = vsel %vm6593, 1, 0
        %v6626 = vsel %vm6594, 1, 0
        %v6627 = vsel %vm6595, 1, 0
        %v6628 = vsel %vm6596, 1, 0
        %v6629 = vsel %vm6597, 1, 0
        %v6630 = vsel %vm6598, 1, 0
        %v6631 = vsel %vm6599, 1, 0
        %v6632 = vsel %vm6600, 1, 0
        %v6633 = vsel %vm6601, 1, 0
        %v6634 = vsel %vm6602, 1, 0
        %vm6635 = vcmp.eq.s32.totalorder %v6603, 1
        %vm6636 = vcmp.eq.s32.totalorder %v6604, 1
        %vm6637 = vcmp.eq.s32.totalorder %v6605, 1
        %vm6638 = vcmp.eq.s32.totalorder %v6606, 1
        %vm6639 = vcmp.eq.s32.totalorder %v6607, 1
        %vm6640 = vcmp.eq.s32.totalorder %v6608, 1
        %vm6641 = vcmp.eq.s32.totalorder %v6609, 1
        %vm6642 = vcmp.eq.s32.totalorder %v6610, 1
        %vm6643 = vcmp.eq.s32.totalorder %v6611, 1
        %vm6644 = vcmp.eq.s32.totalorder %v6612, 1
        %vm6645 = vcmp.eq.s32.totalorder %v6613, 1
        %vm6646 = vcmp.eq.s32.totalorder %v6614, 1
        %vm6647 = vcmp.eq.s32.totalorder %v6615, 1
        %vm6648 = vcmp.eq.s32.totalorder %v6616, 1
        %vm6649 = vcmp.eq.s32.totalorder %v6617, 1
        %vm6650 = vcmp.eq.s32.totalorder %v6618, 1
        %vm6651 = vcmp.eq.s32.totalorder %v6619, 1
        %vm6652 = vcmp.eq.s32.totalorder %v6620, 1
        %vm6653 = vcmp.eq.s32.totalorder %v6621, 1
        %vm6654 = vcmp.eq.s32.totalorder %v6622, 1
        %vm6655 = vcmp.eq.s32.totalorder %v6623, 1
        %vm6656 = vcmp.eq.s32.totalorder %v6624, 1
        %vm6657 = vcmp.eq.s32.totalorder %v6625, 1
        %vm6658 = vcmp.eq.s32.totalorder %v6626, 1
        %vm6659 = vcmp.eq.s32.totalorder %v6627, 1
        %vm6660 = vcmp.eq.s32.totalorder %v6628, 1
        %vm6661 = vcmp.eq.s32.totalorder %v6629, 1
        %vm6662 = vcmp.eq.s32.totalorder %v6630, 1
        %vm6663 = vcmp.eq.s32.totalorder %v6631, 1
        %vm6664 = vcmp.eq.s32.totalorder %v6632, 1
        %vm6665 = vcmp.eq.s32.totalorder %v6633, 1
        %vm6666 = vcmp.eq.s32.totalorder %v6634, 1
        %v6667 = vsel %vm6635, %v6474, 0.0
        %v6668 = vsel %vm6636, %v6473, 0.0
        %v6669 = vsel %vm6637, %v6472, 0.0
        %v6670 = vsel %vm6638, %v6471, 0.0
        %v6671 = vsel %vm6639, %v6470, 0.0
        %v6672 = vsel %vm6640, %v6469, 0.0
        %v6673 = vsel %vm6641, %v6468, 0.0
        %v6674 = vsel %vm6642, %v6467, 0.0
        %v6675 = vsel %vm6643, %v6466, 0.0
        %v6676 = vsel %vm6644, %v6465, 0.0
        %v6677 = vsel %vm6645, %v6464, 0.0
        %v6678 = vsel %vm6646, %v6463, 0.0
        %v6679 = vsel %vm6647, %v6462, 0.0
        %v6680 = vsel %vm6648, %v6461, 0.0
        %v6681 = vsel %vm6649, %v6460, 0.0
        %v6682 = vsel %vm6650, %v6459, 0.0
        %v6683 = vsel %vm6651, %v6458, 0.0
        %v6684 = vsel %vm6652, %v6457, 0.0
        %v6685 = vsel %vm6653, %v6456, 0.0
        %v6686 = vsel %vm6654, %v6455, 0.0
        %v6687 = vsel %vm6655, %v6454, 0.0
        %v6688 = vsel %vm6656, %v6453, 0.0
        %v6689 = vsel %vm6657, %v6452, 0.0
        %v6690 = vsel %vm6658, %v6451, 0.0
        %v6691 = vsel %vm6659, %v6450, 0.0
        %v6692 = vsel %vm6660, %v6449, 0.0
        %v6693 = vsel %vm6661, %v6448, 0.0
        %v6694 = vsel %vm6662, %v6447, 0.0
        %v6695 = vsel %vm6663, %v6446, 0.0
        %v6696 = vsel %vm6664, %v6445, 0.0
        %v6697 = vsel %vm6665, %v6444, 0.0
        %v6698 = vsel %vm6666, %v6443, 0.0
        %v6699 = vld [vmem:[%s5] sm:$0x1]
        %v6700 = vperm.slane %v6699, 0
        %v6701 = vmul.f32 %v6667, %v6700
        %v6702 = vmul.f32 %v6668, %v6700
        %v6703 = vmul.f32 %v6669, %v6700
        %v6704 = vmul.f32 %v6670, %v6700
        %v6705 = vmul.f32 %v6671, %v6700
        %v6706 = vmul.f32 %v6672, %v6700
        %v6707 = vmul.f32 %v6673, %v6700
        %v6708 = vmul.f32 %v6674, %v6700
        %v6709 = vmul.f32 %v6675, %v6700
        %v6710 = vmul.f32 %v6676, %v6700
        %v6711 = vmul.f32 %v6677, %v6700
        %v6712 = vmul.f32 %v6678, %v6700
        %v6713 = vmul.f32 %v6679, %v6700
        %v6714 = vmul.f32 %v6680, %v6700
        %v6715 = vmul.f32 %v6681, %v6700
        %v6716 = vmul.f32 %v6682, %v6700
        %v6717 = vmul.f32 %v6683, %v6700
        %v6718 = vmul.f32 %v6684, %v6700
        %v6719 = vmul.f32 %v6685, %v6700
        %v6720 = vmul.f32 %v6686, %v6700
        %v6721 = vmul.f32 %v6687, %v6700
        %v6722 = vmul.f32 %v6688, %v6700
        %v6723 = vmul.f32 %v6689, %v6700
        %v6724 = vmul.f32 %v6690, %v6700
        %v6725 = vmul.f32 %v6691, %v6700
        %v6726 = vmul.f32 %v6692, %v6700
        %v6727 = vmul.f32 %v6693, %v6700
        %v6728 = vmul.f32 %v6694, %v6700
        %v6729 = vmul.f32 %v6695, %v6700
        %v6730 = vmul.f32 %v6696, %v6700
        %v6731 = vmul.f32 %v6697, %v6700
        %v6732 = vmul.f32 %v6698, %v6700
        %v6733 = vadd.f32 %v6701, 0.0
        %v6734 = vadd.f32 %v6702, 0.0
        %v6735 = vadd.f32 %v6703, 0.0
        %v6736 = vadd.f32 %v6704, 0.0
        %v6737 = vadd.f32 %v6705, 0.0
        %v6738 = vadd.f32 %v6706, 0.0
        %v6739 = vadd.f32 %v6707, 0.0
        %v6740 = vadd.f32 %v6708, 0.0
        %v6741 = vadd.f32 %v6709, 0.0
        %v6742 = vadd.f32 %v6710, 0.0
        %v6743 = vadd.f32 %v6711, 0.0
        %v6744 = vadd.f32 %v6712, 0.0
        %v6745 = vadd.f32 %v6713, 0.0
        %v6746 = vadd.f32 %v6714, 0.0
        %v6747 = vadd.f32 %v6715, 0.0
        %v6748 = vadd.f32 %v6716, 0.0
        %v6749 = vadd.f32 %v6717, 0.0
        %v6750 = vadd.f32 %v6718, 0.0
        %v6751 = vadd.f32 %v6719, 0.0
        %v6752 = vadd.f32 %v6720, 0.0
        %v6753 = vadd.f32 %v6721, 0.0
        %v6754 = vadd.f32 %v6722, 0.0
        %v6755 = vadd.f32 %v6723, 0.0
        %v6756 = vadd.f32 %v6724, 0.0
        %v6757 = vadd.f32 %v6725, 0.0
        %v6758 = vadd.f32 %v6726, 0.0
        %v6759 = vadd.f32 %v6727, 0.0
        %v6760 = vadd.f32 %v6728, 0.0
        %v6761 = vadd.f32 %v6729, 0.0
        %v6762 = vadd.f32 %v6730, 0.0
        %v6763 = vadd.f32 %v6731, 0.0
        %v6764 = vadd.f32 %v6732, 0.0
        %v6765 = vld [vmem:[%s6] sm:$0x1]
        %v6766 = vperm.slane %v6765, 0
        %v6767 = vmul.f32 %v6766, 0.0
        %v6768 = vmul.f32 %v5961, %v6766
        %v6769 = vmul.f32 %v5962, %v6766
        %v6770 = vmul.f32 %v5963, %v6766
        %v6771 = vmul.f32 %v5964, %v6766
        %v6772 = vmul.f32 %v5965, %v6766
        %v6773 = vmul.f32 %v5966, %v6766
        %v6774 = vmul.f32 %v5967, %v6766
        %v6775 = vmul.f32 %v5968, %v6766
        %v6776 = vmul.f32 %v5969, %v6766
        %v6777 = vmul.f32 %v5970, %v6766
        %v6778 = vmul.f32 %v5971, %v6766
        %v6779 = vmul.f32 %v5972, %v6766
        %v6780 = vmul.f32 %v5973, %v6766
        %v6781 = vmul.f32 %v5974, %v6766
        %v6782 = vmul.f32 %v5975, %v6766
        %v6783 = vmul.f32 %v5976, %v6766
        %v6784 = vmul.f32 %v5977, %v6766
        %v6785 = vmul.f32 %v5978, %v6766
        %v6786 = vmul.f32 %v5979, %v6766
        %v6787 = vmul.f32 %v5980, %v6766
        %v6788 = vmul.f32 %v5981, %v6766
        %v6789 = vmul.f32 %v5982, %v6766
        %v6790 = vmul.f32 %v5983, %v6766
        %v6791 = vmul.f32 %v5984, %v6766
        %v6792 = vmul.f32 %v5985, %v6766
        %v6793 = vmul.f32 %v5986, %v6766
        %v6794 = vadd.f32 %v6733, %v6767
        %v6795 = vadd.f32 %v6734, %v6767
        %v6796 = vadd.f32 %v6735, %v6767
        %v6797 = vadd.f32 %v6736, %v6767
        %v6798 = vadd.f32 %v6737, %v6767
        %v6799 = vadd.f32 %v6738, %v6767
        %v6800 = vadd.f32 %v6739, %v6768
        %v6801 = vadd.f32 %v6740, %v6769
        %v6802 = vadd.f32 %v6741, %v6770
        %v6803 = vadd.f32 %v6742, %v6771
        %v6804 = vadd.f32 %v6743, %v6772
        %v6805 = vadd.f32 %v6744, %v6773
        %v6806 = vadd.f32 %v6745, %v6774
        %v6807 = vadd.f32 %v6746, %v6775
        %v6808 = vadd.f32 %v6747, %v6776
        %v6809 = vadd.f32 %v6748, %v6777
        %v6810 = vadd.f32 %v6749, %v6778
        %v6811 = vadd.f32 %v6750, %v6779
        %v6812 = vadd.f32 %v6751, %v6780
        %v6813 = vadd.f32 %v6752, %v6781
        %v6814 = vadd.f32 %v6753, %v6782
        %v6815 = vadd.f32 %v6754, %v6783
        %v6816 = vadd.f32 %v6755, %v6784
        %v6817 = vadd.f32 %v6756, %v6785
        %v6818 = vadd.f32 %v6757, %v6786
        %v6819 = vadd.f32 %v6758, %v6787
        %v6820 = vadd.f32 %v6759, %v6788
        %v6821 = vadd.f32 %v6760, %v6789
        %v6822 = vadd.f32 %v6761, %v6790
        %v6823 = vadd.f32 %v6762, %v6791
        %v6824 = vadd.f32 %v6763, %v6792
        %v6825 = vadd.f32 %v6764, %v6793
        %v6826 = vrot.slane %v5961, 6
        %v6827 = vrot.slane %v5962, 6
        %v6828 = vrot.slane %v5963, 6
        %v6829 = vrot.slane %v5964, 6
        %v6830 = vrot.slane %v5965, 6
        %v6831 = vrot.slane %v5966, 6
        %v6832 = vrot.slane %v5967, 6
        %v6833 = vrot.slane %v5968, 6
        %v6834 = vrot.slane %v5969, 6
        %v6835 = vrot.slane %v5970, 6
        %v6836 = vrot.slane %v5971, 6
        %v6837 = vrot.slane %v5972, 6
        %v6838 = vrot.slane %v5973, 6
        %v6839 = vrot.slane %v5974, 6
        %v6840 = vrot.slane %v5975, 6
        %v6841 = vrot.slane %v5976, 6
        %v6842 = vrot.slane %v5977, 6
        %v6843 = vrot.slane %v5978, 6
        %v6844 = vrot.slane %v5979, 6
        %v6845 = vrot.slane %v5980, 6
        %v6846 = vrot.slane %v5981, 6
        %v6847 = vrot.slane %v5982, 6
        %v6848 = vrot.slane %v5983, 6
        %v6849 = vrot.slane %v5984, 6
        %v6850 = vrot.slane %v5985, 6
        %v6851 = vrot.slane %v5986, 6
        %v6852 = vrot.slane %v5987, 6
        %v6853 = vrot.slane %v5988, 6
        %v6854 = vrot.slane %v5989, 6
        %v6855 = vrot.slane %v5990, 6
        %v6856 = vrot.slane %v5991, 6
        %v6857 = vrot.slane %v5992, 6
        %vm6858 = vcmp.lt.s32.totalorder %v5994, 2
        %v6859 = vsel %vm6858, %v6856, %v6857
        %v6860 = vsel %vm6858, %v6855, %v6856
        %v6861 = vsel %vm6858, %v6854, %v6855
        %v6862 = vsel %vm6858, %v6853, %v6854
        %v6863 = vsel %vm6858, %v6852, %v6853
        %v6864 = vsel %vm6858, %v6851, %v6852
        %v6865 = vsel %vm6858, %v6850, %v6851
        %v6866 = vsel %vm6858, %v6849, %v6850
        %v6867 = vsel %vm6858, %v6848, %v6849
        %v6868 = vsel %vm6858, %v6847, %v6848
        %v6869 = vsel %vm6858, %v6846, %v6847
        %v6870 = vsel %vm6858, %v6845, %v6846
        %v6871 = vsel %vm6858, %v6844, %v6845
        %v6872 = vsel %vm6858, %v6843, %v6844
        %v6873 = vsel %vm6858, %v6842, %v6843
        %v6874 = vsel %vm6858, %v6841, %v6842
        %v6875 = vsel %vm6858, %v6840, %v6841
        %v6876 = vsel %vm6858, %v6839, %v6840
        %v6877 = vsel %vm6858, %v6838, %v6839
        %v6878 = vsel %vm6858, %v6837, %v6838
        %v6879 = vsel %vm6858, %v6836, %v6837
        %v6880 = vsel %vm6858, %v6835, %v6836
        %v6881 = vsel %vm6858, %v6834, %v6835
        %v6882 = vsel %vm6858, %v6833, %v6834
        %v6883 = vsel %vm6858, %v6832, %v6833
        %v6884 = vsel %vm6858, %v6831, %v6832
        %v6885 = vsel %vm6858, %v6830, %v6831
        %v6886 = vsel %vm6858, %v6829, %v6830
        %v6887 = vsel %vm6858, %v6828, %v6829
        %v6888 = vsel %vm6858, %v6827, %v6828
        %v6889 = vsel %vm6858, %v6826, %v6827
        %v6890 = vsel %vm6858, %v6857, %v6826
        %v6891 = vadd.s32 %v6378, 4294967294
        %v6892 = vadd.s32 %v6379, 4294967294
        %v6893 = vadd.s32 %v6380, 4294967294
        %v6894 = vadd.s32 %v6381, 4294967294
        %v6895 = vadd.s32 %v6382, 4294967294
        %v6896 = vadd.s32 %v6383, 4294967294
        %v6897 = vadd.s32 %v6384, 4294967294
        %v6898 = vadd.s32 %v6385, 4294967294
        %v6899 = vadd.s32 %v6386, 4294967294
        %v6900 = vadd.s32 %v6387, 4294967294
        %v6901 = vadd.s32 %v6388, 4294967294
        %v6902 = vadd.s32 %v6389, 4294967294
        %v6903 = vadd.s32 %v6390, 4294967294
        %v6904 = vadd.s32 %v6391, 4294967294
        %v6905 = vadd.s32 %v6392, 4294967294
        %v6906 = vadd.s32 %v6393, 4294967294
        %v6907 = vadd.s32 %v6394, 4294967294
        %v6908 = vadd.s32 %v6395, 4294967294
        %v6909 = vadd.s32 %v6396, 4294967294
        %v6910 = vadd.s32 %v6397, 4294967294
        %v6911 = vadd.s32 %v6398, 4294967294
        %v6912 = vadd.s32 %v6399, 4294967294
        %v6913 = vadd.s32 %v6400, 4294967294
        %v6914 = vadd.s32 %v6401, 4294967294
        %v6915 = vadd.s32 %v6402, 4294967294
        %v6916 = vadd.s32 %v6403, 4294967294
        %v6917 = vadd.s32 %v6404, 4294967294
        %v6918 = vadd.s32 %v6405, 4294967294
        %v6919 = vadd.s32 %v6406, 4294967294
        %v6920 = vadd.s32 %v6407, 4294967294
        %v6921 = vadd.s32 %v6408, 4294967294
        %v6922 = vadd.s32 %v6409, 4294967294
        %vm6923 = vcmp.ge.s32.totalorder %v6891, 0
        %vm6924 = vcmp.ge.s32.totalorder %v6892, 0
        %vm6925 = vcmp.ge.s32.totalorder %v6893, 0
        %vm6926 = vcmp.ge.s32.totalorder %v6894, 0
        %vm6927 = vcmp.ge.s32.totalorder %v6895, 0
        %vm6928 = vcmp.ge.s32.totalorder %v6896, 0
        %vm6929 = vcmp.ge.s32.totalorder %v6897, 0
        %vm6930 = vcmp.ge.s32.totalorder %v6898, 0
        %vm6931 = vcmp.ge.s32.totalorder %v6899, 0
        %vm6932 = vcmp.ge.s32.totalorder %v6900, 0
        %vm6933 = vcmp.ge.s32.totalorder %v6901, 0
        %vm6934 = vcmp.ge.s32.totalorder %v6902, 0
        %vm6935 = vcmp.ge.s32.totalorder %v6903, 0
        %vm6936 = vcmp.ge.s32.totalorder %v6904, 0
        %vm6937 = vcmp.ge.s32.totalorder %v6905, 0
        %vm6938 = vcmp.ge.s32.totalorder %v6906, 0
        %vm6939 = vcmp.ge.s32.totalorder %v6907, 0
        %vm6940 = vcmp.ge.s32.totalorder %v6908, 0
        %vm6941 = vcmp.ge.s32.totalorder %v6909, 0
        %vm6942 = vcmp.ge.s32.totalorder %v6910, 0
        %vm6943 = vcmp.ge.s32.totalorder %v6911, 0
        %vm6944 = vcmp.ge.s32.totalorder %v6912, 0
        %vm6945 = vcmp.ge.s32.totalorder %v6913, 0
        %vm6946 = vcmp.ge.s32.totalorder %v6914, 0
        %vm6947 = vcmp.ge.s32.totalorder %v6915, 0
        %vm6948 = vcmp.ge.s32.totalorder %v6916, 0
        %vm6949 = vcmp.ge.s32.totalorder %v6917, 0
        %vm6950 = vcmp.ge.s32.totalorder %v6918, 0
        %vm6951 = vcmp.ge.s32.totalorder %v6919, 0
        %vm6952 = vcmp.ge.s32.totalorder %v6920, 0
        %vm6953 = vcmp.ge.s32.totalorder %v6921, 0
        %vm6954 = vcmp.ge.s32.totalorder %v6922, 0
        %vm6955 = vcmp.lt.s32.totalorder %v6891, 16
        %vm6956 = vcmp.lt.s32.totalorder %v6892, 16
        %vm6957 = vcmp.lt.s32.totalorder %v6893, 16
        %vm6958 = vcmp.lt.s32.totalorder %v6894, 16
        %vm6959 = vcmp.lt.s32.totalorder %v6895, 16
        %vm6960 = vcmp.lt.s32.totalorder %v6896, 16
        %vm6961 = vcmp.lt.s32.totalorder %v6897, 16
        %vm6962 = vcmp.lt.s32.totalorder %v6898, 16
        %vm6963 = vcmp.lt.s32.totalorder %v6899, 16
        %vm6964 = vcmp.lt.s32.totalorder %v6900, 16
        %vm6965 = vcmp.lt.s32.totalorder %v6901, 16
        %vm6966 = vcmp.lt.s32.totalorder %v6902, 16
        %vm6967 = vcmp.lt.s32.totalorder %v6903, 16
        %vm6968 = vcmp.lt.s32.totalorder %v6904, 16
        %vm6969 = vcmp.lt.s32.totalorder %v6905, 16
        %vm6970 = vcmp.lt.s32.totalorder %v6906, 16
        %vm6971 = vcmp.lt.s32.totalorder %v6907, 16
        %vm6972 = vcmp.lt.s32.totalorder %v6908, 16
        %vm6973 = vcmp.lt.s32.totalorder %v6909, 16
        %vm6974 = vcmp.lt.s32.totalorder %v6910, 16
        %vm6975 = vcmp.lt.s32.totalorder %v6911, 16
        %vm6976 = vcmp.lt.s32.totalorder %v6912, 16
        %vm6977 = vcmp.lt.s32.totalorder %v6913, 16
        %vm6978 = vcmp.lt.s32.totalorder %v6914, 16
        %vm6979 = vcmp.lt.s32.totalorder %v6915, 16
        %vm6980 = vcmp.lt.s32.totalorder %v6916, 16
        %vm6981 = vcmp.lt.s32.totalorder %v6917, 16
        %vm6982 = vcmp.lt.s32.totalorder %v6918, 16
        %vm6983 = vcmp.lt.s32.totalorder %v6919, 16
        %vm6984 = vcmp.lt.s32.totalorder %v6920, 16
        %vm6985 = vcmp.lt.s32.totalorder %v6921, 16
        %vm6986 = vcmp.lt.s32.totalorder %v6922, 16
        %vm6987 = vmand %vm6923, %vm6955
        %vm6988 = vmand %vm6924, %vm6956
        %vm6989 = vmand %vm6925, %vm6957
        %vm6990 = vmand %vm6926, %vm6958
        %vm6991 = vmand %vm6927, %vm6959
        %vm6992 = vmand %vm6928, %vm6960
        %vm6993 = vmand %vm6929, %vm6961
        %vm6994 = vmand %vm6930, %vm6962
        %vm6995 = vmand %vm6931, %vm6963
        %vm6996 = vmand %vm6932, %vm6964
        %vm6997 = vmand %vm6933, %vm6965
        %vm6998 = vmand %vm6934, %vm6966
        %vm6999 = vmand %vm6935, %vm6967
        %vm7000 = vmand %vm6936, %vm6968
        %vm7001 = vmand %vm6937, %vm6969
        %vm7002 = vmand %vm6938, %vm6970
        %vm7003 = vmand %vm6939, %vm6971
        %vm7004 = vmand %vm6940, %vm6972
        %vm7005 = vmand %vm6941, %vm6973
        %vm7006 = vmand %vm6942, %vm6974
        %vm7007 = vmand %vm6943, %vm6975
        %vm7008 = vmand %vm6944, %vm6976
        %vm7009 = vmand %vm6945, %vm6977
        %vm7010 = vmand %vm6946, %vm6978
        %vm7011 = vmand %vm6947, %vm6979
        %vm7012 = vmand %vm6948, %vm6980
        %vm7013 = vmand %vm6949, %vm6981
        %vm7014 = vmand %vm6950, %vm6982
        %vm7015 = vmand %vm6951, %vm6983
        %vm7016 = vmand %vm6952, %vm6984
        %vm7017 = vmand %vm6953, %vm6985
        %vm7018 = vmand %vm6954, %vm6986
        %v7019 = vsel %vm6987, 1, 0
        %v7020 = vsel %vm6988, 1, 0
        %v7021 = vsel %vm6989, 1, 0
        %v7022 = vsel %vm6990, 1, 0
        %v7023 = vsel %vm6991, 1, 0
        %v7024 = vsel %vm6992, 1, 0
        %v7025 = vsel %vm6993, 1, 0
        %v7026 = vsel %vm6994, 1, 0
        %v7027 = vsel %vm6995, 1, 0
        %v7028 = vsel %vm6996, 1, 0
        %v7029 = vsel %vm6997, 1, 0
        %v7030 = vsel %vm6998, 1, 0
        %v7031 = vsel %vm6999, 1, 0
        %v7032 = vsel %vm7000, 1, 0
        %v7033 = vsel %vm7001, 1, 0
        %v7034 = vsel %vm7002, 1, 0
        %v7035 = vsel %vm7003, 1, 0
        %v7036 = vsel %vm7004, 1, 0
        %v7037 = vsel %vm7005, 1, 0
        %v7038 = vsel %vm7006, 1, 0
        %v7039 = vsel %vm7007, 1, 0
        %v7040 = vsel %vm7008, 1, 0
        %v7041 = vsel %vm7009, 1, 0
        %v7042 = vsel %vm7010, 1, 0
        %v7043 = vsel %vm7011, 1, 0
        %v7044 = vsel %vm7012, 1, 0
        %v7045 = vsel %vm7013, 1, 0
        %v7046 = vsel %vm7014, 1, 0
        %v7047 = vsel %vm7015, 1, 0
        %v7048 = vsel %vm7016, 1, 0
        %v7049 = vsel %vm7017, 1, 0
        %v7050 = vsel %vm7018, 1, 0
        %vm7051 = vcmp.eq.s32.totalorder %v7019, 1
        %vm7052 = vcmp.eq.s32.totalorder %v7020, 1
        %vm7053 = vcmp.eq.s32.totalorder %v7021, 1
        %vm7054 = vcmp.eq.s32.totalorder %v7022, 1
        %vm7055 = vcmp.eq.s32.totalorder %v7023, 1
        %vm7056 = vcmp.eq.s32.totalorder %v7024, 1
        %vm7057 = vcmp.eq.s32.totalorder %v7025, 1
        %vm7058 = vcmp.eq.s32.totalorder %v7026, 1
        %vm7059 = vcmp.eq.s32.totalorder %v7027, 1
        %vm7060 = vcmp.eq.s32.totalorder %v7028, 1
        %vm7061 = vcmp.eq.s32.totalorder %v7029, 1
        %vm7062 = vcmp.eq.s32.totalorder %v7030, 1
        %vm7063 = vcmp.eq.s32.totalorder %v7031, 1
        %vm7064 = vcmp.eq.s32.totalorder %v7032, 1
        %vm7065 = vcmp.eq.s32.totalorder %v7033, 1
        %vm7066 = vcmp.eq.s32.totalorder %v7034, 1
        %vm7067 = vcmp.eq.s32.totalorder %v7035, 1
        %vm7068 = vcmp.eq.s32.totalorder %v7036, 1
        %vm7069 = vcmp.eq.s32.totalorder %v7037, 1
        %vm7070 = vcmp.eq.s32.totalorder %v7038, 1
        %vm7071 = vcmp.eq.s32.totalorder %v7039, 1
        %vm7072 = vcmp.eq.s32.totalorder %v7040, 1
        %vm7073 = vcmp.eq.s32.totalorder %v7041, 1
        %vm7074 = vcmp.eq.s32.totalorder %v7042, 1
        %vm7075 = vcmp.eq.s32.totalorder %v7043, 1
        %vm7076 = vcmp.eq.s32.totalorder %v7044, 1
        %vm7077 = vcmp.eq.s32.totalorder %v7045, 1
        %vm7078 = vcmp.eq.s32.totalorder %v7046, 1
        %vm7079 = vcmp.eq.s32.totalorder %v7047, 1
        %vm7080 = vcmp.eq.s32.totalorder %v7048, 1
        %vm7081 = vcmp.eq.s32.totalorder %v7049, 1
        %vm7082 = vcmp.eq.s32.totalorder %v7050, 1
        %v7083 = vsel %vm7051, %v6890, 0.0
        %v7084 = vsel %vm7052, %v6889, 0.0
        %v7085 = vsel %vm7053, %v6888, 0.0
        %v7086 = vsel %vm7054, %v6887, 0.0
        %v7087 = vsel %vm7055, %v6886, 0.0
        %v7088 = vsel %vm7056, %v6885, 0.0
        %v7089 = vsel %vm7057, %v6884, 0.0
        %v7090 = vsel %vm7058, %v6883, 0.0
        %v7091 = vsel %vm7059, %v6882, 0.0
        %v7092 = vsel %vm7060, %v6881, 0.0
        %v7093 = vsel %vm7061, %v6880, 0.0
        %v7094 = vsel %vm7062, %v6879, 0.0
        %v7095 = vsel %vm7063, %v6878, 0.0
        %v7096 = vsel %vm7064, %v6877, 0.0
        %v7097 = vsel %vm7065, %v6876, 0.0
        %v7098 = vsel %vm7066, %v6875, 0.0
        %v7099 = vsel %vm7067, %v6874, 0.0
        %v7100 = vsel %vm7068, %v6873, 0.0
        %v7101 = vsel %vm7069, %v6872, 0.0
        %v7102 = vsel %vm7070, %v6871, 0.0
        %v7103 = vsel %vm7071, %v6870, 0.0
        %v7104 = vsel %vm7072, %v6869, 0.0
        %v7105 = vsel %vm7073, %v6868, 0.0
        %v7106 = vsel %vm7074, %v6867, 0.0
        %v7107 = vsel %vm7075, %v6866, 0.0
        %v7108 = vsel %vm7076, %v6865, 0.0
        %v7109 = vsel %vm7077, %v6864, 0.0
        %v7110 = vsel %vm7078, %v6863, 0.0
        %v7111 = vsel %vm7079, %v6862, 0.0
        %v7112 = vsel %vm7080, %v6861, 0.0
        %v7113 = vsel %vm7081, %v6860, 0.0
        %v7114 = vsel %vm7082, %v6859, 0.0
        %v7115 = vld [vmem:[%s5 + $0x1] sm:$0x1]
        %v7116 = vperm.slane %v7115, 0
        %v7117 = vmul.f32 %v7083, %v7116
        %v7118 = vmul.f32 %v7084, %v7116
        %v7119 = vmul.f32 %v7085, %v7116
        %v7120 = vmul.f32 %v7086, %v7116
        %v7121 = vmul.f32 %v7087, %v7116
        %v7122 = vmul.f32 %v7088, %v7116
        %v7123 = vmul.f32 %v7089, %v7116
        %v7124 = vmul.f32 %v7090, %v7116
        %v7125 = vmul.f32 %v7091, %v7116
        %v7126 = vmul.f32 %v7092, %v7116
        %v7127 = vmul.f32 %v7093, %v7116
        %v7128 = vmul.f32 %v7094, %v7116
        %v7129 = vmul.f32 %v7095, %v7116
        %v7130 = vmul.f32 %v7096, %v7116
        %v7131 = vmul.f32 %v7097, %v7116
        %v7132 = vmul.f32 %v7098, %v7116
        %v7133 = vmul.f32 %v7099, %v7116
        %v7134 = vmul.f32 %v7100, %v7116
        %v7135 = vmul.f32 %v7101, %v7116
        %v7136 = vmul.f32 %v7102, %v7116
        %v7137 = vmul.f32 %v7103, %v7116
        %v7138 = vmul.f32 %v7104, %v7116
        %v7139 = vmul.f32 %v7105, %v7116
        %v7140 = vmul.f32 %v7106, %v7116
        %v7141 = vmul.f32 %v7107, %v7116
        %v7142 = vmul.f32 %v7108, %v7116
        %v7143 = vmul.f32 %v7109, %v7116
        %v7144 = vmul.f32 %v7110, %v7116
        %v7145 = vmul.f32 %v7111, %v7116
        %v7146 = vmul.f32 %v7112, %v7116
        %v7147 = vmul.f32 %v7113, %v7116
        %v7148 = vmul.f32 %v7114, %v7116
        %v7149 = vadd.f32 %v6794, %v7117
        %v7150 = vadd.f32 %v6795, %v7118
        %v7151 = vadd.f32 %v6796, %v7119
        %v7152 = vadd.f32 %v6797, %v7120
        %v7153 = vadd.f32 %v6798, %v7121
        %v7154 = vadd.f32 %v6799, %v7122
        %v7155 = vadd.f32 %v6800, %v7123
        %v7156 = vadd.f32 %v6801, %v7124
        %v7157 = vadd.f32 %v6802, %v7125
        %v7158 = vadd.f32 %v6803, %v7126
        %v7159 = vadd.f32 %v6804, %v7127
        %v7160 = vadd.f32 %v6805, %v7128
        %v7161 = vadd.f32 %v6806, %v7129
        %v7162 = vadd.f32 %v6807, %v7130
        %v7163 = vadd.f32 %v6808, %v7131
        %v7164 = vadd.f32 %v6809, %v7132
        %v7165 = vadd.f32 %v6810, %v7133
        %v7166 = vadd.f32 %v6811, %v7134
        %v7167 = vadd.f32 %v6812, %v7135
        %v7168 = vadd.f32 %v6813, %v7136
        %v7169 = vadd.f32 %v6814, %v7137
        %v7170 = vadd.f32 %v6815, %v7138
        %v7171 = vadd.f32 %v6816, %v7139
        %v7172 = vadd.f32 %v6817, %v7140
        %v7173 = vadd.f32 %v6818, %v7141
        %v7174 = vadd.f32 %v6819, %v7142
        %v7175 = vadd.f32 %v6820, %v7143
        %v7176 = vadd.f32 %v6821, %v7144
        %v7177 = vadd.f32 %v6822, %v7145
        %v7178 = vadd.f32 %v6823, %v7146
        %v7179 = vadd.f32 %v6824, %v7147
        %v7180 = vadd.f32 %v6825, %v7148
        %v7181 = vld [vmem:[%s6 + $0x1] sm:$0x1]
        %v7182 = vperm.slane %v7181, 0
        %v7183 = vmul.f32 %v7182, 0.0
        %v7184 = vmul.f32 %v5961, %v7182
        %v7185 = vmul.f32 %v5962, %v7182
        %v7186 = vmul.f32 %v5963, %v7182
        %v7187 = vmul.f32 %v5964, %v7182
        %v7188 = vmul.f32 %v5965, %v7182
        %v7189 = vmul.f32 %v5966, %v7182
        %v7190 = vmul.f32 %v5967, %v7182
        %v7191 = vmul.f32 %v5968, %v7182
        %v7192 = vmul.f32 %v5969, %v7182
        %v7193 = vmul.f32 %v5970, %v7182
        %v7194 = vmul.f32 %v5971, %v7182
        %v7195 = vmul.f32 %v5972, %v7182
        %v7196 = vmul.f32 %v5973, %v7182
        %v7197 = vmul.f32 %v5974, %v7182
        %v7198 = vmul.f32 %v5975, %v7182
        %v7199 = vmul.f32 %v5976, %v7182
        %v7200 = vmul.f32 %v5977, %v7182
        %v7201 = vmul.f32 %v5978, %v7182
        %v7202 = vmul.f32 %v5979, %v7182
        %v7203 = vmul.f32 %v5980, %v7182
        %v7204 = vmul.f32 %v5981, %v7182
        %v7205 = vmul.f32 %v5982, %v7182
        %v7206 = vmul.f32 %v5983, %v7182
        %v7207 = vmul.f32 %v5984, %v7182
        %v7208 = vmul.f32 %v5985, %v7182
        %v7209 = vmul.f32 %v5986, %v7182
        %v7210 = vmul.f32 %v5987, %v7182
        %v7211 = vmul.f32 %v5988, %v7182
        %v7212 = vadd.f32 %v7149, %v7183
        %v7213 = vadd.f32 %v7150, %v7183
        %v7214 = vadd.f32 %v7151, %v7183
        %v7215 = vadd.f32 %v7152, %v7183
        %v7216 = vadd.f32 %v7153, %v7184
        %v7217 = vadd.f32 %v7154, %v7185
        %v7218 = vadd.f32 %v7155, %v7186
        %v7219 = vadd.f32 %v7156, %v7187
        %v7220 = vadd.f32 %v7157, %v7188
        %v7221 = vadd.f32 %v7158, %v7189
        %v7222 = vadd.f32 %v7159, %v7190
        %v7223 = vadd.f32 %v7160, %v7191
        %v7224 = vadd.f32 %v7161, %v7192
        %v7225 = vadd.f32 %v7162, %v7193
        %v7226 = vadd.f32 %v7163, %v7194
        %v7227 = vadd.f32 %v7164, %v7195
        %v7228 = vadd.f32 %v7165, %v7196
        %v7229 = vadd.f32 %v7166, %v7197
        %v7230 = vadd.f32 %v7167, %v7198
        %v7231 = vadd.f32 %v7168, %v7199
        %v7232 = vadd.f32 %v7169, %v7200
        %v7233 = vadd.f32 %v7170, %v7201
        %v7234 = vadd.f32 %v7171, %v7202
        %v7235 = vadd.f32 %v7172, %v7203
        %v7236 = vadd.f32 %v7173, %v7204
        %v7237 = vadd.f32 %v7174, %v7205
        %v7238 = vadd.f32 %v7175, %v7206
        %v7239 = vadd.f32 %v7176, %v7207
        %v7240 = vadd.f32 %v7177, %v7208
        %v7241 = vadd.f32 %v7178, %v7209
        %v7242 = vadd.f32 %v7179, %v7210
        %v7243 = vadd.f32 %v7180, %v7211
        %v7244 = vrot.slane %v5961, 7
        %v7245 = vrot.slane %v5962, 7
        %v7246 = vrot.slane %v5963, 7
        %v7247 = vrot.slane %v5964, 7
        %v7248 = vrot.slane %v5965, 7
        %v7249 = vrot.slane %v5966, 7
        %v7250 = vrot.slane %v5967, 7
        %v7251 = vrot.slane %v5968, 7
        %v7252 = vrot.slane %v5969, 7
        %v7253 = vrot.slane %v5970, 7
        %v7254 = vrot.slane %v5971, 7
        %v7255 = vrot.slane %v5972, 7
        %v7256 = vrot.slane %v5973, 7
        %v7257 = vrot.slane %v5974, 7
        %v7258 = vrot.slane %v5975, 7
        %v7259 = vrot.slane %v5976, 7
        %v7260 = vrot.slane %v5977, 7
        %v7261 = vrot.slane %v5978, 7
        %v7262 = vrot.slane %v5979, 7
        %v7263 = vrot.slane %v5980, 7
        %v7264 = vrot.slane %v5981, 7
        %v7265 = vrot.slane %v5982, 7
        %v7266 = vrot.slane %v5983, 7
        %v7267 = vrot.slane %v5984, 7
        %v7268 = vrot.slane %v5985, 7
        %v7269 = vrot.slane %v5986, 7
        %v7270 = vrot.slane %v5987, 7
        %v7271 = vrot.slane %v5988, 7
        %v7272 = vrot.slane %v5989, 7
        %v7273 = vrot.slane %v5990, 7
        %v7274 = vrot.slane %v5991, 7
        %v7275 = vrot.slane %v5992, 7
        %vm7276 = vcmp.lt.s32.totalorder %v5994, 1
        %v7277 = vsel %vm7276, %v7274, %v7275
        %v7278 = vsel %vm7276, %v7273, %v7274
        %v7279 = vsel %vm7276, %v7272, %v7273
        %v7280 = vsel %vm7276, %v7271, %v7272
        %v7281 = vsel %vm7276, %v7270, %v7271
        %v7282 = vsel %vm7276, %v7269, %v7270
        %v7283 = vsel %vm7276, %v7268, %v7269
        %v7284 = vsel %vm7276, %v7267, %v7268
        %v7285 = vsel %vm7276, %v7266, %v7267
        %v7286 = vsel %vm7276, %v7265, %v7266
        %v7287 = vsel %vm7276, %v7264, %v7265
        %v7288 = vsel %vm7276, %v7263, %v7264
        %v7289 = vsel %vm7276, %v7262, %v7263
        %v7290 = vsel %vm7276, %v7261, %v7262
        %v7291 = vsel %vm7276, %v7260, %v7261
        %v7292 = vsel %vm7276, %v7259, %v7260
        %v7293 = vsel %vm7276, %v7258, %v7259
        %v7294 = vsel %vm7276, %v7257, %v7258
        %v7295 = vsel %vm7276, %v7256, %v7257
        %v7296 = vsel %vm7276, %v7255, %v7256
        %v7297 = vsel %vm7276, %v7254, %v7255
        %v7298 = vsel %vm7276, %v7253, %v7254
        %v7299 = vsel %vm7276, %v7252, %v7253
        %v7300 = vsel %vm7276, %v7251, %v7252
        %v7301 = vsel %vm7276, %v7250, %v7251
        %v7302 = vsel %vm7276, %v7249, %v7250
        %v7303 = vsel %vm7276, %v7248, %v7249
        %v7304 = vsel %vm7276, %v7247, %v7248
        %v7305 = vsel %vm7276, %v7246, %v7247
        %v7306 = vsel %vm7276, %v7245, %v7246
        %v7307 = vsel %vm7276, %v7244, %v7245
        %v7308 = vsel %vm7276, %v7275, %v7244
        %v7309 = vadd.s32 %v6378, 4294967295
        %v7310 = vadd.s32 %v6379, 4294967295
        %v7311 = vadd.s32 %v6380, 4294967295
        %v7312 = vadd.s32 %v6381, 4294967295
        %v7313 = vadd.s32 %v6382, 4294967295
        %v7314 = vadd.s32 %v6383, 4294967295
        %v7315 = vadd.s32 %v6384, 4294967295
        %v7316 = vadd.s32 %v6385, 4294967295
        %v7317 = vadd.s32 %v6386, 4294967295
        %v7318 = vadd.s32 %v6387, 4294967295
        %v7319 = vadd.s32 %v6388, 4294967295
        %v7320 = vadd.s32 %v6389, 4294967295
        %v7321 = vadd.s32 %v6390, 4294967295
        %v7322 = vadd.s32 %v6391, 4294967295
        %v7323 = vadd.s32 %v6392, 4294967295
        %v7324 = vadd.s32 %v6393, 4294967295
        %v7325 = vadd.s32 %v6394, 4294967295
        %v7326 = vadd.s32 %v6395, 4294967295
        %v7327 = vadd.s32 %v6396, 4294967295
        %v7328 = vadd.s32 %v6397, 4294967295
        %v7329 = vadd.s32 %v6398, 4294967295
        %v7330 = vadd.s32 %v6399, 4294967295
        %v7331 = vadd.s32 %v6400, 4294967295
        %v7332 = vadd.s32 %v6401, 4294967295
        %v7333 = vadd.s32 %v6402, 4294967295
        %v7334 = vadd.s32 %v6403, 4294967295
        %v7335 = vadd.s32 %v6404, 4294967295
        %v7336 = vadd.s32 %v6405, 4294967295
        %v7337 = vadd.s32 %v6406, 4294967295
        %v7338 = vadd.s32 %v6407, 4294967295
        %v7339 = vadd.s32 %v6408, 4294967295
        %v7340 = vadd.s32 %v6409, 4294967295
        %vm7341 = vcmp.ge.s32.totalorder %v7309, 0
        %vm7342 = vcmp.ge.s32.totalorder %v7310, 0
        %vm7343 = vcmp.ge.s32.totalorder %v7311, 0
        %vm7344 = vcmp.ge.s32.totalorder %v7312, 0
        %vm7345 = vcmp.ge.s32.totalorder %v7313, 0
        %vm7346 = vcmp.ge.s32.totalorder %v7314, 0
        %vm7347 = vcmp.ge.s32.totalorder %v7315, 0
        %vm7348 = vcmp.ge.s32.totalorder %v7316, 0
        %vm7349 = vcmp.ge.s32.totalorder %v7317, 0
        %vm7350 = vcmp.ge.s32.totalorder %v7318, 0
        %vm7351 = vcmp.ge.s32.totalorder %v7319, 0
        %vm7352 = vcmp.ge.s32.totalorder %v7320, 0
        %vm7353 = vcmp.ge.s32.totalorder %v7321, 0
        %vm7354 = vcmp.ge.s32.totalorder %v7322, 0
        %vm7355 = vcmp.ge.s32.totalorder %v7323, 0
        %vm7356 = vcmp.ge.s32.totalorder %v7324, 0
        %vm7357 = vcmp.ge.s32.totalorder %v7325, 0
        %vm7358 = vcmp.ge.s32.totalorder %v7326, 0
        %vm7359 = vcmp.ge.s32.totalorder %v7327, 0
        %vm7360 = vcmp.ge.s32.totalorder %v7328, 0
        %vm7361 = vcmp.ge.s32.totalorder %v7329, 0
        %vm7362 = vcmp.ge.s32.totalorder %v7330, 0
        %vm7363 = vcmp.ge.s32.totalorder %v7331, 0
        %vm7364 = vcmp.ge.s32.totalorder %v7332, 0
        %vm7365 = vcmp.ge.s32.totalorder %v7333, 0
        %vm7366 = vcmp.ge.s32.totalorder %v7334, 0
        %vm7367 = vcmp.ge.s32.totalorder %v7335, 0
        %vm7368 = vcmp.ge.s32.totalorder %v7336, 0
        %vm7369 = vcmp.ge.s32.totalorder %v7337, 0
        %vm7370 = vcmp.ge.s32.totalorder %v7338, 0
        %vm7371 = vcmp.ge.s32.totalorder %v7339, 0
        %vm7372 = vcmp.ge.s32.totalorder %v7340, 0
        %vm7373 = vcmp.lt.s32.totalorder %v7309, 16
        %vm7374 = vcmp.lt.s32.totalorder %v7310, 16
        %vm7375 = vcmp.lt.s32.totalorder %v7311, 16
        %vm7376 = vcmp.lt.s32.totalorder %v7312, 16
        %vm7377 = vcmp.lt.s32.totalorder %v7313, 16
        %vm7378 = vcmp.lt.s32.totalorder %v7314, 16
        %vm7379 = vcmp.lt.s32.totalorder %v7315, 16
        %vm7380 = vcmp.lt.s32.totalorder %v7316, 16
        %vm7381 = vcmp.lt.s32.totalorder %v7317, 16
        %vm7382 = vcmp.lt.s32.totalorder %v7318, 16
        %vm7383 = vcmp.lt.s32.totalorder %v7319, 16
        %vm7384 = vcmp.lt.s32.totalorder %v7320, 16
        %vm7385 = vcmp.lt.s32.totalorder %v7321, 16
        %vm7386 = vcmp.lt.s32.totalorder %v7322, 16
        %vm7387 = vcmp.lt.s32.totalorder %v7323, 16
        %vm7388 = vcmp.lt.s32.totalorder %v7324, 16
        %vm7389 = vcmp.lt.s32.totalorder %v7325, 16
        %vm7390 = vcmp.lt.s32.totalorder %v7326, 16
        %vm7391 = vcmp.lt.s32.totalorder %v7327, 16
        %vm7392 = vcmp.lt.s32.totalorder %v7328, 16
        %vm7393 = vcmp.lt.s32.totalorder %v7329, 16
        %vm7394 = vcmp.lt.s32.totalorder %v7330, 16
        %vm7395 = vcmp.lt.s32.totalorder %v7331, 16
        %vm7396 = vcmp.lt.s32.totalorder %v7332, 16
        %vm7397 = vcmp.lt.s32.totalorder %v7333, 16
        %vm7398 = vcmp.lt.s32.totalorder %v7334, 16
        %vm7399 = vcmp.lt.s32.totalorder %v7335, 16
        %vm7400 = vcmp.lt.s32.totalorder %v7336, 16
        %vm7401 = vcmp.lt.s32.totalorder %v7337, 16
        %vm7402 = vcmp.lt.s32.totalorder %v7338, 16
        %vm7403 = vcmp.lt.s32.totalorder %v7339, 16
        %vm7404 = vcmp.lt.s32.totalorder %v7340, 16
        %vm7405 = vmand %vm7341, %vm7373
        %vm7406 = vmand %vm7342, %vm7374
        %vm7407 = vmand %vm7343, %vm7375
        %vm7408 = vmand %vm7344, %vm7376
        %vm7409 = vmand %vm7345, %vm7377
        %vm7410 = vmand %vm7346, %vm7378
        %vm7411 = vmand %vm7347, %vm7379
        %vm7412 = vmand %vm7348, %vm7380
        %vm7413 = vmand %vm7349, %vm7381
        %vm7414 = vmand %vm7350, %vm7382
        %vm7415 = vmand %vm7351, %vm7383
        %vm7416 = vmand %vm7352, %vm7384
        %vm7417 = vmand %vm7353, %vm7385
        %vm7418 = vmand %vm7354, %vm7386
        %vm7419 = vmand %vm7355, %vm7387
        %vm7420 = vmand %vm7356, %vm7388
        %vm7421 = vmand %vm7357, %vm7389
        %vm7422 = vmand %vm7358, %vm7390
        %vm7423 = vmand %vm7359, %vm7391
        %vm7424 = vmand %vm7360, %vm7392
        %vm7425 = vmand %vm7361, %vm7393
        %vm7426 = vmand %vm7362, %vm7394
        %vm7427 = vmand %vm7363, %vm7395
        %vm7428 = vmand %vm7364, %vm7396
        %vm7429 = vmand %vm7365, %vm7397
        %vm7430 = vmand %vm7366, %vm7398
        %vm7431 = vmand %vm7367, %vm7399
        %vm7432 = vmand %vm7368, %vm7400
        %vm7433 = vmand %vm7369, %vm7401
        %vm7434 = vmand %vm7370, %vm7402
        %vm7435 = vmand %vm7371, %vm7403
        %vm7436 = vmand %vm7372, %vm7404
        %v7437 = vsel %vm7405, 1, 0
        %v7438 = vsel %vm7406, 1, 0
        %v7439 = vsel %vm7407, 1, 0
        %v7440 = vsel %vm7408, 1, 0
        %v7441 = vsel %vm7409, 1, 0
        %v7442 = vsel %vm7410, 1, 0
        %v7443 = vsel %vm7411, 1, 0
        %v7444 = vsel %vm7412, 1, 0
        %v7445 = vsel %vm7413, 1, 0
        %v7446 = vsel %vm7414, 1, 0
        %v7447 = vsel %vm7415, 1, 0
        %v7448 = vsel %vm7416, 1, 0
        %v7449 = vsel %vm7417, 1, 0
        %v7450 = vsel %vm7418, 1, 0
        %v7451 = vsel %vm7419, 1, 0
        %v7452 = vsel %vm7420, 1, 0
        %v7453 = vsel %vm7421, 1, 0
        %v7454 = vsel %vm7422, 1, 0
        %v7455 = vsel %vm7423, 1, 0
        %v7456 = vsel %vm7424, 1, 0
        %v7457 = vsel %vm7425, 1, 0
        %v7458 = vsel %vm7426, 1, 0
        %v7459 = vsel %vm7427, 1, 0
        %v7460 = vsel %vm7428, 1, 0
        %v7461 = vsel %vm7429, 1, 0
        %v7462 = vsel %vm7430, 1, 0
        %v7463 = vsel %vm7431, 1, 0
        %v7464 = vsel %vm7432, 1, 0
        %v7465 = vsel %vm7433, 1, 0
        %v7466 = vsel %vm7434, 1, 0
        %v7467 = vsel %vm7435, 1, 0
        %v7468 = vsel %vm7436, 1, 0
        %vm7469 = vcmp.eq.s32.totalorder %v7437, 1
        %vm7470 = vcmp.eq.s32.totalorder %v7438, 1
        %vm7471 = vcmp.eq.s32.totalorder %v7439, 1
        %vm7472 = vcmp.eq.s32.totalorder %v7440, 1
        %vm7473 = vcmp.eq.s32.totalorder %v7441, 1
        %vm7474 = vcmp.eq.s32.totalorder %v7442, 1
        %vm7475 = vcmp.eq.s32.totalorder %v7443, 1
        %vm7476 = vcmp.eq.s32.totalorder %v7444, 1
        %vm7477 = vcmp.eq.s32.totalorder %v7445, 1
        %vm7478 = vcmp.eq.s32.totalorder %v7446, 1
        %vm7479 = vcmp.eq.s32.totalorder %v7447, 1
        %vm7480 = vcmp.eq.s32.totalorder %v7448, 1
        %vm7481 = vcmp.eq.s32.totalorder %v7449, 1
        %vm7482 = vcmp.eq.s32.totalorder %v7450, 1
        %vm7483 = vcmp.eq.s32.totalorder %v7451, 1
        %vm7484 = vcmp.eq.s32.totalorder %v7452, 1
        %vm7485 = vcmp.eq.s32.totalorder %v7453, 1
        %vm7486 = vcmp.eq.s32.totalorder %v7454, 1
        %vm7487 = vcmp.eq.s32.totalorder %v7455, 1
        %vm7488 = vcmp.eq.s32.totalorder %v7456, 1
        %vm7489 = vcmp.eq.s32.totalorder %v7457, 1
        %vm7490 = vcmp.eq.s32.totalorder %v7458, 1
        %vm7491 = vcmp.eq.s32.totalorder %v7459, 1
        %vm7492 = vcmp.eq.s32.totalorder %v7460, 1
        %vm7493 = vcmp.eq.s32.totalorder %v7461, 1
        %vm7494 = vcmp.eq.s32.totalorder %v7462, 1
        %vm7495 = vcmp.eq.s32.totalorder %v7463, 1
        %vm7496 = vcmp.eq.s32.totalorder %v7464, 1
        %vm7497 = vcmp.eq.s32.totalorder %v7465, 1
        %vm7498 = vcmp.eq.s32.totalorder %v7466, 1
        %vm7499 = vcmp.eq.s32.totalorder %v7467, 1
        %vm7500 = vcmp.eq.s32.totalorder %v7468, 1
        %v7501 = vsel %vm7469, %v7308, 0.0
        %v7502 = vsel %vm7470, %v7307, 0.0
        %v7503 = vsel %vm7471, %v7306, 0.0
        %v7504 = vsel %vm7472, %v7305, 0.0
        %v7505 = vsel %vm7473, %v7304, 0.0
        %v7506 = vsel %vm7474, %v7303, 0.0
        %v7507 = vsel %vm7475, %v7302, 0.0
        %v7508 = vsel %vm7476, %v7301, 0.0
        %v7509 = vsel %vm7477, %v7300, 0.0
        %v7510 = vsel %vm7478, %v7299, 0.0
        %v7511 = vsel %vm7479, %v7298, 0.0
        %v7512 = vsel %vm7480, %v7297, 0.0
        %v7513 = vsel %vm7481, %v7296, 0.0
        %v7514 = vsel %vm7482, %v7295, 0.0
        %v7515 = vsel %vm7483, %v7294, 0.0
        %v7516 = vsel %vm7484, %v7293, 0.0
        %v7517 = vsel %vm7485, %v7292, 0.0
        %v7518 = vsel %vm7486, %v7291, 0.0
        %v7519 = vsel %vm7487, %v7290, 0.0
        %v7520 = vsel %vm7488, %v7289, 0.0
        %v7521 = vsel %vm7489, %v7288, 0.0
        %v7522 = vsel %vm7490, %v7287, 0.0
        %v7523 = vsel %vm7491, %v7286, 0.0
        %v7524 = vsel %vm7492, %v7285, 0.0
        %v7525 = vsel %vm7493, %v7284, 0.0
        %v7526 = vsel %vm7494, %v7283, 0.0
        %v7527 = vsel %vm7495, %v7282, 0.0
        %v7528 = vsel %vm7496, %v7281, 0.0
        %v7529 = vsel %vm7497, %v7280, 0.0
        %v7530 = vsel %vm7498, %v7279, 0.0
        %v7531 = vsel %vm7499, %v7278, 0.0
        %v7532 = vsel %vm7500, %v7277, 0.0
        %v7533 = vld [vmem:[%s5 + $0x2] sm:$0x1]
        %v7534 = vperm.slane %v7533, 0
        %v7535 = vmul.f32 %v7501, %v7534
        %v7536 = vmul.f32 %v7502, %v7534
        %v7537 = vmul.f32 %v7503, %v7534
        %v7538 = vmul.f32 %v7504, %v7534
        %v7539 = vmul.f32 %v7505, %v7534
        %v7540 = vmul.f32 %v7506, %v7534
        %v7541 = vmul.f32 %v7507, %v7534
        %v7542 = vmul.f32 %v7508, %v7534
        %v7543 = vmul.f32 %v7509, %v7534
        %v7544 = vmul.f32 %v7510, %v7534
        %v7545 = vmul.f32 %v7511, %v7534
        %v7546 = vmul.f32 %v7512, %v7534
        %v7547 = vmul.f32 %v7513, %v7534
        %v7548 = vmul.f32 %v7514, %v7534
        %v7549 = vmul.f32 %v7515, %v7534
        %v7550 = vmul.f32 %v7516, %v7534
        %v7551 = vmul.f32 %v7517, %v7534
        %v7552 = vmul.f32 %v7518, %v7534
        %v7553 = vmul.f32 %v7519, %v7534
        %v7554 = vmul.f32 %v7520, %v7534
        %v7555 = vmul.f32 %v7521, %v7534
        %v7556 = vmul.f32 %v7522, %v7534
        %v7557 = vmul.f32 %v7523, %v7534
        %v7558 = vmul.f32 %v7524, %v7534
        %v7559 = vmul.f32 %v7525, %v7534
        %v7560 = vmul.f32 %v7526, %v7534
        %v7561 = vmul.f32 %v7527, %v7534
        %v7562 = vmul.f32 %v7528, %v7534
        %v7563 = vmul.f32 %v7529, %v7534
        %v7564 = vmul.f32 %v7530, %v7534
        %v7565 = vmul.f32 %v7531, %v7534
        %v7566 = vmul.f32 %v7532, %v7534
        %v7567 = vadd.f32 %v7212, %v7535
        %v7568 = vadd.f32 %v7213, %v7536
        %v7569 = vadd.f32 %v7214, %v7537
        %v7570 = vadd.f32 %v7215, %v7538
        %v7571 = vadd.f32 %v7216, %v7539
        %v7572 = vadd.f32 %v7217, %v7540
        %v7573 = vadd.f32 %v7218, %v7541
        %v7574 = vadd.f32 %v7219, %v7542
        %v7575 = vadd.f32 %v7220, %v7543
        %v7576 = vadd.f32 %v7221, %v7544
        %v7577 = vadd.f32 %v7222, %v7545
        %v7578 = vadd.f32 %v7223, %v7546
        %v7579 = vadd.f32 %v7224, %v7547
        %v7580 = vadd.f32 %v7225, %v7548
        %v7581 = vadd.f32 %v7226, %v7549
        %v7582 = vadd.f32 %v7227, %v7550
        %v7583 = vadd.f32 %v7228, %v7551
        %v7584 = vadd.f32 %v7229, %v7552
        %v7585 = vadd.f32 %v7230, %v7553
        %v7586 = vadd.f32 %v7231, %v7554
        %v7587 = vadd.f32 %v7232, %v7555
        %v7588 = vadd.f32 %v7233, %v7556
        %v7589 = vadd.f32 %v7234, %v7557
        %v7590 = vadd.f32 %v7235, %v7558
        %v7591 = vadd.f32 %v7236, %v7559
        %v7592 = vadd.f32 %v7237, %v7560
        %v7593 = vadd.f32 %v7238, %v7561
        %v7594 = vadd.f32 %v7239, %v7562
        %v7595 = vadd.f32 %v7240, %v7563
        %v7596 = vadd.f32 %v7241, %v7564
        %v7597 = vadd.f32 %v7242, %v7565
        %v7598 = vadd.f32 %v7243, %v7566
        %v7599 = vld [vmem:[%s6 + $0x2] sm:$0x1]
        %v7600 = vperm.slane %v7599, 0
        %v7601 = vmul.f32 %v7600, 0.0
        %v7602 = vmul.f32 %v5961, %v7600
        %v7603 = vmul.f32 %v5962, %v7600
        %v7604 = vmul.f32 %v5963, %v7600
        %v7605 = vmul.f32 %v5964, %v7600
        %v7606 = vmul.f32 %v5965, %v7600
        %v7607 = vmul.f32 %v5966, %v7600
        %v7608 = vmul.f32 %v5967, %v7600
        %v7609 = vmul.f32 %v5968, %v7600
        %v7610 = vmul.f32 %v5969, %v7600
        %v7611 = vmul.f32 %v5970, %v7600
        %v7612 = vmul.f32 %v5971, %v7600
        %v7613 = vmul.f32 %v5972, %v7600
        %v7614 = vmul.f32 %v5973, %v7600
        %v7615 = vmul.f32 %v5974, %v7600
        %v7616 = vmul.f32 %v5975, %v7600
        %v7617 = vmul.f32 %v5976, %v7600
        %v7618 = vmul.f32 %v5977, %v7600
        %v7619 = vmul.f32 %v5978, %v7600
        %v7620 = vmul.f32 %v5979, %v7600
        %v7621 = vmul.f32 %v5980, %v7600
        %v7622 = vmul.f32 %v5981, %v7600
        %v7623 = vmul.f32 %v5982, %v7600
        %v7624 = vmul.f32 %v5983, %v7600
        %v7625 = vmul.f32 %v5984, %v7600
        %v7626 = vmul.f32 %v5985, %v7600
        %v7627 = vmul.f32 %v5986, %v7600
        %v7628 = vmul.f32 %v5987, %v7600
        %v7629 = vmul.f32 %v5988, %v7600
        %v7630 = vmul.f32 %v5989, %v7600
        %v7631 = vmul.f32 %v5990, %v7600
        %v7632 = vadd.f32 %v7567, %v7601
        %v7633 = vadd.f32 %v7568, %v7601
        %v7634 = vadd.f32 %v7569, %v7602
        %v7635 = vadd.f32 %v7570, %v7603
        %v7636 = vadd.f32 %v7571, %v7604
        %v7637 = vadd.f32 %v7572, %v7605
        %v7638 = vadd.f32 %v7573, %v7606
        %v7639 = vadd.f32 %v7574, %v7607
        %v7640 = vadd.f32 %v7575, %v7608
        %v7641 = vadd.f32 %v7576, %v7609
        %v7642 = vadd.f32 %v7577, %v7610
        %v7643 = vadd.f32 %v7578, %v7611
        %v7644 = vadd.f32 %v7579, %v7612
        %v7645 = vadd.f32 %v7580, %v7613
        %v7646 = vadd.f32 %v7581, %v7614
        %v7647 = vadd.f32 %v7582, %v7615
        %v7648 = vadd.f32 %v7583, %v7616
        %v7649 = vadd.f32 %v7584, %v7617
        %v7650 = vadd.f32 %v7585, %v7618
        %v7651 = vadd.f32 %v7586, %v7619
        %v7652 = vadd.f32 %v7587, %v7620
        %v7653 = vadd.f32 %v7588, %v7621
        %v7654 = vadd.f32 %v7589, %v7622
        %v7655 = vadd.f32 %v7590, %v7623
        %v7656 = vadd.f32 %v7591, %v7624
        %v7657 = vadd.f32 %v7592, %v7625
        %v7658 = vadd.f32 %v7593, %v7626
        %v7659 = vadd.f32 %v7594, %v7627
        %v7660 = vadd.f32 %v7595, %v7628
        %v7661 = vadd.f32 %v7596, %v7629
        %v7662 = vadd.f32 %v7597, %v7630
        %v7663 = vadd.f32 %v7598, %v7631
        %v7664 = vld [vmem:[%s5 + $0x3] sm:$0x1]
        %v7665 = vperm.slane %v7664, 0
        %v7666 = vmul.f32 %v5961, %v7665
        %v7667 = vmul.f32 %v5962, %v7665
        %v7668 = vmul.f32 %v5963, %v7665
        %v7669 = vmul.f32 %v5964, %v7665
        %v7670 = vmul.f32 %v5965, %v7665
        %v7671 = vmul.f32 %v5966, %v7665
        %v7672 = vmul.f32 %v5967, %v7665
        %v7673 = vmul.f32 %v5968, %v7665
        %v7674 = vmul.f32 %v5969, %v7665
        %v7675 = vmul.f32 %v5970, %v7665
        %v7676 = vmul.f32 %v5971, %v7665
        %v7677 = vmul.f32 %v5972, %v7665
        %v7678 = vmul.f32 %v5973, %v7665
        %v7679 = vmul.f32 %v5974, %v7665
        %v7680 = vmul.f32 %v5975, %v7665
        %v7681 = vmul.f32 %v5976, %v7665
        %v7682 = vmul.f32 %v5977, %v7665
        %v7683 = vmul.f32 %v5978, %v7665
        %v7684 = vmul.f32 %v5979, %v7665
        %v7685 = vmul.f32 %v5980, %v7665
        %v7686 = vmul.f32 %v5981, %v7665
        %v7687 = vmul.f32 %v5982, %v7665
        %v7688 = vmul.f32 %v5983, %v7665
        %v7689 = vmul.f32 %v5984, %v7665
        %v7690 = vmul.f32 %v5985, %v7665
        %v7691 = vmul.f32 %v5986, %v7665
        %v7692 = vmul.f32 %v5987, %v7665
        %v7693 = vmul.f32 %v5988, %v7665
        %v7694 = vmul.f32 %v5989, %v7665
        %v7695 = vmul.f32 %v5990, %v7665
        %v7696 = vmul.f32 %v5991, %v7665
        %v7697 = vmul.f32 %v5992, %v7665
        %v7698 = vadd.f32 %v7632, %v7666
        %v7699 = vadd.f32 %v7633, %v7667
        %v7700 = vadd.f32 %v7634, %v7668
        %v7701 = vadd.f32 %v7635, %v7669
        %v7702 = vadd.f32 %v7636, %v7670
        %v7703 = vadd.f32 %v7637, %v7671
        %v7704 = vadd.f32 %v7638, %v7672
        %v7705 = vadd.f32 %v7639, %v7673
        %v7706 = vadd.f32 %v7640, %v7674
        %v7707 = vadd.f32 %v7641, %v7675
        %v7708 = vadd.f32 %v7642, %v7676
        %v7709 = vadd.f32 %v7643, %v7677
        %v7710 = vadd.f32 %v7644, %v7678
        %v7711 = vadd.f32 %v7645, %v7679
        %v7712 = vadd.f32 %v7646, %v7680
        %v7713 = vadd.f32 %v7647, %v7681
        %v7714 = vadd.f32 %v7648, %v7682
        %v7715 = vadd.f32 %v7649, %v7683
        %v7716 = vadd.f32 %v7650, %v7684
        %v7717 = vadd.f32 %v7651, %v7685
        %v7718 = vadd.f32 %v7652, %v7686
        %v7719 = vadd.f32 %v7653, %v7687
        %v7720 = vadd.f32 %v7654, %v7688
        %v7721 = vadd.f32 %v7655, %v7689
        %v7722 = vadd.f32 %v7656, %v7690
        %v7723 = vadd.f32 %v7657, %v7691
        %v7724 = vadd.f32 %v7658, %v7692
        %v7725 = vadd.f32 %v7659, %v7693
        %v7726 = vadd.f32 %v7660, %v7694
        %v7727 = vadd.f32 %v7661, %v7695
        %v7728 = vadd.f32 %v7662, %v7696
        %v7729 = vadd.f32 %v7663, %v7697
        %v7730 = vld [vmem:[%s6 + $0x3] sm:$0x1]
        %v7731 = vperm.slane %v7730, 0
        %v7732 = vmul.f32 %v5961, %v7731
        %v7733 = vmul.f32 %v5962, %v7731
        %v7734 = vmul.f32 %v5963, %v7731
        %v7735 = vmul.f32 %v5964, %v7731
        %v7736 = vmul.f32 %v5965, %v7731
        %v7737 = vmul.f32 %v5966, %v7731
        %v7738 = vmul.f32 %v5967, %v7731
        %v7739 = vmul.f32 %v5968, %v7731
        %v7740 = vmul.f32 %v5969, %v7731
        %v7741 = vmul.f32 %v5970, %v7731
        %v7742 = vmul.f32 %v5971, %v7731
        %v7743 = vmul.f32 %v5972, %v7731
        %v7744 = vmul.f32 %v5973, %v7731
        %v7745 = vmul.f32 %v5974, %v7731
        %v7746 = vmul.f32 %v5975, %v7731
        %v7747 = vmul.f32 %v5976, %v7731
        %v7748 = vmul.f32 %v5977, %v7731
        %v7749 = vmul.f32 %v5978, %v7731
        %v7750 = vmul.f32 %v5979, %v7731
        %v7751 = vmul.f32 %v5980, %v7731
        %v7752 = vmul.f32 %v5981, %v7731
        %v7753 = vmul.f32 %v5982, %v7731
        %v7754 = vmul.f32 %v5983, %v7731
        %v7755 = vmul.f32 %v5984, %v7731
        %v7756 = vmul.f32 %v5985, %v7731
        %v7757 = vmul.f32 %v5986, %v7731
        %v7758 = vmul.f32 %v5987, %v7731
        %v7759 = vmul.f32 %v5988, %v7731
        %v7760 = vmul.f32 %v5989, %v7731
        %v7761 = vmul.f32 %v5990, %v7731
        %v7762 = vmul.f32 %v5991, %v7731
        %v7763 = vmul.f32 %v5992, %v7731
        %v7764 = vadd.f32 %v7698, %v7732
        %v7765 = vadd.f32 %v7699, %v7733
        %v7766 = vadd.f32 %v7700, %v7734
        %v7767 = vadd.f32 %v7701, %v7735
        %v7768 = vadd.f32 %v7702, %v7736
        %v7769 = vadd.f32 %v7703, %v7737
        %v7770 = vadd.f32 %v7704, %v7738
        %v7771 = vadd.f32 %v7705, %v7739
        %v7772 = vadd.f32 %v7706, %v7740
        %v7773 = vadd.f32 %v7707, %v7741
        %v7774 = vadd.f32 %v7708, %v7742
        %v7775 = vadd.f32 %v7709, %v7743
        %v7776 = vadd.f32 %v7710, %v7744
        %v7777 = vadd.f32 %v7711, %v7745
        %v7778 = vadd.f32 %v7712, %v7746
        %v7779 = vadd.f32 %v7713, %v7747
        %v7780 = vadd.f32 %v7714, %v7748
        %v7781 = vadd.f32 %v7715, %v7749
        %v7782 = vadd.f32 %v7716, %v7750
        %v7783 = vadd.f32 %v7717, %v7751
        %v7784 = vadd.f32 %v7718, %v7752
        %v7785 = vadd.f32 %v7719, %v7753
        %v7786 = vadd.f32 %v7720, %v7754
        %v7787 = vadd.f32 %v7721, %v7755
        %v7788 = vadd.f32 %v7722, %v7756
        %v7789 = vadd.f32 %v7723, %v7757
        %v7790 = vadd.f32 %v7724, %v7758
        %v7791 = vadd.f32 %v7725, %v7759
        %v7792 = vadd.f32 %v7726, %v7760
        %v7793 = vadd.f32 %v7727, %v7761
        %v7794 = vadd.f32 %v7728, %v7762
        %v7795 = vadd.f32 %v7729, %v7763
        %v7796 = vrot.slane %v5961, 1
        %v7797 = vrot.slane %v5962, 1
        %v7798 = vrot.slane %v5963, 1
        %v7799 = vrot.slane %v5964, 1
        %v7800 = vrot.slane %v5965, 1
        %v7801 = vrot.slane %v5966, 1
        %v7802 = vrot.slane %v5967, 1
        %v7803 = vrot.slane %v5968, 1
        %v7804 = vrot.slane %v5969, 1
        %v7805 = vrot.slane %v5970, 1
        %v7806 = vrot.slane %v5971, 1
        %v7807 = vrot.slane %v5972, 1
        %v7808 = vrot.slane %v5973, 1
        %v7809 = vrot.slane %v5974, 1
        %v7810 = vrot.slane %v5975, 1
        %v7811 = vrot.slane %v5976, 1
        %v7812 = vrot.slane %v5977, 1
        %v7813 = vrot.slane %v5978, 1
        %v7814 = vrot.slane %v5979, 1
        %v7815 = vrot.slane %v5980, 1
        %v7816 = vrot.slane %v5981, 1
        %v7817 = vrot.slane %v5982, 1
        %v7818 = vrot.slane %v5983, 1
        %v7819 = vrot.slane %v5984, 1
        %v7820 = vrot.slane %v5985, 1
        %v7821 = vrot.slane %v5986, 1
        %v7822 = vrot.slane %v5987, 1
        %v7823 = vrot.slane %v5988, 1
        %v7824 = vrot.slane %v5989, 1
        %v7825 = vrot.slane %v5990, 1
        %v7826 = vrot.slane %v5991, 1
        %v7827 = vrot.slane %v5992, 1
        %vm7828 = vcmp.lt.s32.totalorder %v5994, 7
        %v7829 = vsel %vm7828, %v7826, %v7827
        %v7830 = vsel %vm7828, %v7825, %v7826
        %v7831 = vsel %vm7828, %v7824, %v7825
        %v7832 = vsel %vm7828, %v7823, %v7824
        %v7833 = vsel %vm7828, %v7822, %v7823
        %v7834 = vsel %vm7828, %v7821, %v7822
        %v7835 = vsel %vm7828, %v7820, %v7821
        %v7836 = vsel %vm7828, %v7819, %v7820
        %v7837 = vsel %vm7828, %v7818, %v7819
        %v7838 = vsel %vm7828, %v7817, %v7818
        %v7839 = vsel %vm7828, %v7816, %v7817
        %v7840 = vsel %vm7828, %v7815, %v7816
        %v7841 = vsel %vm7828, %v7814, %v7815
        %v7842 = vsel %vm7828, %v7813, %v7814
        %v7843 = vsel %vm7828, %v7812, %v7813
        %v7844 = vsel %vm7828, %v7811, %v7812
        %v7845 = vsel %vm7828, %v7810, %v7811
        %v7846 = vsel %vm7828, %v7809, %v7810
        %v7847 = vsel %vm7828, %v7808, %v7809
        %v7848 = vsel %vm7828, %v7807, %v7808
        %v7849 = vsel %vm7828, %v7806, %v7807
        %v7850 = vsel %vm7828, %v7805, %v7806
        %v7851 = vsel %vm7828, %v7804, %v7805
        %v7852 = vsel %vm7828, %v7803, %v7804
        %v7853 = vsel %vm7828, %v7802, %v7803
        %v7854 = vsel %vm7828, %v7801, %v7802
        %v7855 = vsel %vm7828, %v7800, %v7801
        %v7856 = vsel %vm7828, %v7799, %v7800
        %v7857 = vsel %vm7828, %v7798, %v7799
        %v7858 = vsel %vm7828, %v7797, %v7798
        %v7859 = vsel %vm7828, %v7796, %v7797
        %v7860 = vsel %vm7828, %v7827, %v7796
        %v7861 = vadd.s32 %v6378, 1
        %v7862 = vadd.s32 %v6379, 1
        %v7863 = vadd.s32 %v6380, 1
        %v7864 = vadd.s32 %v6381, 1
        %v7865 = vadd.s32 %v6382, 1
        %v7866 = vadd.s32 %v6383, 1
        %v7867 = vadd.s32 %v6384, 1
        %v7868 = vadd.s32 %v6385, 1
        %v7869 = vadd.s32 %v6386, 1
        %v7870 = vadd.s32 %v6387, 1
        %v7871 = vadd.s32 %v6388, 1
        %v7872 = vadd.s32 %v6389, 1
        %v7873 = vadd.s32 %v6390, 1
        %v7874 = vadd.s32 %v6391, 1
        %v7875 = vadd.s32 %v6392, 1
        %v7876 = vadd.s32 %v6393, 1
        %v7877 = vadd.s32 %v6394, 1
        %v7878 = vadd.s32 %v6395, 1
        %v7879 = vadd.s32 %v6396, 1
        %v7880 = vadd.s32 %v6397, 1
        %v7881 = vadd.s32 %v6398, 1
        %v7882 = vadd.s32 %v6399, 1
        %v7883 = vadd.s32 %v6400, 1
        %v7884 = vadd.s32 %v6401, 1
        %v7885 = vadd.s32 %v6402, 1
        %v7886 = vadd.s32 %v6403, 1
        %v7887 = vadd.s32 %v6404, 1
        %v7888 = vadd.s32 %v6405, 1
        %v7889 = vadd.s32 %v6406, 1
        %v7890 = vadd.s32 %v6407, 1
        %v7891 = vadd.s32 %v6408, 1
        %v7892 = vadd.s32 %v6409, 1
        %vm7893 = vcmp.ge.s32.totalorder %v7861, 0
        %vm7894 = vcmp.ge.s32.totalorder %v7862, 0
        %vm7895 = vcmp.ge.s32.totalorder %v7863, 0
        %vm7896 = vcmp.ge.s32.totalorder %v7864, 0
        %vm7897 = vcmp.ge.s32.totalorder %v7865, 0
        %vm7898 = vcmp.ge.s32.totalorder %v7866, 0
        %vm7899 = vcmp.ge.s32.totalorder %v7867, 0
        %vm7900 = vcmp.ge.s32.totalorder %v7868, 0
        %vm7901 = vcmp.ge.s32.totalorder %v7869, 0
        %vm7902 = vcmp.ge.s32.totalorder %v7870, 0
        %vm7903 = vcmp.ge.s32.totalorder %v7871, 0
        %vm7904 = vcmp.ge.s32.totalorder %v7872, 0
        %vm7905 = vcmp.ge.s32.totalorder %v7873, 0
        %vm7906 = vcmp.ge.s32.totalorder %v7874, 0
        %vm7907 = vcmp.ge.s32.totalorder %v7875, 0
        %vm7908 = vcmp.ge.s32.totalorder %v7876, 0
        %vm7909 = vcmp.ge.s32.totalorder %v7877, 0
        %vm7910 = vcmp.ge.s32.totalorder %v7878, 0
        %vm7911 = vcmp.ge.s32.totalorder %v7879, 0
        %vm7912 = vcmp.ge.s32.totalorder %v7880, 0
        %vm7913 = vcmp.ge.s32.totalorder %v7881, 0
        %vm7914 = vcmp.ge.s32.totalorder %v7882, 0
        %vm7915 = vcmp.ge.s32.totalorder %v7883, 0
        %vm7916 = vcmp.ge.s32.totalorder %v7884, 0
        %vm7917 = vcmp.ge.s32.totalorder %v7885, 0
        %vm7918 = vcmp.ge.s32.totalorder %v7886, 0
        %vm7919 = vcmp.ge.s32.totalorder %v7887, 0
        %vm7920 = vcmp.ge.s32.totalorder %v7888, 0
        %vm7921 = vcmp.ge.s32.totalorder %v7889, 0
        %vm7922 = vcmp.ge.s32.totalorder %v7890, 0
        %vm7923 = vcmp.ge.s32.totalorder %v7891, 0
        %vm7924 = vcmp.ge.s32.totalorder %v7892, 0
        %vm7925 = vcmp.lt.s32.totalorder %v7861, 16
        %vm7926 = vcmp.lt.s32.totalorder %v7862, 16
        %vm7927 = vcmp.lt.s32.totalorder %v7863, 16
        %vm7928 = vcmp.lt.s32.totalorder %v7864, 16
        %vm7929 = vcmp.lt.s32.totalorder %v7865, 16
        %vm7930 = vcmp.lt.s32.totalorder %v7866, 16
        %vm7931 = vcmp.lt.s32.totalorder %v7867, 16
        %vm7932 = vcmp.lt.s32.totalorder %v7868, 16
        %vm7933 = vcmp.lt.s32.totalorder %v7869, 16
        %vm7934 = vcmp.lt.s32.totalorder %v7870, 16
        %vm7935 = vcmp.lt.s32.totalorder %v7871, 16
        %vm7936 = vcmp.lt.s32.totalorder %v7872, 16
        %vm7937 = vcmp.lt.s32.totalorder %v7873, 16
        %vm7938 = vcmp.lt.s32.totalorder %v7874, 16
        %vm7939 = vcmp.lt.s32.totalorder %v7875, 16
        %vm7940 = vcmp.lt.s32.totalorder %v7876, 16
        %vm7941 = vcmp.lt.s32.totalorder %v7877, 16
        %vm7942 = vcmp.lt.s32.totalorder %v7878, 16
        %vm7943 = vcmp.lt.s32.totalorder %v7879, 16
        %vm7944 = vcmp.lt.s32.totalorder %v7880, 16
        %vm7945 = vcmp.lt.s32.totalorder %v7881, 16
        %vm7946 = vcmp.lt.s32.totalorder %v7882, 16
        %vm7947 = vcmp.lt.s32.totalorder %v7883, 16
        %vm7948 = vcmp.lt.s32.totalorder %v7884, 16
        %vm7949 = vcmp.lt.s32.totalorder %v7885, 16
        %vm7950 = vcmp.lt.s32.totalorder %v7886, 16
        %vm7951 = vcmp.lt.s32.totalorder %v7887, 16
        %vm7952 = vcmp.lt.s32.totalorder %v7888, 16
        %vm7953 = vcmp.lt.s32.totalorder %v7889, 16
        %vm7954 = vcmp.lt.s32.totalorder %v7890, 16
        %vm7955 = vcmp.lt.s32.totalorder %v7891, 16
        %vm7956 = vcmp.lt.s32.totalorder %v7892, 16
        %vm7957 = vmand %vm7893, %vm7925
        %vm7958 = vmand %vm7894, %vm7926
        %vm7959 = vmand %vm7895, %vm7927
        %vm7960 = vmand %vm7896, %vm7928
        %vm7961 = vmand %vm7897, %vm7929
        %vm7962 = vmand %vm7898, %vm7930
        %vm7963 = vmand %vm7899, %vm7931
        %vm7964 = vmand %vm7900, %vm7932
        %vm7965 = vmand %vm7901, %vm7933
        %vm7966 = vmand %vm7902, %vm7934
        %vm7967 = vmand %vm7903, %vm7935
        %vm7968 = vmand %vm7904, %vm7936
        %vm7969 = vmand %vm7905, %vm7937
        %vm7970 = vmand %vm7906, %vm7938
        %vm7971 = vmand %vm7907, %vm7939
        %vm7972 = vmand %vm7908, %vm7940
        %vm7973 = vmand %vm7909, %vm7941
        %vm7974 = vmand %vm7910, %vm7942
        %vm7975 = vmand %vm7911, %vm7943
        %vm7976 = vmand %vm7912, %vm7944
        %vm7977 = vmand %vm7913, %vm7945
        %vm7978 = vmand %vm7914, %vm7946
        %vm7979 = vmand %vm7915, %vm7947
        %vm7980 = vmand %vm7916, %vm7948
        %vm7981 = vmand %vm7917, %vm7949
        %vm7982 = vmand %vm7918, %vm7950
        %vm7983 = vmand %vm7919, %vm7951
        %vm7984 = vmand %vm7920, %vm7952
        %vm7985 = vmand %vm7921, %vm7953
        %vm7986 = vmand %vm7922, %vm7954
        %vm7987 = vmand %vm7923, %vm7955
        %vm7988 = vmand %vm7924, %vm7956
        %v7989 = vsel %vm7957, 1, 0
        %v7990 = vsel %vm7958, 1, 0
        %v7991 = vsel %vm7959, 1, 0
        %v7992 = vsel %vm7960, 1, 0
        %v7993 = vsel %vm7961, 1, 0
        %v7994 = vsel %vm7962, 1, 0
        %v7995 = vsel %vm7963, 1, 0
        %v7996 = vsel %vm7964, 1, 0
        %v7997 = vsel %vm7965, 1, 0
        %v7998 = vsel %vm7966, 1, 0
        %v7999 = vsel %vm7967, 1, 0
        %v8000 = vsel %vm7968, 1, 0
        %v8001 = vsel %vm7969, 1, 0
        %v8002 = vsel %vm7970, 1, 0
        %v8003 = vsel %vm7971, 1, 0
        %v8004 = vsel %vm7972, 1, 0
        %v8005 = vsel %vm7973, 1, 0
        %v8006 = vsel %vm7974, 1, 0
        %v8007 = vsel %vm7975, 1, 0
        %v8008 = vsel %vm7976, 1, 0
        %v8009 = vsel %vm7977, 1, 0
        %v8010 = vsel %vm7978, 1, 0
        %v8011 = vsel %vm7979, 1, 0
        %v8012 = vsel %vm7980, 1, 0
        %v8013 = vsel %vm7981, 1, 0
        %v8014 = vsel %vm7982, 1, 0
        %v8015 = vsel %vm7983, 1, 0
        %v8016 = vsel %vm7984, 1, 0
        %v8017 = vsel %vm7985, 1, 0
        %v8018 = vsel %vm7986, 1, 0
        %v8019 = vsel %vm7987, 1, 0
        %v8020 = vsel %vm7988, 1, 0
        %vm8021 = vcmp.eq.s32.totalorder %v7989, 1
        %vm8022 = vcmp.eq.s32.totalorder %v7990, 1
        %vm8023 = vcmp.eq.s32.totalorder %v7991, 1
        %vm8024 = vcmp.eq.s32.totalorder %v7992, 1
        %vm8025 = vcmp.eq.s32.totalorder %v7993, 1
        %vm8026 = vcmp.eq.s32.totalorder %v7994, 1
        %vm8027 = vcmp.eq.s32.totalorder %v7995, 1
        %vm8028 = vcmp.eq.s32.totalorder %v7996, 1
        %vm8029 = vcmp.eq.s32.totalorder %v7997, 1
        %vm8030 = vcmp.eq.s32.totalorder %v7998, 1
        %vm8031 = vcmp.eq.s32.totalorder %v7999, 1
        %vm8032 = vcmp.eq.s32.totalorder %v8000, 1
        %vm8033 = vcmp.eq.s32.totalorder %v8001, 1
        %vm8034 = vcmp.eq.s32.totalorder %v8002, 1
        %vm8035 = vcmp.eq.s32.totalorder %v8003, 1
        %vm8036 = vcmp.eq.s32.totalorder %v8004, 1
        %vm8037 = vcmp.eq.s32.totalorder %v8005, 1
        %vm8038 = vcmp.eq.s32.totalorder %v8006, 1
        %vm8039 = vcmp.eq.s32.totalorder %v8007, 1
        %vm8040 = vcmp.eq.s32.totalorder %v8008, 1
        %vm8041 = vcmp.eq.s32.totalorder %v8009, 1
        %vm8042 = vcmp.eq.s32.totalorder %v8010, 1
        %vm8043 = vcmp.eq.s32.totalorder %v8011, 1
        %vm8044 = vcmp.eq.s32.totalorder %v8012, 1
        %vm8045 = vcmp.eq.s32.totalorder %v8013, 1
        %vm8046 = vcmp.eq.s32.totalorder %v8014, 1
        %vm8047 = vcmp.eq.s32.totalorder %v8015, 1
        %vm8048 = vcmp.eq.s32.totalorder %v8016, 1
        %vm8049 = vcmp.eq.s32.totalorder %v8017, 1
        %vm8050 = vcmp.eq.s32.totalorder %v8018, 1
        %vm8051 = vcmp.eq.s32.totalorder %v8019, 1
        %vm8052 = vcmp.eq.s32.totalorder %v8020, 1
        %v8053 = vsel %vm8021, %v7859, 0.0
        %v8054 = vsel %vm8022, %v7858, 0.0
        %v8055 = vsel %vm8023, %v7857, 0.0
        %v8056 = vsel %vm8024, %v7856, 0.0
        %v8057 = vsel %vm8025, %v7855, 0.0
        %v8058 = vsel %vm8026, %v7854, 0.0
        %v8059 = vsel %vm8027, %v7853, 0.0
        %v8060 = vsel %vm8028, %v7852, 0.0
        %v8061 = vsel %vm8029, %v7851, 0.0
        %v8062 = vsel %vm8030, %v7850, 0.0
        %v8063 = vsel %vm8031, %v7849, 0.0
        %v8064 = vsel %vm8032, %v7848, 0.0
        %v8065 = vsel %vm8033, %v7847, 0.0
        %v8066 = vsel %vm8034, %v7846, 0.0
        %v8067 = vsel %vm8035, %v7845, 0.0
        %v8068 = vsel %vm8036, %v7844, 0.0
        %v8069 = vsel %vm8037, %v7843, 0.0
        %v8070 = vsel %vm8038, %v7842, 0.0
        %v8071 = vsel %vm8039, %v7841, 0.0
        %v8072 = vsel %vm8040, %v7840, 0.0
        %v8073 = vsel %vm8041, %v7839, 0.0
        %v8074 = vsel %vm8042, %v7838, 0.0
        %v8075 = vsel %vm8043, %v7837, 0.0
        %v8076 = vsel %vm8044, %v7836, 0.0
        %v8077 = vsel %vm8045, %v7835, 0.0
        %v8078 = vsel %vm8046, %v7834, 0.0
        %v8079 = vsel %vm8047, %v7833, 0.0
        %v8080 = vsel %vm8048, %v7832, 0.0
        %v8081 = vsel %vm8049, %v7831, 0.0
        %v8082 = vsel %vm8050, %v7830, 0.0
        %v8083 = vsel %vm8051, %v7829, 0.0
        %v8084 = vsel %vm8052, %v7860, 0.0
        %v8085 = vld [vmem:[%s5 + $0x4] sm:$0x1]
        %v8086 = vperm.slane %v8085, 0
        %v8087 = vmul.f32 %v8053, %v8086
        %v8088 = vmul.f32 %v8054, %v8086
        %v8089 = vmul.f32 %v8055, %v8086
        %v8090 = vmul.f32 %v8056, %v8086
        %v8091 = vmul.f32 %v8057, %v8086
        %v8092 = vmul.f32 %v8058, %v8086
        %v8093 = vmul.f32 %v8059, %v8086
        %v8094 = vmul.f32 %v8060, %v8086
        %v8095 = vmul.f32 %v8061, %v8086
        %v8096 = vmul.f32 %v8062, %v8086
        %v8097 = vmul.f32 %v8063, %v8086
        %v8098 = vmul.f32 %v8064, %v8086
        %v8099 = vmul.f32 %v8065, %v8086
        %v8100 = vmul.f32 %v8066, %v8086
        %v8101 = vmul.f32 %v8067, %v8086
        %v8102 = vmul.f32 %v8068, %v8086
        %v8103 = vmul.f32 %v8069, %v8086
        %v8104 = vmul.f32 %v8070, %v8086
        %v8105 = vmul.f32 %v8071, %v8086
        %v8106 = vmul.f32 %v8072, %v8086
        %v8107 = vmul.f32 %v8073, %v8086
        %v8108 = vmul.f32 %v8074, %v8086
        %v8109 = vmul.f32 %v8075, %v8086
        %v8110 = vmul.f32 %v8076, %v8086
        %v8111 = vmul.f32 %v8077, %v8086
        %v8112 = vmul.f32 %v8078, %v8086
        %v8113 = vmul.f32 %v8079, %v8086
        %v8114 = vmul.f32 %v8080, %v8086
        %v8115 = vmul.f32 %v8081, %v8086
        %v8116 = vmul.f32 %v8082, %v8086
        %v8117 = vmul.f32 %v8083, %v8086
        %v8118 = vmul.f32 %v8084, %v8086
        %v8119 = vadd.f32 %v7764, %v8087
        %v8120 = vadd.f32 %v7765, %v8088
        %v8121 = vadd.f32 %v7766, %v8089
        %v8122 = vadd.f32 %v7767, %v8090
        %v8123 = vadd.f32 %v7768, %v8091
        %v8124 = vadd.f32 %v7769, %v8092
        %v8125 = vadd.f32 %v7770, %v8093
        %v8126 = vadd.f32 %v7771, %v8094
        %v8127 = vadd.f32 %v7772, %v8095
        %v8128 = vadd.f32 %v7773, %v8096
        %v8129 = vadd.f32 %v7774, %v8097
        %v8130 = vadd.f32 %v7775, %v8098
        %v8131 = vadd.f32 %v7776, %v8099
        %v8132 = vadd.f32 %v7777, %v8100
        %v8133 = vadd.f32 %v7778, %v8101
        %v8134 = vadd.f32 %v7779, %v8102
        %v8135 = vadd.f32 %v7780, %v8103
        %v8136 = vadd.f32 %v7781, %v8104
        %v8137 = vadd.f32 %v7782, %v8105
        %v8138 = vadd.f32 %v7783, %v8106
        %v8139 = vadd.f32 %v7784, %v8107
        %v8140 = vadd.f32 %v7785, %v8108
        %v8141 = vadd.f32 %v7786, %v8109
        %v8142 = vadd.f32 %v7787, %v8110
        %v8143 = vadd.f32 %v7788, %v8111
        %v8144 = vadd.f32 %v7789, %v8112
        %v8145 = vadd.f32 %v7790, %v8113
        %v8146 = vadd.f32 %v7791, %v8114
        %v8147 = vadd.f32 %v7792, %v8115
        %v8148 = vadd.f32 %v7793, %v8116
        %v8149 = vadd.f32 %v7794, %v8117
        %v8150 = vadd.f32 %v7795, %v8118
        %v8151 = vld [vmem:[%s6 + $0x4] sm:$0x1]
        %v8152 = vperm.slane %v8151, 0
        %v8153 = vmul.f32 %v5963, %v8152
        %v8154 = vmul.f32 %v5964, %v8152
        %v8155 = vmul.f32 %v5965, %v8152
        %v8156 = vmul.f32 %v5966, %v8152
        %v8157 = vmul.f32 %v5967, %v8152
        %v8158 = vmul.f32 %v5968, %v8152
        %v8159 = vmul.f32 %v5969, %v8152
        %v8160 = vmul.f32 %v5970, %v8152
        %v8161 = vmul.f32 %v5971, %v8152
        %v8162 = vmul.f32 %v5972, %v8152
        %v8163 = vmul.f32 %v5973, %v8152
        %v8164 = vmul.f32 %v5974, %v8152
        %v8165 = vmul.f32 %v5975, %v8152
        %v8166 = vmul.f32 %v5976, %v8152
        %v8167 = vmul.f32 %v5977, %v8152
        %v8168 = vmul.f32 %v5978, %v8152
        %v8169 = vmul.f32 %v5979, %v8152
        %v8170 = vmul.f32 %v5980, %v8152
        %v8171 = vmul.f32 %v5981, %v8152
        %v8172 = vmul.f32 %v5982, %v8152
        %v8173 = vmul.f32 %v5983, %v8152
        %v8174 = vmul.f32 %v5984, %v8152
        %v8175 = vmul.f32 %v5985, %v8152
        %v8176 = vmul.f32 %v5986, %v8152
        %v8177 = vmul.f32 %v5987, %v8152
        %v8178 = vmul.f32 %v5988, %v8152
        %v8179 = vmul.f32 %v5989, %v8152
        %v8180 = vmul.f32 %v5990, %v8152
        %v8181 = vmul.f32 %v5991, %v8152
        %v8182 = vmul.f32 %v5992, %v8152
        %v8183 = vmul.f32 %v8152, 0.0
        %v8184 = vadd.f32 %v8119, %v8153
        %v8185 = vadd.f32 %v8120, %v8154
        %v8186 = vadd.f32 %v8121, %v8155
        %v8187 = vadd.f32 %v8122, %v8156
        %v8188 = vadd.f32 %v8123, %v8157
        %v8189 = vadd.f32 %v8124, %v8158
        %v8190 = vadd.f32 %v8125, %v8159
        %v8191 = vadd.f32 %v8126, %v8160
        %v8192 = vadd.f32 %v8127, %v8161
        %v8193 = vadd.f32 %v8128, %v8162
        %v8194 = vadd.f32 %v8129, %v8163
        %v8195 = vadd.f32 %v8130, %v8164
        %v8196 = vadd.f32 %v8131, %v8165
        %v8197 = vadd.f32 %v8132, %v8166
        %v8198 = vadd.f32 %v8133, %v8167
        %v8199 = vadd.f32 %v8134, %v8168
        %v8200 = vadd.f32 %v8135, %v8169
        %v8201 = vadd.f32 %v8136, %v8170
        %v8202 = vadd.f32 %v8137, %v8171
        %v8203 = vadd.f32 %v8138, %v8172
        %v8204 = vadd.f32 %v8139, %v8173
        %v8205 = vadd.f32 %v8140, %v8174
        %v8206 = vadd.f32 %v8141, %v8175
        %v8207 = vadd.f32 %v8142, %v8176
        %v8208 = vadd.f32 %v8143, %v8177
        %v8209 = vadd.f32 %v8144, %v8178
        %v8210 = vadd.f32 %v8145, %v8179
        %v8211 = vadd.f32 %v8146, %v8180
        %v8212 = vadd.f32 %v8147, %v8181
        %v8213 = vadd.f32 %v8148, %v8182
        %v8214 = vadd.f32 %v8149, %v8183
        %v8215 = vadd.f32 %v8150, %v8183
        %v8216 = vrot.slane %v5961, 2
        %v8217 = vrot.slane %v5962, 2
        %v8218 = vrot.slane %v5963, 2
        %v8219 = vrot.slane %v5964, 2
        %v8220 = vrot.slane %v5965, 2
        %v8221 = vrot.slane %v5966, 2
        %v8222 = vrot.slane %v5967, 2
        %v8223 = vrot.slane %v5968, 2
        %v8224 = vrot.slane %v5969, 2
        %v8225 = vrot.slane %v5970, 2
        %v8226 = vrot.slane %v5971, 2
        %v8227 = vrot.slane %v5972, 2
        %v8228 = vrot.slane %v5973, 2
        %v8229 = vrot.slane %v5974, 2
        %v8230 = vrot.slane %v5975, 2
        %v8231 = vrot.slane %v5976, 2
        %v8232 = vrot.slane %v5977, 2
        %v8233 = vrot.slane %v5978, 2
        %v8234 = vrot.slane %v5979, 2
        %v8235 = vrot.slane %v5980, 2
        %v8236 = vrot.slane %v5981, 2
        %v8237 = vrot.slane %v5982, 2
        %v8238 = vrot.slane %v5983, 2
        %v8239 = vrot.slane %v5984, 2
        %v8240 = vrot.slane %v5985, 2
        %v8241 = vrot.slane %v5986, 2
        %v8242 = vrot.slane %v5987, 2
        %v8243 = vrot.slane %v5988, 2
        %v8244 = vrot.slane %v5989, 2
        %v8245 = vrot.slane %v5990, 2
        %v8246 = vrot.slane %v5991, 2
        %v8247 = vrot.slane %v5992, 2
        %vm8248 = vcmp.lt.s32.totalorder %v5994, 6
        %v8249 = vsel %vm8248, %v8246, %v8247
        %v8250 = vsel %vm8248, %v8245, %v8246
        %v8251 = vsel %vm8248, %v8244, %v8245
        %v8252 = vsel %vm8248, %v8243, %v8244
        %v8253 = vsel %vm8248, %v8242, %v8243
        %v8254 = vsel %vm8248, %v8241, %v8242
        %v8255 = vsel %vm8248, %v8240, %v8241
        %v8256 = vsel %vm8248, %v8239, %v8240
        %v8257 = vsel %vm8248, %v8238, %v8239
        %v8258 = vsel %vm8248, %v8237, %v8238
        %v8259 = vsel %vm8248, %v8236, %v8237
        %v8260 = vsel %vm8248, %v8235, %v8236
        %v8261 = vsel %vm8248, %v8234, %v8235
        %v8262 = vsel %vm8248, %v8233, %v8234
        %v8263 = vsel %vm8248, %v8232, %v8233
        %v8264 = vsel %vm8248, %v8231, %v8232
        %v8265 = vsel %vm8248, %v8230, %v8231
        %v8266 = vsel %vm8248, %v8229, %v8230
        %v8267 = vsel %vm8248, %v8228, %v8229
        %v8268 = vsel %vm8248, %v8227, %v8228
        %v8269 = vsel %vm8248, %v8226, %v8227
        %v8270 = vsel %vm8248, %v8225, %v8226
        %v8271 = vsel %vm8248, %v8224, %v8225
        %v8272 = vsel %vm8248, %v8223, %v8224
        %v8273 = vsel %vm8248, %v8222, %v8223
        %v8274 = vsel %vm8248, %v8221, %v8222
        %v8275 = vsel %vm8248, %v8220, %v8221
        %v8276 = vsel %vm8248, %v8219, %v8220
        %v8277 = vsel %vm8248, %v8218, %v8219
        %v8278 = vsel %vm8248, %v8217, %v8218
        %v8279 = vsel %vm8248, %v8216, %v8217
        %v8280 = vsel %vm8248, %v8247, %v8216
        %v8281 = vadd.s32 %v6378, 2
        %v8282 = vadd.s32 %v6379, 2
        %v8283 = vadd.s32 %v6380, 2
        %v8284 = vadd.s32 %v6381, 2
        %v8285 = vadd.s32 %v6382, 2
        %v8286 = vadd.s32 %v6383, 2
        %v8287 = vadd.s32 %v6384, 2
        %v8288 = vadd.s32 %v6385, 2
        %v8289 = vadd.s32 %v6386, 2
        %v8290 = vadd.s32 %v6387, 2
        %v8291 = vadd.s32 %v6388, 2
        %v8292 = vadd.s32 %v6389, 2
        %v8293 = vadd.s32 %v6390, 2
        %v8294 = vadd.s32 %v6391, 2
        %v8295 = vadd.s32 %v6392, 2
        %v8296 = vadd.s32 %v6393, 2
        %v8297 = vadd.s32 %v6394, 2
        %v8298 = vadd.s32 %v6395, 2
        %v8299 = vadd.s32 %v6396, 2
        %v8300 = vadd.s32 %v6397, 2
        %v8301 = vadd.s32 %v6398, 2
        %v8302 = vadd.s32 %v6399, 2
        %v8303 = vadd.s32 %v6400, 2
        %v8304 = vadd.s32 %v6401, 2
        %v8305 = vadd.s32 %v6402, 2
        %v8306 = vadd.s32 %v6403, 2
        %v8307 = vadd.s32 %v6404, 2
        %v8308 = vadd.s32 %v6405, 2
        %v8309 = vadd.s32 %v6406, 2
        %v8310 = vadd.s32 %v6407, 2
        %v8311 = vadd.s32 %v6408, 2
        %v8312 = vadd.s32 %v6409, 2
        %vm8313 = vcmp.ge.s32.totalorder %v8281, 0
        %vm8314 = vcmp.ge.s32.totalorder %v8282, 0
        %vm8315 = vcmp.ge.s32.totalorder %v8283, 0
        %vm8316 = vcmp.ge.s32.totalorder %v8284, 0
        %vm8317 = vcmp.ge.s32.totalorder %v8285, 0
        %vm8318 = vcmp.ge.s32.totalorder %v8286, 0
        %vm8319 = vcmp.ge.s32.totalorder %v8287, 0
        %vm8320 = vcmp.ge.s32.totalorder %v8288, 0
        %vm8321 = vcmp.ge.s32.totalorder %v8289, 0
        %vm8322 = vcmp.ge.s32.totalorder %v8290, 0
        %vm8323 = vcmp.ge.s32.totalorder %v8291, 0
        %vm8324 = vcmp.ge.s32.totalorder %v8292, 0
        %vm8325 = vcmp.ge.s32.totalorder %v8293, 0
        %vm8326 = vcmp.ge.s32.totalorder %v8294, 0
        %vm8327 = vcmp.ge.s32.totalorder %v8295, 0
        %vm8328 = vcmp.ge.s32.totalorder %v8296, 0
        %vm8329 = vcmp.ge.s32.totalorder %v8297, 0
        %vm8330 = vcmp.ge.s32.totalorder %v8298, 0
        %vm8331 = vcmp.ge.s32.totalorder %v8299, 0
        %vm8332 = vcmp.ge.s32.totalorder %v8300, 0
        %vm8333 = vcmp.ge.s32.totalorder %v8301, 0
        %vm8334 = vcmp.ge.s32.totalorder %v8302, 0
        %vm8335 = vcmp.ge.s32.totalorder %v8303, 0
        %vm8336 = vcmp.ge.s32.totalorder %v8304, 0
        %vm8337 = vcmp.ge.s32.totalorder %v8305, 0
        %vm8338 = vcmp.ge.s32.totalorder %v8306, 0
        %vm8339 = vcmp.ge.s32.totalorder %v8307, 0
        %vm8340 = vcmp.ge.s32.totalorder %v8308, 0
        %vm8341 = vcmp.ge.s32.totalorder %v8309, 0
        %vm8342 = vcmp.ge.s32.totalorder %v8310, 0
        %vm8343 = vcmp.ge.s32.totalorder %v8311, 0
        %vm8344 = vcmp.ge.s32.totalorder %v8312, 0
        %vm8345 = vcmp.lt.s32.totalorder %v8281, 16
        %vm8346 = vcmp.lt.s32.totalorder %v8282, 16
        %vm8347 = vcmp.lt.s32.totalorder %v8283, 16
        %vm8348 = vcmp.lt.s32.totalorder %v8284, 16
        %vm8349 = vcmp.lt.s32.totalorder %v8285, 16
        %vm8350 = vcmp.lt.s32.totalorder %v8286, 16
        %vm8351 = vcmp.lt.s32.totalorder %v8287, 16
        %vm8352 = vcmp.lt.s32.totalorder %v8288, 16
        %vm8353 = vcmp.lt.s32.totalorder %v8289, 16
        %vm8354 = vcmp.lt.s32.totalorder %v8290, 16
        %vm8355 = vcmp.lt.s32.totalorder %v8291, 16
        %vm8356 = vcmp.lt.s32.totalorder %v8292, 16
        %vm8357 = vcmp.lt.s32.totalorder %v8293, 16
        %vm8358 = vcmp.lt.s32.totalorder %v8294, 16
        %vm8359 = vcmp.lt.s32.totalorder %v8295, 16
        %vm8360 = vcmp.lt.s32.totalorder %v8296, 16
        %vm8361 = vcmp.lt.s32.totalorder %v8297, 16
        %vm8362 = vcmp.lt.s32.totalorder %v8298, 16
        %vm8363 = vcmp.lt.s32.totalorder %v8299, 16
        %vm8364 = vcmp.lt.s32.totalorder %v8300, 16
        %vm8365 = vcmp.lt.s32.totalorder %v8301, 16
        %vm8366 = vcmp.lt.s32.totalorder %v8302, 16
        %vm8367 = vcmp.lt.s32.totalorder %v8303, 16
        %vm8368 = vcmp.lt.s32.totalorder %v8304, 16
        %vm8369 = vcmp.lt.s32.totalorder %v8305, 16
        %vm8370 = vcmp.lt.s32.totalorder %v8306, 16
        %vm8371 = vcmp.lt.s32.totalorder %v8307, 16
        %vm8372 = vcmp.lt.s32.totalorder %v8308, 16
        %vm8373 = vcmp.lt.s32.totalorder %v8309, 16
        %vm8374 = vcmp.lt.s32.totalorder %v8310, 16
        %vm8375 = vcmp.lt.s32.totalorder %v8311, 16
        %vm8376 = vcmp.lt.s32.totalorder %v8312, 16
        %vm8377 = vmand %vm8313, %vm8345
        %vm8378 = vmand %vm8314, %vm8346
        %vm8379 = vmand %vm8315, %vm8347
        %vm8380 = vmand %vm8316, %vm8348
        %vm8381 = vmand %vm8317, %vm8349
        %vm8382 = vmand %vm8318, %vm8350
        %vm8383 = vmand %vm8319, %vm8351
        %vm8384 = vmand %vm8320, %vm8352
        %vm8385 = vmand %vm8321, %vm8353
        %vm8386 = vmand %vm8322, %vm8354
        %vm8387 = vmand %vm8323, %vm8355
        %vm8388 = vmand %vm8324, %vm8356
        %vm8389 = vmand %vm8325, %vm8357
        %vm8390 = vmand %vm8326, %vm8358
        %vm8391 = vmand %vm8327, %vm8359
        %vm8392 = vmand %vm8328, %vm8360
        %vm8393 = vmand %vm8329, %vm8361
        %vm8394 = vmand %vm8330, %vm8362
        %vm8395 = vmand %vm8331, %vm8363
        %vm8396 = vmand %vm8332, %vm8364
        %vm8397 = vmand %vm8333, %vm8365
        %vm8398 = vmand %vm8334, %vm8366
        %vm8399 = vmand %vm8335, %vm8367
        %vm8400 = vmand %vm8336, %vm8368
        %vm8401 = vmand %vm8337, %vm8369
        %vm8402 = vmand %vm8338, %vm8370
        %vm8403 = vmand %vm8339, %vm8371
        %vm8404 = vmand %vm8340, %vm8372
        %vm8405 = vmand %vm8341, %vm8373
        %vm8406 = vmand %vm8342, %vm8374
        %vm8407 = vmand %vm8343, %vm8375
        %vm8408 = vmand %vm8344, %vm8376
        %v8409 = vsel %vm8377, 1, 0
        %v8410 = vsel %vm8378, 1, 0
        %v8411 = vsel %vm8379, 1, 0
        %v8412 = vsel %vm8380, 1, 0
        %v8413 = vsel %vm8381, 1, 0
        %v8414 = vsel %vm8382, 1, 0
        %v8415 = vsel %vm8383, 1, 0
        %v8416 = vsel %vm8384, 1, 0
        %v8417 = vsel %vm8385, 1, 0
        %v8418 = vsel %vm8386, 1, 0
        %v8419 = vsel %vm8387, 1, 0
        %v8420 = vsel %vm8388, 1, 0
        %v8421 = vsel %vm8389, 1, 0
        %v8422 = vsel %vm8390, 1, 0
        %v8423 = vsel %vm8391, 1, 0
        %v8424 = vsel %vm8392, 1, 0
        %v8425 = vsel %vm8393, 1, 0
        %v8426 = vsel %vm8394, 1, 0
        %v8427 = vsel %vm8395, 1, 0
        %v8428 = vsel %vm8396, 1, 0
        %v8429 = vsel %vm8397, 1, 0
        %v8430 = vsel %vm8398, 1, 0
        %v8431 = vsel %vm8399, 1, 0
        %v8432 = vsel %vm8400, 1, 0
        %v8433 = vsel %vm8401, 1, 0
        %v8434 = vsel %vm8402, 1, 0
        %v8435 = vsel %vm8403, 1, 0
        %v8436 = vsel %vm8404, 1, 0
        %v8437 = vsel %vm8405, 1, 0
        %v8438 = vsel %vm8406, 1, 0
        %v8439 = vsel %vm8407, 1, 0
        %v8440 = vsel %vm8408, 1, 0
        %vm8441 = vcmp.eq.s32.totalorder %v8409, 1
        %vm8442 = vcmp.eq.s32.totalorder %v8410, 1
        %vm8443 = vcmp.eq.s32.totalorder %v8411, 1
        %vm8444 = vcmp.eq.s32.totalorder %v8412, 1
        %vm8445 = vcmp.eq.s32.totalorder %v8413, 1
        %vm8446 = vcmp.eq.s32.totalorder %v8414, 1
        %vm8447 = vcmp.eq.s32.totalorder %v8415, 1
        %vm8448 = vcmp.eq.s32.totalorder %v8416, 1
        %vm8449 = vcmp.eq.s32.totalorder %v8417, 1
        %vm8450 = vcmp.eq.s32.totalorder %v8418, 1
        %vm8451 = vcmp.eq.s32.totalorder %v8419, 1
        %vm8452 = vcmp.eq.s32.totalorder %v8420, 1
        %vm8453 = vcmp.eq.s32.totalorder %v8421, 1
        %vm8454 = vcmp.eq.s32.totalorder %v8422, 1
        %vm8455 = vcmp.eq.s32.totalorder %v8423, 1
        %vm8456 = vcmp.eq.s32.totalorder %v8424, 1
        %vm8457 = vcmp.eq.s32.totalorder %v8425, 1
        %vm8458 = vcmp.eq.s32.totalorder %v8426, 1
        %vm8459 = vcmp.eq.s32.totalorder %v8427, 1
        %vm8460 = vcmp.eq.s32.totalorder %v8428, 1
        %vm8461 = vcmp.eq.s32.totalorder %v8429, 1
        %vm8462 = vcmp.eq.s32.totalorder %v8430, 1
        %vm8463 = vcmp.eq.s32.totalorder %v8431, 1
        %vm8464 = vcmp.eq.s32.totalorder %v8432, 1
        %vm8465 = vcmp.eq.s32.totalorder %v8433, 1
        %vm8466 = vcmp.eq.s32.totalorder %v8434, 1
        %vm8467 = vcmp.eq.s32.totalorder %v8435, 1
        %vm8468 = vcmp.eq.s32.totalorder %v8436, 1
        %vm8469 = vcmp.eq.s32.totalorder %v8437, 1
        %vm8470 = vcmp.eq.s32.totalorder %v8438, 1
        %vm8471 = vcmp.eq.s32.totalorder %v8439, 1
        %vm8472 = vcmp.eq.s32.totalorder %v8440, 1
        %v8473 = vsel %vm8441, %v8279, 0.0
        %v8474 = vsel %vm8442, %v8278, 0.0
        %v8475 = vsel %vm8443, %v8277, 0.0
        %v8476 = vsel %vm8444, %v8276, 0.0
        %v8477 = vsel %vm8445, %v8275, 0.0
        %v8478 = vsel %vm8446, %v8274, 0.0
        %v8479 = vsel %vm8447, %v8273, 0.0
        %v8480 = vsel %vm8448, %v8272, 0.0
        %v8481 = vsel %vm8449, %v8271, 0.0
        %v8482 = vsel %vm8450, %v8270, 0.0
        %v8483 = vsel %vm8451, %v8269, 0.0
        %v8484 = vsel %vm8452, %v8268, 0.0
        %v8485 = vsel %vm8453, %v8267, 0.0
        %v8486 = vsel %vm8454, %v8266, 0.0
        %v8487 = vsel %vm8455, %v8265, 0.0
        %v8488 = vsel %vm8456, %v8264, 0.0
        %v8489 = vsel %vm8457, %v8263, 0.0
        %v8490 = vsel %vm8458, %v8262, 0.0
        %v8491 = vsel %vm8459, %v8261, 0.0
        %v8492 = vsel %vm8460, %v8260, 0.0
        %v8493 = vsel %vm8461, %v8259, 0.0
        %v8494 = vsel %vm8462, %v8258, 0.0
        %v8495 = vsel %vm8463, %v8257, 0.0
        %v8496 = vsel %vm8464, %v8256, 0.0
        %v8497 = vsel %vm8465, %v8255, 0.0
        %v8498 = vsel %vm8466, %v8254, 0.0
        %v8499 = vsel %vm8467, %v8253, 0.0
        %v8500 = vsel %vm8468, %v8252, 0.0
        %v8501 = vsel %vm8469, %v8251, 0.0
        %v8502 = vsel %vm8470, %v8250, 0.0
        %v8503 = vsel %vm8471, %v8249, 0.0
        %v8504 = vsel %vm8472, %v8280, 0.0
        %v8505 = vld [vmem:[%s5 + $0x5] sm:$0x1]
        %v8506 = vperm.slane %v8505, 0
        %v8507 = vmul.f32 %v8473, %v8506
        %v8508 = vmul.f32 %v8474, %v8506
        %v8509 = vmul.f32 %v8475, %v8506
        %v8510 = vmul.f32 %v8476, %v8506
        %v8511 = vmul.f32 %v8477, %v8506
        %v8512 = vmul.f32 %v8478, %v8506
        %v8513 = vmul.f32 %v8479, %v8506
        %v8514 = vmul.f32 %v8480, %v8506
        %v8515 = vmul.f32 %v8481, %v8506
        %v8516 = vmul.f32 %v8482, %v8506
        %v8517 = vmul.f32 %v8483, %v8506
        %v8518 = vmul.f32 %v8484, %v8506
        %v8519 = vmul.f32 %v8485, %v8506
        %v8520 = vmul.f32 %v8486, %v8506
        %v8521 = vmul.f32 %v8487, %v8506
        %v8522 = vmul.f32 %v8488, %v8506
        %v8523 = vmul.f32 %v8489, %v8506
        %v8524 = vmul.f32 %v8490, %v8506
        %v8525 = vmul.f32 %v8491, %v8506
        %v8526 = vmul.f32 %v8492, %v8506
        %v8527 = vmul.f32 %v8493, %v8506
        %v8528 = vmul.f32 %v8494, %v8506
        %v8529 = vmul.f32 %v8495, %v8506
        %v8530 = vmul.f32 %v8496, %v8506
        %v8531 = vmul.f32 %v8497, %v8506
        %v8532 = vmul.f32 %v8498, %v8506
        %v8533 = vmul.f32 %v8499, %v8506
        %v8534 = vmul.f32 %v8500, %v8506
        %v8535 = vmul.f32 %v8501, %v8506
        %v8536 = vmul.f32 %v8502, %v8506
        %v8537 = vmul.f32 %v8503, %v8506
        %v8538 = vmul.f32 %v8504, %v8506
        %v8539 = vadd.f32 %v8184, %v8507
        %v8540 = vadd.f32 %v8185, %v8508
        %v8541 = vadd.f32 %v8186, %v8509
        %v8542 = vadd.f32 %v8187, %v8510
        %v8543 = vadd.f32 %v8188, %v8511
        %v8544 = vadd.f32 %v8189, %v8512
        %v8545 = vadd.f32 %v8190, %v8513
        %v8546 = vadd.f32 %v8191, %v8514
        %v8547 = vadd.f32 %v8192, %v8515
        %v8548 = vadd.f32 %v8193, %v8516
        %v8549 = vadd.f32 %v8194, %v8517
        %v8550 = vadd.f32 %v8195, %v8518
        %v8551 = vadd.f32 %v8196, %v8519
        %v8552 = vadd.f32 %v8197, %v8520
        %v8553 = vadd.f32 %v8198, %v8521
        %v8554 = vadd.f32 %v8199, %v8522
        %v8555 = vadd.f32 %v8200, %v8523
        %v8556 = vadd.f32 %v8201, %v8524
        %v8557 = vadd.f32 %v8202, %v8525
        %v8558 = vadd.f32 %v8203, %v8526
        %v8559 = vadd.f32 %v8204, %v8527
        %v8560 = vadd.f32 %v8205, %v8528
        %v8561 = vadd.f32 %v8206, %v8529
        %v8562 = vadd.f32 %v8207, %v8530
        %v8563 = vadd.f32 %v8208, %v8531
        %v8564 = vadd.f32 %v8209, %v8532
        %v8565 = vadd.f32 %v8210, %v8533
        %v8566 = vadd.f32 %v8211, %v8534
        %v8567 = vadd.f32 %v8212, %v8535
        %v8568 = vadd.f32 %v8213, %v8536
        %v8569 = vadd.f32 %v8214, %v8537
        %v8570 = vadd.f32 %v8215, %v8538
        %v8571 = vld [vmem:[%s6 + $0x5] sm:$0x1]
        %v8572 = vperm.slane %v8571, 0
        %v8573 = vmul.f32 %v5965, %v8572
        %v8574 = vmul.f32 %v5966, %v8572
        %v8575 = vmul.f32 %v5967, %v8572
        %v8576 = vmul.f32 %v5968, %v8572
        %v8577 = vmul.f32 %v5969, %v8572
        %v8578 = vmul.f32 %v5970, %v8572
        %v8579 = vmul.f32 %v5971, %v8572
        %v8580 = vmul.f32 %v5972, %v8572
        %v8581 = vmul.f32 %v5973, %v8572
        %v8582 = vmul.f32 %v5974, %v8572
        %v8583 = vmul.f32 %v5975, %v8572
        %v8584 = vmul.f32 %v5976, %v8572
        %v8585 = vmul.f32 %v5977, %v8572
        %v8586 = vmul.f32 %v5978, %v8572
        %v8587 = vmul.f32 %v5979, %v8572
        %v8588 = vmul.f32 %v5980, %v8572
        %v8589 = vmul.f32 %v5981, %v8572
        %v8590 = vmul.f32 %v5982, %v8572
        %v8591 = vmul.f32 %v5983, %v8572
        %v8592 = vmul.f32 %v5984, %v8572
        %v8593 = vmul.f32 %v5985, %v8572
        %v8594 = vmul.f32 %v5986, %v8572
        %v8595 = vmul.f32 %v5987, %v8572
        %v8596 = vmul.f32 %v5988, %v8572
        %v8597 = vmul.f32 %v5989, %v8572
        %v8598 = vmul.f32 %v5990, %v8572
        %v8599 = vmul.f32 %v5991, %v8572
        %v8600 = vmul.f32 %v5992, %v8572
        %v8601 = vmul.f32 %v8572, 0.0
        %v8602 = vadd.f32 %v8539, %v8573
        %v8603 = vadd.f32 %v8540, %v8574
        %v8604 = vadd.f32 %v8541, %v8575
        %v8605 = vadd.f32 %v8542, %v8576
        %v8606 = vadd.f32 %v8543, %v8577
        %v8607 = vadd.f32 %v8544, %v8578
        %v8608 = vadd.f32 %v8545, %v8579
        %v8609 = vadd.f32 %v8546, %v8580
        %v8610 = vadd.f32 %v8547, %v8581
        %v8611 = vadd.f32 %v8548, %v8582
        %v8612 = vadd.f32 %v8549, %v8583
        %v8613 = vadd.f32 %v8550, %v8584
        %v8614 = vadd.f32 %v8551, %v8585
        %v8615 = vadd.f32 %v8552, %v8586
        %v8616 = vadd.f32 %v8553, %v8587
        %v8617 = vadd.f32 %v8554, %v8588
        %v8618 = vadd.f32 %v8555, %v8589
        %v8619 = vadd.f32 %v8556, %v8590
        %v8620 = vadd.f32 %v8557, %v8591
        %v8621 = vadd.f32 %v8558, %v8592
        %v8622 = vadd.f32 %v8559, %v8593
        %v8623 = vadd.f32 %v8560, %v8594
        %v8624 = vadd.f32 %v8561, %v8595
        %v8625 = vadd.f32 %v8562, %v8596
        %v8626 = vadd.f32 %v8563, %v8597
        %v8627 = vadd.f32 %v8564, %v8598
        %v8628 = vadd.f32 %v8565, %v8599
        %v8629 = vadd.f32 %v8566, %v8600
        %v8630 = vadd.f32 %v8567, %v8601
        %v8631 = vadd.f32 %v8568, %v8601
        %v8632 = vadd.f32 %v8569, %v8601
        %v8633 = vadd.f32 %v8570, %v8601
        %v8634 = vrot.slane %v5961, 3
        %v8635 = vrot.slane %v5962, 3
        %v8636 = vrot.slane %v5963, 3
        %v8637 = vrot.slane %v5964, 3
        %v8638 = vrot.slane %v5965, 3
        %v8639 = vrot.slane %v5966, 3
        %v8640 = vrot.slane %v5967, 3
        %v8641 = vrot.slane %v5968, 3
        %v8642 = vrot.slane %v5969, 3
        %v8643 = vrot.slane %v5970, 3
        %v8644 = vrot.slane %v5971, 3
        %v8645 = vrot.slane %v5972, 3
        %v8646 = vrot.slane %v5973, 3
        %v8647 = vrot.slane %v5974, 3
        %v8648 = vrot.slane %v5975, 3
        %v8649 = vrot.slane %v5976, 3
        %v8650 = vrot.slane %v5977, 3
        %v8651 = vrot.slane %v5978, 3
        %v8652 = vrot.slane %v5979, 3
        %v8653 = vrot.slane %v5980, 3
        %v8654 = vrot.slane %v5981, 3
        %v8655 = vrot.slane %v5982, 3
        %v8656 = vrot.slane %v5983, 3
        %v8657 = vrot.slane %v5984, 3
        %v8658 = vrot.slane %v5985, 3
        %v8659 = vrot.slane %v5986, 3
        %v8660 = vrot.slane %v5987, 3
        %v8661 = vrot.slane %v5988, 3
        %v8662 = vrot.slane %v5989, 3
        %v8663 = vrot.slane %v5990, 3
        %v8664 = vrot.slane %v5991, 3
        %v8665 = vrot.slane %v5992, 3
        %vm8666 = vcmp.lt.s32.totalorder %v5994, 5
        %v8667 = vsel %vm8666, %v8664, %v8665
        %v8668 = vsel %vm8666, %v8663, %v8664
        %v8669 = vsel %vm8666, %v8662, %v8663
        %v8670 = vsel %vm8666, %v8661, %v8662
        %v8671 = vsel %vm8666, %v8660, %v8661
        %v8672 = vsel %vm8666, %v8659, %v8660
        %v8673 = vsel %vm8666, %v8658, %v8659
        %v8674 = vsel %vm8666, %v8657, %v8658
        %v8675 = vsel %vm8666, %v8656, %v8657
        %v8676 = vsel %vm8666, %v8655, %v8656
        %v8677 = vsel %vm8666, %v8654, %v8655
        %v8678 = vsel %vm8666, %v8653, %v8654
        %v8679 = vsel %vm8666, %v8652, %v8653
        %v8680 = vsel %vm8666, %v8651, %v8652
        %v8681 = vsel %vm8666, %v8650, %v8651
        %v8682 = vsel %vm8666, %v8649, %v8650
        %v8683 = vsel %vm8666, %v8648, %v8649
        %v8684 = vsel %vm8666, %v8647, %v8648
        %v8685 = vsel %vm8666, %v8646, %v8647
        %v8686 = vsel %vm8666, %v8645, %v8646
        %v8687 = vsel %vm8666, %v8644, %v8645
        %v8688 = vsel %vm8666, %v8643, %v8644
        %v8689 = vsel %vm8666, %v8642, %v8643
        %v8690 = vsel %vm8666, %v8641, %v8642
        %v8691 = vsel %vm8666, %v8640, %v8641
        %v8692 = vsel %vm8666, %v8639, %v8640
        %v8693 = vsel %vm8666, %v8638, %v8639
        %v8694 = vsel %vm8666, %v8637, %v8638
        %v8695 = vsel %vm8666, %v8636, %v8637
        %v8696 = vsel %vm8666, %v8635, %v8636
        %v8697 = vsel %vm8666, %v8634, %v8635
        %v8698 = vsel %vm8666, %v8665, %v8634
        %v8699 = vadd.s32 %v6378, 3
        %v8700 = vadd.s32 %v6379, 3
        %v8701 = vadd.s32 %v6380, 3
        %v8702 = vadd.s32 %v6381, 3
        %v8703 = vadd.s32 %v6382, 3
        %v8704 = vadd.s32 %v6383, 3
        %v8705 = vadd.s32 %v6384, 3
        %v8706 = vadd.s32 %v6385, 3
        %v8707 = vadd.s32 %v6386, 3
        %v8708 = vadd.s32 %v6387, 3
        %v8709 = vadd.s32 %v6388, 3
        %v8710 = vadd.s32 %v6389, 3
        %v8711 = vadd.s32 %v6390, 3
        %v8712 = vadd.s32 %v6391, 3
        %v8713 = vadd.s32 %v6392, 3
        %v8714 = vadd.s32 %v6393, 3
        %v8715 = vadd.s32 %v6394, 3
        %v8716 = vadd.s32 %v6395, 3
        %v8717 = vadd.s32 %v6396, 3
        %v8718 = vadd.s32 %v6397, 3
        %v8719 = vadd.s32 %v6398, 3
        %v8720 = vadd.s32 %v6399, 3
        %v8721 = vadd.s32 %v6400, 3
        %v8722 = vadd.s32 %v6401, 3
        %v8723 = vadd.s32 %v6402, 3
        %v8724 = vadd.s32 %v6403, 3
        %v8725 = vadd.s32 %v6404, 3
        %v8726 = vadd.s32 %v6405, 3
        %v8727 = vadd.s32 %v6406, 3
        %v8728 = vadd.s32 %v6407, 3
        %v8729 = vadd.s32 %v6408, 3
        %v8730 = vadd.s32 %v6409, 3
        %vm8731 = vcmp.ge.s32.totalorder %v8699, 0
        %vm8732 = vcmp.ge.s32.totalorder %v8700, 0
        %vm8733 = vcmp.ge.s32.totalorder %v8701, 0
        %vm8734 = vcmp.ge.s32.totalorder %v8702, 0
        %vm8735 = vcmp.ge.s32.totalorder %v8703, 0
        %vm8736 = vcmp.ge.s32.totalorder %v8704, 0
        %vm8737 = vcmp.ge.s32.totalorder %v8705, 0
        %vm8738 = vcmp.ge.s32.totalorder %v8706, 0
        %vm8739 = vcmp.ge.s32.totalorder %v8707, 0
        %vm8740 = vcmp.ge.s32.totalorder %v8708, 0
        %vm8741 = vcmp.ge.s32.totalorder %v8709, 0
        %vm8742 = vcmp.ge.s32.totalorder %v8710, 0
        %vm8743 = vcmp.ge.s32.totalorder %v8711, 0
        %vm8744 = vcmp.ge.s32.totalorder %v8712, 0
        %vm8745 = vcmp.ge.s32.totalorder %v8713, 0
        %vm8746 = vcmp.ge.s32.totalorder %v8714, 0
        %vm8747 = vcmp.ge.s32.totalorder %v8715, 0
        %vm8748 = vcmp.ge.s32.totalorder %v8716, 0
        %vm8749 = vcmp.ge.s32.totalorder %v8717, 0
        %vm8750 = vcmp.ge.s32.totalorder %v8718, 0
        %vm8751 = vcmp.ge.s32.totalorder %v8719, 0
        %vm8752 = vcmp.ge.s32.totalorder %v8720, 0
        %vm8753 = vcmp.ge.s32.totalorder %v8721, 0
        %vm8754 = vcmp.ge.s32.totalorder %v8722, 0
        %vm8755 = vcmp.ge.s32.totalorder %v8723, 0
        %vm8756 = vcmp.ge.s32.totalorder %v8724, 0
        %vm8757 = vcmp.ge.s32.totalorder %v8725, 0
        %vm8758 = vcmp.ge.s32.totalorder %v8726, 0
        %vm8759 = vcmp.ge.s32.totalorder %v8727, 0
        %vm8760 = vcmp.ge.s32.totalorder %v8728, 0
        %vm8761 = vcmp.ge.s32.totalorder %v8729, 0
        %vm8762 = vcmp.ge.s32.totalorder %v8730, 0
        %vm8763 = vcmp.lt.s32.totalorder %v8699, 16
        %vm8764 = vcmp.lt.s32.totalorder %v8700, 16
        %vm8765 = vcmp.lt.s32.totalorder %v8701, 16
        %vm8766 = vcmp.lt.s32.totalorder %v8702, 16
        %vm8767 = vcmp.lt.s32.totalorder %v8703, 16
        %vm8768 = vcmp.lt.s32.totalorder %v8704, 16
        %vm8769 = vcmp.lt.s32.totalorder %v8705, 16
        %vm8770 = vcmp.lt.s32.totalorder %v8706, 16
        %vm8771 = vcmp.lt.s32.totalorder %v8707, 16
        %vm8772 = vcmp.lt.s32.totalorder %v8708, 16
        %vm8773 = vcmp.lt.s32.totalorder %v8709, 16
        %vm8774 = vcmp.lt.s32.totalorder %v8710, 16
        %vm8775 = vcmp.lt.s32.totalorder %v8711, 16
        %vm8776 = vcmp.lt.s32.totalorder %v8712, 16
        %vm8777 = vcmp.lt.s32.totalorder %v8713, 16
        %vm8778 = vcmp.lt.s32.totalorder %v8714, 16
        %vm8779 = vcmp.lt.s32.totalorder %v8715, 16
        %vm8780 = vcmp.lt.s32.totalorder %v8716, 16
        %vm8781 = vcmp.lt.s32.totalorder %v8717, 16
        %vm8782 = vcmp.lt.s32.totalorder %v8718, 16
        %vm8783 = vcmp.lt.s32.totalorder %v8719, 16
        %vm8784 = vcmp.lt.s32.totalorder %v8720, 16
        %vm8785 = vcmp.lt.s32.totalorder %v8721, 16
        %vm8786 = vcmp.lt.s32.totalorder %v8722, 16
        %vm8787 = vcmp.lt.s32.totalorder %v8723, 16
        %vm8788 = vcmp.lt.s32.totalorder %v8724, 16
        %vm8789 = vcmp.lt.s32.totalorder %v8725, 16
        %vm8790 = vcmp.lt.s32.totalorder %v8726, 16
        %vm8791 = vcmp.lt.s32.totalorder %v8727, 16
        %vm8792 = vcmp.lt.s32.totalorder %v8728, 16
        %vm8793 = vcmp.lt.s32.totalorder %v8729, 16
        %vm8794 = vcmp.lt.s32.totalorder %v8730, 16
        %vm8795 = vmand %vm8731, %vm8763
        %vm8796 = vmand %vm8732, %vm8764
        %vm8797 = vmand %vm8733, %vm8765
        %vm8798 = vmand %vm8734, %vm8766
        %vm8799 = vmand %vm8735, %vm8767
        %vm8800 = vmand %vm8736, %vm8768
        %vm8801 = vmand %vm8737, %vm8769
        %vm8802 = vmand %vm8738, %vm8770
        %vm8803 = vmand %vm8739, %vm8771
        %vm8804 = vmand %vm8740, %vm8772
        %vm8805 = vmand %vm8741, %vm8773
        %vm8806 = vmand %vm8742, %vm8774
        %vm8807 = vmand %vm8743, %vm8775
        %vm8808 = vmand %vm8744, %vm8776
        %vm8809 = vmand %vm8745, %vm8777
        %vm8810 = vmand %vm8746, %vm8778
        %vm8811 = vmand %vm8747, %vm8779
        %vm8812 = vmand %vm8748, %vm8780
        %vm8813 = vmand %vm8749, %vm8781
        %vm8814 = vmand %vm8750, %vm8782
        %vm8815 = vmand %vm8751, %vm8783
        %vm8816 = vmand %vm8752, %vm8784
        %vm8817 = vmand %vm8753, %vm8785
        %vm8818 = vmand %vm8754, %vm8786
        %vm8819 = vmand %vm8755, %vm8787
        %vm8820 = vmand %vm8756, %vm8788
        %vm8821 = vmand %vm8757, %vm8789
        %vm8822 = vmand %vm8758, %vm8790
        %vm8823 = vmand %vm8759, %vm8791
        %vm8824 = vmand %vm8760, %vm8792
        %vm8825 = vmand %vm8761, %vm8793
        %vm8826 = vmand %vm8762, %vm8794
        %v8827 = vsel %vm8795, 1, 0
        %v8828 = vsel %vm8796, 1, 0
        %v8829 = vsel %vm8797, 1, 0
        %v8830 = vsel %vm8798, 1, 0
        %v8831 = vsel %vm8799, 1, 0
        %v8832 = vsel %vm8800, 1, 0
        %v8833 = vsel %vm8801, 1, 0
        %v8834 = vsel %vm8802, 1, 0
        %v8835 = vsel %vm8803, 1, 0
        %v8836 = vsel %vm8804, 1, 0
        %v8837 = vsel %vm8805, 1, 0
        %v8838 = vsel %vm8806, 1, 0
        %v8839 = vsel %vm8807, 1, 0
        %v8840 = vsel %vm8808, 1, 0
        %v8841 = vsel %vm8809, 1, 0
        %v8842 = vsel %vm8810, 1, 0
        %v8843 = vsel %vm8811, 1, 0
        %v8844 = vsel %vm8812, 1, 0
        %v8845 = vsel %vm8813, 1, 0
        %v8846 = vsel %vm8814, 1, 0
        %v8847 = vsel %vm8815, 1, 0
        %v8848 = vsel %vm8816, 1, 0
        %v8849 = vsel %vm8817, 1, 0
        %v8850 = vsel %vm8818, 1, 0
        %v8851 = vsel %vm8819, 1, 0
        %v8852 = vsel %vm8820, 1, 0
        %v8853 = vsel %vm8821, 1, 0
        %v8854 = vsel %vm8822, 1, 0
        %v8855 = vsel %vm8823, 1, 0
        %v8856 = vsel %vm8824, 1, 0
        %v8857 = vsel %vm8825, 1, 0
        %v8858 = vsel %vm8826, 1, 0
        %vm8859 = vcmp.eq.s32.totalorder %v8827, 1
        %vm8860 = vcmp.eq.s32.totalorder %v8828, 1
        %vm8861 = vcmp.eq.s32.totalorder %v8829, 1
        %vm8862 = vcmp.eq.s32.totalorder %v8830, 1
        %vm8863 = vcmp.eq.s32.totalorder %v8831, 1
        %vm8864 = vcmp.eq.s32.totalorder %v8832, 1
        %vm8865 = vcmp.eq.s32.totalorder %v8833, 1
        %vm8866 = vcmp.eq.s32.totalorder %v8834, 1
        %vm8867 = vcmp.eq.s32.totalorder %v8835, 1
        %vm8868 = vcmp.eq.s32.totalorder %v8836, 1
        %vm8869 = vcmp.eq.s32.totalorder %v8837, 1
        %vm8870 = vcmp.eq.s32.totalorder %v8838, 1
        %vm8871 = vcmp.eq.s32.totalorder %v8839, 1
        %vm8872 = vcmp.eq.s32.totalorder %v8840, 1
        %vm8873 = vcmp.eq.s32.totalorder %v8841, 1
        %vm8874 = vcmp.eq.s32.totalorder %v8842, 1
        %vm8875 = vcmp.eq.s32.totalorder %v8843, 1
        %vm8876 = vcmp.eq.s32.totalorder %v8844, 1
        %vm8877 = vcmp.eq.s32.totalorder %v8845, 1
        %vm8878 = vcmp.eq.s32.totalorder %v8846, 1
        %vm8879 = vcmp.eq.s32.totalorder %v8847, 1
        %vm8880 = vcmp.eq.s32.totalorder %v8848, 1
        %vm8881 = vcmp.eq.s32.totalorder %v8849, 1
        %vm8882 = vcmp.eq.s32.totalorder %v8850, 1
        %vm8883 = vcmp.eq.s32.totalorder %v8851, 1
        %vm8884 = vcmp.eq.s32.totalorder %v8852, 1
        %vm8885 = vcmp.eq.s32.totalorder %v8853, 1
        %vm8886 = vcmp.eq.s32.totalorder %v8854, 1
        %vm8887 = vcmp.eq.s32.totalorder %v8855, 1
        %vm8888 = vcmp.eq.s32.totalorder %v8856, 1
        %vm8889 = vcmp.eq.s32.totalorder %v8857, 1
        %vm8890 = vcmp.eq.s32.totalorder %v8858, 1
        %v8891 = vsel %vm8859, %v8697, 0.0
        %v8892 = vsel %vm8860, %v8696, 0.0
        %v8893 = vsel %vm8861, %v8695, 0.0
        %v8894 = vsel %vm8862, %v8694, 0.0
        %v8895 = vsel %vm8863, %v8693, 0.0
        %v8896 = vsel %vm8864, %v8692, 0.0
        %v8897 = vsel %vm8865, %v8691, 0.0
        %v8898 = vsel %vm8866, %v8690, 0.0
        %v8899 = vsel %vm8867, %v8689, 0.0
        %v8900 = vsel %vm8868, %v8688, 0.0
        %v8901 = vsel %vm8869, %v8687, 0.0
        %v8902 = vsel %vm8870, %v8686, 0.0
        %v8903 = vsel %vm8871, %v8685, 0.0
        %v8904 = vsel %vm8872, %v8684, 0.0
        %v8905 = vsel %vm8873, %v8683, 0.0
        %v8906 = vsel %vm8874, %v8682, 0.0
        %v8907 = vsel %vm8875, %v8681, 0.0
        %v8908 = vsel %vm8876, %v8680, 0.0
        %v8909 = vsel %vm8877, %v8679, 0.0
        %v8910 = vsel %vm8878, %v8678, 0.0
        %v8911 = vsel %vm8879, %v8677, 0.0
        %v8912 = vsel %vm8880, %v8676, 0.0
        %v8913 = vsel %vm8881, %v8675, 0.0
        %v8914 = vsel %vm8882, %v8674, 0.0
        %v8915 = vsel %vm8883, %v8673, 0.0
        %v8916 = vsel %vm8884, %v8672, 0.0
        %v8917 = vsel %vm8885, %v8671, 0.0
        %v8918 = vsel %vm8886, %v8670, 0.0
        %v8919 = vsel %vm8887, %v8669, 0.0
        %v8920 = vsel %vm8888, %v8668, 0.0
        %v8921 = vsel %vm8889, %v8667, 0.0
        %v8922 = vsel %vm8890, %v8698, 0.0
        %v8923 = vld [vmem:[%s5 + $0x6] sm:$0x1]
        %v8924 = vperm.slane %v8923, 0
        %v8925 = vmul.f32 %v8891, %v8924
        %v8926 = vmul.f32 %v8892, %v8924
        %v8927 = vmul.f32 %v8893, %v8924
        %v8928 = vmul.f32 %v8894, %v8924
        %v8929 = vmul.f32 %v8895, %v8924
        %v8930 = vmul.f32 %v8896, %v8924
        %v8931 = vmul.f32 %v8897, %v8924
        %v8932 = vmul.f32 %v8898, %v8924
        %v8933 = vmul.f32 %v8899, %v8924
        %v8934 = vmul.f32 %v8900, %v8924
        %v8935 = vmul.f32 %v8901, %v8924
        %v8936 = vmul.f32 %v8902, %v8924
        %v8937 = vmul.f32 %v8903, %v8924
        %v8938 = vmul.f32 %v8904, %v8924
        %v8939 = vmul.f32 %v8905, %v8924
        %v8940 = vmul.f32 %v8906, %v8924
        %v8941 = vmul.f32 %v8907, %v8924
        %v8942 = vmul.f32 %v8908, %v8924
        %v8943 = vmul.f32 %v8909, %v8924
        %v8944 = vmul.f32 %v8910, %v8924
        %v8945 = vmul.f32 %v8911, %v8924
        %v8946 = vmul.f32 %v8912, %v8924
        %v8947 = vmul.f32 %v8913, %v8924
        %v8948 = vmul.f32 %v8914, %v8924
        %v8949 = vmul.f32 %v8915, %v8924
        %v8950 = vmul.f32 %v8916, %v8924
        %v8951 = vmul.f32 %v8917, %v8924
        %v8952 = vmul.f32 %v8918, %v8924
        %v8953 = vmul.f32 %v8919, %v8924
        %v8954 = vmul.f32 %v8920, %v8924
        %v8955 = vmul.f32 %v8921, %v8924
        %v8956 = vmul.f32 %v8922, %v8924
        %v8957 = vadd.f32 %v8602, %v8925
        %v8958 = vadd.f32 %v8603, %v8926
        %v8959 = vadd.f32 %v8604, %v8927
        %v8960 = vadd.f32 %v8605, %v8928
        %v8961 = vadd.f32 %v8606, %v8929
        %v8962 = vadd.f32 %v8607, %v8930
        %v8963 = vadd.f32 %v8608, %v8931
        %v8964 = vadd.f32 %v8609, %v8932
        %v8965 = vadd.f32 %v8610, %v8933
        %v8966 = vadd.f32 %v8611, %v8934
        %v8967 = vadd.f32 %v8612, %v8935
        %v8968 = vadd.f32 %v8613, %v8936
        %v8969 = vadd.f32 %v8614, %v8937
        %v8970 = vadd.f32 %v8615, %v8938
        %v8971 = vadd.f32 %v8616, %v8939
        %v8972 = vadd.f32 %v8617, %v8940
        %v8973 = vadd.f32 %v8618, %v8941
        %v8974 = vadd.f32 %v8619, %v8942
        %v8975 = vadd.f32 %v8620, %v8943
        %v8976 = vadd.f32 %v8621, %v8944
        %v8977 = vadd.f32 %v8622, %v8945
        %v8978 = vadd.f32 %v8623, %v8946
        %v8979 = vadd.f32 %v8624, %v8947
        %v8980 = vadd.f32 %v8625, %v8948
        %v8981 = vadd.f32 %v8626, %v8949
        %v8982 = vadd.f32 %v8627, %v8950
        %v8983 = vadd.f32 %v8628, %v8951
        %v8984 = vadd.f32 %v8629, %v8952
        %v8985 = vadd.f32 %v8630, %v8953
        %v8986 = vadd.f32 %v8631, %v8954
        %v8987 = vadd.f32 %v8632, %v8955
        %v8988 = vadd.f32 %v8633, %v8956
        %v8989 = vld [vmem:[%s6 + $0x6] sm:$0x1]
        %v8990 = vperm.slane %v8989, 0
        %v8991 = vmul.f32 %v5967, %v8990
        %v8992 = vmul.f32 %v5968, %v8990
        %v8993 = vmul.f32 %v5969, %v8990
        %v8994 = vmul.f32 %v5970, %v8990
        %v8995 = vmul.f32 %v5971, %v8990
        %v8996 = vmul.f32 %v5972, %v8990
        %v8997 = vmul.f32 %v5973, %v8990
        %v8998 = vmul.f32 %v5974, %v8990
        %v8999 = vmul.f32 %v5975, %v8990
        %v9000 = vmul.f32 %v5976, %v8990
        %v9001 = vmul.f32 %v5977, %v8990
        %v9002 = vmul.f32 %v5978, %v8990
        %v9003 = vmul.f32 %v5979, %v8990
        %v9004 = vmul.f32 %v5980, %v8990
        %v9005 = vmul.f32 %v5981, %v8990
        %v9006 = vmul.f32 %v5982, %v8990
        %v9007 = vmul.f32 %v5983, %v8990
        %v9008 = vmul.f32 %v5984, %v8990
        %v9009 = vmul.f32 %v5985, %v8990
        %v9010 = vmul.f32 %v5986, %v8990
        %v9011 = vmul.f32 %v5987, %v8990
        %v9012 = vmul.f32 %v5988, %v8990
        %v9013 = vmul.f32 %v5989, %v8990
        %v9014 = vmul.f32 %v5990, %v8990
        %v9015 = vmul.f32 %v5991, %v8990
        %v9016 = vmul.f32 %v5992, %v8990
        %v9017 = vmul.f32 %v8990, 0.0
        %v9018 = vadd.f32 %v8957, %v8991
        %v9019 = vadd.f32 %v8958, %v8992
        %v9020 = vadd.f32 %v8959, %v8993
        %v9021 = vadd.f32 %v8960, %v8994
        %v9022 = vadd.f32 %v8961, %v8995
        %v9023 = vadd.f32 %v8962, %v8996
        %v9024 = vadd.f32 %v8963, %v8997
        %v9025 = vadd.f32 %v8964, %v8998
        %v9026 = vadd.f32 %v8965, %v8999
        %v9027 = vadd.f32 %v8966, %v9000
        %v9028 = vadd.f32 %v8967, %v9001
        %v9029 = vadd.f32 %v8968, %v9002
        %v9030 = vadd.f32 %v8969, %v9003
        %v9031 = vadd.f32 %v8970, %v9004
        %v9032 = vadd.f32 %v8971, %v9005
        %v9033 = vadd.f32 %v8972, %v9006
        %v9034 = vadd.f32 %v8973, %v9007
        %v9035 = vadd.f32 %v8974, %v9008
        %v9036 = vadd.f32 %v8975, %v9009
        %v9037 = vadd.f32 %v8976, %v9010
        %v9038 = vadd.f32 %v8977, %v9011
        %v9039 = vadd.f32 %v8978, %v9012
        %v9040 = vadd.f32 %v8979, %v9013
        %v9041 = vadd.f32 %v8980, %v9014
        %v9042 = vadd.f32 %v8981, %v9015
        %v9043 = vadd.f32 %v8982, %v9016
        %v9044 = vadd.f32 %v8983, %v9017
        %v9045 = vadd.f32 %v8984, %v9017
        %v9046 = vadd.f32 %v8985, %v9017
        %v9047 = vadd.f32 %v8986, %v9017
        %v9048 = vadd.f32 %v8987, %v9017
        %v9049 = vadd.f32 %v8988, %v9017
        %v9050 = vadd.f32 %v9018, %v9019
        %v9051 = vadd.f32 %v9050, %v9020
        %v9052 = vadd.f32 %v9051, %v9021
        %v9053 = vadd.f32 %v9052, %v9022
        %v9054 = vadd.f32 %v9053, %v9023
        %v9055 = vadd.f32 %v9054, %v9024
        %v9056 = vadd.f32 %v9055, %v9025
        %v9057 = vadd.f32 %v9056, %v9026
        %v9058 = vadd.f32 %v9057, %v9027
        %v9059 = vadd.f32 %v9058, %v9028
        %v9060 = vadd.f32 %v9059, %v9029
        %v9061 = vadd.f32 %v9060, %v9030
        %v9062 = vadd.f32 %v9061, %v9031
        %v9063 = vadd.f32 %v9062, %v9032
        %v9064 = vadd.f32 %v9063, %v9033
        %v9065 = vadd.f32 %v9064, %v9034
        %v9066 = vadd.f32 %v9065, %v9035
        %v9067 = vadd.f32 %v9066, %v9036
        %v9068 = vadd.f32 %v9067, %v9037
        %v9069 = vadd.f32 %v9068, %v9038
        %v9070 = vadd.f32 %v9069, %v9039
        %v9071 = vadd.f32 %v9070, %v9040
        %v9072 = vadd.f32 %v9071, %v9041
        %v9073 = vadd.f32 %v9072, %v9042
        %v9074 = vadd.f32 %v9073, %v9043
        %v9075 = vadd.f32 %v9074, %v9044
        %v9076 = vadd.f32 %v9075, %v9045
        %v9077 = vadd.f32 %v9076, %v9046
        %v9078 = vadd.f32 %v9077, %v9047
        %v9079 = vadd.f32 %v9078, %v9048
        %v9080 = vadd.f32 %v9079, %v9049
        %v9081 = vrot.slane %v9080, 4
        %v9082 = vadd.f32 %v9080, %v9081
        %v9083 = vrot.slane %v9082, 2
        %v9084 = vadd.f32 %v9082, %v9083
        %v9085 = vrot.slane %v9084, 1
        %v9086 = vadd.f32 %v9084, %v9085
        %v9087 = vsel %vm577, %v814, 0.0
        %v9088 = vsel %vm577, %v816, 0.0
        %v9089 = vadd.f32 %v9087, %v9088
        %v9090 = vsel %vm577, %v819, 0.0
        %v9091 = vadd.f32 %v9089, %v9090
        %v9092 = vsel %vm577, %v821, 0.0
        %v9093 = vadd.f32 %v9091, %v9092
        %v9094 = vsel %vm577, %v824, 0.0
        %v9095 = vadd.f32 %v9093, %v9094
        %v9096 = vsel %vm577, %v826, 0.0
        %v9097 = vadd.f32 %v9095, %v9096
        %v9098 = vsel %vm577, %v829, 0.0
        %v9099 = vadd.f32 %v9097, %v9098
        %v9100 = vsel %vm577, %v831, 0.0
        %v9101 = vadd.f32 %v9099, %v9100
        %v9102 = vsel %vm577, %v834, 0.0
        %v9103 = vadd.f32 %v9101, %v9102
        %v9104 = vsel %vm577, %v836, 0.0
        %v9105 = vadd.f32 %v9103, %v9104
        %v9106 = vsel %vm577, %v839, 0.0
        %v9107 = vadd.f32 %v9105, %v9106
        %v9108 = vsel %vm577, %v841, 0.0
        %v9109 = vadd.f32 %v9107, %v9108
        %v9110 = vsel %vm577, %v844, 0.0
        %v9111 = vadd.f32 %v9109, %v9110
        %v9112 = vsel %vm577, %v846, 0.0
        %v9113 = vadd.f32 %v9111, %v9112
        %v9114 = vsel %vm577, %v849, 0.0
        %v9115 = vadd.f32 %v9113, %v9114
        %v9116 = vsel %vm577, %v851, 0.0
        %v9117 = vadd.f32 %v9115, %v9116
        %v9118 = vsel %vm577, %v854, 0.0
        %v9119 = vadd.f32 %v9117, %v9118
        %v9120 = vsel %vm577, %v856, 0.0
        %v9121 = vadd.f32 %v9119, %v9120
        %v9122 = vsel %vm577, %v859, 0.0
        %v9123 = vadd.f32 %v9121, %v9122
        %v9124 = vsel %vm577, %v861, 0.0
        %v9125 = vadd.f32 %v9123, %v9124
        %v9126 = vsel %vm577, %v864, 0.0
        %v9127 = vadd.f32 %v9125, %v9126
        %v9128 = vsel %vm577, %v866, 0.0
        %v9129 = vadd.f32 %v9127, %v9128
        %v9130 = vsel %vm577, %v869, 0.0
        %v9131 = vadd.f32 %v9129, %v9130
        %v9132 = vsel %vm577, %v871, 0.0
        %v9133 = vadd.f32 %v9131, %v9132
        %v9134 = vsel %vm577, %v874, 0.0
        %v9135 = vadd.f32 %v9133, %v9134
        %v9136 = vsel %vm577, %v876, 0.0
        %v9137 = vadd.f32 %v9135, %v9136
        %v9138 = vsel %vm577, %v879, 0.0
        %v9139 = vadd.f32 %v9137, %v9138
        %v9140 = vsel %vm577, %v881, 0.0
        %v9141 = vadd.f32 %v9139, %v9140
        %v9142 = vsel %vm577, %v884, 0.0
        %v9143 = vadd.f32 %v9141, %v9142
        %v9144 = vsel %vm577, %v886, 0.0
        %v9145 = vadd.f32 %v9143, %v9144
        %v9146 = vsel %vm577, %v889, 0.0
        %v9147 = vadd.f32 %v9145, %v9146
        %v9148 = vsel %vm577, %v891, 0.0
        %v9149 = vadd.f32 %v9147, %v9148
        %v9150 = vrot.slane %v9149, 4
        %v9151 = vadd.f32 %v9149, %v9150
        %v9152 = vrot.slane %v9151, 2
        %v9153 = vadd.f32 %v9151, %v9152
        %v9154 = vrot.slane %v9153, 1
        %v9155 = vadd.f32 %v9153, %v9154
        %9157 = vrot.lane.b32.xlu0 %v9086, 96
        %v9158 = vpop.permute.xlu0 %9157
        %v9160 = vadd.f32 %v9086, %v9158
        %9161 = vrot.lane.b32.xlu0 %v9086, 64
        %v9162 = vpop.permute.xlu0 %9161
        %v9164 = vadd.f32 %v9160, %v9162
        %9165 = vrot.lane.b32.xlu0 %v9086, 32
        %v9166 = vpop.permute.xlu0 %9165
        %v9168 = vadd.f32 %v9164, %v9166
        %v9169 = vadd.f32 %v9168, %v9155
        %v9170 = vmul.f32 %v9169, 0.00390625
        %v9171 = vpack.c.bf16 %v9170, %v9170
        %v9172 = vld [vmem:[%s7] sm:$0xf]
        %v9173 = vld [vmem:[%s7 + $0x4] sm:$0xf]
        %v9174 = vld [vmem:[%s7 + $0x8] sm:$0xf]
        %v9175 = vld [vmem:[%s7 + $0xc] sm:$0xf]
        %v9176 = vld [vmem:[%s8] sm:$0x1]
        %v9181 = vunpack.c.l.b16 %v9172
        %v9182 = vunpack.c.l.b16 %v9173
        %v9183 = vunpack.c.l.b16 %v9174
        %v9184 = vunpack.c.l.b16 %v9175
        %v9185 = vpack.c.b16 %v9182, %v9181
        %v9186 = vpack.c.b16 %v9184, %v9183
        %v9190 = vsel %vm577, %v9171, 0
        %9192 = vmatpush.bf16.msra.mxu0 0
        %9193 = vmatpush.bf16.msra.mxu0 0
        %9194 = vmatpush.bf16.msra.mxu0 0
        %9195 = vmatpush.bf16.msra.mxu0 0
        %9196 = vmatpush.bf16.msra.mxu0 0
        %9197 = vmatpush.bf16.msra.mxu0 0
        %9198 = vmatpush.bf16.msra.mxu0 %v9186
        %9199 = vmatpush.bf16.msra.mxu0 %v9185
        %9200 = vmatmul.bf16.gmra.mxu0 %v9190
        %v9201 = vpop.f32.mrf.mxu0
        %v9202 = vadd.f32 %v9176, %v9201
        %v9203 = vpop.f32.mrf.mxu0
        %9204 = vdwg.mxu0
        %v9205 = vmul.f32 %v9202, 0.5
        %v9206 = vmul.f32 %v9202, 0.70710677
        %v9207 = vand.u32 2147483647, %v9206
        %v9208 = vmul.f32 %v9207, 0.3275911
        %v9209 = vadd.f32 %v9208, 1.0
        %v9210 = vrcp.pop %v9209
        %v9211 = vmul.f32 %v9209, %v9210
        %v9212 = vsub.f32 1.0, %v9211
        %v9213 = vmul.f32 %v9210, %v9212
        %v9214 = vadd.f32 %v9210, %v9213
        %vm9215 = vweird.f32 %v9209
        %vm9216 = vweird.f32 %v9210
        %vm9217 = vmor %vm9215, %vm9216
        %v9218 = vsel %vm9217, %v9210, %v9214
        %v9219 = vand.u32 2147483647, %v9209
        %vm9220 = vcmp.eq.f32.partialorder %v9219, 8.507059e+37
        %v9221 = vand.u32 %v9209, 2147483648
        %v9222 = vor.u32 1.1754944e-38, %v9221
        %v9223 = vsel %vm9220, %v9222, %v9218
        %v9224 = vmul.f32 1.0, %v9223
        %v9225 = vmul.f32 %v9224, 1.0614054
        %v9226 = vadd.f32 %v9225, -1.4531521
        %v9227 = vmul.f32 %v9226, %v9224
        %v9228 = vadd.f32 %v9227, 1.4214138
        %v9229 = vmul.f32 %v9228, %v9224
        %v9230 = vadd.f32 %v9229, -0.28449672
        %v9231 = vmul.f32 %v9230, %v9224
        %v9232 = vadd.f32 %v9231, 0.2548296
        %v9233 = vmul.f32 %v9232, %v9224
        %v9234 = vsub.f32 0.0, %v9207
        %v9235 = vmul.f32 %v9234, %v9207
        %v9236 = vmul.f32 %v9235, 1.442695
        %v9237 = vpow.pop %v9236
        %v9238 = vmul.f32 %v9233, %v9237
        %v9239 = vsub.f32 1.0, %v9238
        %vm9240 = vcmp.lt.f32.partialorder %v9206, 0.0
        %v9241 = vsub.f32 0.0, %v9239
        %v9242 = vsel %vm9240, %v9241, %v9239
        %v9243 = vadd.f32 %v9242, 1.0
        %v9244 = vmul.f32 %v9205, %v9243
        %v9245 = vpack.c.bf16 %v9244, %v9244
        %v9246 = vld [vmem:[%s9] sm:$0xf]
        %v9247 = vld [vmem:[%s10] sm:$0x1]
        %vm9248 = vcmask 64512
        %v9250 = vsel %vm9248, %v9245, 0
        %vm9252 = vcmask 1043456
        %v9254 = vsel %vm9252, %v9246, 0
        %9256 = vmatpush.bf16.msra.mxu0 0
        %9257 = vmatpush.bf16.msra.mxu0 0
        %9258 = vmatpush.bf16.msra.mxu0 0
        %9259 = vmatpush.bf16.msra.mxu0 0
        %9260 = vmatpush.bf16.msra.mxu0 0
        %9261 = vmatpush.bf16.msra.mxu0 0
        %9262 = vmatpush.bf16.msra.mxu0 0
        %9263 = vmatpush.bf16.msra.mxu0 %v9254
        %9264 = vmatmul.bf16.gmra.mxu0 %v9250
        %v9265 = vpop.f32.mrf.mxu0
        %v9266 = vadd.f32 %v9247, %v9265
        %v9267 = vpop.f32.mrf.mxu0
        %9268 = vdwg.mxu0
        %9270 = vrot.lane.b32.xlu0 %v9266, 96
        %v9271 = vpop.permute.xlu0 %9270
        %v9273 = vmax.f32 %v9266, %v9271
        %9274 = vrot.lane.b32.xlu0 %v9266, 64
        %v9275 = vpop.permute.xlu0 %9274
        %v9277 = vmax.f32 %v9273, %v9275
        %v9278 = vsub.f32 %v9266, %v9277
        %v9279 = vmul.f32 %v9278, 1.442695
        %v9280 = vpow.pop %v9279
        %9282 = vrot.lane.b32.xlu0 %v9277, 32
        %v9283 = vpop.permute.xlu0 %9282
        %v9285 = vsub.f32 %v9266, %v9283
        %v9286 = vmul.f32 %v9285, 1.442695
        %v9287 = vpow.pop %v9286
        %9288 = vrot.lane.b32.xlu0 %v9277, 64
        %v9289 = vpop.permute.xlu0 %9288
        %v9291 = vsub.f32 %v9266, %v9289
        %v9292 = vmul.f32 %v9291, 1.442695
        %v9293 = vpow.pop %v9292
        %9295 = vrot.lane.b32.xlu0 %v9287, 96
        %v9296 = vpop.permute.xlu0 %9295
        %v9298 = vadd.f32 %v9280, %v9296
        %9300 = vrot.lane.b32.xlu0 %v9293, 64
        %v9301 = vpop.permute.xlu0 %9300
        %v9303 = vadd.f32 %v9298, %v9301
        %v9304 = vrcp.pop %v9303
        %v9305 = vmul.f32 %v9303, %v9304
        %v9306 = vsub.f32 1.0, %v9305
        %v9307 = vmul.f32 %v9304, %v9306
        %v9308 = vadd.f32 %v9304, %v9307
        %vm9309 = vweird.f32 %v9303
        %vm9310 = vweird.f32 %v9304
        %vm9311 = vmor %vm9309, %vm9310
        %v9312 = vsel %vm9311, %v9304, %v9308
        %v9313 = vand.u32 2147483647, %v9303
        %vm9314 = vcmp.eq.f32.partialorder %v9313, 8.507059e+37
        %v9315 = vand.u32 %v9303, 2147483648
        %v9316 = vor.u32 1.1754944e-38, %v9315
        %v9317 = vsel %vm9314, %v9316, %v9312
        %v9318 = vmul.f32 1.0, %v9317
        %v9319 = vmul.f32 %v9280, %v9318
        %9321 = vrot.lane.b32.xlu0 %v9318, 32
        %v9322 = vpop.permute.xlu0 %9321
        %v9324 = vmul.f32 %v9287, %v9322
        %9325 = vrot.lane.b32.xlu0 %v9318, 64
        %v9326 = vpop.permute.xlu0 %9325
        %v9328 = vmul.f32 %v9293, %v9326
        %9330 = vrot.lane.b32.xlu0 %v9319, 32
        %v9331 = vpop.permute.xlu0 %9330
        %9334 = vrot.lane.b32.xlu0 %v9324, 32
        %v9335 = vpop.permute.xlu0 %9334
        %9337 = vrot.lane.b32.xlu0 %v9324, 64
        %v9338 = vpop.permute.xlu0 %9337
        %v9340 = vsel %vm577, %v9319, %v9331
        %vm9341 = vcmask 523264
        %v9342 = vsel %vm9341, %v9340, %v9335
        %vm9343 = vcmask 785408
        %v9344 = vsel %vm9343, %v9342, %v9338
        %v9345 = vperm.slane %v9344, 0
        %v9346 = vmul.f32 %v9018, %v9345
        %v9347 = vmul.f32 %v9019, %v9345
        %v9348 = vmul.f32 %v9020, %v9345
        %v9349 = vmul.f32 %v9021, %v9345
        %v9350 = vmul.f32 %v9022, %v9345
        %v9351 = vmul.f32 %v9023, %v9345
        %v9352 = vmul.f32 %v9024, %v9345
        %v9353 = vmul.f32 %v9025, %v9345
        %v9354 = vmul.f32 %v9026, %v9345
        %v9355 = vmul.f32 %v9027, %v9345
        %v9356 = vmul.f32 %v9028, %v9345
        %v9357 = vmul.f32 %v9029, %v9345
        %v9358 = vmul.f32 %v9030, %v9345
        %v9359 = vmul.f32 %v9031, %v9345
        %v9360 = vmul.f32 %v9032, %v9345
        %v9361 = vmul.f32 %v9033, %v9345
        %v9362 = vmul.f32 %v9034, %v9345
        %v9363 = vmul.f32 %v9035, %v9345
        %v9364 = vmul.f32 %v9036, %v9345
        %v9365 = vmul.f32 %v9037, %v9345
        %v9366 = vmul.f32 %v9038, %v9345
        %v9367 = vmul.f32 %v9039, %v9345
        %v9368 = vmul.f32 %v9040, %v9345
        %v9369 = vmul.f32 %v9041, %v9345
        %v9370 = vmul.f32 %v9042, %v9345
        %v9371 = vmul.f32 %v9043, %v9345
        %v9372 = vmul.f32 %v9044, %v9345
        %v9373 = vmul.f32 %v9045, %v9345
        %v9374 = vmul.f32 %v9046, %v9345
        %v9375 = vmul.f32 %v9047, %v9345
        %v9376 = vmul.f32 %v9048, %v9345
        %v9377 = vmul.f32 %v9049, %v9345
        %v9378 = vpack.c.bf16 %v9347, %v9346
        %v9379 = vpack.c.bf16 %v9349, %v9348
        %v9380 = vpack.c.bf16 %v9351, %v9350
        %v9381 = vpack.c.bf16 %v9353, %v9352
        %v9382 = vpack.c.bf16 %v9355, %v9354
        %v9383 = vpack.c.bf16 %v9357, %v9356
        %v9384 = vpack.c.bf16 %v9359, %v9358
        %v9385 = vpack.c.bf16 %v9361, %v9360
        %v9386 = vpack.c.bf16 %v9363, %v9362
        %v9387 = vpack.c.bf16 %v9365, %v9364
        %v9388 = vpack.c.bf16 %v9367, %v9366
        %v9389 = vpack.c.bf16 %v9369, %v9368
        %v9390 = vpack.c.bf16 %v9371, %v9370
        %v9391 = vpack.c.bf16 %v9373, %v9372
        %v9392 = vpack.c.bf16 %v9375, %v9374
        %v9393 = vpack.c.bf16 %v9377, %v9376
        %v9394 = vperm.slane %v9328, 0
        %9396 = vrot.lane.b32.xlu0 %v9394, 64
        %v9397 = vpop.permute.xlu0 %9396
        %v9399 = vmul.f32 %v814, %v9397
        %v9400 = vmul.f32 %v816, %v9397
        %v9401 = vmul.f32 %v819, %v9397
        %v9402 = vmul.f32 %v821, %v9397
        %v9403 = vmul.f32 %v824, %v9397
        %v9404 = vmul.f32 %v826, %v9397
        %v9405 = vmul.f32 %v829, %v9397
        %v9406 = vmul.f32 %v831, %v9397
        %v9407 = vmul.f32 %v834, %v9397
        %v9408 = vmul.f32 %v836, %v9397
        %v9409 = vmul.f32 %v839, %v9397
        %v9410 = vmul.f32 %v841, %v9397
        %v9411 = vmul.f32 %v844, %v9397
        %v9412 = vmul.f32 %v846, %v9397
        %v9413 = vmul.f32 %v849, %v9397
        %v9414 = vmul.f32 %v851, %v9397
        %v9415 = vmul.f32 %v854, %v9397
        %v9416 = vmul.f32 %v856, %v9397
        %v9417 = vmul.f32 %v859, %v9397
        %v9418 = vmul.f32 %v861, %v9397
        %v9419 = vmul.f32 %v864, %v9397
        %v9420 = vmul.f32 %v866, %v9397
        %v9421 = vmul.f32 %v869, %v9397
        %v9422 = vmul.f32 %v871, %v9397
        %v9423 = vmul.f32 %v874, %v9397
        %v9424 = vmul.f32 %v876, %v9397
        %v9425 = vmul.f32 %v879, %v9397
        %v9426 = vmul.f32 %v881, %v9397
        %v9427 = vmul.f32 %v884, %v9397
        %v9428 = vmul.f32 %v886, %v9397
        %v9429 = vmul.f32 %v889, %v9397
        %v9430 = vmul.f32 %v891, %v9397
        %v9431 = vpack.c.bf16 %v9400, %v9399
        %v9432 = vpack.c.bf16 %v9402, %v9401
        %v9433 = vpack.c.bf16 %v9404, %v9403
        %v9434 = vpack.c.bf16 %v9406, %v9405
        %v9435 = vpack.c.bf16 %v9408, %v9407
        %v9436 = vpack.c.bf16 %v9410, %v9409
        %v9437 = vpack.c.bf16 %v9412, %v9411
        %v9438 = vpack.c.bf16 %v9414, %v9413
        %v9439 = vpack.c.bf16 %v9416, %v9415
        %v9440 = vpack.c.bf16 %v9418, %v9417
        %v9441 = vpack.c.bf16 %v9420, %v9419
        %v9442 = vpack.c.bf16 %v9422, %v9421
        %v9443 = vpack.c.bf16 %v9424, %v9423
        %v9444 = vpack.c.bf16 %v9426, %v9425
        %v9445 = vpack.c.bf16 %v9428, %v9427
        %v9446 = vpack.c.bf16 %v9430, %v9429
        %v9447 = vld [vmem:[%s11] sm:$0xf]
        %v9448 = vld [vmem:[%s11 + $0x4] sm:$0xf]
        %v9449 = vld [vmem:[%s11 + $0x8] sm:$0xf]
        %v9450 = vld [vmem:[%s11 + $0xc] sm:$0xf]
        %v9451 = vld [vmem:[%s11 + $0x10] sm:$0xf]
        %v9452 = vld [vmem:[%s11 + $0x14] sm:$0xf]
        %v9453 = vld [vmem:[%s11 + $0x18] sm:$0xf]
        %v9454 = vld [vmem:[%s11 + $0x1c] sm:$0xf]
        %v9455 = vld [vmem:[%s11 + $0x20] sm:$0xf]
        %v9456 = vld [vmem:[%s11 + $0x24] sm:$0xf]
        %v9457 = vld [vmem:[%s11 + $0x28] sm:$0xf]
        %v9458 = vld [vmem:[%s11 + $0x2c] sm:$0xf]
        %v9459 = vld [vmem:[%s11 + $0x30] sm:$0xf]
        %v9460 = vld [vmem:[%s11 + $0x34] sm:$0xf]
        %v9461 = vld [vmem:[%s11 + $0x38] sm:$0xf]
        %v9462 = vld [vmem:[%s11 + $0x3c] sm:$0xf]
        %v9463 = vld [vmem:[%s12] sm:$0xf]
        %v9464 = vld [vmem:[%s12 + $0x4] sm:$0xf]
        %v9465 = vld [vmem:[%s12 + $0x8] sm:$0xf]
        %v9466 = vld [vmem:[%s12 + $0xc] sm:$0xf]
        %v9471 = vunpack.c.l.b16 %v9463
        %v9472 = vunpack.c.l.b16 %v9464
        %v9473 = vunpack.c.l.b16 %v9465
        %v9474 = vunpack.c.l.b16 %v9466
        %v9475 = vpack.c.b16 %v9472, %v9471
        %v9476 = vpack.c.b16 %v9474, %v9473
        %v9480 = vsel %vm577, %v9431, 0
        %v9483 = vsel %vm577, %v9432, 0
        %v9486 = vsel %vm577, %v9433, 0
        %v9489 = vsel %vm577, %v9434, 0
        %v9492 = vsel %vm577, %v9435, 0
        %v9495 = vsel %vm577, %v9436, 0
        %v9498 = vsel %vm577, %v9437, 0
        %v9501 = vsel %vm577, %v9438, 0
        %v9504 = vsel %vm577, %v9439, 0
        %v9507 = vsel %vm577, %v9440, 0
        %v9510 = vsel %vm577, %v9441, 0
        %v9513 = vsel %vm577, %v9442, 0
        %v9516 = vsel %vm577, %v9443, 0
        %v9519 = vsel %vm577, %v9444, 0
        %v9522 = vsel %vm577, %v9445, 0
        %v9525 = vsel %vm577, %v9446, 0
        %9527 = vmatpush.bf16.msra.mxu0 0
        %9528 = vmatpush.bf16.msra.mxu0 0
        %9529 = vmatpush.bf16.msra.mxu0 0
        %9530 = vmatpush.bf16.msra.mxu0 0
        %9531 = vmatpush.bf16.msra.mxu0 0
        %9532 = vmatpush.bf16.msra.mxu0 0
        %9533 = vmatpush.bf16.msra.mxu0 %v9476
        %9534 = vmatpush.bf16.msra.mxu0 %v9475
        %9535 = vmatmul.bf16.gmra.mxu0 %v9480
        %v9536 = vpop.f32.mrf.mxu0
        %v9537 = vadd.f32 0.0, %v9536
        %v9538 = vpop.f32.mrf.mxu0
        %v9539 = vadd.f32 0.0, %v9538
        %9540 = vmatmul.bf16.gmra.mxu0 %v9483
        %v9541 = vpop.f32.mrf.mxu0
        %v9542 = vadd.f32 0.0, %v9541
        %v9543 = vpop.f32.mrf.mxu0
        %v9544 = vadd.f32 0.0, %v9543
        %9545 = vmatmul.bf16.gmra.mxu0 %v9486
        %v9546 = vpop.f32.mrf.mxu0
        %v9547 = vadd.f32 0.0, %v9546
        %v9548 = vpop.f32.mrf.mxu0
        %v9549 = vadd.f32 0.0, %v9548
        %9550 = vmatmul.bf16.gmra.mxu0 %v9489
        %v9551 = vpop.f32.mrf.mxu0
        %v9552 = vadd.f32 0.0, %v9551
        %v9553 = vpop.f32.mrf.mxu0
        %v9554 = vadd.f32 0.0, %v9553
        %9555 = vmatmul.bf16.gmra.mxu0 %v9492
        %v9556 = vpop.f32.mrf.mxu0
        %v9557 = vadd.f32 0.0, %v9556
        %v9558 = vpop.f32.mrf.mxu0
        %v9559 = vadd.f32 0.0, %v9558
        %9560 = vmatmul.bf16.gmra.mxu0 %v9495
        %v9561 = vpop.f32.mrf.mxu0
        %v9562 = vadd.f32 0.0, %v9561
        %v9563 = vpop.f32.mrf.mxu0
        %v9564 = vadd.f32 0.0, %v9563
        %9565 = vmatmul.bf16.gmra.mxu0 %v9498
        %v9566 = vpop.f32.mrf.mxu0
        %v9567 = vadd.f32 0.0, %v9566
        %v9568 = vpop.f32.mrf.mxu0
        %v9569 = vadd.f32 0.0, %v9568
        %9570 = vmatmul.bf16.gmra.mxu0 %v9501
        %v9571 = vpop.f32.mrf.mxu0
        %v9572 = vadd.f32 0.0, %v9571
        %v9573 = vpop.f32.mrf.mxu0
        %v9574 = vadd.f32 0.0, %v9573
        %9575 = vmatmul.bf16.gmra.mxu0 %v9504
        %v9576 = vpop.f32.mrf.mxu0
        %v9577 = vadd.f32 0.0, %v9576
        %v9578 = vpop.f32.mrf.mxu0
        %v9579 = vadd.f32 0.0, %v9578
        %9580 = vmatmul.bf16.gmra.mxu0 %v9507
        %v9581 = vpop.f32.mrf.mxu0
        %v9582 = vadd.f32 0.0, %v9581
        %v9583 = vpop.f32.mrf.mxu0
        %v9584 = vadd.f32 0.0, %v9583
        %9585 = vmatmul.bf16.gmra.mxu0 %v9510
        %v9586 = vpop.f32.mrf.mxu0
        %v9587 = vadd.f32 0.0, %v9586
        %v9588 = vpop.f32.mrf.mxu0
        %v9589 = vadd.f32 0.0, %v9588
        %9590 = vmatmul.bf16.gmra.mxu0 %v9513
        %v9591 = vpop.f32.mrf.mxu0
        %v9592 = vadd.f32 0.0, %v9591
        %v9593 = vpop.f32.mrf.mxu0
        %v9594 = vadd.f32 0.0, %v9593
        %9595 = vmatmul.bf16.gmra.mxu0 %v9516
        %v9596 = vpop.f32.mrf.mxu0
        %v9597 = vadd.f32 0.0, %v9596
        %v9598 = vpop.f32.mrf.mxu0
        %v9599 = vadd.f32 0.0, %v9598
        %9600 = vmatmul.bf16.gmra.mxu0 %v9519
        %v9601 = vpop.f32.mrf.mxu0
        %v9602 = vadd.f32 0.0, %v9601
        %v9603 = vpop.f32.mrf.mxu0
        %v9604 = vadd.f32 0.0, %v9603
        %9605 = vmatmul.bf16.gmra.mxu0 %v9522
        %v9606 = vpop.f32.mrf.mxu0
        %v9607 = vadd.f32 0.0, %v9606
        %v9608 = vpop.f32.mrf.mxu0
        %v9609 = vadd.f32 0.0, %v9608
        %9610 = vmatmul.bf16.gmra.mxu0 %v9525
        %v9611 = vpop.f32.mrf.mxu0
        %v9612 = vadd.f32 0.0, %v9611
        %v9613 = vpop.f32.mrf.mxu0
        %v9614 = vadd.f32 0.0, %v9613
        %9615 = vdwg.mxu0
        %v9632 = vunpack.c.l.b16 %v9447
        %v9633 = vunpack.c.l.b16 %v9448
        %v9634 = vunpack.c.l.b16 %v9449
        %v9635 = vunpack.c.l.b16 %v9450
        %v9636 = vunpack.c.l.b16 %v9451
        %v9637 = vunpack.c.l.b16 %v9452
        %v9638 = vunpack.c.l.b16 %v9453
        %v9639 = vunpack.c.l.b16 %v9454
        %v9640 = vunpack.c.l.b16 %v9455
        %v9641 = vunpack.c.l.b16 %v9456
        %v9642 = vunpack.c.l.b16 %v9457
        %v9643 = vunpack.c.l.b16 %v9458
        %v9644 = vunpack.c.l.b16 %v9459
        %v9645 = vunpack.c.l.b16 %v9460
        %v9646 = vunpack.c.l.b16 %v9461
        %v9647 = vunpack.c.l.b16 %v9462
        %v9648 = vpack.c.b16 %v9633, %v9632
        %v9649 = vpack.c.b16 %v9635, %v9634
        %v9650 = vpack.c.b16 %v9637, %v9636
        %v9651 = vpack.c.b16 %v9639, %v9638
        %v9652 = vpack.c.b16 %v9641, %v9640
        %v9653 = vpack.c.b16 %v9643, %v9642
        %v9654 = vpack.c.b16 %v9645, %v9644
        %v9655 = vpack.c.b16 %v9647, %v9646
        %9664 = vmatpush.bf16.msra.mxu0 %v9655
        %9665 = vmatpush.bf16.msra.mxu0 %v9654
        %9666 = vmatpush.bf16.msra.mxu0 %v9653
        %9667 = vmatpush.bf16.msra.mxu0 %v9652
        %9668 = vmatpush.bf16.msra.mxu0 %v9651
        %9669 = vmatpush.bf16.msra.mxu0 %v9650
        %9670 = vmatpush.bf16.msra.mxu0 %v9649
        %9671 = vmatpush.bf16.msra.mxu0 %v9648
        %9672 = vmatmul.bf16.gmra.mxu0 %v9378
        %v9673 = vpop.f32.mrf.mxu0
        %v9674 = vadd.f32 %v9537, %v9673
        %v9675 = vpop.f32.mrf.mxu0
        %v9676 = vadd.f32 %v9539, %v9675
        %9677 = vmatmul.bf16.gmra.mxu0 %v9379
        %v9678 = vpop.f32.mrf.mxu0
        %v9679 = vadd.f32 %v9542, %v9678
        %v9680 = vpop.f32.mrf.mxu0
        %v9681 = vadd.f32 %v9544, %v9680
        %9682 = vmatmul.bf16.gmra.mxu0 %v9380
        %v9683 = vpop.f32.mrf.mxu0
        %v9684 = vadd.f32 %v9547, %v9683
        %v9685 = vpop.f32.mrf.mxu0
        %v9686 = vadd.f32 %v9549, %v9685
        %9687 = vmatmul.bf16.gmra.mxu0 %v9381
        %v9688 = vpop.f32.mrf.mxu0
        %v9689 = vadd.f32 %v9552, %v9688
        %v9690 = vpop.f32.mrf.mxu0
        %v9691 = vadd.f32 %v9554, %v9690
        %9692 = vmatmul.bf16.gmra.mxu0 %v9382
        %v9693 = vpop.f32.mrf.mxu0
        %v9694 = vadd.f32 %v9557, %v9693
        %v9695 = vpop.f32.mrf.mxu0
        %v9696 = vadd.f32 %v9559, %v9695
        %9697 = vmatmul.bf16.gmra.mxu0 %v9383
        %v9698 = vpop.f32.mrf.mxu0
        %v9699 = vadd.f32 %v9562, %v9698
        %v9700 = vpop.f32.mrf.mxu0
        %v9701 = vadd.f32 %v9564, %v9700
        %9702 = vmatmul.bf16.gmra.mxu0 %v9384
        %v9703 = vpop.f32.mrf.mxu0
        %v9704 = vadd.f32 %v9567, %v9703
        %v9705 = vpop.f32.mrf.mxu0
        %v9706 = vadd.f32 %v9569, %v9705
        %9707 = vmatmul.bf16.gmra.mxu0 %v9385
        %v9708 = vpop.f32.mrf.mxu0
        %v9709 = vadd.f32 %v9572, %v9708
        %v9710 = vpop.f32.mrf.mxu0
        %v9711 = vadd.f32 %v9574, %v9710
        %9712 = vmatmul.bf16.gmra.mxu0 %v9386
        %v9713 = vpop.f32.mrf.mxu0
        %v9714 = vadd.f32 %v9577, %v9713
        %v9715 = vpop.f32.mrf.mxu0
        %v9716 = vadd.f32 %v9579, %v9715
        %9717 = vmatmul.bf16.gmra.mxu0 %v9387
        %v9718 = vpop.f32.mrf.mxu0
        %v9719 = vadd.f32 %v9582, %v9718
        %v9720 = vpop.f32.mrf.mxu0
        %v9721 = vadd.f32 %v9584, %v9720
        %9722 = vmatmul.bf16.gmra.mxu0 %v9388
        %v9723 = vpop.f32.mrf.mxu0
        %v9724 = vadd.f32 %v9587, %v9723
        %v9725 = vpop.f32.mrf.mxu0
        %v9726 = vadd.f32 %v9589, %v9725
        %9727 = vmatmul.bf16.gmra.mxu0 %v9389
        %v9728 = vpop.f32.mrf.mxu0
        %v9729 = vadd.f32 %v9592, %v9728
        %v9730 = vpop.f32.mrf.mxu0
        %v9731 = vadd.f32 %v9594, %v9730
        %9732 = vmatmul.bf16.gmra.mxu0 %v9390
        %v9733 = vpop.f32.mrf.mxu0
        %v9734 = vadd.f32 %v9597, %v9733
        %v9735 = vpop.f32.mrf.mxu0
        %v9736 = vadd.f32 %v9599, %v9735
        %9737 = vmatmul.bf16.gmra.mxu0 %v9391
        %v9738 = vpop.f32.mrf.mxu0
        %v9739 = vadd.f32 %v9602, %v9738
        %v9740 = vpop.f32.mrf.mxu0
        %v9741 = vadd.f32 %v9604, %v9740
        %9742 = vmatmul.bf16.gmra.mxu0 %v9392
        %v9743 = vpop.f32.mrf.mxu0
        %v9744 = vadd.f32 %v9607, %v9743
        %v9745 = vpop.f32.mrf.mxu0
        %v9746 = vadd.f32 %v9609, %v9745
        %9747 = vmatmul.bf16.gmra.mxu0 %v9393
        %v9748 = vpop.f32.mrf.mxu0
        %v9749 = vadd.f32 %v9612, %v9748
        %v9750 = vpop.f32.mrf.mxu0
        %v9751 = vadd.f32 %v9614, %v9750
        %9752 = vdwg.mxu0
        %v9753 = vld [vmem:[%s13] sm:$0x1]
        %v9755 = vperm.slane %v9753, 0
        %v9757 = vadd.f32 %v9674, %v9755
        %v9758 = vadd.f32 %v9676, %v9755
        %v9759 = vadd.f32 %v9679, %v9755
        %v9760 = vadd.f32 %v9681, %v9755
        %v9761 = vadd.f32 %v9684, %v9755
        %v9762 = vadd.f32 %v9686, %v9755
        %v9763 = vadd.f32 %v9689, %v9755
        %v9764 = vadd.f32 %v9691, %v9755
        %v9765 = vadd.f32 %v9694, %v9755
        %v9766 = vadd.f32 %v9696, %v9755
        %v9767 = vadd.f32 %v9699, %v9755
        %v9768 = vadd.f32 %v9701, %v9755
        %v9769 = vadd.f32 %v9704, %v9755
        %v9770 = vadd.f32 %v9706, %v9755
        %v9771 = vadd.f32 %v9709, %v9755
        %v9772 = vadd.f32 %v9711, %v9755
        %v9773 = vadd.f32 %v9714, %v9755
        %v9774 = vadd.f32 %v9716, %v9755
        %v9775 = vadd.f32 %v9719, %v9755
        %v9776 = vadd.f32 %v9721, %v9755
        %v9777 = vadd.f32 %v9724, %v9755
        %v9778 = vadd.f32 %v9726, %v9755
        %v9779 = vadd.f32 %v9729, %v9755
        %v9780 = vadd.f32 %v9731, %v9755
        %v9781 = vadd.f32 %v9734, %v9755
        %v9782 = vadd.f32 %v9736, %v9755
        %v9783 = vadd.f32 %v9739, %v9755
        %v9784 = vadd.f32 %v9741, %v9755
        %v9785 = vadd.f32 %v9744, %v9755
        %v9786 = vadd.f32 %v9746, %v9755
        %v9787 = vadd.f32 %v9749, %v9755
        %v9788 = vadd.f32 %v9751, %v9755
        %9789 = vst.msk [vmem:[%s487] sm:$0xff] %vm577, %v9757
        %9790 = vst.msk [vmem:[%s487 + $0x8] sm:$0xff] %vm577, %v9758
        %9791 = vst.msk [vmem:[%s487 + $0x10] sm:$0xff] %vm577, %v9759
        %9792 = vst.msk [vmem:[%s487 + $0x18] sm:$0xff] %vm577, %v9760
        %9793 = vst.msk [vmem:[%s487 + $0x20] sm:$0xff] %vm577, %v9761
        %9794 = vst.msk [vmem:[%s487 + $0x28] sm:$0xff] %vm577, %v9762
        %9795 = vst.msk [vmem:[%s487 + $0x30] sm:$0xff] %vm577, %v9763
        %9796 = vst.msk [vmem:[%s487 + $0x38] sm:$0xff] %vm577, %v9764
        %9797 = vst.msk [vmem:[%s487 + $0x40] sm:$0xff] %vm577, %v9765
        %9798 = vst.msk [vmem:[%s487 + $0x48] sm:$0xff] %vm577, %v9766
        %9799 = vst.msk [vmem:[%s487 + $0x50] sm:$0xff] %vm577, %v9767
        %9800 = vst.msk [vmem:[%s487 + $0x58] sm:$0xff] %vm577, %v9768
        %9801 = vst.msk [vmem:[%s487 + $0x60] sm:$0xff] %vm577, %v9769
        %9802 = vst.msk [vmem:[%s487 + $0x68] sm:$0xff] %vm577, %v9770
        %9803 = vst.msk [vmem:[%s487 + $0x70] sm:$0xff] %vm577, %v9771
        %9804 = vst.msk [vmem:[%s487 + $0x78] sm:$0xff] %vm577, %v9772
        %9805 = vst.msk [vmem:[%s487 + $0x80] sm:$0xff] %vm577, %v9773
        %9806 = vst.msk [vmem:[%s487 + $0x88] sm:$0xff] %vm577, %v9774
        %9807 = vst.msk [vmem:[%s487 + $0x90] sm:$0xff] %vm577, %v9775
        %9808 = vst.msk [vmem:[%s487 + $0x98] sm:$0xff] %vm577, %v9776
        %9809 = vst.msk [vmem:[%s487 + $0xa0] sm:$0xff] %vm577, %v9777
        %9810 = vst.msk [vmem:[%s487 + $0xa8] sm:$0xff] %vm577, %v9778
        %9811 = vst.msk [vmem:[%s487 + $0xb0] sm:$0xff] %vm577, %v9779
        %9812 = vst.msk [vmem:[%s487 + $0xb8] sm:$0xff] %vm577, %v9780
        %9813 = vst.msk [vmem:[%s487 + $0xc0] sm:$0xff] %vm577, %v9781
        %9814 = vst.msk [vmem:[%s487 + $0xc8] sm:$0xff] %vm577, %v9782
        %9815 = vst.msk [vmem:[%s487 + $0xd0] sm:$0xff] %vm577, %v9783
        %9816 = vst.msk [vmem:[%s487 + $0xd8] sm:$0xff] %vm577, %v9784
        %9817 = vst.msk [vmem:[%s487 + $0xe0] sm:$0xff] %vm577, %v9785
        %9818 = vst.msk [vmem:[%s487 + $0xe8] sm:$0xff] %vm577, %v9786
        %9819 = vst.msk [vmem:[%s487 + $0xf0] sm:$0xff] %vm577, %v9787
        %9820 = vst.msk [vmem:[%s487 + $0xf8] sm:$0xff] %vm577, %v9788
        %s9821 = sand.u32 %s338, 1
        %s9822 = scalar_lea.sflag [#allocation4], %s9821
        %s9823 = sand.u32 %s338, 1
        %s9824 = smul.addr %s9823, 256
        %s9825 = scalar_lea.vmem [#allocation5], %s9824
        // Predicated region
        $region81: #{patm_forward.1} parent=75 // pred_check
          %p9826 = pneg %p348
        $region82: #{patm_forward.1} parent=75 // pred_check_branch
          %9828 = sbr.rel (%p9826) target = $region84
        $region83: #{patm_forward.1} parent=75 // pred_region
          %9830 = vsyncadd %s9822, 0
          %s9831 = smul.addr %s31, 32
          %s9832 = smul.addr %s9831, 8
          %s9833 = scalar_lea.hbm %s14, %s9832
          %s9834 = sshll.u32 %s9825, 4
          %s9835 = int_to_ptr.vmem [resolvable:$true] %s9834
          %s9836 = sshll.u32 %s9833, 4
          %s9837 = int_to_ptr.hbm [resolvable:$true] %s9836
          %9842 = dma.vmem_to_hbm [thread:$0]  %s9835, 4096, %s9837, %s9822, 128, 128, 8
        $region84: #{patm_forward.1} parent=75 // pred_fallthru
          _
      $region76: #{patm_forward.1} parent=5 // pred_fallthru
        _
      %p9843 = scmp.le.s32.totalorder 2, %s26
      // Predicated region
      $region85: #{patm_forward.1} parent=5 // pred_check
        %p9844 = pneg %p9843
      $region86: #{patm_forward.1} parent=5 // pred_check_branch
        %9846 = sbr.rel (%p9844) target = $region88
      $region87: #{patm_forward.1} parent=5 // pred_region
        %s9847 = ssub.s32 %s26, 2
        // Predicated region
        $region89: #{patm_forward.1} parent=87 // pred_check
          %p9848 = pneg %p354
        $region90: #{patm_forward.1} parent=87 // pred_check_branch
          %9850 = sbr.rel (%p9848) target = $region92
        $region91: #{patm_forward.1} parent=87 // pred_region
          %s9851 = sand.u32 %s339, 1
          %s9852 = scalar_lea.sflag [#allocation4], %s9851
          %s9853 = sand.u32 %s339, 1
          %s9854 = smul.addr %s9853, 256
          %s9855 = scalar_lea.vmem [#allocation5], %s9854
          %9857 = dma.done %s9852, 4096
        $region92: #{patm_forward.1} parent=87 // pred_fallthru
          _
      $region88: #{patm_forward.1} parent=5 // pred_fallthru
        _
    $region6: #{patm_forward.1} parent=1 // loop_footer
      %s30 = sadd.s32 1, %s26
    $region7: #{patm_forward.1} parent=1 // loop_footer_branch
      %25 = sbr.rel target = $region3
    $region8: #{patm_forward.1} parent=1 // loop_exit
      _
    %9858 = vsyncpa [#allocation3], 1
    %s9859 = scalar_lea.sflag [#allocation3], 1
    %9860 = vsyncpa %s9859, 1
    %9861 = vsyncpa [#allocation4], 1
    %s9862 = scalar_lea.sflag [#allocation4], 1
    %9863 = vsyncpa %s9862, 1

</llo_original>
